<compile_context>
chip_gen: v7x
topology: tpu7x:2x2x1
jax: 0.10.0
libtpu: 0.0.40
codegen_flags: <defaults>
</compile_context>

<pallas_src>
import functools
import math

import jax
import jax.numpy as jnp
from jax import lax
from jax.experimental import pallas as pl
from jax.experimental.pallas import tpu as pltpu


def pointer_decoder_kernel(
    emb_ref, x0_ref, h0_ref, c0_ref, ctxin_ref,
    w_ih_ref, w_hh_ref, b_xh_ref, w_in_ref, b_in_ref, w_ctx_ref, b_ctx_ref,
    v_ref,
    out_ref, ptr_ref, hn_ref, cn_ref,
    ctx_vmem, embp_vmem,
    *, seq_len, loop_unroll,
):
    Bb, Lp, De = emb_ref.shape
    H = h0_ref.shape[1]
    H4 = w_hh_ref.shape[1]
    T = out_ref.shape[1]
    cdt = ctx_vmem.dtype                       # compute dtype (f32 or bf16)

    # ---- small weights loaded once (stay as values) --------------------------
    w_ih = w_ih_ref[...]                       # [De, 4H]
    w_hh = w_hh_ref[...]                       # [H, 4H]
    b_xh = b_xh_ref[...]                       # [1, 4H]  (b_ih + b_hh, f32)
    w_in = w_in_ref[...]                       # [H, H]
    b_in = b_in_ref[...]                       # [1, H]   (f32)
    v_c = v_ref[...].astype(cdt)               # [1, H]

    # ---- one-time projections, hoisted out of the serial decode loop --------
    # Conv1d(kernel_size=1) context projection -> VMEM scratch (read per step).
    ctx_vmem[...] = (
        jnp.dot(ctxin_ref[...].reshape(Bb * Lp, H), w_ctx_ref[...],
                preferred_element_type=jnp.float32)
        + b_ctx_ref[...]
    ).astype(cdt).reshape(Bb, Lp, H)
    # Pre-projected decoder inputs: emb @ W_ih + (b_ih + b_hh) -> VMEM scratch.
    embp_vmem[...] = (
        jnp.dot(emb_ref[...].reshape(Bb * Lp, De), w_ih,
                preferred_element_type=jnp.float32)
        + b_xh
    ).astype(cdt).reshape(Bb, Lp, H4)

    x0_proj = (jnp.dot(x0_ref[...].astype(cdt), w_ih,
                       preferred_element_type=jnp.float32) + b_xh)  # [Bb, 4H] f32

    lane_iota = lax.broadcasted_iota(jnp.int32, (Bb, Lp), 1)
    t_iota = lax.broadcasted_iota(jnp.int32, (Bb, T), 1)
    if seq_len < Lp:
        valid = lane_iota < seq_len            # structural (padding) lane mask

    def step(t, carry):
        x_proj, h_prev, c_prev, mask, ptrs = carry   # small state -> vregs

        # ---- LSTM cell (x already projected; K = H only) ---------------------
        gates = x_proj + jnp.dot(h_prev.astype(w_hh.dtype), w_hh,
                                 preferred_element_type=jnp.float32)
        # TODO(synk): at production sizes make H a multiple of 128 so these
        # lane slices are vreg-aligned (no XLU rotates).
        i_g = jax.nn.sigmoid(gates[:, 0 * H:1 * H])
        f_g = jax.nn.sigmoid(gates[:, 1 * H:2 * H])
        g_g = jnp.tanh(gates[:, 2 * H:3 * H])
        o_g = jax.nn.sigmoid(gates[:, 3 * H:4 * H])
        c_t = f_g * c_prev + i_g * g_g
        h_t = o_g * jnp.tanh(c_t)

        # ---- PointerAttention -------------------------------------------------
        inp = (jnp.dot(h_t.astype(w_in.dtype), w_in,
                       preferred_element_type=jnp.float32) + b_in)      # [Bb,H] f32
        ctx = ctx_vmem[...]                                             # [Bb,Lp,H]
        act = jnp.tanh(inp.astype(cdt)[:, None, :] + ctx)               # EUP, cdt
        energy = jnp.sum((act * v_c[None, :, :]).astype(jnp.float32),
                         axis=-1)                                       # [Bb,Lp] f32
        energy = jnp.where(mask == 0.0, jnp.float32(-10.0), energy)
        if seq_len < Lp:
            # structural pads contribute exactly 0 to both normalizations
            energy = jnp.where(valid, energy, jnp.float32(-1e30))

        # ---- pointer selection on PRE-softmax energy (argmax-invariant) ------
        sel = jnp.where(mask == 0.0, jnp.float32(-1e9), energy)
        mx = jnp.max(sel, axis=1, keepdims=True)
        idx = jnp.min(jnp.where(sel == mx, lane_iota, jnp.int32(Lp)),
                      axis=1, keepdims=True)                            # [Bb,1]
        one_hot = (lane_iota == idx).astype(jnp.float32)                # [Bb,Lp]

        # ---- softmax then log_softmax (double normalization, as reference) ---
        m_e = jnp.max(energy, axis=1, keepdims=True)
        ex = jnp.exp(energy - m_e)
        s = jnp.sum(ex, axis=1, keepdims=True)
        r = pl.reciprocal(s, approx=True)
        r = r * (2.0 - s * r)                 # one Newton step -> f32 accuracy
        alpha = ex * r
        if seq_len < Lp:
            alpha = jnp.where(valid, alpha, jnp.float32(-1e30))
        m_a = jnp.max(alpha, axis=1, keepdims=True)
        lse = jnp.log(jnp.sum(jnp.exp(alpha - m_a), axis=1, keepdims=True))
        step_out = alpha - m_a - lse                                    # [Bb,Lp]

        # lane-dense store (Lp is a multiple of 128), final (B,T,L) layout
        out_ref[:, pl.ds(t, 1), :] = step_out[:, None, :].astype(out_ref.dtype)

        # pointers staged in the carry; single store after the loop
        ptrs = jnp.where(t_iota == t, idx, ptrs)

        new_mask = mask * (1.0 - one_hot)                               # masking=True
        # next decoder input, already projected through W_ih (+ folded bias)
        new_x_proj = jnp.sum(
            one_hot[:, :, None] * embp_vmem[...], axis=1).astype(jnp.float32)
        return (new_x_proj, h_t, c_t, new_mask, ptrs)

    init = (x0_proj, h0_ref[...], c0_ref[...],
            jnp.ones((Bb, Lp), jnp.float32),
            jnp.zeros((Bb, T), jnp.int32))
    _, h_f, c_f, _, ptrs_f = lax.fori_loop(0, T, step, init, unroll=loop_unroll)

    hn_ref[...] = h_f
    cn_ref[...] = c_f
    ptr_ref[...] = ptrs_f


def pointer_decoder_forward(embedded_inputs, decoder_input, h0, c0, context,
                            params, output_length=None, batch_block=None,
                            compute_dtype=jnp.float32):
    B, L, De = embedded_inputs.shape
    H = h0.shape[1]
    T = int(output_length) if output_length is not None else L
    cdt = jnp.dtype(compute_dtype)

    # ---- lane-dense attention length: pad L to a multiple of 128 ------------
    Lp = max(128, ((L + 127) // 128) * 128)
    emb_p = embedded_inputs.astype(cdt)
    ctx_p = context.astype(cdt)
    if Lp != L:
        emb_p = jnp.pad(emb_p, ((0, 0), (0, Lp - L), (0, 0)))
        ctx_p = jnp.pad(ctx_p, ((0, 0), (0, Lp - L), (0, 0)))

    # ---- batch tiling: nb >= 2 when possible (both v7x TensorCores) ---------
    if batch_block is None:
        bb = B // 2 if (B % 16 == 0) else B
    else:
        bb = int(batch_block)
    assert B % bb == 0 and (bb == B or bb % 8 == 0), (
        "batch_block must divide B and be a multiple of 8 (sublane constraint)")
    nb = B // bb

    # ---- parameters (biases folded once; weights in compute dtype) ----------
    w_ih = params["w_ih"].astype(cdt)
    w_hh = params["w_hh"].astype(cdt)
    b_xh = (params["b_ih"] + params["b_hh"]).astype(jnp.float32)
    w_in = params["w_in"].astype(cdt)
    b_in = params["b_in"].astype(jnp.float32)
    w_ctx = params["w_ctx"].astype(cdt)
    b_ctx = params["b_ctx"].astype(jnp.float32)
    v = params["v"].astype(cdt)

    args = (emb_p, decoder_input.astype(jnp.float32), h0.astype(jnp.float32),
            c0.astype(jnp.float32), ctx_p,
            w_ih, w_hh, b_xh, w_in, b_in, w_ctx, b_ctx, v)

    out_shapes = (
        jax.ShapeDtypeStruct((B, T, Lp), jnp.float32),  # log-probs (final layout)
        jax.ShapeDtypeStruct((B, T), jnp.int32),        # pointers
        jax.ShapeDtypeStruct((B, H), jnp.float32),      # final h
        jax.ShapeDtypeStruct((B, H), jnp.float32),      # final c
    )

    def batched(shape):
        n = len(shape)
        blk = (bb,) + tuple(shape[1:])
        return pl.BlockSpec(blk, lambda b, _k=n - 1: (b,) + (0,) * _k)

    def full(shape):
        n = len(shape)
        return pl.BlockSpec(tuple(shape), lambda b, _n=n: (0,) * _n)

    in_specs = [
        batched(emb_p.shape), batched(decoder_input.shape),
        batched(h0.shape), batched(c0.shape), batched(ctx_p.shape),
        full(w_ih.shape), full(w_hh.shape), full(b_xh.shape),
        full(w_in.shape), full(b_in.shape),
        full(w_ctx.shape), full(b_ctx.shape), full(v.shape),
    ]
    out_specs = (
        pl.BlockSpec((bb, T, Lp), lambda b: (b, 0, 0)),
        pl.BlockSpec((bb, T), lambda b: (b, 0)),
        pl.BlockSpec((bb, H), lambda b: (b, 0)),
        pl.BlockSpec((bb, H), lambda b: (b, 0)),
    )
    scratch_shapes = [
        pltpu.VMEM((bb, Lp, H), cdt),         # projected context
        pltpu.VMEM((bb, Lp, 4 * H), cdt),     # pre-projected decoder inputs
    ]

    # ---- VMEM budget: tile footprint (double-buffered) + scratch, <= 48 MiB --
    def _nb(shape, dt):
        return math.prod(shape) * jnp.dtype(dt).itemsize
    tile_in = (_nb((bb, Lp, De), cdt) + _nb((bb, Lp, H), cdt)
               + _nb((bb, De), jnp.float32) + 2 * _nb((bb, H), jnp.float32))
    weights = (_nb(w_ih.shape, cdt) + _nb(w_hh.shape, cdt)
               + _nb(b_xh.shape, jnp.float32) + _nb(w_in.shape, cdt)
               + _nb(b_in.shape, jnp.float32) + _nb(w_ctx.shape, cdt)
               + _nb(b_ctx.shape, jnp.float32) + _nb(v.shape, cdt))
    tile_out = (_nb((bb, T, Lp), jnp.float32) + _nb((bb, T), jnp.int32)
                + 2 * _nb((bb, H), jnp.float32))
    scratch = _nb((bb, Lp, H), cdt) + _nb((bb, Lp, 4 * H), cdt)
    est = 2 * (tile_in + tile_out) + weights + scratch
    vmem_limit = int(min(48 * 1024 * 1024, max(16 * 1024 * 1024, 2 * est)))

    kernel = functools.partial(pointer_decoder_kernel,
                               seq_len=L,
                               loop_unroll=(T if T <= 8 else 2))

    outs, ptrs, hn, cn = pl.pallas_call(
        kernel,
        out_shape=out_shapes,
        grid=(nb,),
        in_specs=in_specs,
        out_specs=out_specs,
        scratch_shapes=scratch_shapes,
        compiler_params=pltpu.CompilerParams(
            dimension_semantics=("parallel",),
            vmem_limit_bytes=vmem_limit),
    )(*args)

    outputs = outs[:, :, :L] if Lp != L else outs     # [B, T, L]
    return (outputs, ptrs), (hn, cn)


def reference_forward(emb, x0, h0, c0, context, p):
    """Pure-JAX replica of the PyTorch forward (for correctness check)."""
    B, L, De = emb.shape
    H = h0.shape[1]
    ctx = jnp.einsum("blh,hk->blk", context, p["w_ctx"]) + p["b_ctx"]
    mask = jnp.ones((B, L), jnp.float32)
    x, h, c = x0, h0, c0
    outs, ptrs = [], []
    for _ in range(L):
        gates = x @ p["w_ih"] + p["b_ih"] + h @ p["w_hh"] + p["b_hh"]
        i_g = jax.nn.sigmoid(gates[:, :H])
        f_g = jax.nn.sigmoid(gates[:, H:2 * H])
        g_g = jnp.tanh(gates[:, 2 * H:3 * H])
        o_g = jax.nn.sigmoid(gates[:, 3 * H:])
        c = f_g * c + i_g * g_g
        h = o_g * jnp.tanh(c)
        inp = h @ p["w_in"] + p["b_in"]
        energy = jnp.sum(jnp.tanh(inp[:, None, :] + ctx) * p["v"][None, :, :], axis=-1)
        energy = jnp.where(mask == 0.0, -10.0, energy)
        alpha = jax.nn.softmax(energy, axis=-1)
        step_out = jax.nn.log_softmax(alpha, axis=-1)
        masked = jnp.where(mask == 0.0, -1e9, step_out)
        idx = jnp.argmax(masked, axis=1)
        one_hot = (jnp.arange(L)[None, :] == idx[:, None]).astype(jnp.float32)
        mask = mask * (1.0 - one_hot)
        x = jnp.sum(one_hot[:, :, None] * emb, axis=1)
        outs.append(step_out)
        ptrs.append(idx)
    return (jnp.stack(outs, 1), jnp.stack(ptrs, 1).astype(jnp.int32), h, c)


if __name__ == "__main__":
    B, L, D_EMB, H = 2, 8, 16, 32
    key = jax.random.PRNGKey(0)
    ks = jax.random.split(key, 16)

    def u(k, shape, lo=-0.1, hi=0.1):
        return jax.random.uniform(k, shape, jnp.float32, lo, hi)

    # deterministic synthetic parameters (shapes from PointerDecoder.__init__)
    params = dict(
        w_ih=u(ks[0], (D_EMB, 4 * H)), b_ih=u(ks[1], (1, 4 * H)),   # input_to_hidden
        w_hh=u(ks[2], (H, 4 * H)),     b_hh=u(ks[3], (1, 4 * H)),   # hidden_to_hidden
        w_in=u(ks[4], (H, H)),         b_in=u(ks[5], (1, H)),       # att.input_linear
        w_ctx=u(ks[6], (H, H)),        b_ctx=u(ks[7], (1, H)),      # att.context_linear (Conv1d k=1)
        v=u(ks[8], (1, H), -1.0, 1.0),                              # att.V  ~ U(-1, 1)
    )
    # TODO(synk): hidden_out / MAB parameters exist in __init__ but their
    # outputs are unused by the forward pass, so they are not materialized.

    embedded_inputs = u(ks[9], (B, L, D_EMB), -1.0, 1.0)
    decoder_input = u(ks[10], (B, D_EMB), -1.0, 1.0)
    h0 = u(ks[11], (B, H), -1.0, 1.0)
    c0 = u(ks[12], (B, H), -1.0, 1.0)
    context = u(ks[13], (B, L, H), -1.0, 1.0)

    (outputs, pointers), (hn, cn) = pointer_decoder_forward(
        embedded_inputs, decoder_input, h0, c0, context, params)
    jax.block_until_ready((outputs, pointers, hn, cn))

    ro, rp, rh, rc = reference_forward(
        embedded_inputs, decoder_input, h0, c0, context, params)

    assert outputs.shape == (B, L, L) and pointers.shape == (B, L)
    assert jnp.allclose(outputs, ro, atol=2e-3, rtol=2e-3)
    assert jnp.array_equal(pointers, rp)
    assert jnp.allclose(hn, rh, atol=2e-3) and jnp.allclose(cn, rc, atol=2e-3)

    # Optional bf16 smoke run (recommended production path on v6e/v7x); skipped
    # silently on generations without bf16 elementwise support (e.g. v5e).
    try:
        (o_bf, p_bf), _ = pointer_decoder_forward(
            embedded_inputs, decoder_input, h0, c0, context, params,
            compute_dtype=jnp.bfloat16)
        jax.block_until_ready((o_bf, p_bf))
        assert o_bf.shape == (B, L, L) and p_bf.shape == (B, L)
    except Exception:
        pass

    print("KERNEL_OK")
</pallas_src>

<mosaic_0001>
module attributes {stable_mosaic.version = 11 : i64} {
  func.func @pointer_decoder_kernel(%arg0: i32, %arg1: memref<2x128x16xf32, #tpu.memory_space<vmem>>, %arg2: memref<2x16xf32, #tpu.memory_space<vmem>>, %arg3: memref<2x32xf32, #tpu.memory_space<vmem>>, %arg4: memref<2x32xf32, #tpu.memory_space<vmem>>, %arg5: memref<2x128x32xf32, #tpu.memory_space<vmem>>, %arg6: memref<16x128xf32, #tpu.memory_space<vmem>>, %arg7: memref<32x128xf32, #tpu.memory_space<vmem>>, %arg8: memref<1x128xf32, #tpu.memory_space<vmem>>, %arg9: memref<32x32xf32, #tpu.memory_space<vmem>>, %arg10: memref<1x32xf32, #tpu.memory_space<vmem>>, %arg11: memref<32x32xf32, #tpu.memory_space<vmem>>, %arg12: memref<1x32xf32, #tpu.memory_space<vmem>>, %arg13: memref<1x32xf32, #tpu.memory_space<vmem>>, %arg14: memref<2x8x128xf32, #tpu.memory_space<vmem>>, %arg15: memref<2x8xi32, #tpu.memory_space<vmem>>, %arg16: memref<2x32xf32, #tpu.memory_space<vmem>>, %arg17: memref<2x32xf32, #tpu.memory_space<vmem>>, %arg18: memref<2x128x32xf32, #tpu.memory_space<vmem>>, %arg19: memref<2x128x128xf32, #tpu.memory_space<vmem>>) attributes {dimension_semantics = [#tpu.dimension_semantics<parallel>], iteration_bounds = array<i64: 1>, scalar_prefetch = 0 : i64, scratch_operands = 2 : i64, tpu.core_type = #tpu.core_type<tc>, window_params = [{transform_indices = @transform_0, window_bounds = array<i64: 2, 128, 16>}, {transform_indices = @transform_1, window_bounds = array<i64: 2, 16>}, {transform_indices = @transform_2, window_bounds = array<i64: 2, 32>}, {transform_indices = @transform_3, window_bounds = array<i64: 2, 32>}, {transform_indices = @transform_4, window_bounds = array<i64: 2, 128, 32>}, {pipeline_mode = #tpu.pipeline_mode<synchronous>, transform_indices = @transform_5, window_bounds = array<i64: 16, 128>}, {pipeline_mode = #tpu.pipeline_mode<synchronous>, transform_indices = @transform_6, window_bounds = array<i64: 32, 128>}, {pipeline_mode = #tpu.pipeline_mode<synchronous>, transform_indices = @transform_7, window_bounds = array<i64: 1, 128>}, {pipeline_mode = #tpu.pipeline_mode<synchronous>, transform_indices = @transform_8, window_bounds = array<i64: 32, 32>}, {pipeline_mode = #tpu.pipeline_mode<synchronous>, transform_indices = @transform_9, window_bounds = array<i64: 1, 32>}, {pipeline_mode = #tpu.pipeline_mode<synchronous>, transform_indices = @transform_10, window_bounds = array<i64: 32, 32>}, {pipeline_mode = #tpu.pipeline_mode<synchronous>, transform_indices = @transform_11, window_bounds = array<i64: 1, 32>}, {pipeline_mode = #tpu.pipeline_mode<synchronous>, transform_indices = @transform_12, window_bounds = array<i64: 1, 32>}, {transform_indices = @transform_13, window_bounds = array<i64: 2, 8, 128>}, {transform_indices = @transform_14, window_bounds = array<i64: 2, 8>}, {transform_indices = @transform_15, window_bounds = array<i64: 2, 32>}, {transform_indices = @transform_16, window_bounds = array<i64: 2, 32>}]} {
    %c0 = arith.constant 0 : index
    %c0_0 = arith.constant 0 : index
    %0 = vector.load %arg6[%c0, %c0_0] : memref<16x128xf32, #tpu.memory_space<vmem>>, vector<16x128xf32>
    %c0_1 = arith.constant 0 : index
    %c0_2 = arith.constant 0 : index
    %1 = vector.load %arg7[%c0_1, %c0_2] : memref<32x128xf32, #tpu.memory_space<vmem>>, vector<32x128xf32>
    %c0_3 = arith.constant 0 : index
    %c0_4 = arith.constant 0 : index
    %2 = vector.load %arg8[%c0_3, %c0_4] : memref<1x128xf32, #tpu.memory_space<vmem>>, vector<1x128xf32>
    %c0_5 = arith.constant 0 : index
    %c0_6 = arith.constant 0 : index
    %3 = vector.load %arg9[%c0_5, %c0_6] : memref<32x32xf32, #tpu.memory_space<vmem>>, vector<32x32xf32>
    %c0_7 = arith.constant 0 : index
    %c0_8 = arith.constant 0 : index
    %4 = vector.load %arg10[%c0_7, %c0_8] : memref<1x32xf32, #tpu.memory_space<vmem>>, vector<1x32xf32>
    %c0_9 = arith.constant 0 : index
    %c0_10 = arith.constant 0 : index
    %5 = vector.load %arg13[%c0_9, %c0_10] : memref<1x32xf32, #tpu.memory_space<vmem>>, vector<1x32xf32>
    %c0_11 = arith.constant 0 : index
    %c0_12 = arith.constant 0 : index
    %c0_13 = arith.constant 0 : index
    %6 = vector.load %arg5[%c0_11, %c0_12, %c0_13] : memref<2x128x32xf32, #tpu.memory_space<vmem>>, vector<2x128x32xf32>
    %7 = vector.shape_cast %6 : vector<2x128x32xf32> to vector<256x32xf32>
    %c0_14 = arith.constant 0 : index
    %c0_15 = arith.constant 0 : index
    %8 = vector.load %arg11[%c0_14, %c0_15] : memref<32x32xf32, #tpu.memory_space<vmem>>, vector<32x32xf32>
    %cst = arith.constant dense<0.000000e+00> : vector<256x32xf32>
    %9 = tpu.matmul %7, %8, %cst {dimension_numbers = #tpu.dot_dimension_numbers<[1], [0], [0], [1], [0, 0, 1, 1], [], []>} : vector<256x32xf32>, vector<32x32xf32>, vector<256x32xf32> -> vector<256x32xf32>
    %c0_16 = arith.constant 0 : index
    %c0_17 = arith.constant 0 : index
    %10 = vector.load %arg12[%c0_16, %c0_17] : memref<1x32xf32, #tpu.memory_space<vmem>>, vector<1x32xf32>
    %11 = vector.broadcast %10 : vector<1x32xf32> to vector<256x32xf32>
    %12 = arith.addf %9, %11 : vector<256x32xf32>
    %13 = vector.shape_cast %12 : vector<256x32xf32> to vector<2x128x32xf32>
    %c0_18 = arith.constant 0 : index
    %c0_19 = arith.constant 0 : index
    %c0_20 = arith.constant 0 : index
    %14 = vector.load %arg18[%c0_18, %c0_19, %c0_20] : memref<2x128x32xf32, #tpu.memory_space<vmem>>, vector<2x128x32xf32>
    tpu.vector_store %arg18[%c0_18, %c0_19, %c0_20], %13 {strides = array<i32>} : memref<2x128x32xf32, #tpu.memory_space<vmem>>, vector<2x128x32xf32>,
    %c0_21 = arith.constant 0 : index
    %c0_22 = arith.constant 0 : index
    %c0_23 = arith.constant 0 : index
    %15 = vector.load %arg1[%c0_21, %c0_22, %c0_23] : memref<2x128x16xf32, #tpu.memory_space<vmem>>, vector<2x128x16xf32>
    %16 = vector.shape_cast %15 : vector<2x128x16xf32> to vector<256x16xf32>
    %cst_24 = arith.constant dense<0.000000e+00> : vector<256x128xf32>
    %17 = tpu.matmul %16, %0, %cst_24 {dimension_numbers = #tpu.dot_dimension_numbers<[1], [0], [0], [1], [0, 0, 1, 1], [], []>} : vector<256x16xf32>, vector<16x128xf32>, vector<256x128xf32> -> vector<256x128xf32>
    %18 = vector.broadcast %2 : vector<1x128xf32> to vector<256x128xf32>
    %19 = arith.addf %17, %18 : vector<256x128xf32>
    %20 = vector.shape_cast %19 : vector<256x128xf32> to vector<2x128x128xf32>
    %c0_25 = arith.constant 0 : index
    %c0_26 = arith.constant 0 : index
    %c0_27 = arith.constant 0 : index
    %21 = vector.load %arg19[%c0_25, %c0_26, %c0_27] : memref<2x128x128xf32, #tpu.memory_space<vmem>>, vector<2x128x128xf32>
    tpu.vector_store %arg19[%c0_25, %c0_26, %c0_27], %20 {strides = array<i32>} : memref<2x128x128xf32, #tpu.memory_space<vmem>>, vector<2x128x128xf32>,
    %c0_28 = arith.constant 0 : index
    %c0_29 = arith.constant 0 : index
    %22 = vector.load %arg2[%c0_28, %c0_29] : memref<2x16xf32, #tpu.memory_space<vmem>>, vector<2x16xf32>
    %cst_30 = arith.constant dense<0.000000e+00> : vector<2x128xf32>
    %23 = tpu.matmul %22, %0, %cst_30 {dimension_numbers = #tpu.dot_dimension_numbers<[1], [0], [0], [1], [0, 0, 1, 1], [], []>} : vector<2x16xf32>, vector<16x128xf32>, vector<2x128xf32> -> vector<2x128xf32>
    %24 = vector.broadcast %2 : vector<1x128xf32> to vector<2x128xf32>
    %25 = arith.addf %23, %24 : vector<2x128xf32>
    %26 = tpu.iota {dimensions = array<i32: 1>} : vector<2x128xi32>
    %27 = tpu.iota {dimensions = array<i32: 1>} : vector<2x8xi32>
    %c8_i32 = arith.constant 8 : i32
    %28 = vector.broadcast %c8_i32 : i32 to vector<2x128xi32>
    %29 = arith.cmpi slt, %26, %28 : vector<2x128xi32>
    %c0_31 = arith.constant 0 : index
    %c0_32 = arith.constant 0 : index
    %30 = vector.load %arg3[%c0_31, %c0_32] : memref<2x32xf32, #tpu.memory_space<vmem>>, vector<2x32xf32>
    %c0_33 = arith.constant 0 : index
    %c0_34 = arith.constant 0 : index
    %31 = vector.load %arg4[%c0_33, %c0_34] : memref<2x32xf32, #tpu.memory_space<vmem>>, vector<2x32xf32>
    %cst_35 = arith.constant 1.000000e+00 : f32
    %32 = vector.broadcast %cst_35 : f32 to vector<2x128xf32>
    %c0_i32 = arith.constant 0 : i32
    %33 = vector.broadcast %c0_i32 : i32 to vector<2x8xi32>
    %c0_i32_36 = arith.constant 0 : i32
    %cst_37 = arith.constant dense<0.000000e+00> : vector<2x128xf32>
    %34 = tpu.matmul %30, %1, %cst_37 {dimension_numbers = #tpu.dot_dimension_numbers<[1], [0], [0], [1], [0, 0, 1, 1], [], []>} : vector<2x32xf32>, vector<32x128xf32>, vector<2x128xf32> -> vector<2x128xf32>
    %35 = arith.addf %25, %34 : vector<2x128xf32>
    %36 = vector.extract_strided_slice %35 {offsets = [0, 0], sizes = [2, 32], strides = [1, 1]} : vector<2x128xf32> to vector<2x32xf32>
    %37 = arith.negf %36 : vector<2x32xf32>
    %38 = math.exp %37 : vector<2x32xf32>
    %cst_38 = arith.constant 1.000000e+00 : f32
    %39 = vector.broadcast %cst_38 : f32 to vector<2x32xf32>
    %40 = arith.addf %39, %38 : vector<2x32xf32>
    %41 = arith.divf %39, %40 : vector<2x32xf32>
    %42 = vector.extract_strided_slice %35 {offsets = [0, 32], sizes = [2, 32], strides = [1, 1]} : vector<2x128xf32> to vector<2x32xf32>
    %43 = arith.negf %42 : vector<2x32xf32>
    %44 = math.exp %43 : vector<2x32xf32>
    %cst_39 = arith.constant 1.000000e+00 : f32
    %45 = vector.broadcast %cst_39 : f32 to vector<2x32xf32>
    %46 = arith.addf %45, %44 : vector<2x32xf32>
    %47 = arith.divf %45, %46 : vector<2x32xf32>
    %48 = vector.extract_strided_slice %35 {offsets = [0, 64], sizes = [2, 32], strides = [1, 1]} : vector<2x128xf32> to vector<2x32xf32>
    %49 = math.tanh %48 : vector<2x32xf32>
    %50 = vector.extract_strided_slice %35 {offsets = [0, 96], sizes = [2, 32], strides = [1, 1]} : vector<2x128xf32> to vector<2x32xf32>
    %51 = arith.negf %50 : vector<2x32xf32>
    %52 = math.exp %51 : vector<2x32xf32>
    %cst_40 = arith.constant 1.000000e+00 : f32
    %53 = vector.broadcast %cst_40 : f32 to vector<2x32xf32>
    %54 = arith.addf %53, %52 : vector<2x32xf32>
    %55 = arith.divf %53, %54 : vector<2x32xf32>
    %56 = arith.mulf %47, %31 : vector<2x32xf32>
    %57 = arith.mulf %41, %49 : vector<2x32xf32>
    %58 = arith.addf %56, %57 : vector<2x32xf32>
    %59 = math.tanh %58 : vector<2x32xf32>
    %60 = arith.mulf %55, %59 : vector<2x32xf32>
    %cst_41 = arith.constant dense<0.000000e+00> : vector<2x32xf32>
    %61 = tpu.matmul %60, %3, %cst_41 {dimension_numbers = #tpu.dot_dimension_numbers<[1], [0], [0], [1], [0, 0, 1, 1], [], []>} : vector<2x32xf32>, vector<32x32xf32>, vector<2x32xf32> -> vector<2x32xf32>
    %62 = vector.broadcast %4 : vector<1x32xf32> to vector<2x32xf32>
    %63 = arith.addf %61, %62 : vector<2x32xf32>
    %c0_42 = arith.constant 0 : index
    %c0_43 = arith.constant 0 : index
    %c0_44 = arith.constant 0 : index
    %64 = vector.load %arg18[%c0_42, %c0_43, %c0_44] : memref<2x128x32xf32, #tpu.memory_space<vmem>>, vector<2x128x32xf32>
    %65 = vector.shape_cast %63 : vector<2x32xf32> to vector<2x1x32xf32>
    %66 = vector.broadcast %65 : vector<2x1x32xf32> to vector<2x128x32xf32>
    %67 = arith.addf %66, %64 : vector<2x128x32xf32>
    %68 = math.tanh %67 : vector<2x128x32xf32>
    %69 = vector.shape_cast %5 : vector<1x32xf32> to vector<1x1x32xf32>
    %70 = vector.broadcast %69 : vector<1x1x32xf32> to vector<2x128x32xf32>
    %71 = arith.mulf %68, %70 : vector<2x128x32xf32>
    %cst_45 = arith.constant dense<0.000000e+00> : vector<2x128xf32>
    %72 = vector.multi_reduction <add>, %71, %cst_45 [2] : vector<2x128x32xf32> to vector<2x128xf32>
    %cst_46 = arith.constant 0.000000e+00 : f32
    %73 = vector.broadcast %cst_46 : f32 to vector<2x128xf32>
    %74 = arith.cmpf oeq, %32, %73 : vector<2x128xf32>
    %cst_47 = arith.constant -1.000000e+01 : f32
    %75 = vector.broadcast %cst_47 : f32 to vector<2x128xf32>
    %76 = arith.select %74, %75, %72 : vector<2x128xi1>, vector<2x128xf32>
    %cst_48 = arith.constant -1.000000e+30 : f32
    %77 = vector.broadcast %cst_48 : f32 to vector<2x128xf32>
    %78 = arith.select %29, %76, %77 : vector<2x128xi1>, vector<2x128xf32>
    %cst_49 = arith.constant 0.000000e+00 : f32
    %79 = vector.broadcast %cst_49 : f32 to vector<2x128xf32>
    %80 = arith.cmpf oeq, %32, %79 : vector<2x128xf32>
    %cst_50 = arith.constant -1.000000e+09 : f32
    %81 = vector.broadcast %cst_50 : f32 to vector<2x128xf32>
    %82 = arith.select %80, %81, %78 : vector<2x128xi1>, vector<2x128xf32>
    %cst_51 = arith.constant dense<0xFF800000> : vector<2xf32>
    %83 = vector.multi_reduction <maximumf>, %82, %cst_51 [1] : vector<2x128xf32> to vector<2xf32>
    %84 = vector.shape_cast %83 : vector<2xf32> to vector<2x1xf32>
    %85 = vector.broadcast %84 : vector<2x1xf32> to vector<2x128xf32>
    %86 = arith.cmpf oeq, %82, %85 : vector<2x128xf32>
    %c128_i32 = arith.constant 128 : i32
    %87 = vector.broadcast %c128_i32 : i32 to vector<2x128xi32>
    %88 = arith.select %86, %26, %87 : vector<2x128xi1>, vector<2x128xi32>
    %cst_52 = arith.constant dense<2147483647> : vector<2xi32>
    %89 = vector.multi_reduction <minsi>, %88, %cst_52 [1] : vector<2x128xi32> to vector<2xi32>
    %90 = vector.shape_cast %89 : vector<2xi32> to vector<2x1xi32>
    %91 = vector.broadcast %90 : vector<2x1xi32> to vector<2x128xi32>
    %92 = arith.cmpi eq, %26, %91 : vector<2x128xi32>
    %93 = arith.extui %92 : vector<2x128xi1> to vector<2x128xi32>
    %94 = arith.sitofp %93 : vector<2x128xi32> to vector<2x128xf32>
    %cst_53 = arith.constant dense<0xFF800000> : vector<2xf32>
    %95 = vector.multi_reduction <maximumf>, %78, %cst_53 [1] : vector<2x128xf32> to vector<2xf32>
    %96 = vector.shape_cast %95 : vector<2xf32> to vector<2x1xf32>
    %97 = vector.broadcast %96 : vector<2x1xf32> to vector<2x128xf32>
    %98 = arith.subf %78, %97 : vector<2x128xf32>
    %99 = math.exp %98 : vector<2x128xf32>
    %cst_54 = arith.constant dense<0.000000e+00> : vector<2xf32>
    %100 = vector.multi_reduction <add>, %99, %cst_54 [1] : vector<2x128xf32> to vector<2xf32>
    %101 = vector.shape_cast %100 : vector<2xf32> to vector<2x1xf32>
    %102 = tpu.reciprocal %101 {approx = true} : vector<2x1xf32> -> vector<2x1xf32>
    %103 = arith.mulf %101, %102 : vector<2x1xf32>
    %cst_55 = arith.constant 2.000000e+00 : f32
    %104 = vector.broadcast %cst_55 : f32 to vector<2x1xf32>
    %105 = arith.subf %104, %103 : vector<2x1xf32>
    %106 = arith.mulf %102, %105 : vector<2x1xf32>
    %107 = vector.broadcast %106 : vector<2x1xf32> to vector<2x128xf32>
    %108 = arith.mulf %99, %107 : vector<2x128xf32>
    %cst_56 = arith.constant -1.000000e+30 : f32
    %109 = vector.broadcast %cst_56 : f32 to vector<2x128xf32>
    %110 = arith.select %29, %108, %109 : vector<2x128xi1>, vector<2x128xf32>
    %cst_57 = arith.constant dense<0xFF800000> : vector<2xf32>
    %111 = vector.multi_reduction <maximumf>, %110, %cst_57 [1] : vector<2x128xf32> to vector<2xf32>
    %112 = vector.shape_cast %111 : vector<2xf32> to vector<2x1xf32>
    %113 = vector.broadcast %112 : vector<2x1xf32> to vector<2x128xf32>
    %114 = arith.subf %110, %113 : vector<2x128xf32>
    %115 = math.exp %114 : vector<2x128xf32>
    %cst_58 = arith.constant dense<0.000000e+00> : vector<2xf32>
    %116 = vector.multi_reduction <add>, %115, %cst_58 [1] : vector<2x128xf32> to vector<2xf32>
    %117 = vector.shape_cast %116 : vector<2xf32> to vector<2x1xf32>
    %118 = math.log %117 : vector<2x1xf32>
    %119 = vector.broadcast %112 : vector<2x1xf32> to vector<2x128xf32>
    %120 = arith.subf %110, %119 : vector<2x128xf32>
    %121 = vector.broadcast %118 : vector<2x1xf32> to vector<2x128xf32>
    %122 = arith.subf %120, %121 : vector<2x128xf32>
    %123 = vector.shape_cast %122 : vector<2x128xf32> to vector<2x1x128xf32>
    %c0_59 = arith.constant 0 : index
    %124 = arith.index_cast %c0_i32_36 : i32 to index
    %c0_60 = arith.constant 0 : index
    %125 = vector.load %arg14[%c0_59, %124, %c0_60] : memref<2x8x128xf32, #tpu.memory_space<vmem>>, vector<2x1x128xf32>
    tpu.vector_store %arg14[%c0_59, %124, %c0_60], %123 {strides = array<i32>} : memref<2x8x128xf32, #tpu.memory_space<vmem>>, vector<2x1x128xf32>,
    %126 = vector.broadcast %c0_i32_36 : i32 to vector<2x8xi32>
    %127 = arith.cmpi eq, %27, %126 : vector<2x8xi32>
    %128 = vector.shape_cast %90 : vector<2x1xi32> to vector<2x1xi32>
    %129 = vector.broadcast %128 : vector<2x1xi32> to vector<2x8xi32>
    %130 = arith.select %127, %129, %33 : vector<2x8xi1>, vector<2x8xi32>
    %cst_61 = arith.constant 1.000000e+00 : f32
    %131 = vector.broadcast %cst_61 : f32 to vector<2x128xf32>
    %132 = arith.subf %131, %94 : vector<2x128xf32>
    %133 = arith.mulf %32, %132 : vector<2x128xf32>
    %134 = vector.shape_cast %94 : vector<2x128xf32> to vector<2x128x1xf32>
    %c0_62 = arith.constant 0 : index
    %c0_63 = arith.constant 0 : index
    %c0_64 = arith.constant 0 : index
    %135 = vector.load %arg19[%c0_62, %c0_63, %c0_64] : memref<2x128x128xf32, #tpu.memory_space<vmem>>, vector<2x128x128xf32>
    %136 = vector.broadcast %134 : vector<2x128x1xf32> to vector<2x128x128xf32>
    %137 = arith.mulf %136, %135 : vector<2x128x128xf32>
    %cst_65 = arith.constant dense<0.000000e+00> : vector<2x128xf32>
    %138 = vector.multi_reduction <add>, %137, %cst_65 [1] : vector<2x128x128xf32> to vector<2x128xf32>
    %c1_i32 = arith.constant 1 : i32
    %cst_66 = arith.constant dense<0.000000e+00> : vector<2x128xf32>
    %139 = tpu.matmul %60, %1, %cst_66 {dimension_numbers = #tpu.dot_dimension_numbers<[1], [0], [0], [1], [0, 0, 1, 1], [], []>} : vector<2x32xf32>, vector<32x128xf32>, vector<2x128xf32> -> vector<2x128xf32>
    %140 = arith.addf %138, %139 : vector<2x128xf32>
    %141 = vector.extract_strided_slice %140 {offsets = [0, 0], sizes = [2, 32], strides = [1, 1]} : vector<2x128xf32> to vector<2x32xf32>
    %142 = arith.negf %141 : vector<2x32xf32>
    %143 = math.exp %142 : vector<2x32xf32>
    %cst_67 = arith.constant 1.000000e+00 : f32
    %144 = vector.broadcast %cst_67 : f32 to vector<2x32xf32>
    %145 = arith.addf %144, %143 : vector<2x32xf32>
    %146 = arith.divf %144, %145 : vector<2x32xf32>
    %147 = vector.extract_strided_slice %140 {offsets = [0, 32], sizes = [2, 32], strides = [1, 1]} : vector<2x128xf32> to vector<2x32xf32>
    %148 = arith.negf %147 : vector<2x32xf32>
    %149 = math.exp %148 : vector<2x32xf32>
    %cst_68 = arith.constant 1.000000e+00 : f32
    %150 = vector.broadcast %cst_68 : f32 to vector<2x32xf32>
    %151 = arith.addf %150, %149 : vector<2x32xf32>
    %152 = arith.divf %150, %151 : vector<2x32xf32>
    %153 = vector.extract_strided_slice %140 {offsets = [0, 64], sizes = [2, 32], strides = [1, 1]} : vector<2x128xf32> to vector<2x32xf32>
    %154 = math.tanh %153 : vector<2x32xf32>
    %155 = vector.extract_strided_slice %140 {offsets = [0, 96], sizes = [2, 32], strides = [1, 1]} : vector<2x128xf32> to vector<2x32xf32>
    %156 = arith.negf %155 : vector<2x32xf32>
    %157 = math.exp %156 : vector<2x32xf32>
    %cst_69 = arith.constant 1.000000e+00 : f32
    %158 = vector.broadcast %cst_69 : f32 to vector<2x32xf32>
    %159 = arith.addf %158, %157 : vector<2x32xf32>
    %160 = arith.divf %158, %159 : vector<2x32xf32>
    %161 = arith.mulf %152, %58 : vector<2x32xf32>
    %162 = arith.mulf %146, %154 : vector<2x32xf32>
    %163 = arith.addf %161, %162 : vector<2x32xf32>
    %164 = math.tanh %163 : vector<2x32xf32>
    %165 = arith.mulf %160, %164 : vector<2x32xf32>
    %cst_70 = arith.constant dense<0.000000e+00> : vector<2x32xf32>
    %166 = tpu.matmul %165, %3, %cst_70 {dimension_numbers = #tpu.dot_dimension_numbers<[1], [0], [0], [1], [0, 0, 1, 1], [], []>} : vector<2x32xf32>, vector<32x32xf32>, vector<2x32xf32> -> vector<2x32xf32>
    %167 = vector.broadcast %4 : vector<1x32xf32> to vector<2x32xf32>
    %168 = arith.addf %166, %167 : vector<2x32xf32>
    %c0_71 = arith.constant 0 : index
    %c0_72 = arith.constant 0 : index
    %c0_73 = arith.constant 0 : index
    %169 = vector.load %arg18[%c0_71, %c0_72, %c0_73] : memref<2x128x32xf32, #tpu.memory_space<vmem>>, vector<2x128x32xf32>
    %170 = vector.shape_cast %168 : vector<2x32xf32> to vector<2x1x32xf32>
    %171 = vector.broadcast %170 : vector<2x1x32xf32> to vector<2x128x32xf32>
    %172 = arith.addf %171, %169 : vector<2x128x32xf32>
    %173 = math.tanh %172 : vector<2x128x32xf32>
    %174 = vector.shape_cast %5 : vector<1x32xf32> to vector<1x1x32xf32>
    %175 = vector.broadcast %174 : vector<1x1x32xf32> to vector<2x128x32xf32>
    %176 = arith.mulf %173, %175 : vector<2x128x32xf32>
    %cst_74 = arith.constant dense<0.000000e+00> : vector<2x128xf32>
    %177 = vector.multi_reduction <add>, %176, %cst_74 [2] : vector<2x128x32xf32> to vector<2x128xf32>
    %cst_75 = arith.constant 0.000000e+00 : f32
    %178 = vector.broadcast %cst_75 : f32 to vector<2x128xf32>
    %179 = arith.cmpf oeq, %133, %178 : vector<2x128xf32>
    %cst_76 = arith.constant -1.000000e+01 : f32
    %180 = vector.broadcast %cst_76 : f32 to vector<2x128xf32>
    %181 = arith.select %179, %180, %177 : vector<2x128xi1>, vector<2x128xf32>
    %cst_77 = arith.constant -1.000000e+30 : f32
    %182 = vector.broadcast %cst_77 : f32 to vector<2x128xf32>
    %183 = arith.select %29, %181, %182 : vector<2x128xi1>, vector<2x128xf32>
    %cst_78 = arith.constant 0.000000e+00 : f32
    %184 = vector.broadcast %cst_78 : f32 to vector<2x128xf32>
    %185 = arith.cmpf oeq, %133, %184 : vector<2x128xf32>
    %cst_79 = arith.constant -1.000000e+09 : f32
    %186 = vector.broadcast %cst_79 : f32 to vector<2x128xf32>
    %187 = arith.select %185, %186, %183 : vector<2x128xi1>, vector<2x128xf32>
    %cst_80 = arith.constant dense<0xFF800000> : vector<2xf32>
    %188 = vector.multi_reduction <maximumf>, %187, %cst_80 [1] : vector<2x128xf32> to vector<2xf32>
    %189 = vector.shape_cast %188 : vector<2xf32> to vector<2x1xf32>
    %190 = vector.broadcast %189 : vector<2x1xf32> to vector<2x128xf32>
    %191 = arith.cmpf oeq, %187, %190 : vector<2x128xf32>
    %c128_i32_81 = arith.constant 128 : i32
    %192 = vector.broadcast %c128_i32_81 : i32 to vector<2x128xi32>
    %193 = arith.select %191, %26, %192 : vector<2x128xi1>, vector<2x128xi32>
    %cst_82 = arith.constant dense<2147483647> : vector<2xi32>
    %194 = vector.multi_reduction <minsi>, %193, %cst_82 [1] : vector<2x128xi32> to vector<2xi32>
    %195 = vector.shape_cast %194 : vector<2xi32> to vector<2x1xi32>
    %196 = vector.broadcast %195 : vector<2x1xi32> to vector<2x128xi32>
    %197 = arith.cmpi eq, %26, %196 : vector<2x128xi32>
    %198 = arith.extui %197 : vector<2x128xi1> to vector<2x128xi32>
    %199 = arith.sitofp %198 : vector<2x128xi32> to vector<2x128xf32>
    %cst_83 = arith.constant dense<0xFF800000> : vector<2xf32>
    %200 = vector.multi_reduction <maximumf>, %183, %cst_83 [1] : vector<2x128xf32> to vector<2xf32>
    %201 = vector.shape_cast %200 : vector<2xf32> to vector<2x1xf32>
    %202 = vector.broadcast %201 : vector<2x1xf32> to vector<2x128xf32>
    %203 = arith.subf %183, %202 : vector<2x128xf32>
    %204 = math.exp %203 : vector<2x128xf32>
    %cst_84 = arith.constant dense<0.000000e+00> : vector<2xf32>
    %205 = vector.multi_reduction <add>, %204, %cst_84 [1] : vector<2x128xf32> to vector<2xf32>
    %206 = vector.shape_cast %205 : vector<2xf32> to vector<2x1xf32>
    %207 = tpu.reciprocal %206 {approx = true} : vector<2x1xf32> -> vector<2x1xf32>
    %208 = arith.mulf %206, %207 : vector<2x1xf32>
    %cst_85 = arith.constant 2.000000e+00 : f32
    %209 = vector.broadcast %cst_85 : f32 to vector<2x1xf32>
    %210 = arith.subf %209, %208 : vector<2x1xf32>
    %211 = arith.mulf %207, %210 : vector<2x1xf32>
    %212 = vector.broadcast %211 : vector<2x1xf32> to vector<2x128xf32>
    %213 = arith.mulf %204, %212 : vector<2x128xf32>
    %cst_86 = arith.constant -1.000000e+30 : f32
    %214 = vector.broadcast %cst_86 : f32 to vector<2x128xf32>
    %215 = arith.select %29, %213, %214 : vector<2x128xi1>, vector<2x128xf32>
    %cst_87 = arith.constant dense<0xFF800000> : vector<2xf32>
    %216 = vector.multi_reduction <maximumf>, %215, %cst_87 [1] : vector<2x128xf32> to vector<2xf32>
    %217 = vector.shape_cast %216 : vector<2xf32> to vector<2x1xf32>
    %218 = vector.broadcast %217 : vector<2x1xf32> to vector<2x128xf32>
    %219 = arith.subf %215, %218 : vector<2x128xf32>
    %220 = math.exp %219 : vector<2x128xf32>
    %cst_88 = arith.constant dense<0.000000e+00> : vector<2xf32>
    %221 = vector.multi_reduction <add>, %220, %cst_88 [1] : vector<2x128xf32> to vector<2xf32>
    %222 = vector.shape_cast %221 : vector<2xf32> to vector<2x1xf32>
    %223 = math.log %222 : vector<2x1xf32>
    %224 = vector.broadcast %217 : vector<2x1xf32> to vector<2x128xf32>
    %225 = arith.subf %215, %224 : vector<2x128xf32>
    %226 = vector.broadcast %223 : vector<2x1xf32> to vector<2x128xf32>
    %227 = arith.subf %225, %226 : vector<2x128xf32>
    %228 = vector.shape_cast %227 : vector<2x128xf32> to vector<2x1x128xf32>
    %c0_89 = arith.constant 0 : index
    %229 = arith.index_cast %c1_i32 : i32 to index
    %c0_90 = arith.constant 0 : index
    %230 = vector.load %arg14[%c0_89, %229, %c0_90] : memref<2x8x128xf32, #tpu.memory_space<vmem>>, vector<2x1x128xf32>
    tpu.vector_store %arg14[%c0_89, %229, %c0_90], %228 {strides = array<i32>} : memref<2x8x128xf32, #tpu.memory_space<vmem>>, vector<2x1x128xf32>,
    %231 = vector.broadcast %c1_i32 : i32 to vector<2x8xi32>
    %232 = arith.cmpi eq, %27, %231 : vector<2x8xi32>
    %233 = vector.shape_cast %195 : vector<2x1xi32> to vector<2x1xi32>
    %234 = vector.broadcast %233 : vector<2x1xi32> to vector<2x8xi32>
    %235 = arith.select %232, %234, %130 : vector<2x8xi1>, vector<2x8xi32>
    %cst_91 = arith.constant 1.000000e+00 : f32
    %236 = vector.broadcast %cst_91 : f32 to vector<2x128xf32>
    %237 = arith.subf %236, %199 : vector<2x128xf32>
    %238 = arith.mulf %133, %237 : vector<2x128xf32>
    %239 = vector.shape_cast %199 : vector<2x128xf32> to vector<2x128x1xf32>
    %c0_92 = arith.constant 0 : index
    %c0_93 = arith.constant 0 : index
    %c0_94 = arith.constant 0 : index
    %240 = vector.load %arg19[%c0_92, %c0_93, %c0_94] : memref<2x128x128xf32, #tpu.memory_space<vmem>>, vector<2x128x128xf32>
    %241 = vector.broadcast %239 : vector<2x128x1xf32> to vector<2x128x128xf32>
    %242 = arith.mulf %241, %240 : vector<2x128x128xf32>
    %cst_95 = arith.constant dense<0.000000e+00> : vector<2x128xf32>
    %243 = vector.multi_reduction <add>, %242, %cst_95 [1] : vector<2x128x128xf32> to vector<2x128xf32>
    %c2_i32 = arith.constant 2 : i32
    %cst_96 = arith.constant dense<0.000000e+00> : vector<2x128xf32>
    %244 = tpu.matmul %165, %1, %cst_96 {dimension_numbers = #tpu.dot_dimension_numbers<[1], [0], [0], [1], [0, 0, 1, 1], [], []>} : vector<2x32xf32>, vector<32x128xf32>, vector<2x128xf32> -> vector<2x128xf32>
    %245 = arith.addf %243, %244 : vector<2x128xf32>
    %246 = vector.extract_strided_slice %245 {offsets = [0, 0], sizes = [2, 32], strides = [1, 1]} : vector<2x128xf32> to vector<2x32xf32>
    %247 = arith.negf %246 : vector<2x32xf32>
    %248 = math.exp %247 : vector<2x32xf32>
    %cst_97 = arith.constant 1.000000e+00 : f32
    %249 = vector.broadcast %cst_97 : f32 to vector<2x32xf32>
    %250 = arith.addf %249, %248 : vector<2x32xf32>
    %251 = arith.divf %249, %250 : vector<2x32xf32>
    %252 = vector.extract_strided_slice %245 {offsets = [0, 32], sizes = [2, 32], strides = [1, 1]} : vector<2x128xf32> to vector<2x32xf32>
    %253 = arith.negf %252 : vector<2x32xf32>
    %254 = math.exp %253 : vector<2x32xf32>
    %cst_98 = arith.constant 1.000000e+00 : f32
    %255 = vector.broadcast %cst_98 : f32 to vector<2x32xf32>
    %256 = arith.addf %255, %254 : vector<2x32xf32>
    %257 = arith.divf %255, %256 : vector<2x32xf32>
    %258 = vector.extract_strided_slice %245 {offsets = [0, 64], sizes = [2, 32], strides = [1, 1]} : vector<2x128xf32> to vector<2x32xf32>
    %259 = math.tanh %258 : vector<2x32xf32>
    %260 = vector.extract_strided_slice %245 {offsets = [0, 96], sizes = [2, 32], strides = [1, 1]} : vector<2x128xf32> to vector<2x32xf32>
    %261 = arith.negf %260 : vector<2x32xf32>
    %262 = math.exp %261 : vector<2x32xf32>
    %cst_99 = arith.constant 1.000000e+00 : f32
    %263 = vector.broadcast %cst_99 : f32 to vector<2x32xf32>
    %264 = arith.addf %263, %262 : vector<2x32xf32>
    %265 = arith.divf %263, %264 : vector<2x32xf32>
    %266 = arith.mulf %257, %163 : vector<2x32xf32>
    %267 = arith.mulf %251, %259 : vector<2x32xf32>
    %268 = arith.addf %266, %267 : vector<2x32xf32>
    %269 = math.tanh %268 : vector<2x32xf32>
    %270 = arith.mulf %265, %269 : vector<2x32xf32>
    %cst_100 = arith.constant dense<0.000000e+00> : vector<2x32xf32>
    %271 = tpu.matmul %270, %3, %cst_100 {dimension_numbers = #tpu.dot_dimension_numbers<[1], [0], [0], [1], [0, 0, 1, 1], [], []>} : vector<2x32xf32>, vector<32x32xf32>, vector<2x32xf32> -> vector<2x32xf32>
    %272 = vector.broadcast %4 : vector<1x32xf32> to vector<2x32xf32>
    %273 = arith.addf %271, %272 : vector<2x32xf32>
    %c0_101 = arith.constant 0 : index
    %c0_102 = arith.constant 0 : index
    %c0_103 = arith.constant 0 : index
    %274 = vector.load %arg18[%c0_101, %c0_102, %c0_103] : memref<2x128x32xf32, #tpu.memory_space<vmem>>, vector<2x128x32xf32>
    %275 = vector.shape_cast %273 : vector<2x32xf32> to vector<2x1x32xf32>
    %276 = vector.broadcast %275 : vector<2x1x32xf32> to vector<2x128x32xf32>
    %277 = arith.addf %276, %274 : vector<2x128x32xf32>
    %278 = math.tanh %277 : vector<2x128x32xf32>
    %279 = vector.shape_cast %5 : vector<1x32xf32> to vector<1x1x32xf32>
    %280 = vector.broadcast %279 : vector<1x1x32xf32> to vector<2x128x32xf32>
    %281 = arith.mulf %278, %280 : vector<2x128x32xf32>
    %cst_104 = arith.constant dense<0.000000e+00> : vector<2x128xf32>
    %282 = vector.multi_reduction <add>, %281, %cst_104 [2] : vector<2x128x32xf32> to vector<2x128xf32>
    %cst_105 = arith.constant 0.000000e+00 : f32
    %283 = vector.broadcast %cst_105 : f32 to vector<2x128xf32>
    %284 = arith.cmpf oeq, %238, %283 : vector<2x128xf32>
    %cst_106 = arith.constant -1.000000e+01 : f32
    %285 = vector.broadcast %cst_106 : f32 to vector<2x128xf32>
    %286 = arith.select %284, %285, %282 : vector<2x128xi1>, vector<2x128xf32>
    %cst_107 = arith.constant -1.000000e+30 : f32
    %287 = vector.broadcast %cst_107 : f32 to vector<2x128xf32>
    %288 = arith.select %29, %286, %287 : vector<2x128xi1>, vector<2x128xf32>
    %cst_108 = arith.constant 0.000000e+00 : f32
    %289 = vector.broadcast %cst_108 : f32 to vector<2x128xf32>
    %290 = arith.cmpf oeq, %238, %289 : vector<2x128xf32>
    %cst_109 = arith.constant -1.000000e+09 : f32
    %291 = vector.broadcast %cst_109 : f32 to vector<2x128xf32>
    %292 = arith.select %290, %291, %288 : vector<2x128xi1>, vector<2x128xf32>
    %cst_110 = arith.constant dense<0xFF800000> : vector<2xf32>
    %293 = vector.multi_reduction <maximumf>, %292, %cst_110 [1] : vector<2x128xf32> to vector<2xf32>
    %294 = vector.shape_cast %293 : vector<2xf32> to vector<2x1xf32>
    %295 = vector.broadcast %294 : vector<2x1xf32> to vector<2x128xf32>
    %296 = arith.cmpf oeq, %292, %295 : vector<2x128xf32>
    %c128_i32_111 = arith.constant 128 : i32
    %297 = vector.broadcast %c128_i32_111 : i32 to vector<2x128xi32>
    %298 = arith.select %296, %26, %297 : vector<2x128xi1>, vector<2x128xi32>
    %cst_112 = arith.constant dense<2147483647> : vector<2xi32>
    %299 = vector.multi_reduction <minsi>, %298, %cst_112 [1] : vector<2x128xi32> to vector<2xi32>
    %300 = vector.shape_cast %299 : vector<2xi32> to vector<2x1xi32>
    %301 = vector.broadcast %300 : vector<2x1xi32> to vector<2x128xi32>
    %302 = arith.cmpi eq, %26, %301 : vector<2x128xi32>
    %303 = arith.extui %302 : vector<2x128xi1> to vector<2x128xi32>
    %304 = arith.sitofp %303 : vector<2x128xi32> to vector<2x128xf32>
    %cst_113 = arith.constant dense<0xFF800000> : vector<2xf32>
    %305 = vector.multi_reduction <maximumf>, %288, %cst_113 [1] : vector<2x128xf32> to vector<2xf32>
    %306 = vector.shape_cast %305 : vector<2xf32> to vector<2x1xf32>
    %307 = vector.broadcast %306 : vector<2x1xf32> to vector<2x128xf32>
    %308 = arith.subf %288, %307 : vector<2x128xf32>
    %309 = math.exp %308 : vector<2x128xf32>
    %cst_114 = arith.constant dense<0.000000e+00> : vector<2xf32>
    %310 = vector.multi_reduction <add>, %309, %cst_114 [1] : vector<2x128xf32> to vector<2xf32>
    %311 = vector.shape_cast %310 : vector<2xf32> to vector<2x1xf32>
    %312 = tpu.reciprocal %311 {approx = true} : vector<2x1xf32> -> vector<2x1xf32>
    %313 = arith.mulf %311, %312 : vector<2x1xf32>
    %cst_115 = arith.constant 2.000000e+00 : f32
    %314 = vector.broadcast %cst_115 : f32 to vector<2x1xf32>
    %315 = arith.subf %314, %313 : vector<2x1xf32>
    %316 = arith.mulf %312, %315 : vector<2x1xf32>
    %317 = vector.broadcast %316 : vector<2x1xf32> to vector<2x128xf32>
    %318 = arith.mulf %309, %317 : vector<2x128xf32>
    %cst_116 = arith.constant -1.000000e+30 : f32
    %319 = vector.broadcast %cst_116 : f32 to vector<2x128xf32>
    %320 = arith.select %29, %318, %319 : vector<2x128xi1>, vector<2x128xf32>
    %cst_117 = arith.constant dense<0xFF800000> : vector<2xf32>
    %321 = vector.multi_reduction <maximumf>, %320, %cst_117 [1] : vector<2x128xf32> to vector<2xf32>
    %322 = vector.shape_cast %321 : vector<2xf32> to vector<2x1xf32>
    %323 = vector.broadcast %322 : vector<2x1xf32> to vector<2x128xf32>
    %324 = arith.subf %320, %323 : vector<2x128xf32>
    %325 = math.exp %324 : vector<2x128xf32>
    %cst_118 = arith.constant dense<0.000000e+00> : vector<2xf32>
    %326 = vector.multi_reduction <add>, %325, %cst_118 [1] : vector<2x128xf32> to vector<2xf32>
    %327 = vector.shape_cast %326 : vector<2xf32> to vector<2x1xf32>
    %328 = math.log %327 : vector<2x1xf32>
    %329 = vector.broadcast %322 : vector<2x1xf32> to vector<2x128xf32>
    %330 = arith.subf %320, %329 : vector<2x128xf32>
    %331 = vector.broadcast %328 : vector<2x1xf32> to vector<2x128xf32>
    %332 = arith.subf %330, %331 : vector<2x128xf32>
    %333 = vector.shape_cast %332 : vector<2x128xf32> to vector<2x1x128xf32>
    %c0_119 = arith.constant 0 : index
    %334 = arith.index_cast %c2_i32 : i32 to index
    %c0_120 = arith.constant 0 : index
    %335 = vector.load %arg14[%c0_119, %334, %c0_120] : memref<2x8x128xf32, #tpu.memory_space<vmem>>, vector<2x1x128xf32>
    tpu.vector_store %arg14[%c0_119, %334, %c0_120], %333 {strides = array<i32>} : memref<2x8x128xf32, #tpu.memory_space<vmem>>, vector<2x1x128xf32>,
    %336 = vector.broadcast %c2_i32 : i32 to vector<2x8xi32>
    %337 = arith.cmpi eq, %27, %336 : vector<2x8xi32>
    %338 = vector.shape_cast %300 : vector<2x1xi32> to vector<2x1xi32>
    %339 = vector.broadcast %338 : vector<2x1xi32> to vector<2x8xi32>
    %340 = arith.select %337, %339, %235 : vector<2x8xi1>, vector<2x8xi32>
    %cst_121 = arith.constant 1.000000e+00 : f32
    %341 = vector.broadcast %cst_121 : f32 to vector<2x128xf32>
    %342 = arith.subf %341, %304 : vector<2x128xf32>
    %343 = arith.mulf %238, %342 : vector<2x128xf32>
    %344 = vector.shape_cast %304 : vector<2x128xf32> to vector<2x128x1xf32>
    %c0_122 = arith.constant 0 : index
    %c0_123 = arith.constant 0 : index
    %c0_124 = arith.constant 0 : index
    %345 = vector.load %arg19[%c0_122, %c0_123, %c0_124] : memref<2x128x128xf32, #tpu.memory_space<vmem>>, vector<2x128x128xf32>
    %346 = vector.broadcast %344 : vector<2x128x1xf32> to vector<2x128x128xf32>
    %347 = arith.mulf %346, %345 : vector<2x128x128xf32>
    %cst_125 = arith.constant dense<0.000000e+00> : vector<2x128xf32>
    %348 = vector.multi_reduction <add>, %347, %cst_125 [1] : vector<2x128x128xf32> to vector<2x128xf32>
    %c3_i32 = arith.constant 3 : i32
    %cst_126 = arith.constant dense<0.000000e+00> : vector<2x128xf32>
    %349 = tpu.matmul %270, %1, %cst_126 {dimension_numbers = #tpu.dot_dimension_numbers<[1], [0], [0], [1], [0, 0, 1, 1], [], []>} : vector<2x32xf32>, vector<32x128xf32>, vector<2x128xf32> -> vector<2x128xf32>
    %350 = arith.addf %348, %349 : vector<2x128xf32>
    %351 = vector.extract_strided_slice %350 {offsets = [0, 0], sizes = [2, 32], strides = [1, 1]} : vector<2x128xf32> to vector<2x32xf32>
    %352 = arith.negf %351 : vector<2x32xf32>
    %353 = math.exp %352 : vector<2x32xf32>
    %cst_127 = arith.constant 1.000000e+00 : f32
    %354 = vector.broadcast %cst_127 : f32 to vector<2x32xf32>
    %355 = arith.addf %354, %353 : vector<2x32xf32>
    %356 = arith.divf %354, %355 : vector<2x32xf32>
    %357 = vector.extract_strided_slice %350 {offsets = [0, 32], sizes = [2, 32], strides = [1, 1]} : vector<2x128xf32> to vector<2x32xf32>
    %358 = arith.negf %357 : vector<2x32xf32>
    %359 = math.exp %358 : vector<2x32xf32>
    %cst_128 = arith.constant 1.000000e+00 : f32
    %360 = vector.broadcast %cst_128 : f32 to vector<2x32xf32>
    %361 = arith.addf %360, %359 : vector<2x32xf32>
    %362 = arith.divf %360, %361 : vector<2x32xf32>
    %363 = vector.extract_strided_slice %350 {offsets = [0, 64], sizes = [2, 32], strides = [1, 1]} : vector<2x128xf32> to vector<2x32xf32>
    %364 = math.tanh %363 : vector<2x32xf32>
    %365 = vector.extract_strided_slice %350 {offsets = [0, 96], sizes = [2, 32], strides = [1, 1]} : vector<2x128xf32> to vector<2x32xf32>
    %366 = arith.negf %365 : vector<2x32xf32>
    %367 = math.exp %366 : vector<2x32xf32>
    %cst_129 = arith.constant 1.000000e+00 : f32
    %368 = vector.broadcast %cst_129 : f32 to vector<2x32xf32>
    %369 = arith.addf %368, %367 : vector<2x32xf32>
    %370 = arith.divf %368, %369 : vector<2x32xf32>
    %371 = arith.mulf %362, %268 : vector<2x32xf32>
    %372 = arith.mulf %356, %364 : vector<2x32xf32>
    %373 = arith.addf %371, %372 : vector<2x32xf32>
    %374 = math.tanh %373 : vector<2x32xf32>
    %375 = arith.mulf %370, %374 : vector<2x32xf32>
    %cst_130 = arith.constant dense<0.000000e+00> : vector<2x32xf32>
    %376 = tpu.matmul %375, %3, %cst_130 {dimension_numbers = #tpu.dot_dimension_numbers<[1], [0], [0], [1], [0, 0, 1, 1], [], []>} : vector<2x32xf32>, vector<32x32xf32>, vector<2x32xf32> -> vector<2x32xf32>
    %377 = vector.broadcast %4 : vector<1x32xf32> to vector<2x32xf32>
    %378 = arith.addf %376, %377 : vector<2x32xf32>
    %c0_131 = arith.constant 0 : index
    %c0_132 = arith.constant 0 : index
    %c0_133 = arith.constant 0 : index
    %379 = vector.load %arg18[%c0_131, %c0_132, %c0_133] : memref<2x128x32xf32, #tpu.memory_space<vmem>>, vector<2x128x32xf32>
    %380 = vector.shape_cast %378 : vector<2x32xf32> to vector<2x1x32xf32>
    %381 = vector.broadcast %380 : vector<2x1x32xf32> to vector<2x128x32xf32>
    %382 = arith.addf %381, %379 : vector<2x128x32xf32>
    %383 = math.tanh %382 : vector<2x128x32xf32>
    %384 = vector.shape_cast %5 : vector<1x32xf32> to vector<1x1x32xf32>
    %385 = vector.broadcast %384 : vector<1x1x32xf32> to vector<2x128x32xf32>
    %386 = arith.mulf %383, %385 : vector<2x128x32xf32>
    %cst_134 = arith.constant dense<0.000000e+00> : vector<2x128xf32>
    %387 = vector.multi_reduction <add>, %386, %cst_134 [2] : vector<2x128x32xf32> to vector<2x128xf32>
    %cst_135 = arith.constant 0.000000e+00 : f32
    %388 = vector.broadcast %cst_135 : f32 to vector<2x128xf32>
    %389 = arith.cmpf oeq, %343, %388 : vector<2x128xf32>
    %cst_136 = arith.constant -1.000000e+01 : f32
    %390 = vector.broadcast %cst_136 : f32 to vector<2x128xf32>
    %391 = arith.select %389, %390, %387 : vector<2x128xi1>, vector<2x128xf32>
    %cst_137 = arith.constant -1.000000e+30 : f32
    %392 = vector.broadcast %cst_137 : f32 to vector<2x128xf32>
    %393 = arith.select %29, %391, %392 : vector<2x128xi1>, vector<2x128xf32>
    %cst_138 = arith.constant 0.000000e+00 : f32
    %394 = vector.broadcast %cst_138 : f32 to vector<2x128xf32>
    %395 = arith.cmpf oeq, %343, %394 : vector<2x128xf32>
    %cst_139 = arith.constant -1.000000e+09 : f32
    %396 = vector.broadcast %cst_139 : f32 to vector<2x128xf32>
    %397 = arith.select %395, %396, %393 : vector<2x128xi1>, vector<2x128xf32>
    %cst_140 = arith.constant dense<0xFF800000> : vector<2xf32>
    %398 = vector.multi_reduction <maximumf>, %397, %cst_140 [1] : vector<2x128xf32> to vector<2xf32>
    %399 = vector.shape_cast %398 : vector<2xf32> to vector<2x1xf32>
    %400 = vector.broadcast %399 : vector<2x1xf32> to vector<2x128xf32>
    %401 = arith.cmpf oeq, %397, %400 : vector<2x128xf32>
    %c128_i32_141 = arith.constant 128 : i32
    %402 = vector.broadcast %c128_i32_141 : i32 to vector<2x128xi32>
    %403 = arith.select %401, %26, %402 : vector<2x128xi1>, vector<2x128xi32>
    %cst_142 = arith.constant dense<2147483647> : vector<2xi32>
    %404 = vector.multi_reduction <minsi>, %403, %cst_142 [1] : vector<2x128xi32> to vector<2xi32>
    %405 = vector.shape_cast %404 : vector<2xi32> to vector<2x1xi32>
    %406 = vector.broadcast %405 : vector<2x1xi32> to vector<2x128xi32>
    %407 = arith.cmpi eq, %26, %406 : vector<2x128xi32>
    %408 = arith.extui %407 : vector<2x128xi1> to vector<2x128xi32>
    %409 = arith.sitofp %408 : vector<2x128xi32> to vector<2x128xf32>
    %cst_143 = arith.constant dense<0xFF800000> : vector<2xf32>
    %410 = vector.multi_reduction <maximumf>, %393, %cst_143 [1] : vector<2x128xf32> to vector<2xf32>
    %411 = vector.shape_cast %410 : vector<2xf32> to vector<2x1xf32>
    %412 = vector.broadcast %411 : vector<2x1xf32> to vector<2x128xf32>
    %413 = arith.subf %393, %412 : vector<2x128xf32>
    %414 = math.exp %413 : vector<2x128xf32>
    %cst_144 = arith.constant dense<0.000000e+00> : vector<2xf32>
    %415 = vector.multi_reduction <add>, %414, %cst_144 [1] : vector<2x128xf32> to vector<2xf32>
    %416 = vector.shape_cast %415 : vector<2xf32> to vector<2x1xf32>
    %417 = tpu.reciprocal %416 {approx = true} : vector<2x1xf32> -> vector<2x1xf32>
    %418 = arith.mulf %416, %417 : vector<2x1xf32>
    %cst_145 = arith.constant 2.000000e+00 : f32
    %419 = vector.broadcast %cst_145 : f32 to vector<2x1xf32>
    %420 = arith.subf %419, %418 : vector<2x1xf32>
    %421 = arith.mulf %417, %420 : vector<2x1xf32>
    %422 = vector.broadcast %421 : vector<2x1xf32> to vector<2x128xf32>
    %423 = arith.mulf %414, %422 : vector<2x128xf32>
    %cst_146 = arith.constant -1.000000e+30 : f32
    %424 = vector.broadcast %cst_146 : f32 to vector<2x128xf32>
    %425 = arith.select %29, %423, %424 : vector<2x128xi1>, vector<2x128xf32>
    %cst_147 = arith.constant dense<0xFF800000> : vector<2xf32>
    %426 = vector.multi_reduction <maximumf>, %425, %cst_147 [1] : vector<2x128xf32> to vector<2xf32>
    %427 = vector.shape_cast %426 : vector<2xf32> to vector<2x1xf32>
    %428 = vector.broadcast %427 : vector<2x1xf32> to vector<2x128xf32>
    %429 = arith.subf %425, %428 : vector<2x128xf32>
    %430 = math.exp %429 : vector<2x128xf32>
    %cst_148 = arith.constant dense<0.000000e+00> : vector<2xf32>
    %431 = vector.multi_reduction <add>, %430, %cst_148 [1] : vector<2x128xf32> to vector<2xf32>
    %432 = vector.shape_cast %431 : vector<2xf32> to vector<2x1xf32>
    %433 = math.log %432 : vector<2x1xf32>
    %434 = vector.broadcast %427 : vector<2x1xf32> to vector<2x128xf32>
    %435 = arith.subf %425, %434 : vector<2x128xf32>
    %436 = vector.broadcast %433 : vector<2x1xf32> to vector<2x128xf32>
    %437 = arith.subf %435, %436 : vector<2x128xf32>
    %438 = vector.shape_cast %437 : vector<2x128xf32> to vector<2x1x128xf32>
    %c0_149 = arith.constant 0 : index
    %439 = arith.index_cast %c3_i32 : i32 to index
    %c0_150 = arith.constant 0 : index
    %440 = vector.load %arg14[%c0_149, %439, %c0_150] : memref<2x8x128xf32, #tpu.memory_space<vmem>>, vector<2x1x128xf32>
    tpu.vector_store %arg14[%c0_149, %439, %c0_150], %438 {strides = array<i32>} : memref<2x8x128xf32, #tpu.memory_space<vmem>>, vector<2x1x128xf32>,
    %441 = vector.broadcast %c3_i32 : i32 to vector<2x8xi32>
    %442 = arith.cmpi eq, %27, %441 : vector<2x8xi32>
    %443 = vector.shape_cast %405 : vector<2x1xi32> to vector<2x1xi32>
    %444 = vector.broadcast %443 : vector<2x1xi32> to vector<2x8xi32>
    %445 = arith.select %442, %444, %340 : vector<2x8xi1>, vector<2x8xi32>
    %cst_151 = arith.constant 1.000000e+00 : f32
    %446 = vector.broadcast %cst_151 : f32 to vector<2x128xf32>
    %447 = arith.subf %446, %409 : vector<2x128xf32>
    %448 = arith.mulf %343, %447 : vector<2x128xf32>
    %449 = vector.shape_cast %409 : vector<2x128xf32> to vector<2x128x1xf32>
    %c0_152 = arith.constant 0 : index
    %c0_153 = arith.constant 0 : index
    %c0_154 = arith.constant 0 : index
    %450 = vector.load %arg19[%c0_152, %c0_153, %c0_154] : memref<2x128x128xf32, #tpu.memory_space<vmem>>, vector<2x128x128xf32>
    %451 = vector.broadcast %449 : vector<2x128x1xf32> to vector<2x128x128xf32>
    %452 = arith.mulf %451, %450 : vector<2x128x128xf32>
    %cst_155 = arith.constant dense<0.000000e+00> : vector<2x128xf32>
    %453 = vector.multi_reduction <add>, %452, %cst_155 [1] : vector<2x128x128xf32> to vector<2x128xf32>
    %c4_i32 = arith.constant 4 : i32
    %cst_156 = arith.constant dense<0.000000e+00> : vector<2x128xf32>
    %454 = tpu.matmul %375, %1, %cst_156 {dimension_numbers = #tpu.dot_dimension_numbers<[1], [0], [0], [1], [0, 0, 1, 1], [], []>} : vector<2x32xf32>, vector<32x128xf32>, vector<2x128xf32> -> vector<2x128xf32>
    %455 = arith.addf %453, %454 : vector<2x128xf32>
    %456 = vector.extract_strided_slice %455 {offsets = [0, 0], sizes = [2, 32], strides = [1, 1]} : vector<2x128xf32> to vector<2x32xf32>
    %457 = arith.negf %456 : vector<2x32xf32>
    %458 = math.exp %457 : vector<2x32xf32>
    %cst_157 = arith.constant 1.000000e+00 : f32
    %459 = vector.broadcast %cst_157 : f32 to vector<2x32xf32>
    %460 = arith.addf %459, %458 : vector<2x32xf32>
    %461 = arith.divf %459, %460 : vector<2x32xf32>
    %462 = vector.extract_strided_slice %455 {offsets = [0, 32], sizes = [2, 32], strides = [1, 1]} : vector<2x128xf32> to vector<2x32xf32>
    %463 = arith.negf %462 : vector<2x32xf32>
    %464 = math.exp %463 : vector<2x32xf32>
    %cst_158 = arith.constant 1.000000e+00 : f32
    %465 = vector.broadcast %cst_158 : f32 to vector<2x32xf32>
    %466 = arith.addf %465, %464 : vector<2x32xf32>
    %467 = arith.divf %465, %466 : vector<2x32xf32>
    %468 = vector.extract_strided_slice %455 {offsets = [0, 64], sizes = [2, 32], strides = [1, 1]} : vector<2x128xf32> to vector<2x32xf32>
    %469 = math.tanh %468 : vector<2x32xf32>
    %470 = vector.extract_strided_slice %455 {offsets = [0, 96], sizes = [2, 32], strides = [1, 1]} : vector<2x128xf32> to vector<2x32xf32>
    %471 = arith.negf %470 : vector<2x32xf32>
    %472 = math.exp %471 : vector<2x32xf32>
    %cst_159 = arith.constant 1.000000e+00 : f32
    %473 = vector.broadcast %cst_159 : f32 to vector<2x32xf32>
    %474 = arith.addf %473, %472 : vector<2x32xf32>
    %475 = arith.divf %473, %474 : vector<2x32xf32>
    %476 = arith.mulf %467, %373 : vector<2x32xf32>
    %477 = arith.mulf %461, %469 : vector<2x32xf32>
    %478 = arith.addf %476, %477 : vector<2x32xf32>
    %479 = math.tanh %478 : vector<2x32xf32>
    %480 = arith.mulf %475, %479 : vector<2x32xf32>
    %cst_160 = arith.constant dense<0.000000e+00> : vector<2x32xf32>
    %481 = tpu.matmul %480, %3, %cst_160 {dimension_numbers = #tpu.dot_dimension_numbers<[1], [0], [0], [1], [0, 0, 1, 1], [], []>} : vector<2x32xf32>, vector<32x32xf32>, vector<2x32xf32> -> vector<2x32xf32>
    %482 = vector.broadcast %4 : vector<1x32xf32> to vector<2x32xf32>
    %483 = arith.addf %481, %482 : vector<2x32xf32>
    %c0_161 = arith.constant 0 : index
    %c0_162 = arith.constant 0 : index
    %c0_163 = arith.constant 0 : index
    %484 = vector.load %arg18[%c0_161, %c0_162, %c0_163] : memref<2x128x32xf32, #tpu.memory_space<vmem>>, vector<2x128x32xf32>
    %485 = vector.shape_cast %483 : vector<2x32xf32> to vector<2x1x32xf32>
    %486 = vector.broadcast %485 : vector<2x1x32xf32> to vector<2x128x32xf32>
    %487 = arith.addf %486, %484 : vector<2x128x32xf32>
    %488 = math.tanh %487 : vector<2x128x32xf32>
    %489 = vector.shape_cast %5 : vector<1x32xf32> to vector<1x1x32xf32>
    %490 = vector.broadcast %489 : vector<1x1x32xf32> to vector<2x128x32xf32>
    %491 = arith.mulf %488, %490 : vector<2x128x32xf32>
    %cst_164 = arith.constant dense<0.000000e+00> : vector<2x128xf32>
    %492 = vector.multi_reduction <add>, %491, %cst_164 [2] : vector<2x128x32xf32> to vector<2x128xf32>
    %cst_165 = arith.constant 0.000000e+00 : f32
    %493 = vector.broadcast %cst_165 : f32 to vector<2x128xf32>
    %494 = arith.cmpf oeq, %448, %493 : vector<2x128xf32>
    %cst_166 = arith.constant -1.000000e+01 : f32
    %495 = vector.broadcast %cst_166 : f32 to vector<2x128xf32>
    %496 = arith.select %494, %495, %492 : vector<2x128xi1>, vector<2x128xf32>
    %cst_167 = arith.constant -1.000000e+30 : f32
    %497 = vector.broadcast %cst_167 : f32 to vector<2x128xf32>
    %498 = arith.select %29, %496, %497 : vector<2x128xi1>, vector<2x128xf32>
    %cst_168 = arith.constant 0.000000e+00 : f32
    %499 = vector.broadcast %cst_168 : f32 to vector<2x128xf32>
    %500 = arith.cmpf oeq, %448, %499 : vector<2x128xf32>
    %cst_169 = arith.constant -1.000000e+09 : f32
    %501 = vector.broadcast %cst_169 : f32 to vector<2x128xf32>
    %502 = arith.select %500, %501, %498 : vector<2x128xi1>, vector<2x128xf32>
    %cst_170 = arith.constant dense<0xFF800000> : vector<2xf32>
    %503 = vector.multi_reduction <maximumf>, %502, %cst_170 [1] : vector<2x128xf32> to vector<2xf32>
    %504 = vector.shape_cast %503 : vector<2xf32> to vector<2x1xf32>
    %505 = vector.broadcast %504 : vector<2x1xf32> to vector<2x128xf32>
    %506 = arith.cmpf oeq, %502, %505 : vector<2x128xf32>
    %c128_i32_171 = arith.constant 128 : i32
    %507 = vector.broadcast %c128_i32_171 : i32 to vector<2x128xi32>
    %508 = arith.select %506, %26, %507 : vector<2x128xi1>, vector<2x128xi32>
    %cst_172 = arith.constant dense<2147483647> : vector<2xi32>
    %509 = vector.multi_reduction <minsi>, %508, %cst_172 [1] : vector<2x128xi32> to vector<2xi32>
    %510 = vector.shape_cast %509 : vector<2xi32> to vector<2x1xi32>
    %511 = vector.broadcast %510 : vector<2x1xi32> to vector<2x128xi32>
    %512 = arith.cmpi eq, %26, %511 : vector<2x128xi32>
    %513 = arith.extui %512 : vector<2x128xi1> to vector<2x128xi32>
    %514 = arith.sitofp %513 : vector<2x128xi32> to vector<2x128xf32>
    %cst_173 = arith.constant dense<0xFF800000> : vector<2xf32>
    %515 = vector.multi_reduction <maximumf>, %498, %cst_173 [1] : vector<2x128xf32> to vector<2xf32>
    %516 = vector.shape_cast %515 : vector<2xf32> to vector<2x1xf32>
    %517 = vector.broadcast %516 : vector<2x1xf32> to vector<2x128xf32>
    %518 = arith.subf %498, %517 : vector<2x128xf32>
    %519 = math.exp %518 : vector<2x128xf32>
    %cst_174 = arith.constant dense<0.000000e+00> : vector<2xf32>
    %520 = vector.multi_reduction <add>, %519, %cst_174 [1] : vector<2x128xf32> to vector<2xf32>
    %521 = vector.shape_cast %520 : vector<2xf32> to vector<2x1xf32>
    %522 = tpu.reciprocal %521 {approx = true} : vector<2x1xf32> -> vector<2x1xf32>
    %523 = arith.mulf %521, %522 : vector<2x1xf32>
    %cst_175 = arith.constant 2.000000e+00 : f32
    %524 = vector.broadcast %cst_175 : f32 to vector<2x1xf32>
    %525 = arith.subf %524, %523 : vector<2x1xf32>
    %526 = arith.mulf %522, %525 : vector<2x1xf32>
    %527 = vector.broadcast %526 : vector<2x1xf32> to vector<2x128xf32>
    %528 = arith.mulf %519, %527 : vector<2x128xf32>
    %cst_176 = arith.constant -1.000000e+30 : f32
    %529 = vector.broadcast %cst_176 : f32 to vector<2x128xf32>
    %530 = arith.select %29, %528, %529 : vector<2x128xi1>, vector<2x128xf32>
    %cst_177 = arith.constant dense<0xFF800000> : vector<2xf32>
    %531 = vector.multi_reduction <maximumf>, %530, %cst_177 [1] : vector<2x128xf32> to vector<2xf32>
    %532 = vector.shape_cast %531 : vector<2xf32> to vector<2x1xf32>
    %533 = vector.broadcast %532 : vector<2x1xf32> to vector<2x128xf32>
    %534 = arith.subf %530, %533 : vector<2x128xf32>
    %535 = math.exp %534 : vector<2x128xf32>
    %cst_178 = arith.constant dense<0.000000e+00> : vector<2xf32>
    %536 = vector.multi_reduction <add>, %535, %cst_178 [1] : vector<2x128xf32> to vector<2xf32>
    %537 = vector.shape_cast %536 : vector<2xf32> to vector<2x1xf32>
    %538 = math.log %537 : vector<2x1xf32>
    %539 = vector.broadcast %532 : vector<2x1xf32> to vector<2x128xf32>
    %540 = arith.subf %530, %539 : vector<2x128xf32>
    %541 = vector.broadcast %538 : vector<2x1xf32> to vector<2x128xf32>
    %542 = arith.subf %540, %541 : vector<2x128xf32>
    %543 = vector.shape_cast %542 : vector<2x128xf32> to vector<2x1x128xf32>
    %c0_179 = arith.constant 0 : index
    %544 = arith.index_cast %c4_i32 : i32 to index
    %c0_180 = arith.constant 0 : index
    %545 = vector.load %arg14[%c0_179, %544, %c0_180] : memref<2x8x128xf32, #tpu.memory_space<vmem>>, vector<2x1x128xf32>
    tpu.vector_store %arg14[%c0_179, %544, %c0_180], %543 {strides = array<i32>} : memref<2x8x128xf32, #tpu.memory_space<vmem>>, vector<2x1x128xf32>,
    %546 = vector.broadcast %c4_i32 : i32 to vector<2x8xi32>
    %547 = arith.cmpi eq, %27, %546 : vector<2x8xi32>
    %548 = vector.shape_cast %510 : vector<2x1xi32> to vector<2x1xi32>
    %549 = vector.broadcast %548 : vector<2x1xi32> to vector<2x8xi32>
    %550 = arith.select %547, %549, %445 : vector<2x8xi1>, vector<2x8xi32>
    %cst_181 = arith.constant 1.000000e+00 : f32
    %551 = vector.broadcast %cst_181 : f32 to vector<2x128xf32>
    %552 = arith.subf %551, %514 : vector<2x128xf32>
    %553 = arith.mulf %448, %552 : vector<2x128xf32>
    %554 = vector.shape_cast %514 : vector<2x128xf32> to vector<2x128x1xf32>
    %c0_182 = arith.constant 0 : index
    %c0_183 = arith.constant 0 : index
    %c0_184 = arith.constant 0 : index
    %555 = vector.load %arg19[%c0_182, %c0_183, %c0_184] : memref<2x128x128xf32, #tpu.memory_space<vmem>>, vector<2x128x128xf32>
    %556 = vector.broadcast %554 : vector<2x128x1xf32> to vector<2x128x128xf32>
    %557 = arith.mulf %556, %555 : vector<2x128x128xf32>
    %cst_185 = arith.constant dense<0.000000e+00> : vector<2x128xf32>
    %558 = vector.multi_reduction <add>, %557, %cst_185 [1] : vector<2x128x128xf32> to vector<2x128xf32>
    %c5_i32 = arith.constant 5 : i32
    %cst_186 = arith.constant dense<0.000000e+00> : vector<2x128xf32>
    %559 = tpu.matmul %480, %1, %cst_186 {dimension_numbers = #tpu.dot_dimension_numbers<[1], [0], [0], [1], [0, 0, 1, 1], [], []>} : vector<2x32xf32>, vector<32x128xf32>, vector<2x128xf32> -> vector<2x128xf32>
    %560 = arith.addf %558, %559 : vector<2x128xf32>
    %561 = vector.extract_strided_slice %560 {offsets = [0, 0], sizes = [2, 32], strides = [1, 1]} : vector<2x128xf32> to vector<2x32xf32>
    %562 = arith.negf %561 : vector<2x32xf32>
    %563 = math.exp %562 : vector<2x32xf32>
    %cst_187 = arith.constant 1.000000e+00 : f32
    %564 = vector.broadcast %cst_187 : f32 to vector<2x32xf32>
    %565 = arith.addf %564, %563 : vector<2x32xf32>
    %566 = arith.divf %564, %565 : vector<2x32xf32>
    %567 = vector.extract_strided_slice %560 {offsets = [0, 32], sizes = [2, 32], strides = [1, 1]} : vector<2x128xf32> to vector<2x32xf32>
    %568 = arith.negf %567 : vector<2x32xf32>
    %569 = math.exp %568 : vector<2x32xf32>
    %cst_188 = arith.constant 1.000000e+00 : f32
    %570 = vector.broadcast %cst_188 : f32 to vector<2x32xf32>
    %571 = arith.addf %570, %569 : vector<2x32xf32>
    %572 = arith.divf %570, %571 : vector<2x32xf32>
    %573 = vector.extract_strided_slice %560 {offsets = [0, 64], sizes = [2, 32], strides = [1, 1]} : vector<2x128xf32> to vector<2x32xf32>
    %574 = math.tanh %573 : vector<2x32xf32>
    %575 = vector.extract_strided_slice %560 {offsets = [0, 96], sizes = [2, 32], strides = [1, 1]} : vector<2x128xf32> to vector<2x32xf32>
    %576 = arith.negf %575 : vector<2x32xf32>
    %577 = math.exp %576 : vector<2x32xf32>
    %cst_189 = arith.constant 1.000000e+00 : f32
    %578 = vector.broadcast %cst_189 : f32 to vector<2x32xf32>
    %579 = arith.addf %578, %577 : vector<2x32xf32>
    %580 = arith.divf %578, %579 : vector<2x32xf32>
    %581 = arith.mulf %572, %478 : vector<2x32xf32>
    %582 = arith.mulf %566, %574 : vector<2x32xf32>
    %583 = arith.addf %581, %582 : vector<2x32xf32>
    %584 = math.tanh %583 : vector<2x32xf32>
    %585 = arith.mulf %580, %584 : vector<2x32xf32>
    %cst_190 = arith.constant dense<0.000000e+00> : vector<2x32xf32>
    %586 = tpu.matmul %585, %3, %cst_190 {dimension_numbers = #tpu.dot_dimension_numbers<[1], [0], [0], [1], [0, 0, 1, 1], [], []>} : vector<2x32xf32>, vector<32x32xf32>, vector<2x32xf32> -> vector<2x32xf32>
    %587 = vector.broadcast %4 : vector<1x32xf32> to vector<2x32xf32>
    %588 = arith.addf %586, %587 : vector<2x32xf32>
    %c0_191 = arith.constant 0 : index
    %c0_192 = arith.constant 0 : index
    %c0_193 = arith.constant 0 : index
    %589 = vector.load %arg18[%c0_191, %c0_192, %c0_193] : memref<2x128x32xf32, #tpu.memory_space<vmem>>, vector<2x128x32xf32>
    %590 = vector.shape_cast %588 : vector<2x32xf32> to vector<2x1x32xf32>
    %591 = vector.broadcast %590 : vector<2x1x32xf32> to vector<2x128x32xf32>
    %592 = arith.addf %591, %589 : vector<2x128x32xf32>
    %593 = math.tanh %592 : vector<2x128x32xf32>
    %594 = vector.shape_cast %5 : vector<1x32xf32> to vector<1x1x32xf32>
    %595 = vector.broadcast %594 : vector<1x1x32xf32> to vector<2x128x32xf32>
    %596 = arith.mulf %593, %595 : vector<2x128x32xf32>
    %cst_194 = arith.constant dense<0.000000e+00> : vector<2x128xf32>
    %597 = vector.multi_reduction <add>, %596, %cst_194 [2] : vector<2x128x32xf32> to vector<2x128xf32>
    %cst_195 = arith.constant 0.000000e+00 : f32
    %598 = vector.broadcast %cst_195 : f32 to vector<2x128xf32>
    %599 = arith.cmpf oeq, %553, %598 : vector<2x128xf32>
    %cst_196 = arith.constant -1.000000e+01 : f32
    %600 = vector.broadcast %cst_196 : f32 to vector<2x128xf32>
    %601 = arith.select %599, %600, %597 : vector<2x128xi1>, vector<2x128xf32>
    %cst_197 = arith.constant -1.000000e+30 : f32
    %602 = vector.broadcast %cst_197 : f32 to vector<2x128xf32>
    %603 = arith.select %29, %601, %602 : vector<2x128xi1>, vector<2x128xf32>
    %cst_198 = arith.constant 0.000000e+00 : f32
    %604 = vector.broadcast %cst_198 : f32 to vector<2x128xf32>
    %605 = arith.cmpf oeq, %553, %604 : vector<2x128xf32>
    %cst_199 = arith.constant -1.000000e+09 : f32
    %606 = vector.broadcast %cst_199 : f32 to vector<2x128xf32>
    %607 = arith.select %605, %606, %603 : vector<2x128xi1>, vector<2x128xf32>
    %cst_200 = arith.constant dense<0xFF800000> : vector<2xf32>
    %608 = vector.multi_reduction <maximumf>, %607, %cst_200 [1] : vector<2x128xf32> to vector<2xf32>
    %609 = vector.shape_cast %608 : vector<2xf32> to vector<2x1xf32>
    %610 = vector.broadcast %609 : vector<2x1xf32> to vector<2x128xf32>
    %611 = arith.cmpf oeq, %607, %610 : vector<2x128xf32>
    %c128_i32_201 = arith.constant 128 : i32
    %612 = vector.broadcast %c128_i32_201 : i32 to vector<2x128xi32>
    %613 = arith.select %611, %26, %612 : vector<2x128xi1>, vector<2x128xi32>
    %cst_202 = arith.constant dense<2147483647> : vector<2xi32>
    %614 = vector.multi_reduction <minsi>, %613, %cst_202 [1] : vector<2x128xi32> to vector<2xi32>
    %615 = vector.shape_cast %614 : vector<2xi32> to vector<2x1xi32>
    %616 = vector.broadcast %615 : vector<2x1xi32> to vector<2x128xi32>
    %617 = arith.cmpi eq, %26, %616 : vector<2x128xi32>
    %618 = arith.extui %617 : vector<2x128xi1> to vector<2x128xi32>
    %619 = arith.sitofp %618 : vector<2x128xi32> to vector<2x128xf32>
    %cst_203 = arith.constant dense<0xFF800000> : vector<2xf32>
    %620 = vector.multi_reduction <maximumf>, %603, %cst_203 [1] : vector<2x128xf32> to vector<2xf32>
    %621 = vector.shape_cast %620 : vector<2xf32> to vector<2x1xf32>
    %622 = vector.broadcast %621 : vector<2x1xf32> to vector<2x128xf32>
    %623 = arith.subf %603, %622 : vector<2x128xf32>
    %624 = math.exp %623 : vector<2x128xf32>
    %cst_204 = arith.constant dense<0.000000e+00> : vector<2xf32>
    %625 = vector.multi_reduction <add>, %624, %cst_204 [1] : vector<2x128xf32> to vector<2xf32>
    %626 = vector.shape_cast %625 : vector<2xf32> to vector<2x1xf32>
    %627 = tpu.reciprocal %626 {approx = true} : vector<2x1xf32> -> vector<2x1xf32>
    %628 = arith.mulf %626, %627 : vector<2x1xf32>
    %cst_205 = arith.constant 2.000000e+00 : f32
    %629 = vector.broadcast %cst_205 : f32 to vector<2x1xf32>
    %630 = arith.subf %629, %628 : vector<2x1xf32>
    %631 = arith.mulf %627, %630 : vector<2x1xf32>
    %632 = vector.broadcast %631 : vector<2x1xf32> to vector<2x128xf32>
    %633 = arith.mulf %624, %632 : vector<2x128xf32>
    %cst_206 = arith.constant -1.000000e+30 : f32
    %634 = vector.broadcast %cst_206 : f32 to vector<2x128xf32>
    %635 = arith.select %29, %633, %634 : vector<2x128xi1>, vector<2x128xf32>
    %cst_207 = arith.constant dense<0xFF800000> : vector<2xf32>
    %636 = vector.multi_reduction <maximumf>, %635, %cst_207 [1] : vector<2x128xf32> to vector<2xf32>
    %637 = vector.shape_cast %636 : vector<2xf32> to vector<2x1xf32>
    %638 = vector.broadcast %637 : vector<2x1xf32> to vector<2x128xf32>
    %639 = arith.subf %635, %638 : vector<2x128xf32>
    %640 = math.exp %639 : vector<2x128xf32>
    %cst_208 = arith.constant dense<0.000000e+00> : vector<2xf32>
    %641 = vector.multi_reduction <add>, %640, %cst_208 [1] : vector<2x128xf32> to vector<2xf32>
    %642 = vector.shape_cast %641 : vector<2xf32> to vector<2x1xf32>
    %643 = math.log %642 : vector<2x1xf32>
    %644 = vector.broadcast %637 : vector<2x1xf32> to vector<2x128xf32>
    %645 = arith.subf %635, %644 : vector<2x128xf32>
    %646 = vector.broadcast %643 : vector<2x1xf32> to vector<2x128xf32>
    %647 = arith.subf %645, %646 : vector<2x128xf32>
    %648 = vector.shape_cast %647 : vector<2x128xf32> to vector<2x1x128xf32>
    %c0_209 = arith.constant 0 : index
    %649 = arith.index_cast %c5_i32 : i32 to index
    %c0_210 = arith.constant 0 : index
    %650 = vector.load %arg14[%c0_209, %649, %c0_210] : memref<2x8x128xf32, #tpu.memory_space<vmem>>, vector<2x1x128xf32>
    tpu.vector_store %arg14[%c0_209, %649, %c0_210], %648 {strides = array<i32>} : memref<2x8x128xf32, #tpu.memory_space<vmem>>, vector<2x1x128xf32>,
    %651 = vector.broadcast %c5_i32 : i32 to vector<2x8xi32>
    %652 = arith.cmpi eq, %27, %651 : vector<2x8xi32>
    %653 = vector.shape_cast %615 : vector<2x1xi32> to vector<2x1xi32>
    %654 = vector.broadcast %653 : vector<2x1xi32> to vector<2x8xi32>
    %655 = arith.select %652, %654, %550 : vector<2x8xi1>, vector<2x8xi32>
    %cst_211 = arith.constant 1.000000e+00 : f32
    %656 = vector.broadcast %cst_211 : f32 to vector<2x128xf32>
    %657 = arith.subf %656, %619 : vector<2x128xf32>
    %658 = arith.mulf %553, %657 : vector<2x128xf32>
    %659 = vector.shape_cast %619 : vector<2x128xf32> to vector<2x128x1xf32>
    %c0_212 = arith.constant 0 : index
    %c0_213 = arith.constant 0 : index
    %c0_214 = arith.constant 0 : index
    %660 = vector.load %arg19[%c0_212, %c0_213, %c0_214] : memref<2x128x128xf32, #tpu.memory_space<vmem>>, vector<2x128x128xf32>
    %661 = vector.broadcast %659 : vector<2x128x1xf32> to vector<2x128x128xf32>
    %662 = arith.mulf %661, %660 : vector<2x128x128xf32>
    %cst_215 = arith.constant dense<0.000000e+00> : vector<2x128xf32>
    %663 = vector.multi_reduction <add>, %662, %cst_215 [1] : vector<2x128x128xf32> to vector<2x128xf32>
    %c6_i32 = arith.constant 6 : i32
    %cst_216 = arith.constant dense<0.000000e+00> : vector<2x128xf32>
    %664 = tpu.matmul %585, %1, %cst_216 {dimension_numbers = #tpu.dot_dimension_numbers<[1], [0], [0], [1], [0, 0, 1, 1], [], []>} : vector<2x32xf32>, vector<32x128xf32>, vector<2x128xf32> -> vector<2x128xf32>
    %665 = arith.addf %663, %664 : vector<2x128xf32>
    %666 = vector.extract_strided_slice %665 {offsets = [0, 0], sizes = [2, 32], strides = [1, 1]} : vector<2x128xf32> to vector<2x32xf32>
    %667 = arith.negf %666 : vector<2x32xf32>
    %668 = math.exp %667 : vector<2x32xf32>
    %cst_217 = arith.constant 1.000000e+00 : f32
    %669 = vector.broadcast %cst_217 : f32 to vector<2x32xf32>
    %670 = arith.addf %669, %668 : vector<2x32xf32>
    %671 = arith.divf %669, %670 : vector<2x32xf32>
    %672 = vector.extract_strided_slice %665 {offsets = [0, 32], sizes = [2, 32], strides = [1, 1]} : vector<2x128xf32> to vector<2x32xf32>
    %673 = arith.negf %672 : vector<2x32xf32>
    %674 = math.exp %673 : vector<2x32xf32>
    %cst_218 = arith.constant 1.000000e+00 : f32
    %675 = vector.broadcast %cst_218 : f32 to vector<2x32xf32>
    %676 = arith.addf %675, %674 : vector<2x32xf32>
    %677 = arith.divf %675, %676 : vector<2x32xf32>
    %678 = vector.extract_strided_slice %665 {offsets = [0, 64], sizes = [2, 32], strides = [1, 1]} : vector<2x128xf32> to vector<2x32xf32>
    %679 = math.tanh %678 : vector<2x32xf32>
    %680 = vector.extract_strided_slice %665 {offsets = [0, 96], sizes = [2, 32], strides = [1, 1]} : vector<2x128xf32> to vector<2x32xf32>
    %681 = arith.negf %680 : vector<2x32xf32>
    %682 = math.exp %681 : vector<2x32xf32>
    %cst_219 = arith.constant 1.000000e+00 : f32
    %683 = vector.broadcast %cst_219 : f32 to vector<2x32xf32>
    %684 = arith.addf %683, %682 : vector<2x32xf32>
    %685 = arith.divf %683, %684 : vector<2x32xf32>
    %686 = arith.mulf %677, %583 : vector<2x32xf32>
    %687 = arith.mulf %671, %679 : vector<2x32xf32>
    %688 = arith.addf %686, %687 : vector<2x32xf32>
    %689 = math.tanh %688 : vector<2x32xf32>
    %690 = arith.mulf %685, %689 : vector<2x32xf32>
    %cst_220 = arith.constant dense<0.000000e+00> : vector<2x32xf32>
    %691 = tpu.matmul %690, %3, %cst_220 {dimension_numbers = #tpu.dot_dimension_numbers<[1], [0], [0], [1], [0, 0, 1, 1], [], []>} : vector<2x32xf32>, vector<32x32xf32>, vector<2x32xf32> -> vector<2x32xf32>
    %692 = vector.broadcast %4 : vector<1x32xf32> to vector<2x32xf32>
    %693 = arith.addf %691, %692 : vector<2x32xf32>
    %c0_221 = arith.constant 0 : index
    %c0_222 = arith.constant 0 : index
    %c0_223 = arith.constant 0 : index
    %694 = vector.load %arg18[%c0_221, %c0_222, %c0_223] : memref<2x128x32xf32, #tpu.memory_space<vmem>>, vector<2x128x32xf32>
    %695 = vector.shape_cast %693 : vector<2x32xf32> to vector<2x1x32xf32>
    %696 = vector.broadcast %695 : vector<2x1x32xf32> to vector<2x128x32xf32>
    %697 = arith.addf %696, %694 : vector<2x128x32xf32>
    %698 = math.tanh %697 : vector<2x128x32xf32>
    %699 = vector.shape_cast %5 : vector<1x32xf32> to vector<1x1x32xf32>
    %700 = vector.broadcast %699 : vector<1x1x32xf32> to vector<2x128x32xf32>
    %701 = arith.mulf %698, %700 : vector<2x128x32xf32>
    %cst_224 = arith.constant dense<0.000000e+00> : vector<2x128xf32>
    %702 = vector.multi_reduction <add>, %701, %cst_224 [2] : vector<2x128x32xf32> to vector<2x128xf32>
    %cst_225 = arith.constant 0.000000e+00 : f32
    %703 = vector.broadcast %cst_225 : f32 to vector<2x128xf32>
    %704 = arith.cmpf oeq, %658, %703 : vector<2x128xf32>
    %cst_226 = arith.constant -1.000000e+01 : f32
    %705 = vector.broadcast %cst_226 : f32 to vector<2x128xf32>
    %706 = arith.select %704, %705, %702 : vector<2x128xi1>, vector<2x128xf32>
    %cst_227 = arith.constant -1.000000e+30 : f32
    %707 = vector.broadcast %cst_227 : f32 to vector<2x128xf32>
    %708 = arith.select %29, %706, %707 : vector<2x128xi1>, vector<2x128xf32>
    %cst_228 = arith.constant 0.000000e+00 : f32
    %709 = vector.broadcast %cst_228 : f32 to vector<2x128xf32>
    %710 = arith.cmpf oeq, %658, %709 : vector<2x128xf32>
    %cst_229 = arith.constant -1.000000e+09 : f32
    %711 = vector.broadcast %cst_229 : f32 to vector<2x128xf32>
    %712 = arith.select %710, %711, %708 : vector<2x128xi1>, vector<2x128xf32>
    %cst_230 = arith.constant dense<0xFF800000> : vector<2xf32>
    %713 = vector.multi_reduction <maximumf>, %712, %cst_230 [1] : vector<2x128xf32> to vector<2xf32>
    %714 = vector.shape_cast %713 : vector<2xf32> to vector<2x1xf32>
    %715 = vector.broadcast %714 : vector<2x1xf32> to vector<2x128xf32>
    %716 = arith.cmpf oeq, %712, %715 : vector<2x128xf32>
    %c128_i32_231 = arith.constant 128 : i32
    %717 = vector.broadcast %c128_i32_231 : i32 to vector<2x128xi32>
    %718 = arith.select %716, %26, %717 : vector<2x128xi1>, vector<2x128xi32>
    %cst_232 = arith.constant dense<2147483647> : vector<2xi32>
    %719 = vector.multi_reduction <minsi>, %718, %cst_232 [1] : vector<2x128xi32> to vector<2xi32>
    %720 = vector.shape_cast %719 : vector<2xi32> to vector<2x1xi32>
    %721 = vector.broadcast %720 : vector<2x1xi32> to vector<2x128xi32>
    %722 = arith.cmpi eq, %26, %721 : vector<2x128xi32>
    %723 = arith.extui %722 : vector<2x128xi1> to vector<2x128xi32>
    %724 = arith.sitofp %723 : vector<2x128xi32> to vector<2x128xf32>
    %cst_233 = arith.constant dense<0xFF800000> : vector<2xf32>
    %725 = vector.multi_reduction <maximumf>, %708, %cst_233 [1] : vector<2x128xf32> to vector<2xf32>
    %726 = vector.shape_cast %725 : vector<2xf32> to vector<2x1xf32>
    %727 = vector.broadcast %726 : vector<2x1xf32> to vector<2x128xf32>
    %728 = arith.subf %708, %727 : vector<2x128xf32>
    %729 = math.exp %728 : vector<2x128xf32>
    %cst_234 = arith.constant dense<0.000000e+00> : vector<2xf32>
    %730 = vector.multi_reduction <add>, %729, %cst_234 [1] : vector<2x128xf32> to vector<2xf32>
    %731 = vector.shape_cast %730 : vector<2xf32> to vector<2x1xf32>
    %732 = tpu.reciprocal %731 {approx = true} : vector<2x1xf32> -> vector<2x1xf32>
    %733 = arith.mulf %731, %732 : vector<2x1xf32>
    %cst_235 = arith.constant 2.000000e+00 : f32
    %734 = vector.broadcast %cst_235 : f32 to vector<2x1xf32>
    %735 = arith.subf %734, %733 : vector<2x1xf32>
    %736 = arith.mulf %732, %735 : vector<2x1xf32>
    %737 = vector.broadcast %736 : vector<2x1xf32> to vector<2x128xf32>
    %738 = arith.mulf %729, %737 : vector<2x128xf32>
    %cst_236 = arith.constant -1.000000e+30 : f32
    %739 = vector.broadcast %cst_236 : f32 to vector<2x128xf32>
    %740 = arith.select %29, %738, %739 : vector<2x128xi1>, vector<2x128xf32>
    %cst_237 = arith.constant dense<0xFF800000> : vector<2xf32>
    %741 = vector.multi_reduction <maximumf>, %740, %cst_237 [1] : vector<2x128xf32> to vector<2xf32>
    %742 = vector.shape_cast %741 : vector<2xf32> to vector<2x1xf32>
    %743 = vector.broadcast %742 : vector<2x1xf32> to vector<2x128xf32>
    %744 = arith.subf %740, %743 : vector<2x128xf32>
    %745 = math.exp %744 : vector<2x128xf32>
    %cst_238 = arith.constant dense<0.000000e+00> : vector<2xf32>
    %746 = vector.multi_reduction <add>, %745, %cst_238 [1] : vector<2x128xf32> to vector<2xf32>
    %747 = vector.shape_cast %746 : vector<2xf32> to vector<2x1xf32>
    %748 = math.log %747 : vector<2x1xf32>
    %749 = vector.broadcast %742 : vector<2x1xf32> to vector<2x128xf32>
    %750 = arith.subf %740, %749 : vector<2x128xf32>
    %751 = vector.broadcast %748 : vector<2x1xf32> to vector<2x128xf32>
    %752 = arith.subf %750, %751 : vector<2x128xf32>
    %753 = vector.shape_cast %752 : vector<2x128xf32> to vector<2x1x128xf32>
    %c0_239 = arith.constant 0 : index
    %754 = arith.index_cast %c6_i32 : i32 to index
    %c0_240 = arith.constant 0 : index
    %755 = vector.load %arg14[%c0_239, %754, %c0_240] : memref<2x8x128xf32, #tpu.memory_space<vmem>>, vector<2x1x128xf32>
    tpu.vector_store %arg14[%c0_239, %754, %c0_240], %753 {strides = array<i32>} : memref<2x8x128xf32, #tpu.memory_space<vmem>>, vector<2x1x128xf32>,
    %756 = vector.broadcast %c6_i32 : i32 to vector<2x8xi32>
    %757 = arith.cmpi eq, %27, %756 : vector<2x8xi32>
    %758 = vector.shape_cast %720 : vector<2x1xi32> to vector<2x1xi32>
    %759 = vector.broadcast %758 : vector<2x1xi32> to vector<2x8xi32>
    %760 = arith.select %757, %759, %655 : vector<2x8xi1>, vector<2x8xi32>
    %cst_241 = arith.constant 1.000000e+00 : f32
    %761 = vector.broadcast %cst_241 : f32 to vector<2x128xf32>
    %762 = arith.subf %761, %724 : vector<2x128xf32>
    %763 = arith.mulf %658, %762 : vector<2x128xf32>
    %764 = vector.shape_cast %724 : vector<2x128xf32> to vector<2x128x1xf32>
    %c0_242 = arith.constant 0 : index
    %c0_243 = arith.constant 0 : index
    %c0_244 = arith.constant 0 : index
    %765 = vector.load %arg19[%c0_242, %c0_243, %c0_244] : memref<2x128x128xf32, #tpu.memory_space<vmem>>, vector<2x128x128xf32>
    %766 = vector.broadcast %764 : vector<2x128x1xf32> to vector<2x128x128xf32>
    %767 = arith.mulf %766, %765 : vector<2x128x128xf32>
    %cst_245 = arith.constant dense<0.000000e+00> : vector<2x128xf32>
    %768 = vector.multi_reduction <add>, %767, %cst_245 [1] : vector<2x128x128xf32> to vector<2x128xf32>
    %c7_i32 = arith.constant 7 : i32
    %cst_246 = arith.constant dense<0.000000e+00> : vector<2x128xf32>
    %769 = tpu.matmul %690, %1, %cst_246 {dimension_numbers = #tpu.dot_dimension_numbers<[1], [0], [0], [1], [0, 0, 1, 1], [], []>} : vector<2x32xf32>, vector<32x128xf32>, vector<2x128xf32> -> vector<2x128xf32>
    %770 = arith.addf %768, %769 : vector<2x128xf32>
    %771 = vector.extract_strided_slice %770 {offsets = [0, 0], sizes = [2, 32], strides = [1, 1]} : vector<2x128xf32> to vector<2x32xf32>
    %772 = arith.negf %771 : vector<2x32xf32>
    %773 = math.exp %772 : vector<2x32xf32>
    %cst_247 = arith.constant 1.000000e+00 : f32
    %774 = vector.broadcast %cst_247 : f32 to vector<2x32xf32>
    %775 = arith.addf %774, %773 : vector<2x32xf32>
    %776 = arith.divf %774, %775 : vector<2x32xf32>
    %777 = vector.extract_strided_slice %770 {offsets = [0, 32], sizes = [2, 32], strides = [1, 1]} : vector<2x128xf32> to vector<2x32xf32>
    %778 = arith.negf %777 : vector<2x32xf32>
    %779 = math.exp %778 : vector<2x32xf32>
    %cst_248 = arith.constant 1.000000e+00 : f32
    %780 = vector.broadcast %cst_248 : f32 to vector<2x32xf32>
    %781 = arith.addf %780, %779 : vector<2x32xf32>
    %782 = arith.divf %780, %781 : vector<2x32xf32>
    %783 = vector.extract_strided_slice %770 {offsets = [0, 64], sizes = [2, 32], strides = [1, 1]} : vector<2x128xf32> to vector<2x32xf32>
    %784 = math.tanh %783 : vector<2x32xf32>
    %785 = vector.extract_strided_slice %770 {offsets = [0, 96], sizes = [2, 32], strides = [1, 1]} : vector<2x128xf32> to vector<2x32xf32>
    %786 = arith.negf %785 : vector<2x32xf32>
    %787 = math.exp %786 : vector<2x32xf32>
    %cst_249 = arith.constant 1.000000e+00 : f32
    %788 = vector.broadcast %cst_249 : f32 to vector<2x32xf32>
    %789 = arith.addf %788, %787 : vector<2x32xf32>
    %790 = arith.divf %788, %789 : vector<2x32xf32>
    %791 = arith.mulf %782, %688 : vector<2x32xf32>
    %792 = arith.mulf %776, %784 : vector<2x32xf32>
    %793 = arith.addf %791, %792 : vector<2x32xf32>
    %794 = math.tanh %793 : vector<2x32xf32>
    %795 = arith.mulf %790, %794 : vector<2x32xf32>
    %cst_250 = arith.constant dense<0.000000e+00> : vector<2x32xf32>
    %796 = tpu.matmul %795, %3, %cst_250 {dimension_numbers = #tpu.dot_dimension_numbers<[1], [0], [0], [1], [0, 0, 1, 1], [], []>} : vector<2x32xf32>, vector<32x32xf32>, vector<2x32xf32> -> vector<2x32xf32>
    %797 = vector.broadcast %4 : vector<1x32xf32> to vector<2x32xf32>
    %798 = arith.addf %796, %797 : vector<2x32xf32>
    %c0_251 = arith.constant 0 : index
    %c0_252 = arith.constant 0 : index
    %c0_253 = arith.constant 0 : index
    %799 = vector.load %arg18[%c0_251, %c0_252, %c0_253] : memref<2x128x32xf32, #tpu.memory_space<vmem>>, vector<2x128x32xf32>
    %800 = vector.shape_cast %798 : vector<2x32xf32> to vector<2x1x32xf32>
    %801 = vector.broadcast %800 : vector<2x1x32xf32> to vector<2x128x32xf32>
    %802 = arith.addf %801, %799 : vector<2x128x32xf32>
    %803 = math.tanh %802 : vector<2x128x32xf32>
    %804 = vector.shape_cast %5 : vector<1x32xf32> to vector<1x1x32xf32>
    %805 = vector.broadcast %804 : vector<1x1x32xf32> to vector<2x128x32xf32>
    %806 = arith.mulf %803, %805 : vector<2x128x32xf32>
    %cst_254 = arith.constant dense<0.000000e+00> : vector<2x128xf32>
    %807 = vector.multi_reduction <add>, %806, %cst_254 [2] : vector<2x128x32xf32> to vector<2x128xf32>
    %cst_255 = arith.constant 0.000000e+00 : f32
    %808 = vector.broadcast %cst_255 : f32 to vector<2x128xf32>
    %809 = arith.cmpf oeq, %763, %808 : vector<2x128xf32>
    %cst_256 = arith.constant -1.000000e+01 : f32
    %810 = vector.broadcast %cst_256 : f32 to vector<2x128xf32>
    %811 = arith.select %809, %810, %807 : vector<2x128xi1>, vector<2x128xf32>
    %cst_257 = arith.constant -1.000000e+30 : f32
    %812 = vector.broadcast %cst_257 : f32 to vector<2x128xf32>
    %813 = arith.select %29, %811, %812 : vector<2x128xi1>, vector<2x128xf32>
    %cst_258 = arith.constant 0.000000e+00 : f32
    %814 = vector.broadcast %cst_258 : f32 to vector<2x128xf32>
    %815 = arith.cmpf oeq, %763, %814 : vector<2x128xf32>
    %cst_259 = arith.constant -1.000000e+09 : f32
    %816 = vector.broadcast %cst_259 : f32 to vector<2x128xf32>
    %817 = arith.select %815, %816, %813 : vector<2x128xi1>, vector<2x128xf32>
    %cst_260 = arith.constant dense<0xFF800000> : vector<2xf32>
    %818 = vector.multi_reduction <maximumf>, %817, %cst_260 [1] : vector<2x128xf32> to vector<2xf32>
    %819 = vector.shape_cast %818 : vector<2xf32> to vector<2x1xf32>
    %820 = vector.broadcast %819 : vector<2x1xf32> to vector<2x128xf32>
    %821 = arith.cmpf oeq, %817, %820 : vector<2x128xf32>
    %c128_i32_261 = arith.constant 128 : i32
    %822 = vector.broadcast %c128_i32_261 : i32 to vector<2x128xi32>
    %823 = arith.select %821, %26, %822 : vector<2x128xi1>, vector<2x128xi32>
    %cst_262 = arith.constant dense<2147483647> : vector<2xi32>
    %824 = vector.multi_reduction <minsi>, %823, %cst_262 [1] : vector<2x128xi32> to vector<2xi32>
    %825 = vector.shape_cast %824 : vector<2xi32> to vector<2x1xi32>
    %826 = vector.broadcast %825 : vector<2x1xi32> to vector<2x128xi32>
    %827 = arith.cmpi eq, %26, %826 : vector<2x128xi32>
    %828 = arith.extui %827 : vector<2x128xi1> to vector<2x128xi32>
    %829 = arith.sitofp %828 : vector<2x128xi32> to vector<2x128xf32>
    %cst_263 = arith.constant dense<0xFF800000> : vector<2xf32>
    %830 = vector.multi_reduction <maximumf>, %813, %cst_263 [1] : vector<2x128xf32> to vector<2xf32>
    %831 = vector.shape_cast %830 : vector<2xf32> to vector<2x1xf32>
    %832 = vector.broadcast %831 : vector<2x1xf32> to vector<2x128xf32>
    %833 = arith.subf %813, %832 : vector<2x128xf32>
    %834 = math.exp %833 : vector<2x128xf32>
    %cst_264 = arith.constant dense<0.000000e+00> : vector<2xf32>
    %835 = vector.multi_reduction <add>, %834, %cst_264 [1] : vector<2x128xf32> to vector<2xf32>
    %836 = vector.shape_cast %835 : vector<2xf32> to vector<2x1xf32>
    %837 = tpu.reciprocal %836 {approx = true} : vector<2x1xf32> -> vector<2x1xf32>
    %838 = arith.mulf %836, %837 : vector<2x1xf32>
    %cst_265 = arith.constant 2.000000e+00 : f32
    %839 = vector.broadcast %cst_265 : f32 to vector<2x1xf32>
    %840 = arith.subf %839, %838 : vector<2x1xf32>
    %841 = arith.mulf %837, %840 : vector<2x1xf32>
    %842 = vector.broadcast %841 : vector<2x1xf32> to vector<2x128xf32>
    %843 = arith.mulf %834, %842 : vector<2x128xf32>
    %cst_266 = arith.constant -1.000000e+30 : f32
    %844 = vector.broadcast %cst_266 : f32 to vector<2x128xf32>
    %845 = arith.select %29, %843, %844 : vector<2x128xi1>, vector<2x128xf32>
    %cst_267 = arith.constant dense<0xFF800000> : vector<2xf32>
    %846 = vector.multi_reduction <maximumf>, %845, %cst_267 [1] : vector<2x128xf32> to vector<2xf32>
    %847 = vector.shape_cast %846 : vector<2xf32> to vector<2x1xf32>
    %848 = vector.broadcast %847 : vector<2x1xf32> to vector<2x128xf32>
    %849 = arith.subf %845, %848 : vector<2x128xf32>
    %850 = math.exp %849 : vector<2x128xf32>
    %cst_268 = arith.constant dense<0.000000e+00> : vector<2xf32>
    %851 = vector.multi_reduction <add>, %850, %cst_268 [1] : vector<2x128xf32> to vector<2xf32>
    %852 = vector.shape_cast %851 : vector<2xf32> to vector<2x1xf32>
    %853 = math.log %852 : vector<2x1xf32>
    %854 = vector.broadcast %847 : vector<2x1xf32> to vector<2x128xf32>
    %855 = arith.subf %845, %854 : vector<2x128xf32>
    %856 = vector.broadcast %853 : vector<2x1xf32> to vector<2x128xf32>
    %857 = arith.subf %855, %856 : vector<2x128xf32>
    %858 = vector.shape_cast %857 : vector<2x128xf32> to vector<2x1x128xf32>
    %c0_269 = arith.constant 0 : index
    %859 = arith.index_cast %c7_i32 : i32 to index
    %c0_270 = arith.constant 0 : index
    %860 = vector.load %arg14[%c0_269, %859, %c0_270] : memref<2x8x128xf32, #tpu.memory_space<vmem>>, vector<2x1x128xf32>
    tpu.vector_store %arg14[%c0_269, %859, %c0_270], %858 {strides = array<i32>} : memref<2x8x128xf32, #tpu.memory_space<vmem>>, vector<2x1x128xf32>,
    %861 = vector.broadcast %c7_i32 : i32 to vector<2x8xi32>
    %862 = arith.cmpi eq, %27, %861 : vector<2x8xi32>
    %863 = vector.shape_cast %825 : vector<2x1xi32> to vector<2x1xi32>
    %864 = vector.broadcast %863 : vector<2x1xi32> to vector<2x8xi32>
    %865 = arith.select %862, %864, %760 : vector<2x8xi1>, vector<2x8xi32>
    %cst_271 = arith.constant 1.000000e+00 : f32
    %866 = vector.broadcast %cst_271 : f32 to vector<2x128xf32>
    %867 = arith.subf %866, %829 : vector<2x128xf32>
    %868 = arith.mulf %763, %867 : vector<2x128xf32>
    %869 = vector.shape_cast %829 : vector<2x128xf32> to vector<2x128x1xf32>
    %c0_272 = arith.constant 0 : index
    %c0_273 = arith.constant 0 : index
    %c0_274 = arith.constant 0 : index
    %870 = vector.load %arg19[%c0_272, %c0_273, %c0_274] : memref<2x128x128xf32, #tpu.memory_space<vmem>>, vector<2x128x128xf32>
    %871 = vector.broadcast %869 : vector<2x128x1xf32> to vector<2x128x128xf32>
    %872 = arith.mulf %871, %870 : vector<2x128x128xf32>
    %cst_275 = arith.constant dense<0.000000e+00> : vector<2x128xf32>
    %873 = vector.multi_reduction <add>, %872, %cst_275 [1] : vector<2x128x128xf32> to vector<2x128xf32>
    %c8_i32_276 = arith.constant 8 : i32
    %c0_277 = arith.constant 0 : index
    %c0_278 = arith.constant 0 : index
    %874 = vector.load %arg16[%c0_277, %c0_278] : memref<2x32xf32, #tpu.memory_space<vmem>>, vector<2x32xf32>
    tpu.vector_store %arg16[%c0_277, %c0_278], %795 {strides = array<i32>} : memref<2x32xf32, #tpu.memory_space<vmem>>, vector<2x32xf32>,
    %c0_279 = arith.constant 0 : index
    %c0_280 = arith.constant 0 : index
    %875 = vector.load %arg17[%c0_279, %c0_280] : memref<2x32xf32, #tpu.memory_space<vmem>>, vector<2x32xf32>
    tpu.vector_store %arg17[%c0_279, %c0_280], %793 {strides = array<i32>} : memref<2x32xf32, #tpu.memory_space<vmem>>, vector<2x32xf32>,
    %c0_281 = arith.constant 0 : index
    %c0_282 = arith.constant 0 : index
    %876 = vector.load %arg15[%c0_281, %c0_282] : memref<2x8xi32, #tpu.memory_space<vmem>>, vector<2x8xi32>
    tpu.vector_store %arg15[%c0_281, %c0_282], %865 {strides = array<i32>} : memref<2x8xi32, #tpu.memory_space<vmem>>, vector<2x8xi32>,
    return
  }
  func.func @transform_0(%arg0: i32) -> (i32, i32, i32) {
    %c0_i32 = arith.constant 0 : i32
    %c0_i32_0 = arith.constant 0 : i32
    %c0_i32_1 = arith.constant 0 : i32
    return %arg0, %c0_i32, %c0_i32_0 : i32, i32, i32
  }
  func.func @transform_1(%arg0: i32) -> (i32, i32) {
    %c0_i32 = arith.constant 0 : i32
    %c0_i32_0 = arith.constant 0 : i32
    return %arg0, %c0_i32 : i32, i32
  }
  func.func @transform_2(%arg0: i32) -> (i32, i32) {
    %c0_i32 = arith.constant 0 : i32
    %c0_i32_0 = arith.constant 0 : i32
    return %arg0, %c0_i32 : i32, i32
  }
  func.func @transform_3(%arg0: i32) -> (i32, i32) {
    %c0_i32 = arith.constant 0 : i32
    %c0_i32_0 = arith.constant 0 : i32
    return %arg0, %c0_i32 : i32, i32
  }
  func.func @transform_4(%arg0: i32) -> (i32, i32, i32) {
    %c0_i32 = arith.constant 0 : i32
    %c0_i32_0 = arith.constant 0 : i32
    %c0_i32_1 = arith.constant 0 : i32
    return %arg0, %c0_i32, %c0_i32_0 : i32, i32, i32
  }
  func.func @transform_5(%arg0: i32) -> (i32, i32) {
    %c0_i32 = arith.constant 0 : i32
    %c0_i32_0 = arith.constant 0 : i32
    %c0_i32_1 = arith.constant 0 : i32
    return %c0_i32, %c0_i32_0 : i32, i32
  }
  func.func @transform_6(%arg0: i32) -> (i32, i32) {
    %c0_i32 = arith.constant 0 : i32
    %c0_i32_0 = arith.constant 0 : i32
    %c0_i32_1 = arith.constant 0 : i32
    return %c0_i32, %c0_i32_0 : i32, i32
  }
  func.func @transform_7(%arg0: i32) -> (i32, i32) {
    %c0_i32 = arith.constant 0 : i32
    %c0_i32_0 = arith.constant 0 : i32
    %c0_i32_1 = arith.constant 0 : i32
    return %c0_i32, %c0_i32_0 : i32, i32
  }
  func.func @transform_8(%arg0: i32) -> (i32, i32) {
    %c0_i32 = arith.constant 0 : i32
    %c0_i32_0 = arith.constant 0 : i32
    %c0_i32_1 = arith.constant 0 : i32
    return %c0_i32, %c0_i32_0 : i32, i32
  }
  func.func @transform_9(%arg0: i32) -> (i32, i32) {
    %c0_i32 = arith.constant 0 : i32
    %c0_i32_0 = arith.constant 0 : i32
    %c0_i32_1 = arith.constant 0 : i32
    return %c0_i32, %c0_i32_0 : i32, i32
  }
  func.func @transform_10(%arg0: i32) -> (i32, i32) {
    %c0_i32 = arith.constant 0 : i32
    %c0_i32_0 = arith.constant 0 : i32
    %c0_i32_1 = arith.constant 0 : i32
    return %c0_i32, %c0_i32_0 : i32, i32
  }
  func.func @transform_11(%arg0: i32) -> (i32, i32) {
    %c0_i32 = arith.constant 0 : i32
    %c0_i32_0 = arith.constant 0 : i32
    %c0_i32_1 = arith.constant 0 : i32
    return %c0_i32, %c0_i32_0 : i32, i32
  }
  func.func @transform_12(%arg0: i32) -> (i32, i32) {
    %c0_i32 = arith.constant 0 : i32
    %c0_i32_0 = arith.constant 0 : i32
    %c0_i32_1 = arith.constant 0 : i32
    return %c0_i32, %c0_i32_0 : i32, i32
  }
  func.func @transform_13(%arg0: i32) -> (i32, i32, i32) {
    %c0_i32 = arith.constant 0 : i32
    %c0_i32_0 = arith.constant 0 : i32
    %c0_i32_1 = arith.constant 0 : i32
    return %arg0, %c0_i32, %c0_i32_0 : i32, i32, i32
  }
  func.func @transform_14(%arg0: i32) -> (i32, i32) {
    %c0_i32 = arith.constant 0 : i32
    %c0_i32_0 = arith.constant 0 : i32
    return %arg0, %c0_i32 : i32, i32
  }
  func.func @transform_15(%arg0: i32) -> (i32, i32) {
    %c0_i32 = arith.constant 0 : i32
    %c0_i32_0 = arith.constant 0 : i32
    return %arg0, %c0_i32 : i32, i32
  }
  func.func @transform_16(%arg0: i32) -> (i32, i32) {
    %c0_i32 = arith.constant 0 : i32
    %c0_i32_0 = arith.constant 0 : i32
    return %arg0, %c0_i32 : i32, i32
  }
}

</mosaic_0001>

<llo_original>
// kernel: tpu_custom_call.1
$region0: #{tpu_custom_call.1}
  #allocation0 [shape = 'u32[]', space=smem, size = 0x4, offset = 0x4, fixed_abs, tag = 'smem constant byte address 0x4 - core index']
  #allocation1 [shape = 'u32[144,128]{1,0:T(1,128)}', space=vmem, size = 0x12000, scoped, tag = 'internal scratch']
  #allocation2 [shape = 'f32[2,128,32]{2,1,0:T(8,128)}', space=vmem, size = 0x20000, scoped, tag = 'scratch operand']
  #allocation3 [shape = 'f32[2,128,128]{2,1,0:T(8,128)}', space=vmem, size = 0x20000, scoped, tag = 'scratch operand']
  %s0 = inlined_call_operand.vmem [shape: f32[2,128,16], index: 0, kind: input, shape index: {}]
  %s1 = inlined_call_operand.vmem [shape: f32[2,16], index: 1, kind: input, shape index: {}]
  %s2 = inlined_call_operand.vmem [shape: f32[2,32], index: 2, kind: input, shape index: {}]
  %s3 = inlined_call_operand.vmem [shape: f32[2,32], index: 3, kind: input, shape index: {}]
  %s4 = inlined_call_operand.vmem [shape: f32[2,128,32], index: 4, kind: input, shape index: {}]
  %s5 = inlined_call_operand.vmem [shape: f32[16,128], index: 5, kind: input, shape index: {}]
  %s6 = inlined_call_operand.vmem [shape: f32[32,128], index: 6, kind: input, shape index: {}]
  %s7 = inlined_call_operand.vmem [shape: f32[1,128], index: 7, kind: input, shape index: {}]
  %s8 = inlined_call_operand.vmem [shape: f32[32,32], index: 8, kind: input, shape index: {}]
  %s9 = inlined_call_operand.vmem [shape: f32[1,32], index: 9, kind: input, shape index: {}]
  %s10 = inlined_call_operand.vmem [shape: f32[32,32], index: 10, kind: input, shape index: {}]
  %s11 = inlined_call_operand.vmem [shape: f32[1,32], index: 11, kind: input, shape index: {}]
  %s12 = inlined_call_operand.vmem [shape: f32[1,32], index: 12, kind: input, shape index: {}]
  %s13 = inlined_call_operand.hbm [shape: f32[2,8,128], index: 13, kind: output, shape index: {0}]
  %s14 = inlined_call_operand.hbm [shape: s32[2,8], index: 14, kind: output, shape index: {1}]
  %s15 = inlined_call_operand.hbm [shape: f32[2,32], index: 15, kind: output, shape index: {2}]
  %s16 = inlined_call_operand.hbm [shape: f32[2,32], index: 16, kind: output, shape index: {3}]
  %17 = xla_tuple %s13, %s14, %s15, %s16
  %s18 = sld [smem:[#allocation0]]
  $region86: #{tpu_custom_call.1} parent=0
    _
  %s20 = ssub.s32 1, %s18
  %s21 = scalar_select 0, %s20, %s18
  $region1: #{tpu_custom_call.1} parent=0
    #allocation4 [shape = 'u8[8192]{0}', space=vmem, size = 0x2000, scoped, tag = 'output window, operand 0, single buffered']
    #allocation5 [shape = 's32[1]{0}', space=sflag, size = 0x4, scoped, tag = 'scoped memory for tpu_custom_call.1']
    #allocation6 [shape = 'u8[1024]{0}', space=vmem, size = 0x400, scoped, tag = 'output window, operand 1, single buffered']
    #allocation7 [shape = 's32[1]{0}', space=sflag, size = 0x4, scoped, tag = 'scoped memory for tpu_custom_call.1']
    #allocation8 [shape = 'u8[1024]{0}', space=vmem, size = 0x400, scoped, tag = 'output window, operand 2, single buffered']
    #allocation9 [shape = 'u8[1024]{0}', space=vmem, size = 0x400, scoped, tag = 'output window, operand 3, single buffered']
    #allocation10 [shape = 's32[1]{0}', space=sflag, size = 0x4, scoped, tag = 'scoped memory for tpu_custom_call.1']
    %22 = vsyncpa [#allocation5], 0
    %23 = vsyncpa [#allocation7], 0
    %24 = vsyncpa [#allocation10], 0
    // Predicated region
    $region2: #{tpu_custom_call.1} parent=1 // pred_check
      _
    $region3: #{tpu_custom_call.1} parent=1 // pred_check_branch
      %26 = sbr.rel (0) target = $region5
    $region4: #{tpu_custom_call.1} parent=1 // pred_region
      _
    $region5: #{tpu_custom_call.1} parent=1 // pred_fallthru
      _
    // Predicated region
    $region6: #{tpu_custom_call.1} parent=1 // pred_check
      _
    $region7: #{tpu_custom_call.1} parent=1 // pred_check_branch
      %28 = sbr.rel (0) target = $region9
    $region8: #{tpu_custom_call.1} parent=1 // pred_region
      _
    $region9: #{tpu_custom_call.1} parent=1 // pred_fallthru
      _
    // Predicated region
    $region10: #{tpu_custom_call.1} parent=1 // pred_check
      _
    $region11: #{tpu_custom_call.1} parent=1 // pred_check_branch
      %30 = sbr.rel (0) target = $region13
    $region12: #{tpu_custom_call.1} parent=1 // pred_region
      _
    $region13: #{tpu_custom_call.1} parent=1 // pred_fallthru
      _
    // Predicated region
    $region14: #{tpu_custom_call.1} parent=1 // pred_check
      _
    $region15: #{tpu_custom_call.1} parent=1 // pred_check_branch
      %32 = sbr.rel (0) target = $region17
    $region16: #{tpu_custom_call.1} parent=1 // pred_region
      _
    $region17: #{tpu_custom_call.1} parent=1 // pred_fallthru
      _
    // Predicated region
    $region18: #{tpu_custom_call.1} parent=1 // pred_check
      _
    $region19: #{tpu_custom_call.1} parent=1 // pred_check_branch
      %34 = sbr.rel (0) target = $region21
    $region20: #{tpu_custom_call.1} parent=1 // pred_region
      _
    $region21: #{tpu_custom_call.1} parent=1 // pred_fallthru
      _
    // Predicated region
    $region22: #{tpu_custom_call.1} parent=1 // pred_check
      _
    $region23: #{tpu_custom_call.1} parent=1 // pred_check_branch
      %36 = sbr.rel (0) target = $region25
    $region24: #{tpu_custom_call.1} parent=1 // pred_region
      _
    $region25: #{tpu_custom_call.1} parent=1 // pred_fallthru
      _
    // Predicated region
    $region26: #{tpu_custom_call.1} parent=1 // pred_check
      _
    $region27: #{tpu_custom_call.1} parent=1 // pred_check_branch
      %38 = sbr.rel (0) target = $region29
    $region28: #{tpu_custom_call.1} parent=1 // pred_region
      _
    $region29: #{tpu_custom_call.1} parent=1 // pred_fallthru
      _
    // Predicated region
    $region30: #{tpu_custom_call.1} parent=1 // pred_check
      _
    $region31: #{tpu_custom_call.1} parent=1 // pred_check_branch
      %40 = sbr.rel (0) target = $region33
    $region32: #{tpu_custom_call.1} parent=1 // pred_region
      _
    $region33: #{tpu_custom_call.1} parent=1 // pred_fallthru
      _
    // Predicated region
    $region34: #{tpu_custom_call.1} parent=1 // pred_check
      _
    $region35: #{tpu_custom_call.1} parent=1 // pred_check_branch
      %42 = sbr.rel (0) target = $region37
    $region36: #{tpu_custom_call.1} parent=1 // pred_region
      _
    $region37: #{tpu_custom_call.1} parent=1 // pred_fallthru
      _
    // Predicated region
    $region38: #{tpu_custom_call.1} parent=1 // pred_check
      _
    $region39: #{tpu_custom_call.1} parent=1 // pred_check_branch
      %44 = sbr.rel (0) target = $region41
    $region40: #{tpu_custom_call.1} parent=1 // pred_region
      _
    $region41: #{tpu_custom_call.1} parent=1 // pred_fallthru
      _
    // Predicated region
    $region42: #{tpu_custom_call.1} parent=1 // pred_check
      _
    $region43: #{tpu_custom_call.1} parent=1 // pred_check_branch
      %46 = sbr.rel (0) target = $region45
    $region44: #{tpu_custom_call.1} parent=1 // pred_region
      _
    $region45: #{tpu_custom_call.1} parent=1 // pred_fallthru
      _
    // Predicated region
    $region46: #{tpu_custom_call.1} parent=1 // pred_check
      _
    $region47: #{tpu_custom_call.1} parent=1 // pred_check_branch
      %48 = sbr.rel (0) target = $region49
    $region48: #{tpu_custom_call.1} parent=1 // pred_region
      _
    $region49: #{tpu_custom_call.1} parent=1 // pred_fallthru
      _
    // Predicated region
    $region50: #{tpu_custom_call.1} parent=1 // pred_check
      _
    $region51: #{tpu_custom_call.1} parent=1 // pred_check_branch
      %50 = sbr.rel (0) target = $region53
    $region52: #{tpu_custom_call.1} parent=1 // pred_region
      _
    $region53: #{tpu_custom_call.1} parent=1 // pred_fallthru
      _
    %v51 = vld [vmem:[%s5] sm:$0xff]
    %v52 = vld [vmem:[%s5 + $0x8] sm:$0xff]
    %v53 = vld [vmem:[%s6] sm:$0xff]
    %v54 = vld [vmem:[%s6 + $0x8] sm:$0xff]
    %v55 = vld [vmem:[%s6 + $0x10] sm:$0xff]
    %v56 = vld [vmem:[%s6 + $0x18] sm:$0xff]
    %v57 = vld [vmem:[%s7] sm:$0x1]
    %v58 = vld [vmem:[%s8] sm:$0xff]
    %v59 = vld [vmem:[%s8 + $0x8] sm:$0xff]
    %v60 = vld [vmem:[%s8 + $0x10] sm:$0xff]
    %v61 = vld [vmem:[%s8 + $0x18] sm:$0xff]
    %v62 = vld [vmem:[%s9] sm:$0x1]
    %v63 = vld [vmem:[%s12] sm:$0x1]
    %v64 = vld [vmem:[%s4] sm:$0xff]
    %v65 = vld [vmem:[%s4 + $0x8] sm:$0xff]
    %v66 = vld [vmem:[%s4 + $0x10] sm:$0xff]
    %v67 = vld [vmem:[%s4 + $0x18] sm:$0xff]
    %v68 = vld [vmem:[%s4 + $0x20] sm:$0xff]
    %v69 = vld [vmem:[%s4 + $0x28] sm:$0xff]
    %v70 = vld [vmem:[%s4 + $0x30] sm:$0xff]
    %v71 = vld [vmem:[%s4 + $0x38] sm:$0xff]
    %v72 = vld [vmem:[%s4 + $0x40] sm:$0xff]
    %v73 = vld [vmem:[%s4 + $0x48] sm:$0xff]
    %v74 = vld [vmem:[%s4 + $0x50] sm:$0xff]
    %v75 = vld [vmem:[%s4 + $0x58] sm:$0xff]
    %v76 = vld [vmem:[%s4 + $0x60] sm:$0xff]
    %v77 = vld [vmem:[%s4 + $0x68] sm:$0xff]
    %v78 = vld [vmem:[%s4 + $0x70] sm:$0xff]
    %v79 = vld [vmem:[%s4 + $0x78] sm:$0xff]
    %v80 = vld [vmem:[%s4 + $0x80] sm:$0xff]
    %v81 = vld [vmem:[%s4 + $0x88] sm:$0xff]
    %v82 = vld [vmem:[%s4 + $0x90] sm:$0xff]
    %v83 = vld [vmem:[%s4 + $0x98] sm:$0xff]
    %v84 = vld [vmem:[%s4 + $0xa0] sm:$0xff]
    %v85 = vld [vmem:[%s4 + $0xa8] sm:$0xff]
    %v86 = vld [vmem:[%s4 + $0xb0] sm:$0xff]
    %v87 = vld [vmem:[%s4 + $0xb8] sm:$0xff]
    %v88 = vld [vmem:[%s4 + $0xc0] sm:$0xff]
    %v89 = vld [vmem:[%s4 + $0xc8] sm:$0xff]
    %v90 = vld [vmem:[%s4 + $0xd0] sm:$0xff]
    %v91 = vld [vmem:[%s4 + $0xd8] sm:$0xff]
    %v92 = vld [vmem:[%s4 + $0xe0] sm:$0xff]
    %v93 = vld [vmem:[%s4 + $0xe8] sm:$0xff]
    %v94 = vld [vmem:[%s4 + $0xf0] sm:$0xff]
    %v95 = vld [vmem:[%s4 + $0xf8] sm:$0xff]
    %v96 = vld [vmem:[%s10] sm:$0xff]
    %v97 = vld [vmem:[%s10 + $0x8] sm:$0xff]
    %v98 = vld [vmem:[%s10 + $0x10] sm:$0xff]
    %v99 = vld [vmem:[%s10 + $0x18] sm:$0xff]
    %v100 = vld [vmem:[%s11] sm:$0x1]
    %v102 = vlaneseq
    %v103 = vshrl.u32 %v102, 7
    %v104 = vsub.s32 0, %v103
    %v105 = vrot.slane %v100, %v104
    %vm107 = vcmask 261120
    %v109 = vsel %vm107, %v64, 0
    %v112 = vsel %vm107, %v65, 0
    %v115 = vsel %vm107, %v66, 0
    %v118 = vsel %vm107, %v67, 0
    %v121 = vsel %vm107, %v68, 0
    %v124 = vsel %vm107, %v69, 0
    %v127 = vsel %vm107, %v70, 0
    %v130 = vsel %vm107, %v71, 0
    %v133 = vsel %vm107, %v72, 0
    %v136 = vsel %vm107, %v73, 0
    %v139 = vsel %vm107, %v74, 0
    %v142 = vsel %vm107, %v75, 0
    %v145 = vsel %vm107, %v76, 0
    %v148 = vsel %vm107, %v77, 0
    %v151 = vsel %vm107, %v78, 0
    %v154 = vsel %vm107, %v79, 0
    %v157 = vsel %vm107, %v80, 0
    %v160 = vsel %vm107, %v81, 0
    %v163 = vsel %vm107, %v82, 0
    %v166 = vsel %vm107, %v83, 0
    %v169 = vsel %vm107, %v84, 0
    %v172 = vsel %vm107, %v85, 0
    %v175 = vsel %vm107, %v86, 0
    %v178 = vsel %vm107, %v87, 0
    %v181 = vsel %vm107, %v88, 0
    %v184 = vsel %vm107, %v89, 0
    %v187 = vsel %vm107, %v90, 0
    %v190 = vsel %vm107, %v91, 0
    %v193 = vsel %vm107, %v92, 0
    %v196 = vsel %vm107, %v93, 0
    %v199 = vsel %vm107, %v94, 0
    %v202 = vsel %vm107, %v95, 0
    %204 = vmatprep.subr.mxu0 0.0
    %205 = vmatpush1.msra.mxu0 %v96
    %206 = vmatprep.subr.mxu0 0.0
    %207 = vmatpush1.msra.mxu0 %v97
    %208 = vmatprep.subr.mxu0 0.0
    %209 = vmatpush1.msra.mxu0 %v98
    %210 = vmatprep.subr.mxu0 0.0
    %211 = vmatpush1.msra.mxu0 %v99
    %212 = vmatprep.subr.mxu0 0.0
    %213 = vmatpush1.msra.mxu0 0.0
    %214 = vmatprep.subr.mxu0 0.0
    %215 = vmatpush1.msra.mxu0 0.0
    %216 = vmatprep.subr.mxu0 0.0
    %217 = vmatpush1.msra.mxu0 0.0
    %218 = vmatprep.subr.mxu0 0.0
    %219 = vmatpush1.msra.mxu0 0.0
    %220 = vmatprep.subr.mxu0 0.0
    %221 = vmatpush1.msra.mxu0 0.0
    %222 = vmatprep.subr.mxu0 0.0
    %223 = vmatpush1.msra.mxu0 0.0
    %224 = vmatprep.subr.mxu0 0.0
    %225 = vmatpush1.msra.mxu0 0.0
    %226 = vmatprep.subr.mxu0 0.0
    %227 = vmatpush1.msra.mxu0 0.0
    %228 = vmatprep.subr.mxu0 0.0
    %229 = vmatpush1.msra.mxu0 0.0
    %230 = vmatprep.subr.mxu0 0.0
    %231 = vmatpush1.msra.mxu0 0.0
    %232 = vmatprep.subr.mxu0 0.0
    %233 = vmatpush1.msra.mxu0 0.0
    %234 = vmatprep.subr.mxu0 0.0
    %235 = vmatpush1.msra.mxu0 0.0
    %236 = vmatprep.subr.mxu0 0.0
    %237 = vmatpush1.msra.mxu0 0.0
    %238 = vmatprep.subr.mxu0 0.0
    %239 = vmatpush1.msra.mxu0 0.0
    %240 = vmatprep.subr.mxu0 0.0
    %241 = vmatpush1.msra.mxu0 0.0
    %242 = vmatprep.subr.mxu0 0.0
    %243 = vmatpush1.msra.mxu0 0.0
    %244 = vmatprep.subr.mxu0 0.0
    %245 = vmatpush1.msra.mxu0 0.0
    %246 = vmatprep.subr.mxu0 0.0
    %247 = vmatpush1.msra.mxu0 0.0
    %248 = vmatprep.subr.mxu0 0.0
    %249 = vmatpush1.msra.mxu0 0.0
    %250 = vmatprep.subr.mxu0 0.0
    %251 = vmatpush1.msra.mxu0 0.0
    %252 = vmatprep.subr.mxu0 0.0
    %253 = vmatpush1.msra.mxu0 0.0
    %254 = vmatprep.subr.mxu0 0.0
    %255 = vmatpush1.msra.mxu0 0.0
    %256 = vmatprep.subr.mxu0 0.0
    %257 = vmatpush1.msra.mxu0 0.0
    %258 = vmatprep.subr.mxu0 0.0
    %259 = vmatpush1.msra.mxu0 0.0
    %260 = vmatprep.subr.mxu0 0.0
    %261 = vmatpush1.msra.mxu0 0.0
    %262 = vmatprep.subr.mxu0 0.0
    %263 = vmatpush1.msra.mxu0 0.0
    %264 = vmatprep.subr.mxu0 0.0
    %265 = vmatpush1.msra.mxu0 0.0
    %266 = vmatprep.subr.mxu0 0.0
    %267 = vmatpush1.msra.mxu0 0.0
    %268 = vmatprep.mubr.f32.mxu0 0.0
    %269 = vmatmul.mubr.f32.gmra.mrb[0].mxu0 %v109
    %v270 = vpop.f32.mrb[0].mxu0
    %v271 = vadd.f32 %v105, %v270
    %v272 = vpop.f32.mrb[0].mxu0
    %273 = vmatprep.mubr.f32.mxu0 0.0
    %274 = vmatmul.mubr.f32.gmra.mrb[0].mxu0 %v112
    %v275 = vpop.f32.mrb[0].mxu0
    %v276 = vadd.f32 %v105, %v275
    %v277 = vpop.f32.mrb[0].mxu0
    %278 = vmatprep.mubr.f32.mxu0 0.0
    %279 = vmatmul.mubr.f32.gmra.mrb[0].mxu0 %v115
    %v280 = vpop.f32.mrb[0].mxu0
    %v281 = vadd.f32 %v105, %v280
    %v282 = vpop.f32.mrb[0].mxu0
    %283 = vmatprep.mubr.f32.mxu0 0.0
    %284 = vmatmul.mubr.f32.gmra.mrb[0].mxu0 %v118
    %v285 = vpop.f32.mrb[0].mxu0
    %v286 = vadd.f32 %v105, %v285
    %v287 = vpop.f32.mrb[0].mxu0
    %288 = vmatprep.mubr.f32.mxu0 0.0
    %289 = vmatmul.mubr.f32.gmra.mrb[0].mxu0 %v121
    %v290 = vpop.f32.mrb[0].mxu0
    %v291 = vadd.f32 %v105, %v290
    %v292 = vpop.f32.mrb[0].mxu0
    %293 = vmatprep.mubr.f32.mxu0 0.0
    %294 = vmatmul.mubr.f32.gmra.mrb[0].mxu0 %v124
    %v295 = vpop.f32.mrb[0].mxu0
    %v296 = vadd.f32 %v105, %v295
    %v297 = vpop.f32.mrb[0].mxu0
    %298 = vmatprep.mubr.f32.mxu0 0.0
    %299 = vmatmul.mubr.f32.gmra.mrb[0].mxu0 %v127
    %v300 = vpop.f32.mrb[0].mxu0
    %v301 = vadd.f32 %v105, %v300
    %v302 = vpop.f32.mrb[0].mxu0
    %303 = vmatprep.mubr.f32.mxu0 0.0
    %304 = vmatmul.mubr.f32.gmra.mrb[0].mxu0 %v130
    %v305 = vpop.f32.mrb[0].mxu0
    %v306 = vadd.f32 %v105, %v305
    %v307 = vpop.f32.mrb[0].mxu0
    %308 = vmatprep.mubr.f32.mxu0 0.0
    %309 = vmatmul.mubr.f32.gmra.mrb[0].mxu0 %v133
    %v310 = vpop.f32.mrb[0].mxu0
    %v311 = vadd.f32 %v105, %v310
    %v312 = vpop.f32.mrb[0].mxu0
    %313 = vmatprep.mubr.f32.mxu0 0.0
    %314 = vmatmul.mubr.f32.gmra.mrb[0].mxu0 %v136
    %v315 = vpop.f32.mrb[0].mxu0
    %v316 = vadd.f32 %v105, %v315
    %v317 = vpop.f32.mrb[0].mxu0
    %318 = vmatprep.mubr.f32.mxu0 0.0
    %319 = vmatmul.mubr.f32.gmra.mrb[0].mxu0 %v139
    %v320 = vpop.f32.mrb[0].mxu0
    %v321 = vadd.f32 %v105, %v320
    %v322 = vpop.f32.mrb[0].mxu0
    %323 = vmatprep.mubr.f32.mxu0 0.0
    %324 = vmatmul.mubr.f32.gmra.mrb[0].mxu0 %v142
    %v325 = vpop.f32.mrb[0].mxu0
    %v326 = vadd.f32 %v105, %v325
    %v327 = vpop.f32.mrb[0].mxu0
    %328 = vmatprep.mubr.f32.mxu0 0.0
    %329 = vmatmul.mubr.f32.gmra.mrb[0].mxu0 %v145
    %v330 = vpop.f32.mrb[0].mxu0
    %v331 = vadd.f32 %v105, %v330
    %v332 = vpop.f32.mrb[0].mxu0
    %333 = vmatprep.mubr.f32.mxu0 0.0
    %334 = vmatmul.mubr.f32.gmra.mrb[0].mxu0 %v148
    %v335 = vpop.f32.mrb[0].mxu0
    %v336 = vadd.f32 %v105, %v335
    %v337 = vpop.f32.mrb[0].mxu0
    %338 = vmatprep.mubr.f32.mxu0 0.0
    %339 = vmatmul.mubr.f32.gmra.mrb[0].mxu0 %v151
    %v340 = vpop.f32.mrb[0].mxu0
    %v341 = vadd.f32 %v105, %v340
    %v342 = vpop.f32.mrb[0].mxu0
    %343 = vmatprep.mubr.f32.mxu0 0.0
    %344 = vmatmul.mubr.f32.gmra.mrb[0].mxu0 %v154
    %v345 = vpop.f32.mrb[0].mxu0
    %v346 = vadd.f32 %v105, %v345
    %v347 = vpop.f32.mrb[0].mxu0
    %348 = vmatprep.mubr.f32.mxu0 0.0
    %349 = vmatmul.mubr.f32.gmra.mrb[0].mxu0 %v157
    %v350 = vpop.f32.mrb[0].mxu0
    %v351 = vadd.f32 %v105, %v350
    %v352 = vpop.f32.mrb[0].mxu0
    %353 = vmatprep.mubr.f32.mxu0 0.0
    %354 = vmatmul.mubr.f32.gmra.mrb[0].mxu0 %v160
    %v355 = vpop.f32.mrb[0].mxu0
    %v356 = vadd.f32 %v105, %v355
    %v357 = vpop.f32.mrb[0].mxu0
    %358 = vmatprep.mubr.f32.mxu0 0.0
    %359 = vmatmul.mubr.f32.gmra.mrb[0].mxu0 %v163
    %v360 = vpop.f32.mrb[0].mxu0
    %v361 = vadd.f32 %v105, %v360
    %v362 = vpop.f32.mrb[0].mxu0
    %363 = vmatprep.mubr.f32.mxu0 0.0
    %364 = vmatmul.mubr.f32.gmra.mrb[0].mxu0 %v166
    %v365 = vpop.f32.mrb[0].mxu0
    %v366 = vadd.f32 %v105, %v365
    %v367 = vpop.f32.mrb[0].mxu0
    %368 = vmatprep.mubr.f32.mxu0 0.0
    %369 = vmatmul.mubr.f32.gmra.mrb[0].mxu0 %v169
    %v370 = vpop.f32.mrb[0].mxu0
    %v371 = vadd.f32 %v105, %v370
    %v372 = vpop.f32.mrb[0].mxu0
    %373 = vmatprep.mubr.f32.mxu0 0.0
    %374 = vmatmul.mubr.f32.gmra.mrb[0].mxu0 %v172
    %v375 = vpop.f32.mrb[0].mxu0
    %v376 = vadd.f32 %v105, %v375
    %v377 = vpop.f32.mrb[0].mxu0
    %378 = vmatprep.mubr.f32.mxu0 0.0
    %379 = vmatmul.mubr.f32.gmra.mrb[0].mxu0 %v175
    %v380 = vpop.f32.mrb[0].mxu0
    %v381 = vadd.f32 %v105, %v380
    %v382 = vpop.f32.mrb[0].mxu0
    %383 = vmatprep.mubr.f32.mxu0 0.0
    %384 = vmatmul.mubr.f32.gmra.mrb[0].mxu0 %v178
    %v385 = vpop.f32.mrb[0].mxu0
    %v386 = vadd.f32 %v105, %v385
    %v387 = vpop.f32.mrb[0].mxu0
    %388 = vmatprep.mubr.f32.mxu0 0.0
    %389 = vmatmul.mubr.f32.gmra.mrb[0].mxu0 %v181
    %v390 = vpop.f32.mrb[0].mxu0
    %v391 = vadd.f32 %v105, %v390
    %v392 = vpop.f32.mrb[0].mxu0
    %393 = vmatprep.mubr.f32.mxu0 0.0
    %394 = vmatmul.mubr.f32.gmra.mrb[0].mxu0 %v184
    %v395 = vpop.f32.mrb[0].mxu0
    %v396 = vadd.f32 %v105, %v395
    %v397 = vpop.f32.mrb[0].mxu0
    %398 = vmatprep.mubr.f32.mxu0 0.0
    %399 = vmatmul.mubr.f32.gmra.mrb[0].mxu0 %v187
    %v400 = vpop.f32.mrb[0].mxu0
    %v401 = vadd.f32 %v105, %v400
    %v402 = vpop.f32.mrb[0].mxu0
    %403 = vmatprep.mubr.f32.mxu0 0.0
    %404 = vmatmul.mubr.f32.gmra.mrb[0].mxu0 %v190
    %v405 = vpop.f32.mrb[0].mxu0
    %v406 = vadd.f32 %v105, %v405
    %v407 = vpop.f32.mrb[0].mxu0
    %408 = vmatprep.mubr.f32.mxu0 0.0
    %409 = vmatmul.mubr.f32.gmra.mrb[0].mxu0 %v193
    %v410 = vpop.f32.mrb[0].mxu0
    %v411 = vadd.f32 %v105, %v410
    %v412 = vpop.f32.mrb[0].mxu0
    %413 = vmatprep.mubr.f32.mxu0 0.0
    %414 = vmatmul.mubr.f32.gmra.mrb[0].mxu0 %v196
    %v415 = vpop.f32.mrb[0].mxu0
    %v416 = vadd.f32 %v105, %v415
    %v417 = vpop.f32.mrb[0].mxu0
    %418 = vmatprep.mubr.f32.mxu0 0.0
    %419 = vmatmul.mubr.f32.gmra.mrb[0].mxu0 %v199
    %v420 = vpop.f32.mrb[0].mxu0
    %v421 = vadd.f32 %v105, %v420
    %v422 = vpop.f32.mrb[0].mxu0
    %423 = vmatprep.mubr.f32.mxu0 0.0
    %424 = vmatmul.mubr.f32.gmra.mrb[0].mxu0 %v202
    %v425 = vpop.f32.mrb[0].mxu0
    %v426 = vadd.f32 %v105, %v425
    %v427 = vpop.f32.mrb[0].mxu0
    %428 = vdwg.mxu0
    %429 = vst.msk [vmem:[#allocation2] sm:$0xff] %vm107, %v271
    %430 = vst.msk [vmem:[#allocation2 + $0x8] sm:$0xff] %vm107, %v276
    %431 = vst.msk [vmem:[#allocation2 + $0x10] sm:$0xff] %vm107, %v281
    %432 = vst.msk [vmem:[#allocation2 + $0x18] sm:$0xff] %vm107, %v286
    %433 = vst.msk [vmem:[#allocation2 + $0x20] sm:$0xff] %vm107, %v291
    %434 = vst.msk [vmem:[#allocation2 + $0x28] sm:$0xff] %vm107, %v296
    %435 = vst.msk [vmem:[#allocation2 + $0x30] sm:$0xff] %vm107, %v301
    %436 = vst.msk [vmem:[#allocation2 + $0x38] sm:$0xff] %vm107, %v306
    %437 = vst.msk [vmem:[#allocation2 + $0x40] sm:$0xff] %vm107, %v311
    %438 = vst.msk [vmem:[#allocation2 + $0x48] sm:$0xff] %vm107, %v316
    %439 = vst.msk [vmem:[#allocation2 + $0x50] sm:$0xff] %vm107, %v321
    %440 = vst.msk [vmem:[#allocation2 + $0x58] sm:$0xff] %vm107, %v326
    %441 = vst.msk [vmem:[#allocation2 + $0x60] sm:$0xff] %vm107, %v331
    %442 = vst.msk [vmem:[#allocation2 + $0x68] sm:$0xff] %vm107, %v336
    %443 = vst.msk [vmem:[#allocation2 + $0x70] sm:$0xff] %vm107, %v341
    %444 = vst.msk [vmem:[#allocation2 + $0x78] sm:$0xff] %vm107, %v346
    %445 = vst.msk [vmem:[#allocation2 + $0x80] sm:$0xff] %vm107, %v351
    %446 = vst.msk [vmem:[#allocation2 + $0x88] sm:$0xff] %vm107, %v356
    %447 = vst.msk [vmem:[#allocation2 + $0x90] sm:$0xff] %vm107, %v361
    %448 = vst.msk [vmem:[#allocation2 + $0x98] sm:$0xff] %vm107, %v366
    %449 = vst.msk [vmem:[#allocation2 + $0xa0] sm:$0xff] %vm107, %v371
    %450 = vst.msk [vmem:[#allocation2 + $0xa8] sm:$0xff] %vm107, %v376
    %451 = vst.msk [vmem:[#allocation2 + $0xb0] sm:$0xff] %vm107, %v381
    %452 = vst.msk [vmem:[#allocation2 + $0xb8] sm:$0xff] %vm107, %v386
    %453 = vst.msk [vmem:[#allocation2 + $0xc0] sm:$0xff] %vm107, %v391
    %454 = vst.msk [vmem:[#allocation2 + $0xc8] sm:$0xff] %vm107, %v396
    %455 = vst.msk [vmem:[#allocation2 + $0xd0] sm:$0xff] %vm107, %v401
    %456 = vst.msk [vmem:[#allocation2 + $0xd8] sm:$0xff] %vm107, %v406
    %457 = vst.msk [vmem:[#allocation2 + $0xe0] sm:$0xff] %vm107, %v411
    %458 = vst.msk [vmem:[#allocation2 + $0xe8] sm:$0xff] %vm107, %v416
    %459 = vst.msk [vmem:[#allocation2 + $0xf0] sm:$0xff] %vm107, %v421
    %460 = vst.msk [vmem:[#allocation2 + $0xf8] sm:$0xff] %vm107, %v426
    %v461 = vld [vmem:[%s0] sm:$0xff]
    %v462 = vld [vmem:[%s0 + $0x8] sm:$0xff]
    %v463 = vld [vmem:[%s0 + $0x10] sm:$0xff]
    %v464 = vld [vmem:[%s0 + $0x18] sm:$0xff]
    %v465 = vld [vmem:[%s0 + $0x20] sm:$0xff]
    %v466 = vld [vmem:[%s0 + $0x28] sm:$0xff]
    %v467 = vld [vmem:[%s0 + $0x30] sm:$0xff]
    %v468 = vld [vmem:[%s0 + $0x38] sm:$0xff]
    %v469 = vld [vmem:[%s0 + $0x40] sm:$0xff]
    %v470 = vld [vmem:[%s0 + $0x48] sm:$0xff]
    %v471 = vld [vmem:[%s0 + $0x50] sm:$0xff]
    %v472 = vld [vmem:[%s0 + $0x58] sm:$0xff]
    %v473 = vld [vmem:[%s0 + $0x60] sm:$0xff]
    %v474 = vld [vmem:[%s0 + $0x68] sm:$0xff]
    %v475 = vld [vmem:[%s0 + $0x70] sm:$0xff]
    %v476 = vld [vmem:[%s0 + $0x78] sm:$0xff]
    %v477 = vld [vmem:[%s0 + $0x80] sm:$0xff]
    %v478 = vld [vmem:[%s0 + $0x88] sm:$0xff]
    %v479 = vld [vmem:[%s0 + $0x90] sm:$0xff]
    %v480 = vld [vmem:[%s0 + $0x98] sm:$0xff]
    %v481 = vld [vmem:[%s0 + $0xa0] sm:$0xff]
    %v482 = vld [vmem:[%s0 + $0xa8] sm:$0xff]
    %v483 = vld [vmem:[%s0 + $0xb0] sm:$0xff]
    %v484 = vld [vmem:[%s0 + $0xb8] sm:$0xff]
    %v485 = vld [vmem:[%s0 + $0xc0] sm:$0xff]
    %v486 = vld [vmem:[%s0 + $0xc8] sm:$0xff]
    %v487 = vld [vmem:[%s0 + $0xd0] sm:$0xff]
    %v488 = vld [vmem:[%s0 + $0xd8] sm:$0xff]
    %v489 = vld [vmem:[%s0 + $0xe0] sm:$0xff]
    %v490 = vld [vmem:[%s0 + $0xe8] sm:$0xff]
    %v491 = vld [vmem:[%s0 + $0xf0] sm:$0xff]
    %v492 = vld [vmem:[%s0 + $0xf8] sm:$0xff]
    %v494 = vlaneseq
    %v495 = vshrl.u32 %v494, 7
    %v496 = vsub.s32 0, %v495
    %v497 = vrot.slane %v57, %v496
    %vm499 = vcmask 130048
    %v501 = vsel %vm499, %v461, 0
    %v504 = vsel %vm499, %v462, 0
    %v507 = vsel %vm499, %v463, 0
    %v510 = vsel %vm499, %v464, 0
    %v513 = vsel %vm499, %v465, 0
    %v516 = vsel %vm499, %v466, 0
    %v519 = vsel %vm499, %v467, 0
    %v522 = vsel %vm499, %v468, 0
    %v525 = vsel %vm499, %v469, 0
    %v528 = vsel %vm499, %v470, 0
    %v531 = vsel %vm499, %v471, 0
    %v534 = vsel %vm499, %v472, 0
    %v537 = vsel %vm499, %v473, 0
    %v540 = vsel %vm499, %v474, 0
    %v543 = vsel %vm499, %v475, 0
    %v546 = vsel %vm499, %v476, 0
    %v549 = vsel %vm499, %v477, 0
    %v552 = vsel %vm499, %v478, 0
    %v555 = vsel %vm499, %v479, 0
    %v558 = vsel %vm499, %v480, 0
    %v561 = vsel %vm499, %v481, 0
    %v564 = vsel %vm499, %v482, 0
    %v567 = vsel %vm499, %v483, 0
    %v570 = vsel %vm499, %v484, 0
    %v573 = vsel %vm499, %v485, 0
    %v576 = vsel %vm499, %v486, 0
    %v579 = vsel %vm499, %v487, 0
    %v582 = vsel %vm499, %v488, 0
    %v585 = vsel %vm499, %v489, 0
    %v588 = vsel %vm499, %v490, 0
    %v591 = vsel %vm499, %v491, 0
    %v594 = vsel %vm499, %v492, 0
    %596 = vmatprep.subr.mxu0 0.0
    %597 = vmatpush1.msra.mxu0 %v51
    %598 = vmatprep.subr.mxu0 0.0
    %599 = vmatpush1.msra.mxu0 %v52
    %600 = vmatprep.subr.mxu0 0.0
    %601 = vmatpush1.msra.mxu0 0.0
    %602 = vmatprep.subr.mxu0 0.0
    %603 = vmatpush1.msra.mxu0 0.0
    %604 = vmatprep.subr.mxu0 0.0
    %605 = vmatpush1.msra.mxu0 0.0
    %606 = vmatprep.subr.mxu0 0.0
    %607 = vmatpush1.msra.mxu0 0.0
    %608 = vmatprep.subr.mxu0 0.0
    %609 = vmatpush1.msra.mxu0 0.0
    %610 = vmatprep.subr.mxu0 0.0
    %611 = vmatpush1.msra.mxu0 0.0
    %612 = vmatprep.subr.mxu0 0.0
    %613 = vmatpush1.msra.mxu0 0.0
    %614 = vmatprep.subr.mxu0 0.0
    %615 = vmatpush1.msra.mxu0 0.0
    %616 = vmatprep.subr.mxu0 0.0
    %617 = vmatpush1.msra.mxu0 0.0
    %618 = vmatprep.subr.mxu0 0.0
    %619 = vmatpush1.msra.mxu0 0.0
    %620 = vmatprep.subr.mxu0 0.0
    %621 = vmatpush1.msra.mxu0 0.0
    %622 = vmatprep.subr.mxu0 0.0
    %623 = vmatpush1.msra.mxu0 0.0
    %624 = vmatprep.subr.mxu0 0.0
    %625 = vmatpush1.msra.mxu0 0.0
    %626 = vmatprep.subr.mxu0 0.0
    %627 = vmatpush1.msra.mxu0 0.0
    %628 = vmatprep.subr.mxu0 0.0
    %629 = vmatpush1.msra.mxu0 0.0
    %630 = vmatprep.subr.mxu0 0.0
    %631 = vmatpush1.msra.mxu0 0.0
    %632 = vmatprep.subr.mxu0 0.0
    %633 = vmatpush1.msra.mxu0 0.0
    %634 = vmatprep.subr.mxu0 0.0
    %635 = vmatpush1.msra.mxu0 0.0
    %636 = vmatprep.subr.mxu0 0.0
    %637 = vmatpush1.msra.mxu0 0.0
    %638 = vmatprep.subr.mxu0 0.0
    %639 = vmatpush1.msra.mxu0 0.0
    %640 = vmatprep.subr.mxu0 0.0
    %641 = vmatpush1.msra.mxu0 0.0
    %642 = vmatprep.subr.mxu0 0.0
    %643 = vmatpush1.msra.mxu0 0.0
    %644 = vmatprep.subr.mxu0 0.0
    %645 = vmatpush1.msra.mxu0 0.0
    %646 = vmatprep.subr.mxu0 0.0
    %647 = vmatpush1.msra.mxu0 0.0
    %648 = vmatprep.subr.mxu0 0.0
    %649 = vmatpush1.msra.mxu0 0.0
    %650 = vmatprep.subr.mxu0 0.0
    %651 = vmatpush1.msra.mxu0 0.0
    %652 = vmatprep.subr.mxu0 0.0
    %653 = vmatpush1.msra.mxu0 0.0
    %654 = vmatprep.subr.mxu0 0.0
    %655 = vmatpush1.msra.mxu0 0.0
    %656 = vmatprep.subr.mxu0 0.0
    %657 = vmatpush1.msra.mxu0 0.0
    %658 = vmatprep.subr.mxu0 0.0
    %659 = vmatpush1.msra.mxu0 0.0
    %660 = vmatprep.mubr.f32.mxu0 0.0
    %661 = vmatmul.mubr.f32.gmra.mrb[0].mxu0 %v501
    %v662 = vpop.f32.mrb[0].mxu0
    %v663 = vadd.f32 %v497, %v662
    %v664 = vpop.f32.mrb[0].mxu0
    %665 = vmatprep.mubr.f32.mxu0 0.0
    %666 = vmatmul.mubr.f32.gmra.mrb[0].mxu0 %v504
    %v667 = vpop.f32.mrb[0].mxu0
    %v668 = vadd.f32 %v497, %v667
    %v669 = vpop.f32.mrb[0].mxu0
    %670 = vmatprep.mubr.f32.mxu0 0.0
    %671 = vmatmul.mubr.f32.gmra.mrb[0].mxu0 %v507
    %v672 = vpop.f32.mrb[0].mxu0
    %v673 = vadd.f32 %v497, %v672
    %v674 = vpop.f32.mrb[0].mxu0
    %675 = vmatprep.mubr.f32.mxu0 0.0
    %676 = vmatmul.mubr.f32.gmra.mrb[0].mxu0 %v510
    %v677 = vpop.f32.mrb[0].mxu0
    %v678 = vadd.f32 %v497, %v677
    %v679 = vpop.f32.mrb[0].mxu0
    %680 = vmatprep.mubr.f32.mxu0 0.0
    %681 = vmatmul.mubr.f32.gmra.mrb[0].mxu0 %v513
    %v682 = vpop.f32.mrb[0].mxu0
    %v683 = vadd.f32 %v497, %v682
    %v684 = vpop.f32.mrb[0].mxu0
    %685 = vmatprep.mubr.f32.mxu0 0.0
    %686 = vmatmul.mubr.f32.gmra.mrb[0].mxu0 %v516
    %v687 = vpop.f32.mrb[0].mxu0
    %v688 = vadd.f32 %v497, %v687
    %v689 = vpop.f32.mrb[0].mxu0
    %690 = vmatprep.mubr.f32.mxu0 0.0
    %691 = vmatmul.mubr.f32.gmra.mrb[0].mxu0 %v519
    %v692 = vpop.f32.mrb[0].mxu0
    %v693 = vadd.f32 %v497, %v692
    %v694 = vpop.f32.mrb[0].mxu0
    %695 = vmatprep.mubr.f32.mxu0 0.0
    %696 = vmatmul.mubr.f32.gmra.mrb[0].mxu0 %v522
    %v697 = vpop.f32.mrb[0].mxu0
    %v698 = vadd.f32 %v497, %v697
    %v699 = vpop.f32.mrb[0].mxu0
    %700 = vmatprep.mubr.f32.mxu0 0.0
    %701 = vmatmul.mubr.f32.gmra.mrb[0].mxu0 %v525
    %v702 = vpop.f32.mrb[0].mxu0
    %v703 = vadd.f32 %v497, %v702
    %v704 = vpop.f32.mrb[0].mxu0
    %705 = vmatprep.mubr.f32.mxu0 0.0
    %706 = vmatmul.mubr.f32.gmra.mrb[0].mxu0 %v528
    %v707 = vpop.f32.mrb[0].mxu0
    %v708 = vadd.f32 %v497, %v707
    %v709 = vpop.f32.mrb[0].mxu0
    %710 = vmatprep.mubr.f32.mxu0 0.0
    %711 = vmatmul.mubr.f32.gmra.mrb[0].mxu0 %v531
    %v712 = vpop.f32.mrb[0].mxu0
    %v713 = vadd.f32 %v497, %v712
    %v714 = vpop.f32.mrb[0].mxu0
    %715 = vmatprep.mubr.f32.mxu0 0.0
    %716 = vmatmul.mubr.f32.gmra.mrb[0].mxu0 %v534
    %v717 = vpop.f32.mrb[0].mxu0
    %v718 = vadd.f32 %v497, %v717
    %v719 = vpop.f32.mrb[0].mxu0
    %720 = vmatprep.mubr.f32.mxu0 0.0
    %721 = vmatmul.mubr.f32.gmra.mrb[0].mxu0 %v537
    %v722 = vpop.f32.mrb[0].mxu0
    %v723 = vadd.f32 %v497, %v722
    %v724 = vpop.f32.mrb[0].mxu0
    %725 = vmatprep.mubr.f32.mxu0 0.0
    %726 = vmatmul.mubr.f32.gmra.mrb[0].mxu0 %v540
    %v727 = vpop.f32.mrb[0].mxu0
    %v728 = vadd.f32 %v497, %v727
    %v729 = vpop.f32.mrb[0].mxu0
    %730 = vmatprep.mubr.f32.mxu0 0.0
    %731 = vmatmul.mubr.f32.gmra.mrb[0].mxu0 %v543
    %v732 = vpop.f32.mrb[0].mxu0
    %v733 = vadd.f32 %v497, %v732
    %v734 = vpop.f32.mrb[0].mxu0
    %735 = vmatprep.mubr.f32.mxu0 0.0
    %736 = vmatmul.mubr.f32.gmra.mrb[0].mxu0 %v546
    %v737 = vpop.f32.mrb[0].mxu0
    %v738 = vadd.f32 %v497, %v737
    %v739 = vpop.f32.mrb[0].mxu0
    %740 = vmatprep.mubr.f32.mxu0 0.0
    %741 = vmatmul.mubr.f32.gmra.mrb[0].mxu0 %v549
    %v742 = vpop.f32.mrb[0].mxu0
    %v743 = vadd.f32 %v497, %v742
    %v744 = vpop.f32.mrb[0].mxu0
    %745 = vmatprep.mubr.f32.mxu0 0.0
    %746 = vmatmul.mubr.f32.gmra.mrb[0].mxu0 %v552
    %v747 = vpop.f32.mrb[0].mxu0
    %v748 = vadd.f32 %v497, %v747
    %v749 = vpop.f32.mrb[0].mxu0
    %750 = vmatprep.mubr.f32.mxu0 0.0
    %751 = vmatmul.mubr.f32.gmra.mrb[0].mxu0 %v555
    %v752 = vpop.f32.mrb[0].mxu0
    %v753 = vadd.f32 %v497, %v752
    %v754 = vpop.f32.mrb[0].mxu0
    %755 = vmatprep.mubr.f32.mxu0 0.0
    %756 = vmatmul.mubr.f32.gmra.mrb[0].mxu0 %v558
    %v757 = vpop.f32.mrb[0].mxu0
    %v758 = vadd.f32 %v497, %v757
    %v759 = vpop.f32.mrb[0].mxu0
    %760 = vmatprep.mubr.f32.mxu0 0.0
    %761 = vmatmul.mubr.f32.gmra.mrb[0].mxu0 %v561
    %v762 = vpop.f32.mrb[0].mxu0
    %v763 = vadd.f32 %v497, %v762
    %v764 = vpop.f32.mrb[0].mxu0
    %765 = vmatprep.mubr.f32.mxu0 0.0
    %766 = vmatmul.mubr.f32.gmra.mrb[0].mxu0 %v564
    %v767 = vpop.f32.mrb[0].mxu0
    %v768 = vadd.f32 %v497, %v767
    %v769 = vpop.f32.mrb[0].mxu0
    %770 = vmatprep.mubr.f32.mxu0 0.0
    %771 = vmatmul.mubr.f32.gmra.mrb[0].mxu0 %v567
    %v772 = vpop.f32.mrb[0].mxu0
    %v773 = vadd.f32 %v497, %v772
    %v774 = vpop.f32.mrb[0].mxu0
    %775 = vmatprep.mubr.f32.mxu0 0.0
    %776 = vmatmul.mubr.f32.gmra.mrb[0].mxu0 %v570
    %v777 = vpop.f32.mrb[0].mxu0
    %v778 = vadd.f32 %v497, %v777
    %v779 = vpop.f32.mrb[0].mxu0
    %780 = vmatprep.mubr.f32.mxu0 0.0
    %781 = vmatmul.mubr.f32.gmra.mrb[0].mxu0 %v573
    %v782 = vpop.f32.mrb[0].mxu0
    %v783 = vadd.f32 %v497, %v782
    %v784 = vpop.f32.mrb[0].mxu0
    %785 = vmatprep.mubr.f32.mxu0 0.0
    %786 = vmatmul.mubr.f32.gmra.mrb[0].mxu0 %v576
    %v787 = vpop.f32.mrb[0].mxu0
    %v788 = vadd.f32 %v497, %v787
    %v789 = vpop.f32.mrb[0].mxu0
    %790 = vmatprep.mubr.f32.mxu0 0.0
    %791 = vmatmul.mubr.f32.gmra.mrb[0].mxu0 %v579
    %v792 = vpop.f32.mrb[0].mxu0
    %v793 = vadd.f32 %v497, %v792
    %v794 = vpop.f32.mrb[0].mxu0
    %795 = vmatprep.mubr.f32.mxu0 0.0
    %796 = vmatmul.mubr.f32.gmra.mrb[0].mxu0 %v582
    %v797 = vpop.f32.mrb[0].mxu0
    %v798 = vadd.f32 %v497, %v797
    %v799 = vpop.f32.mrb[0].mxu0
    %800 = vmatprep.mubr.f32.mxu0 0.0
    %801 = vmatmul.mubr.f32.gmra.mrb[0].mxu0 %v585
    %v802 = vpop.f32.mrb[0].mxu0
    %v803 = vadd.f32 %v497, %v802
    %v804 = vpop.f32.mrb[0].mxu0
    %805 = vmatprep.mubr.f32.mxu0 0.0
    %806 = vmatmul.mubr.f32.gmra.mrb[0].mxu0 %v588
    %v807 = vpop.f32.mrb[0].mxu0
    %v808 = vadd.f32 %v497, %v807
    %v809 = vpop.f32.mrb[0].mxu0
    %810 = vmatprep.mubr.f32.mxu0 0.0
    %811 = vmatmul.mubr.f32.gmra.mrb[0].mxu0 %v591
    %v812 = vpop.f32.mrb[0].mxu0
    %v813 = vadd.f32 %v497, %v812
    %v814 = vpop.f32.mrb[0].mxu0
    %815 = vmatprep.mubr.f32.mxu0 0.0
    %816 = vmatmul.mubr.f32.gmra.mrb[0].mxu0 %v594
    %v817 = vpop.f32.mrb[0].mxu0
    %v818 = vadd.f32 %v497, %v817
    %v819 = vpop.f32.mrb[0].mxu0
    %820 = vdwg.mxu0
    %821 = vst [vmem:[#allocation3] sm:$0xff] %v663
    %822 = vst [vmem:[#allocation3 + $0x8] sm:$0xff] %v668
    %823 = vst [vmem:[#allocation3 + $0x10] sm:$0xff] %v673
    %824 = vst [vmem:[#allocation3 + $0x18] sm:$0xff] %v678
    %825 = vst [vmem:[#allocation3 + $0x20] sm:$0xff] %v683
    %826 = vst [vmem:[#allocation3 + $0x28] sm:$0xff] %v688
    %827 = vst [vmem:[#allocation3 + $0x30] sm:$0xff] %v693
    %828 = vst [vmem:[#allocation3 + $0x38] sm:$0xff] %v698
    %829 = vst [vmem:[#allocation3 + $0x40] sm:$0xff] %v703
    %830 = vst [vmem:[#allocation3 + $0x48] sm:$0xff] %v708
    %831 = vst [vmem:[#allocation3 + $0x50] sm:$0xff] %v713
    %832 = vst [vmem:[#allocation3 + $0x58] sm:$0xff] %v718
    %833 = vst [vmem:[#allocation3 + $0x60] sm:$0xff] %v723
    %834 = vst [vmem:[#allocation3 + $0x68] sm:$0xff] %v728
    %835 = vst [vmem:[#allocation3 + $0x70] sm:$0xff] %v733
    %836 = vst [vmem:[#allocation3 + $0x78] sm:$0xff] %v738
    %837 = vst [vmem:[#allocation3 + $0x80] sm:$0xff] %v743
    %838 = vst [vmem:[#allocation3 + $0x88] sm:$0xff] %v748
    %839 = vst [vmem:[#allocation3 + $0x90] sm:$0xff] %v753
    %840 = vst [vmem:[#allocation3 + $0x98] sm:$0xff] %v758
    %841 = vst [vmem:[#allocation3 + $0xa0] sm:$0xff] %v763
    %842 = vst [vmem:[#allocation3 + $0xa8] sm:$0xff] %v768
    %843 = vst [vmem:[#allocation3 + $0xb0] sm:$0xff] %v773
    %844 = vst [vmem:[#allocation3 + $0xb8] sm:$0xff] %v778
    %845 = vst [vmem:[#allocation3 + $0xc0] sm:$0xff] %v783
    %846 = vst [vmem:[#allocation3 + $0xc8] sm:$0xff] %v788
    %847 = vst [vmem:[#allocation3 + $0xd0] sm:$0xff] %v793
    %848 = vst [vmem:[#allocation3 + $0xd8] sm:$0xff] %v798
    %849 = vst [vmem:[#allocation3 + $0xe0] sm:$0xff] %v803
    %850 = vst [vmem:[#allocation3 + $0xe8] sm:$0xff] %v808
    %851 = vst [vmem:[#allocation3 + $0xf0] sm:$0xff] %v813
    %852 = vst [vmem:[#allocation3 + $0xf8] sm:$0xff] %v818
    %v853 = vld [vmem:[%s1] sm:$0x3]
    %v855 = vsel %vm499, %v853, 0
    %857 = vmatprep.subr.mxu0 0.0
    %858 = vmatpush1.msra.mxu0 %v51
    %859 = vmatprep.subr.mxu0 0.0
    %860 = vmatpush1.msra.mxu0 %v52
    %861 = vmatprep.subr.mxu0 0.0
    %862 = vmatpush1.msra.mxu0 0.0
    %863 = vmatprep.subr.mxu0 0.0
    %864 = vmatpush1.msra.mxu0 0.0
    %865 = vmatprep.subr.mxu0 0.0
    %866 = vmatpush1.msra.mxu0 0.0
    %867 = vmatprep.subr.mxu0 0.0
    %868 = vmatpush1.msra.mxu0 0.0
    %869 = vmatprep.subr.mxu0 0.0
    %870 = vmatpush1.msra.mxu0 0.0
    %871 = vmatprep.subr.mxu0 0.0
    %872 = vmatpush1.msra.mxu0 0.0
    %873 = vmatprep.subr.mxu0 0.0
    %874 = vmatpush1.msra.mxu0 0.0
    %875 = vmatprep.subr.mxu0 0.0
    %876 = vmatpush1.msra.mxu0 0.0
    %877 = vmatprep.subr.mxu0 0.0
    %878 = vmatpush1.msra.mxu0 0.0
    %879 = vmatprep.subr.mxu0 0.0
    %880 = vmatpush1.msra.mxu0 0.0
    %881 = vmatprep.subr.mxu0 0.0
    %882 = vmatpush1.msra.mxu0 0.0
    %883 = vmatprep.subr.mxu0 0.0
    %884 = vmatpush1.msra.mxu0 0.0
    %885 = vmatprep.subr.mxu0 0.0
    %886 = vmatpush1.msra.mxu0 0.0
    %887 = vmatprep.subr.mxu0 0.0
    %888 = vmatpush1.msra.mxu0 0.0
    %889 = vmatprep.subr.mxu0 0.0
    %890 = vmatpush1.msra.mxu0 0.0
    %891 = vmatprep.subr.mxu0 0.0
    %892 = vmatpush1.msra.mxu0 0.0
    %893 = vmatprep.subr.mxu0 0.0
    %894 = vmatpush1.msra.mxu0 0.0
    %895 = vmatprep.subr.mxu0 0.0
    %896 = vmatpush1.msra.mxu0 0.0
    %897 = vmatprep.subr.mxu0 0.0
    %898 = vmatpush1.msra.mxu0 0.0
    %899 = vmatprep.subr.mxu0 0.0
    %900 = vmatpush1.msra.mxu0 0.0
    %901 = vmatprep.subr.mxu0 0.0
    %902 = vmatpush1.msra.mxu0 0.0
    %903 = vmatprep.subr.mxu0 0.0
    %904 = vmatpush1.msra.mxu0 0.0
    %905 = vmatprep.subr.mxu0 0.0
    %906 = vmatpush1.msra.mxu0 0.0
    %907 = vmatprep.subr.mxu0 0.0
    %908 = vmatpush1.msra.mxu0 0.0
    %909 = vmatprep.subr.mxu0 0.0
    %910 = vmatpush1.msra.mxu0 0.0
    %911 = vmatprep.subr.mxu0 0.0
    %912 = vmatpush1.msra.mxu0 0.0
    %913 = vmatprep.subr.mxu0 0.0
    %914 = vmatpush1.msra.mxu0 0.0
    %915 = vmatprep.subr.mxu0 0.0
    %916 = vmatpush1.msra.mxu0 0.0
    %917 = vmatprep.subr.mxu0 0.0
    %918 = vmatpush1.msra.mxu0 0.0
    %919 = vmatprep.subr.mxu0 0.0
    %920 = vmatpush1.msra.mxu0 0.0
    %921 = vmatprep.mubr.f32.mxu0 0.0
    %922 = vmatmul.mubr.f32.gmra.mrb[0].mxu0 %v855
    %v923 = vpop.f32.mrb[0].mxu0
    %v924 = vadd.f32 %v497, %v923
    %v925 = vpop.f32.mrb[0].mxu0
    %926 = vdwg.mxu0
    %v927 = vlaneseq
    %v928 = vand.u32 %v927, 127
    %vm929 = vcmp.lt.s32.totalorder %v928, 8
    %v930 = vld [vmem:[%s2] sm:$0x3]
    %v931 = vld [vmem:[%s3] sm:$0x3]
    %v933 = vsel %vm107, %v930, 0
    %935 = vmatprep.subr.mxu0 0.0
    %936 = vmatpush1.msra.mxu0 %v53
    %937 = vmatprep.subr.mxu0 0.0
    %938 = vmatpush1.msra.mxu0 %v54
    %939 = vmatprep.subr.mxu0 0.0
    %940 = vmatpush1.msra.mxu0 %v55
    %941 = vmatprep.subr.mxu0 0.0
    %942 = vmatpush1.msra.mxu0 %v56
    %943 = vmatprep.subr.mxu0 0.0
    %944 = vmatpush1.msra.mxu0 0.0
    %945 = vmatprep.subr.mxu0 0.0
    %946 = vmatpush1.msra.mxu0 0.0
    %947 = vmatprep.subr.mxu0 0.0
    %948 = vmatpush1.msra.mxu0 0.0
    %949 = vmatprep.subr.mxu0 0.0
    %950 = vmatpush1.msra.mxu0 0.0
    %951 = vmatprep.subr.mxu0 0.0
    %952 = vmatpush1.msra.mxu0 0.0
    %953 = vmatprep.subr.mxu0 0.0
    %954 = vmatpush1.msra.mxu0 0.0
    %955 = vmatprep.subr.mxu0 0.0
    %956 = vmatpush1.msra.mxu0 0.0
    %957 = vmatprep.subr.mxu0 0.0
    %958 = vmatpush1.msra.mxu0 0.0
    %959 = vmatprep.subr.mxu0 0.0
    %960 = vmatpush1.msra.mxu0 0.0
    %961 = vmatprep.subr.mxu0 0.0
    %962 = vmatpush1.msra.mxu0 0.0
    %963 = vmatprep.subr.mxu0 0.0
    %964 = vmatpush1.msra.mxu0 0.0
    %965 = vmatprep.subr.mxu0 0.0
    %966 = vmatpush1.msra.mxu0 0.0
    %967 = vmatprep.subr.mxu0 0.0
    %968 = vmatpush1.msra.mxu0 0.0
    %969 = vmatprep.subr.mxu0 0.0
    %970 = vmatpush1.msra.mxu0 0.0
    %971 = vmatprep.subr.mxu0 0.0
    %972 = vmatpush1.msra.mxu0 0.0
    %973 = vmatprep.subr.mxu0 0.0
    %974 = vmatpush1.msra.mxu0 0.0
    %975 = vmatprep.subr.mxu0 0.0
    %976 = vmatpush1.msra.mxu0 0.0
    %977 = vmatprep.subr.mxu0 0.0
    %978 = vmatpush1.msra.mxu0 0.0
    %979 = vmatprep.subr.mxu0 0.0
    %980 = vmatpush1.msra.mxu0 0.0
    %981 = vmatprep.subr.mxu0 0.0
    %982 = vmatpush1.msra.mxu0 0.0
    %983 = vmatprep.subr.mxu0 0.0
    %984 = vmatpush1.msra.mxu0 0.0
    %985 = vmatprep.subr.mxu0 0.0
    %986 = vmatpush1.msra.mxu0 0.0
    %987 = vmatprep.subr.mxu0 0.0
    %988 = vmatpush1.msra.mxu0 0.0
    %989 = vmatprep.subr.mxu0 0.0
    %990 = vmatpush1.msra.mxu0 0.0
    %991 = vmatprep.subr.mxu0 0.0
    %992 = vmatpush1.msra.mxu0 0.0
    %993 = vmatprep.subr.mxu0 0.0
    %994 = vmatpush1.msra.mxu0 0.0
    %995 = vmatprep.subr.mxu0 0.0
    %996 = vmatpush1.msra.mxu0 0.0
    %997 = vmatprep.subr.mxu0 0.0
    %998 = vmatpush1.msra.mxu0 0.0
    %999 = vmatprep.mubr.f32.mxu0 0.0
    %1000 = vmatmul.mubr.f32.gmra.mrb[0].mxu0 %v933
    %v1001 = vpop.f32.mrb[0].mxu0
    %v1002 = vadd.f32 0.0, %v1001
    %v1003 = vpop.f32.mrb[0].mxu0
    %1004 = vdwg.mxu0
    %v1005 = vadd.f32 %v924, %v1002
    %v1006 = vxor.u32 %v1005, 2147483648
    %v1007 = vmul.f32 %v1006, 1.442695
    %v1008 = vpow.pop %v1007
    %v1009 = vadd.f32 %v1008, 1.0
    %v1010 = vrcp.pop %v1009
    %v1011 = vmul.f32 1.0, %v1010
    %v1012 = vtanh.pop %v1005
    %1014 = vrot.lane.b32.xlu0 %v931, 32
    %v1015 = vpop.permute.xlu0 %1014
    %v1017 = vmul.f32 %v1011, %v1015
    %1019 = vrot.lane.b32.xlu0 %v1012, 64
    %v1020 = vpop.permute.xlu0 %1019
    %v1022 = vmul.f32 %v1011, %v1020
    %1024 = vrot.lane.b32.xlu0 %v1022, 32
    %v1025 = vpop.permute.xlu0 %1024
    %v1027 = vadd.f32 %v1017, %v1025
    %v1028 = vtanh.pop %v1027
    %1030 = vrot.lane.b32.xlu0 %v1028, 64
    %v1031 = vpop.permute.xlu0 %1030
    %v1033 = vmul.f32 %v1011, %v1031
    %v1035 = vlaneseq
    %v1036 = vshrl.u32 %v1035, 7
    %v1037 = vsub.s32 0, %v1036
    %v1038 = vrot.slane %v62, %v1037
    %1041 = vrot.lane.b32.xlu0 %v1033, 32
    %v1042 = vpop.permute.xlu0 %1041
    %v1043 = vsel %vm107, %v1042, 0
    %1045 = vmatprep.subr.mxu0 0.0
    %1046 = vmatpush1.msra.mxu0 %v58
    %1047 = vmatprep.subr.mxu0 0.0
    %1048 = vmatpush1.msra.mxu0 %v59
    %1049 = vmatprep.subr.mxu0 0.0
    %1050 = vmatpush1.msra.mxu0 %v60
    %1051 = vmatprep.subr.mxu0 0.0
    %1052 = vmatpush1.msra.mxu0 %v61
    %1053 = vmatprep.subr.mxu0 0.0
    %1054 = vmatpush1.msra.mxu0 0.0
    %1055 = vmatprep.subr.mxu0 0.0
    %1056 = vmatpush1.msra.mxu0 0.0
    %1057 = vmatprep.subr.mxu0 0.0
    %1058 = vmatpush1.msra.mxu0 0.0
    %1059 = vmatprep.subr.mxu0 0.0
    %1060 = vmatpush1.msra.mxu0 0.0
    %1061 = vmatprep.subr.mxu0 0.0
    %1062 = vmatpush1.msra.mxu0 0.0
    %1063 = vmatprep.subr.mxu0 0.0
    %1064 = vmatpush1.msra.mxu0 0.0
    %1065 = vmatprep.subr.mxu0 0.0
    %1066 = vmatpush1.msra.mxu0 0.0
    %1067 = vmatprep.subr.mxu0 0.0
    %1068 = vmatpush1.msra.mxu0 0.0
    %1069 = vmatprep.subr.mxu0 0.0
    %1070 = vmatpush1.msra.mxu0 0.0
    %1071 = vmatprep.subr.mxu0 0.0
    %1072 = vmatpush1.msra.mxu0 0.0
    %1073 = vmatprep.subr.mxu0 0.0
    %1074 = vmatpush1.msra.mxu0 0.0
    %1075 = vmatprep.subr.mxu0 0.0
    %1076 = vmatpush1.msra.mxu0 0.0
    %1077 = vmatprep.subr.mxu0 0.0
    %1078 = vmatpush1.msra.mxu0 0.0
    %1079 = vmatprep.subr.mxu0 0.0
    %1080 = vmatpush1.msra.mxu0 0.0
    %1081 = vmatprep.subr.mxu0 0.0
    %1082 = vmatpush1.msra.mxu0 0.0
    %1083 = vmatprep.subr.mxu0 0.0
    %1084 = vmatpush1.msra.mxu0 0.0
    %1085 = vmatprep.subr.mxu0 0.0
    %1086 = vmatpush1.msra.mxu0 0.0
    %1087 = vmatprep.subr.mxu0 0.0
    %1088 = vmatpush1.msra.mxu0 0.0
    %1089 = vmatprep.subr.mxu0 0.0
    %1090 = vmatpush1.msra.mxu0 0.0
    %1091 = vmatprep.subr.mxu0 0.0
    %1092 = vmatpush1.msra.mxu0 0.0
    %1093 = vmatprep.subr.mxu0 0.0
    %1094 = vmatpush1.msra.mxu0 0.0
    %1095 = vmatprep.subr.mxu0 0.0
    %1096 = vmatpush1.msra.mxu0 0.0
    %1097 = vmatprep.subr.mxu0 0.0
    %1098 = vmatpush1.msra.mxu0 0.0
    %1099 = vmatprep.subr.mxu0 0.0
    %1100 = vmatpush1.msra.mxu0 0.0
    %1101 = vmatprep.subr.mxu0 0.0
    %1102 = vmatpush1.msra.mxu0 0.0
    %1103 = vmatprep.subr.mxu0 0.0
    %1104 = vmatpush1.msra.mxu0 0.0
    %1105 = vmatprep.subr.mxu0 0.0
    %1106 = vmatpush1.msra.mxu0 0.0
    %1107 = vmatprep.subr.mxu0 0.0
    %1108 = vmatpush1.msra.mxu0 0.0
    %1109 = vmatprep.mubr.f32.mxu0 0.0
    %1110 = vmatmul.mubr.f32.gmra.mrb[0].mxu0 %v1043
    %v1111 = vpop.f32.mrb[0].mxu0
    %v1112 = vadd.f32 %v1038, %v1111
    %v1113 = vpop.f32.mrb[0].mxu0
    %1114 = vdwg.mxu0
    %v1115 = vld [vmem:[#allocation2] sm:$0xff]
    %v1116 = vld [vmem:[#allocation2 + $0x8] sm:$0xff]
    %v1117 = vld [vmem:[#allocation2 + $0x10] sm:$0xff]
    %v1118 = vld [vmem:[#allocation2 + $0x18] sm:$0xff]
    %v1119 = vld [vmem:[#allocation2 + $0x20] sm:$0xff]
    %v1120 = vld [vmem:[#allocation2 + $0x28] sm:$0xff]
    %v1121 = vld [vmem:[#allocation2 + $0x30] sm:$0xff]
    %v1122 = vld [vmem:[#allocation2 + $0x38] sm:$0xff]
    %v1123 = vld [vmem:[#allocation2 + $0x40] sm:$0xff]
    %v1124 = vld [vmem:[#allocation2 + $0x48] sm:$0xff]
    %v1125 = vld [vmem:[#allocation2 + $0x50] sm:$0xff]
    %v1126 = vld [vmem:[#allocation2 + $0x58] sm:$0xff]
    %v1127 = vld [vmem:[#allocation2 + $0x60] sm:$0xff]
    %v1128 = vld [vmem:[#allocation2 + $0x68] sm:$0xff]
    %v1129 = vld [vmem:[#allocation2 + $0x70] sm:$0xff]
    %v1130 = vld [vmem:[#allocation2 + $0x78] sm:$0xff]
    %v1131 = vld [vmem:[#allocation2 + $0x80] sm:$0xff]
    %v1132 = vld [vmem:[#allocation2 + $0x88] sm:$0xff]
    %v1133 = vld [vmem:[#allocation2 + $0x90] sm:$0xff]
    %v1134 = vld [vmem:[#allocation2 + $0x98] sm:$0xff]
    %v1135 = vld [vmem:[#allocation2 + $0xa0] sm:$0xff]
    %v1136 = vld [vmem:[#allocation2 + $0xa8] sm:$0xff]
    %v1137 = vld [vmem:[#allocation2 + $0xb0] sm:$0xff]
    %v1138 = vld [vmem:[#allocation2 + $0xb8] sm:$0xff]
    %v1139 = vld [vmem:[#allocation2 + $0xc0] sm:$0xff]
    %v1140 = vld [vmem:[#allocation2 + $0xc8] sm:$0xff]
    %v1141 = vld [vmem:[#allocation2 + $0xd0] sm:$0xff]
    %v1142 = vld [vmem:[#allocation2 + $0xd8] sm:$0xff]
    %v1143 = vld [vmem:[#allocation2 + $0xe0] sm:$0xff]
    %v1144 = vld [vmem:[#allocation2 + $0xe8] sm:$0xff]
    %v1145 = vld [vmem:[#allocation2 + $0xf0] sm:$0xff]
    %v1146 = vld [vmem:[#allocation2 + $0xf8] sm:$0xff]
    %v1149 = vunpack.c.l.s4 1966171168
    %v1150 = vunpack.c.0.s8 %v1149
    %v1151 = vlaneseq
    %v1152 = vshrl.u32 %v1151, 7
    %v1153 = vsub.s32 %v1150, %v1152
    %v1154 = vrot.slane %v1112, %v1153
    %v1155 = vcombine.high %v1154, %v1154
    %v1157 = vunpack.c.l.s4 1966171168
    %v1158 = vunpack.c.0.s8 %v1157
    %v1159 = vlaneseq
    %v1160 = vshrl.u32 %v1159, 7
    %v1161 = vsub.s32 %v1158, %v1160
    %v1162 = vrot.slane %v1154, %v1161
    %v1164 = vunpack.c.l.s4 1966171168
    %v1165 = vunpack.c.0.s8 %v1164
    %v1166 = vlaneseq
    %v1167 = vshrl.u32 %v1166, 7
    %v1168 = vsub.s32 %v1165, %v1167
    %v1169 = vrot.slane %v1155, %v1168
    %v1170 = vlaneseq
    %v1171 = vshrl.u32 %v1170, 7
    %v1172 = vsub.s32 0, %v1171
    %v1173 = vrot.slane %v1162, %v1172
    %v1174 = vlaneseq
    %v1175 = vshrl.u32 %v1174, 7
    %v1176 = vsub.s32 0, %v1175
    %v1177 = vrot.slane %v1169, %v1176
    %v1180 = vadd.f32 %v1173, %v1115
    %v1181 = vadd.f32 %v1173, %v1116
    %v1182 = vadd.f32 %v1173, %v1117
    %v1183 = vadd.f32 %v1173, %v1118
    %v1184 = vadd.f32 %v1173, %v1119
    %v1185 = vadd.f32 %v1173, %v1120
    %v1186 = vadd.f32 %v1173, %v1121
    %v1187 = vadd.f32 %v1173, %v1122
    %v1188 = vadd.f32 %v1173, %v1123
    %v1189 = vadd.f32 %v1173, %v1124
    %v1190 = vadd.f32 %v1173, %v1125
    %v1191 = vadd.f32 %v1173, %v1126
    %v1192 = vadd.f32 %v1173, %v1127
    %v1193 = vadd.f32 %v1173, %v1128
    %v1194 = vadd.f32 %v1173, %v1129
    %v1195 = vadd.f32 %v1173, %v1130
    %v1196 = vadd.f32 %v1177, %v1131
    %v1197 = vadd.f32 %v1177, %v1132
    %v1198 = vadd.f32 %v1177, %v1133
    %v1199 = vadd.f32 %v1177, %v1134
    %v1200 = vadd.f32 %v1177, %v1135
    %v1201 = vadd.f32 %v1177, %v1136
    %v1202 = vadd.f32 %v1177, %v1137
    %v1203 = vadd.f32 %v1177, %v1138
    %v1204 = vadd.f32 %v1177, %v1139
    %v1205 = vadd.f32 %v1177, %v1140
    %v1206 = vadd.f32 %v1177, %v1141
    %v1207 = vadd.f32 %v1177, %v1142
    %v1208 = vadd.f32 %v1177, %v1143
    %v1209 = vadd.f32 %v1177, %v1144
    %v1210 = vadd.f32 %v1177, %v1145
    %v1211 = vadd.f32 %v1177, %v1146
    %v1212 = vtanh.pop %v1180
    %v1213 = vtanh.pop %v1181
    %v1214 = vtanh.pop %v1182
    %v1215 = vtanh.pop %v1183
    %v1216 = vtanh.pop %v1184
    %v1217 = vtanh.pop %v1185
    %v1218 = vtanh.pop %v1186
    %v1219 = vtanh.pop %v1187
    %v1220 = vtanh.pop %v1188
    %v1221 = vtanh.pop %v1189
    %v1222 = vtanh.pop %v1190
    %v1223 = vtanh.pop %v1191
    %v1224 = vtanh.pop %v1192
    %v1225 = vtanh.pop %v1193
    %v1226 = vtanh.pop %v1194
    %v1227 = vtanh.pop %v1195
    %v1228 = vtanh.pop %v1196
    %v1229 = vtanh.pop %v1197
    %v1230 = vtanh.pop %v1198
    %v1231 = vtanh.pop %v1199
    %v1232 = vtanh.pop %v1200
    %v1233 = vtanh.pop %v1201
    %v1234 = vtanh.pop %v1202
    %v1235 = vtanh.pop %v1203
    %v1236 = vtanh.pop %v1204
    %v1237 = vtanh.pop %v1205
    %v1238 = vtanh.pop %v1206
    %v1239 = vtanh.pop %v1207
    %v1240 = vtanh.pop %v1208
    %v1241 = vtanh.pop %v1209
    %v1242 = vtanh.pop %v1210
    %v1243 = vtanh.pop %v1211
    %v1245 = vlaneseq
    %v1246 = vshrl.u32 %v1245, 7
    %v1247 = vsub.s32 0, %v1246
    %v1248 = vrot.slane %v63, %v1247
    %v1250 = vmul.f32 %v1212, %v1248
    %v1251 = vmul.f32 %v1213, %v1248
    %v1252 = vmul.f32 %v1214, %v1248
    %v1253 = vmul.f32 %v1215, %v1248
    %v1254 = vmul.f32 %v1216, %v1248
    %v1255 = vmul.f32 %v1217, %v1248
    %v1256 = vmul.f32 %v1218, %v1248
    %v1257 = vmul.f32 %v1219, %v1248
    %v1258 = vmul.f32 %v1220, %v1248
    %v1259 = vmul.f32 %v1221, %v1248
    %v1260 = vmul.f32 %v1222, %v1248
    %v1261 = vmul.f32 %v1223, %v1248
    %v1262 = vmul.f32 %v1224, %v1248
    %v1263 = vmul.f32 %v1225, %v1248
    %v1264 = vmul.f32 %v1226, %v1248
    %v1265 = vmul.f32 %v1227, %v1248
    %v1266 = vmul.f32 %v1228, %v1248
    %v1267 = vmul.f32 %v1229, %v1248
    %v1268 = vmul.f32 %v1230, %v1248
    %v1269 = vmul.f32 %v1231, %v1248
    %v1270 = vmul.f32 %v1232, %v1248
    %v1271 = vmul.f32 %v1233, %v1248
    %v1272 = vmul.f32 %v1234, %v1248
    %v1273 = vmul.f32 %v1235, %v1248
    %v1274 = vmul.f32 %v1236, %v1248
    %v1275 = vmul.f32 %v1237, %v1248
    %v1276 = vmul.f32 %v1238, %v1248
    %v1277 = vmul.f32 %v1239, %v1248
    %v1278 = vmul.f32 %v1240, %v1248
    %v1279 = vmul.f32 %v1241, %v1248
    %v1280 = vmul.f32 %v1242, %v1248
    %v1281 = vmul.f32 %v1243, %v1248
    %v1282 = vsel %vm107, %v1250, 0.0
    %1283 = vadd.xlane.f32.xlu0 %v1282
    %v1284 = vpop.xlane.xlu0 %1283
    %v1285 = vsel %vm107, %v1251, 0.0
    %1286 = vadd.xlane.f32.xlu0 %v1285
    %v1287 = vpop.xlane.xlu0 %1286
    %v1288 = vsel %vm107, %v1252, 0.0
    %1289 = vadd.xlane.f32.xlu0 %v1288
    %v1290 = vpop.xlane.xlu0 %1289
    %v1291 = vsel %vm107, %v1253, 0.0
    %1292 = vadd.xlane.f32.xlu0 %v1291
    %v1293 = vpop.xlane.xlu0 %1292
    %v1294 = vsel %vm107, %v1254, 0.0
    %1295 = vadd.xlane.f32.xlu0 %v1294
    %v1296 = vpop.xlane.xlu0 %1295
    %v1297 = vsel %vm107, %v1255, 0.0
    %1298 = vadd.xlane.f32.xlu0 %v1297
    %v1299 = vpop.xlane.xlu0 %1298
    %v1300 = vsel %vm107, %v1256, 0.0
    %1301 = vadd.xlane.f32.xlu0 %v1300
    %v1302 = vpop.xlane.xlu0 %1301
    %v1303 = vsel %vm107, %v1257, 0.0
    %1304 = vadd.xlane.f32.xlu0 %v1303
    %v1305 = vpop.xlane.xlu0 %1304
    %v1306 = vsel %vm107, %v1258, 0.0
    %1307 = vadd.xlane.f32.xlu0 %v1306
    %v1308 = vpop.xlane.xlu0 %1307
    %v1309 = vsel %vm107, %v1259, 0.0
    %1310 = vadd.xlane.f32.xlu0 %v1309
    %v1311 = vpop.xlane.xlu0 %1310
    %v1312 = vsel %vm107, %v1260, 0.0
    %1313 = vadd.xlane.f32.xlu0 %v1312
    %v1314 = vpop.xlane.xlu0 %1313
    %v1315 = vsel %vm107, %v1261, 0.0
    %1316 = vadd.xlane.f32.xlu0 %v1315
    %v1317 = vpop.xlane.xlu0 %1316
    %v1318 = vsel %vm107, %v1262, 0.0
    %1319 = vadd.xlane.f32.xlu0 %v1318
    %v1320 = vpop.xlane.xlu0 %1319
    %v1321 = vsel %vm107, %v1263, 0.0
    %1322 = vadd.xlane.f32.xlu0 %v1321
    %v1323 = vpop.xlane.xlu0 %1322
    %v1324 = vsel %vm107, %v1264, 0.0
    %1325 = vadd.xlane.f32.xlu0 %v1324
    %v1326 = vpop.xlane.xlu0 %1325
    %v1327 = vsel %vm107, %v1265, 0.0
    %1328 = vadd.xlane.f32.xlu0 %v1327
    %v1329 = vpop.xlane.xlu0 %1328
    %v1330 = vsel %vm107, %v1266, 0.0
    %1331 = vadd.xlane.f32.xlu0 %v1330
    %v1332 = vpop.xlane.xlu0 %1331
    %v1333 = vsel %vm107, %v1267, 0.0
    %1334 = vadd.xlane.f32.xlu0 %v1333
    %v1335 = vpop.xlane.xlu0 %1334
    %v1336 = vsel %vm107, %v1268, 0.0
    %1337 = vadd.xlane.f32.xlu0 %v1336
    %v1338 = vpop.xlane.xlu0 %1337
    %v1339 = vsel %vm107, %v1269, 0.0
    %1340 = vadd.xlane.f32.xlu0 %v1339
    %v1341 = vpop.xlane.xlu0 %1340
    %v1342 = vsel %vm107, %v1270, 0.0
    %1343 = vadd.xlane.f32.xlu0 %v1342
    %v1344 = vpop.xlane.xlu0 %1343
    %v1345 = vsel %vm107, %v1271, 0.0
    %1346 = vadd.xlane.f32.xlu0 %v1345
    %v1347 = vpop.xlane.xlu0 %1346
    %v1348 = vsel %vm107, %v1272, 0.0
    %1349 = vadd.xlane.f32.xlu0 %v1348
    %v1350 = vpop.xlane.xlu0 %1349
    %v1351 = vsel %vm107, %v1273, 0.0
    %1352 = vadd.xlane.f32.xlu0 %v1351
    %v1353 = vpop.xlane.xlu0 %1352
    %v1354 = vsel %vm107, %v1274, 0.0
    %1355 = vadd.xlane.f32.xlu0 %v1354
    %v1356 = vpop.xlane.xlu0 %1355
    %v1357 = vsel %vm107, %v1275, 0.0
    %1358 = vadd.xlane.f32.xlu0 %v1357
    %v1359 = vpop.xlane.xlu0 %1358
    %v1360 = vsel %vm107, %v1276, 0.0
    %1361 = vadd.xlane.f32.xlu0 %v1360
    %v1362 = vpop.xlane.xlu0 %1361
    %v1363 = vsel %vm107, %v1277, 0.0
    %1364 = vadd.xlane.f32.xlu0 %v1363
    %v1365 = vpop.xlane.xlu0 %1364
    %v1366 = vsel %vm107, %v1278, 0.0
    %1367 = vadd.xlane.f32.xlu0 %v1366
    %v1368 = vpop.xlane.xlu0 %1367
    %v1369 = vsel %vm107, %v1279, 0.0
    %1370 = vadd.xlane.f32.xlu0 %v1369
    %v1371 = vpop.xlane.xlu0 %1370
    %v1372 = vsel %vm107, %v1280, 0.0
    %1373 = vadd.xlane.f32.xlu0 %v1372
    %v1374 = vpop.xlane.xlu0 %1373
    %v1375 = vsel %vm107, %v1281, 0.0
    %1376 = vadd.xlane.f32.xlu0 %v1375
    %v1377 = vpop.xlane.xlu0 %1376
    %vm1378 = vcmp.eq.f32.partialorder 1.0, 0.0
    %v1379 = vsel %vm1378, -10.0, %v1284
    %v1380 = vsel %vm1378, -10.0, %v1287
    %v1381 = vsel %vm1378, -10.0, %v1290
    %v1382 = vsel %vm1378, -10.0, %v1293
    %v1383 = vsel %vm1378, -10.0, %v1296
    %v1384 = vsel %vm1378, -10.0, %v1299
    %v1385 = vsel %vm1378, -10.0, %v1302
    %v1386 = vsel %vm1378, -10.0, %v1305
    %v1387 = vsel %vm1378, -10.0, %v1308
    %v1388 = vsel %vm1378, -10.0, %v1311
    %v1389 = vsel %vm1378, -10.0, %v1314
    %v1390 = vsel %vm1378, -10.0, %v1317
    %v1391 = vsel %vm1378, -10.0, %v1320
    %v1392 = vsel %vm1378, -10.0, %v1323
    %v1393 = vsel %vm1378, -10.0, %v1326
    %v1394 = vsel %vm1378, -10.0, %v1329
    %v1395 = vsel %vm1378, -10.0, %v1332
    %v1396 = vsel %vm1378, -10.0, %v1335
    %v1397 = vsel %vm1378, -10.0, %v1338
    %v1398 = vsel %vm1378, -10.0, %v1341
    %v1399 = vsel %vm1378, -10.0, %v1344
    %v1400 = vsel %vm1378, -10.0, %v1347
    %v1401 = vsel %vm1378, -10.0, %v1350
    %v1402 = vsel %vm1378, -10.0, %v1353
    %v1403 = vsel %vm1378, -10.0, %v1356
    %v1404 = vsel %vm1378, -10.0, %v1359
    %v1405 = vsel %vm1378, -10.0, %v1362
    %v1406 = vsel %vm1378, -10.0, %v1365
    %v1407 = vsel %vm1378, -10.0, %v1368
    %v1408 = vsel %vm1378, -10.0, %v1371
    %v1409 = vsel %vm1378, -10.0, %v1374
    %v1410 = vsel %vm1378, -10.0, %v1377
    %v1443 = vlaneseq
    %v1444 = vshrl.u32 %v1443, 7
    %v1445 = vsub.s32 %v928, %v1444
    %v1446 = vrot.slane %v1379, %v1445
    %v1447 = vadd.s32 %v928, 4294967288
    %v1448 = vlaneseq
    %v1449 = vshrl.u32 %v1448, 7
    %v1450 = vsub.s32 %v1447, %v1449
    %v1451 = vrot.slane %v1380, %v1450
    %vm1452 = vcmask 130112
    %v1453 = vsel %vm1452, %v1451, %v1446
    %v1454 = vadd.s32 %v928, 4294967280
    %v1455 = vlaneseq
    %v1456 = vshrl.u32 %v1455, 7
    %v1457 = vsub.s32 %v1454, %v1456
    %v1458 = vrot.slane %v1381, %v1457
    %vm1459 = vcmask 195712
    %v1460 = vsel %vm1459, %v1458, %v1453
    %v1461 = vadd.s32 %v928, 4294967272
    %v1462 = vlaneseq
    %v1463 = vshrl.u32 %v1462, 7
    %v1464 = vsub.s32 %v1461, %v1463
    %v1465 = vrot.slane %v1382, %v1464
    %vm1466 = vcmask 261312
    %v1467 = vsel %vm1466, %v1465, %v1460
    %v1468 = vadd.s32 %v928, 4294967264
    %v1469 = vlaneseq
    %v1470 = vshrl.u32 %v1469, 7
    %v1471 = vsub.s32 %v1468, %v1470
    %v1472 = vrot.slane %v1383, %v1471
    %vm1473 = vcmask 326912
    %v1474 = vsel %vm1473, %v1472, %v1467
    %v1475 = vadd.s32 %v928, 4294967256
    %v1476 = vlaneseq
    %v1477 = vshrl.u32 %v1476, 7
    %v1478 = vsub.s32 %v1475, %v1477
    %v1479 = vrot.slane %v1384, %v1478
    %vm1480 = vcmask 392512
    %v1481 = vsel %vm1480, %v1479, %v1474
    %v1482 = vadd.s32 %v928, 4294967248
    %v1483 = vlaneseq
    %v1484 = vshrl.u32 %v1483, 7
    %v1485 = vsub.s32 %v1482, %v1484
    %v1486 = vrot.slane %v1385, %v1485
    %vm1487 = vcmask 458112
    %v1488 = vsel %vm1487, %v1486, %v1481
    %v1489 = vadd.s32 %v928, 4294967240
    %v1490 = vlaneseq
    %v1491 = vshrl.u32 %v1490, 7
    %v1492 = vsub.s32 %v1489, %v1491
    %v1493 = vrot.slane %v1386, %v1492
    %vm1494 = vcmask 523712
    %v1495 = vsel %vm1494, %v1493, %v1488
    %v1496 = vadd.s32 %v928, 4294967232
    %v1497 = vlaneseq
    %v1498 = vshrl.u32 %v1497, 7
    %v1499 = vsub.s32 %v1496, %v1498
    %v1500 = vrot.slane %v1387, %v1499
    %vm1501 = vcmask 589312
    %v1502 = vsel %vm1501, %v1500, %v1495
    %v1503 = vadd.s32 %v928, 4294967224
    %v1504 = vlaneseq
    %v1505 = vshrl.u32 %v1504, 7
    %v1506 = vsub.s32 %v1503, %v1505
    %v1507 = vrot.slane %v1388, %v1506
    %vm1508 = vcmask 654912
    %v1509 = vsel %vm1508, %v1507, %v1502
    %v1510 = vadd.s32 %v928, 4294967216
    %v1511 = vlaneseq
    %v1512 = vshrl.u32 %v1511, 7
    %v1513 = vsub.s32 %v1510, %v1512
    %v1514 = vrot.slane %v1389, %v1513
    %vm1515 = vcmask 720512
    %v1516 = vsel %vm1515, %v1514, %v1509
    %v1517 = vadd.s32 %v928, 4294967208
    %v1518 = vlaneseq
    %v1519 = vshrl.u32 %v1518, 7
    %v1520 = vsub.s32 %v1517, %v1519
    %v1521 = vrot.slane %v1390, %v1520
    %vm1522 = vcmask 786112
    %v1523 = vsel %vm1522, %v1521, %v1516
    %v1524 = vadd.s32 %v928, 4294967200
    %v1525 = vlaneseq
    %v1526 = vshrl.u32 %v1525, 7
    %v1527 = vsub.s32 %v1524, %v1526
    %v1528 = vrot.slane %v1391, %v1527
    %vm1529 = vcmask 851712
    %v1530 = vsel %vm1529, %v1528, %v1523
    %v1531 = vadd.s32 %v928, 4294967192
    %v1532 = vlaneseq
    %v1533 = vshrl.u32 %v1532, 7
    %v1534 = vsub.s32 %v1531, %v1533
    %v1535 = vrot.slane %v1392, %v1534
    %vm1536 = vcmask 917312
    %v1537 = vsel %vm1536, %v1535, %v1530
    %v1538 = vadd.s32 %v928, 4294967184
    %v1539 = vlaneseq
    %v1540 = vshrl.u32 %v1539, 7
    %v1541 = vsub.s32 %v1538, %v1540
    %v1542 = vrot.slane %v1393, %v1541
    %vm1543 = vcmask 982912
    %v1544 = vsel %vm1543, %v1542, %v1537
    %v1545 = vadd.s32 %v928, 4294967176
    %v1546 = vlaneseq
    %v1547 = vshrl.u32 %v1546, 7
    %v1548 = vsub.s32 %v1545, %v1547
    %v1549 = vrot.slane %v1394, %v1548
    %vm1550 = vcmask 1048512
    %v1551 = vsel %vm1550, %v1549, %v1544
    %v1552 = vlaneseq
    %v1553 = vshrl.u32 %v1552, 7
    %v1554 = vsub.s32 %v928, %v1553
    %v1555 = vrot.slane %v1395, %v1554
    %v1556 = vlaneseq
    %v1557 = vshrl.u32 %v1556, 7
    %v1558 = vsub.s32 %v1447, %v1557
    %v1559 = vrot.slane %v1396, %v1558
    %v1560 = vsel %vm1452, %v1559, %v1555
    %v1561 = vlaneseq
    %v1562 = vshrl.u32 %v1561, 7
    %v1563 = vsub.s32 %v1454, %v1562
    %v1564 = vrot.slane %v1397, %v1563
    %v1565 = vsel %vm1459, %v1564, %v1560
    %v1566 = vlaneseq
    %v1567 = vshrl.u32 %v1566, 7
    %v1568 = vsub.s32 %v1461, %v1567
    %v1569 = vrot.slane %v1398, %v1568
    %v1570 = vsel %vm1466, %v1569, %v1565
    %v1571 = vlaneseq
    %v1572 = vshrl.u32 %v1571, 7
    %v1573 = vsub.s32 %v1468, %v1572
    %v1574 = vrot.slane %v1399, %v1573
    %v1575 = vsel %vm1473, %v1574, %v1570
    %v1576 = vlaneseq
    %v1577 = vshrl.u32 %v1576, 7
    %v1578 = vsub.s32 %v1475, %v1577
    %v1579 = vrot.slane %v1400, %v1578
    %v1580 = vsel %vm1480, %v1579, %v1575
    %v1581 = vlaneseq
    %v1582 = vshrl.u32 %v1581, 7
    %v1583 = vsub.s32 %v1482, %v1582
    %v1584 = vrot.slane %v1401, %v1583
    %v1585 = vsel %vm1487, %v1584, %v1580
    %v1586 = vlaneseq
    %v1587 = vshrl.u32 %v1586, 7
    %v1588 = vsub.s32 %v1489, %v1587
    %v1589 = vrot.slane %v1402, %v1588
    %v1590 = vsel %vm1494, %v1589, %v1585
    %v1591 = vlaneseq
    %v1592 = vshrl.u32 %v1591, 7
    %v1593 = vsub.s32 %v1496, %v1592
    %v1594 = vrot.slane %v1403, %v1593
    %v1595 = vsel %vm1501, %v1594, %v1590
    %v1596 = vlaneseq
    %v1597 = vshrl.u32 %v1596, 7
    %v1598 = vsub.s32 %v1503, %v1597
    %v1599 = vrot.slane %v1404, %v1598
    %v1600 = vsel %vm1508, %v1599, %v1595
    %v1601 = vlaneseq
    %v1602 = vshrl.u32 %v1601, 7
    %v1603 = vsub.s32 %v1510, %v1602
    %v1604 = vrot.slane %v1405, %v1603
    %v1605 = vsel %vm1515, %v1604, %v1600
    %v1606 = vlaneseq
    %v1607 = vshrl.u32 %v1606, 7
    %v1608 = vsub.s32 %v1517, %v1607
    %v1609 = vrot.slane %v1406, %v1608
    %v1610 = vsel %vm1522, %v1609, %v1605
    %v1611 = vlaneseq
    %v1612 = vshrl.u32 %v1611, 7
    %v1613 = vsub.s32 %v1524, %v1612
    %v1614 = vrot.slane %v1407, %v1613
    %v1615 = vsel %vm1529, %v1614, %v1610
    %v1616 = vlaneseq
    %v1617 = vshrl.u32 %v1616, 7
    %v1618 = vsub.s32 %v1531, %v1617
    %v1619 = vrot.slane %v1408, %v1618
    %v1620 = vsel %vm1536, %v1619, %v1615
    %v1621 = vlaneseq
    %v1622 = vshrl.u32 %v1621, 7
    %v1623 = vsub.s32 %v1538, %v1622
    %v1624 = vrot.slane %v1409, %v1623
    %v1625 = vsel %vm1543, %v1624, %v1620
    %v1626 = vlaneseq
    %v1627 = vshrl.u32 %v1626, 7
    %v1628 = vsub.s32 %v1545, %v1627
    %v1629 = vrot.slane %v1410, %v1628
    %v1630 = vsel %vm1550, %v1629, %v1625
    %vm1631 = vcmask 1041409
    %v1632 = vsel %vm1631, %v1630, %v1551
    %v1634 = vsel %vm929, %v1632, -1e+30
    %v1635 = vsel %vm1378, -1e+09, %v1634
    %vm1636 = vcmask 1041408
    %v1637 = vsel %vm1636, %v1635, -inf
    %1638 = vmax.xlane.f32.xlu0 %v1637
    %v1639 = vpop.xlane.xlu0 %1638
    %vm1640 = vcmp.eq.f32.partialorder %v1635, %v1639
    %v1641 = vsel %vm1640, %v928, 128
    %v1642 = vsel %vm1636, %v1641, 2147483647
    %v1643 = vand.u32 %v1642, 65535
    %v1644 = vshra.s32 %v1642, 16
    %v1645 = vcvt.s32.f32 %v1643
    %v1646 = vcvt.s32.f32 %v1644
    %1647 = vmin.xlane.f32.xlu0 %v1646
    %v1648 = vpop.xlane.xlu0 %1647
    %vm1649 = vcmp.eq.f32.partialorder %v1646, %v1648
    %v1650 = vsel %vm1649, %v1645, inf
    %1651 = vmin.xlane.f32.xlu0 %v1650
    %v1652 = vpop.xlane.xlu0 %1651
    %v1653 = vcvt.f32.s32 %v1652
    %v1654 = vcvt.f32.s32 %v1648
    %v1655 = vshll.u32 %v1654, 16
    %v1656 = vadd.s32 %v1655, %v1653
    %vm1657 = vcmp.eq.s32.totalorder %v928, %v1656
    %v1658 = vsel %vm1657, 1, 0
    %v1659 = vcvt.s32.f32 %v1658
    %v1660 = vsel %vm1636, %v1634, -inf
    %1661 = vmax.xlane.f32.xlu0 %v1660
    %v1662 = vpop.xlane.xlu0 %1661
    %v1663 = vsub.f32 %v1634, %v1662
    %v1664 = vmul.f32 %v1663, 1.442695
    %v1665 = vpow.pop %v1664
    %v1666 = vsel %vm1636, %v1665, 0.0
    %1667 = vadd.xlane.f32.xlu0 %v1666
    %v1668 = vpop.xlane.xlu0 %1667
    %v1669 = vrcp.pop %v1668
    %v1670 = vmul.f32 %v1668, %v1669
    %v1671 = vsub.f32 2.0, %v1670
    %v1672 = vmul.f32 %v1669, %v1671
    %v1673 = vmul.f32 %v1665, %v1672
    %v1674 = vsel %vm929, %v1673, -1e+30
    %v1675 = vsel %vm1636, %v1674, -inf
    %1676 = vmax.xlane.f32.xlu0 %v1675
    %v1677 = vpop.xlane.xlu0 %1676
    %v1678 = vsub.f32 %v1674, %v1677
    %v1679 = vmul.f32 %v1678, 1.442695
    %v1680 = vpow.pop %v1679
    %v1681 = vsel %vm1636, %v1680, 0.0
    %1682 = vadd.xlane.f32.xlu0 %v1681
    %v1683 = vpop.xlane.xlu0 %1682
    %v1684 = vlog2.pop %v1683
    %v1685 = vmul.f32 %v1684, 0.6931472
    %v1686 = vsub.f32 %v1678, %v1685
    %v1689 = vunpack.c.l.s4 1966171168
    %v1690 = vunpack.c.0.s8 %v1689
    %v1691 = vlaneseq
    %v1692 = vshrl.u32 %v1691, 7
    %v1693 = vsub.s32 %v1690, %v1692
    %v1694 = vrot.slane %v1686, %v1693
    %v1695 = vcombine.high %v1694, %v1694
    %v1697 = vunpack.c.l.s4 1966171168
    %v1698 = vunpack.c.0.s8 %v1697
    %v1699 = vlaneseq
    %v1700 = vshrl.u32 %v1699, 7
    %v1701 = vsub.s32 %v1698, %v1700
    %v1702 = vrot.slane %v1694, %v1701
    %v1704 = vunpack.c.l.s4 1966171168
    %v1705 = vunpack.c.0.s8 %v1704
    %v1706 = vlaneseq
    %v1707 = vshrl.u32 %v1706, 7
    %v1708 = vsub.s32 %v1705, %v1707
    %v1709 = vrot.slane %v1695, %v1708
    %1712 = vst [vmem:[#allocation4] sm:$0x1] %v1702
    %1713 = vst [vmem:[#allocation4 + $0x8] sm:$0x1] %v1709
    %vm1714 = vcmp.eq.s32.totalorder %v928, 0
    %v1715 = vsel %vm1714, %v1656, 0
    %v1716 = vsub.f32 1.0, %v1659
    %v1717 = vlaneseq
    %v1718 = vshrl.u32 %v1717, 7
    %v1719 = vsub.s32 0, %v1718
    %v1720 = vrot.slane %v1659, %v1719
    %1722 = vbcast.lane.b32.xlu0 %v1720, 256
    %v1723 = vpop.permute.xlu0 %1722
    %s1725 = sor.u32 256, 8
    %1726 = vbcast.lane.b32.xlu0 %v1720, %s1725
    %v1727 = vpop.permute.xlu0 %1726
    %s1729 = sor.u32 256, 16
    %1730 = vbcast.lane.b32.xlu0 %v1720, %s1729
    %v1731 = vpop.permute.xlu0 %1730
    %s1733 = sor.u32 256, 24
    %1734 = vbcast.lane.b32.xlu0 %v1720, %s1733
    %v1735 = vpop.permute.xlu0 %1734
    %s1737 = sor.u32 256, 32
    %1738 = vbcast.lane.b32.xlu0 %v1720, %s1737
    %v1739 = vpop.permute.xlu0 %1738
    %s1741 = sor.u32 256, 40
    %1742 = vbcast.lane.b32.xlu0 %v1720, %s1741
    %v1743 = vpop.permute.xlu0 %1742
    %s1745 = sor.u32 256, 48
    %1746 = vbcast.lane.b32.xlu0 %v1720, %s1745
    %v1747 = vpop.permute.xlu0 %1746
    %s1749 = sor.u32 256, 56
    %1750 = vbcast.lane.b32.xlu0 %v1720, %s1749
    %v1751 = vpop.permute.xlu0 %1750
    %s1753 = sor.u32 256, 64
    %1754 = vbcast.lane.b32.xlu0 %v1720, %s1753
    %v1755 = vpop.permute.xlu0 %1754
    %s1757 = sor.u32 256, 72
    %1758 = vbcast.lane.b32.xlu0 %v1720, %s1757
    %v1759 = vpop.permute.xlu0 %1758
    %s1761 = sor.u32 256, 80
    %1762 = vbcast.lane.b32.xlu0 %v1720, %s1761
    %v1763 = vpop.permute.xlu0 %1762
    %s1765 = sor.u32 256, 88
    %1766 = vbcast.lane.b32.xlu0 %v1720, %s1765
    %v1767 = vpop.permute.xlu0 %1766
    %s1769 = sor.u32 256, 96
    %1770 = vbcast.lane.b32.xlu0 %v1720, %s1769
    %v1771 = vpop.permute.xlu0 %1770
    %s1773 = sor.u32 256, 104
    %1774 = vbcast.lane.b32.xlu0 %v1720, %s1773
    %v1775 = vpop.permute.xlu0 %1774
    %s1777 = sor.u32 256, 112
    %1778 = vbcast.lane.b32.xlu0 %v1720, %s1777
    %v1779 = vpop.permute.xlu0 %1778
    %s1781 = sor.u32 256, 120
    %1782 = vbcast.lane.b32.xlu0 %v1720, %s1781
    %v1783 = vpop.permute.xlu0 %1782
    %v1784 = vlaneseq
    %v1785 = vshrl.u32 %v1784, 7
    %v1786 = vsub.s32 1, %v1785
    %v1787 = vrot.slane %v1659, %v1786
    %1789 = vbcast.lane.b32.xlu0 %v1787, 256
    %v1790 = vpop.permute.xlu0 %1789
    %s1792 = sor.u32 256, 8
    %1793 = vbcast.lane.b32.xlu0 %v1787, %s1792
    %v1794 = vpop.permute.xlu0 %1793
    %s1796 = sor.u32 256, 16
    %1797 = vbcast.lane.b32.xlu0 %v1787, %s1796
    %v1798 = vpop.permute.xlu0 %1797
    %s1800 = sor.u32 256, 24
    %1801 = vbcast.lane.b32.xlu0 %v1787, %s1800
    %v1802 = vpop.permute.xlu0 %1801
    %s1804 = sor.u32 256, 32
    %1805 = vbcast.lane.b32.xlu0 %v1787, %s1804
    %v1806 = vpop.permute.xlu0 %1805
    %s1808 = sor.u32 256, 40
    %1809 = vbcast.lane.b32.xlu0 %v1787, %s1808
    %v1810 = vpop.permute.xlu0 %1809
    %s1812 = sor.u32 256, 48
    %1813 = vbcast.lane.b32.xlu0 %v1787, %s1812
    %v1814 = vpop.permute.xlu0 %1813
    %s1816 = sor.u32 256, 56
    %1817 = vbcast.lane.b32.xlu0 %v1787, %s1816
    %v1818 = vpop.permute.xlu0 %1817
    %s1820 = sor.u32 256, 64
    %1821 = vbcast.lane.b32.xlu0 %v1787, %s1820
    %v1822 = vpop.permute.xlu0 %1821
    %s1824 = sor.u32 256, 72
    %1825 = vbcast.lane.b32.xlu0 %v1787, %s1824
    %v1826 = vpop.permute.xlu0 %1825
    %s1828 = sor.u32 256, 80
    %1829 = vbcast.lane.b32.xlu0 %v1787, %s1828
    %v1830 = vpop.permute.xlu0 %1829
    %s1832 = sor.u32 256, 88
    %1833 = vbcast.lane.b32.xlu0 %v1787, %s1832
    %v1834 = vpop.permute.xlu0 %1833
    %s1836 = sor.u32 256, 96
    %1837 = vbcast.lane.b32.xlu0 %v1787, %s1836
    %v1838 = vpop.permute.xlu0 %1837
    %s1840 = sor.u32 256, 104
    %1841 = vbcast.lane.b32.xlu0 %v1787, %s1840
    %v1842 = vpop.permute.xlu0 %1841
    %s1844 = sor.u32 256, 112
    %1845 = vbcast.lane.b32.xlu0 %v1787, %s1844
    %v1846 = vpop.permute.xlu0 %1845
    %s1848 = sor.u32 256, 120
    %1849 = vbcast.lane.b32.xlu0 %v1787, %s1848
    %v1850 = vpop.permute.xlu0 %1849
    %v1851 = vld [vmem:[#allocation3] sm:$0xff]
    %v1852 = vld [vmem:[#allocation3 + $0x8] sm:$0xff]
    %v1853 = vld [vmem:[#allocation3 + $0x10] sm:$0xff]
    %v1854 = vld [vmem:[#allocation3 + $0x18] sm:$0xff]
    %v1855 = vld [vmem:[#allocation3 + $0x20] sm:$0xff]
    %v1856 = vld [vmem:[#allocation3 + $0x28] sm:$0xff]
    %v1857 = vld [vmem:[#allocation3 + $0x30] sm:$0xff]
    %v1858 = vld [vmem:[#allocation3 + $0x38] sm:$0xff]
    %v1859 = vld [vmem:[#allocation3 + $0x40] sm:$0xff]
    %v1860 = vld [vmem:[#allocation3 + $0x48] sm:$0xff]
    %v1861 = vld [vmem:[#allocation3 + $0x50] sm:$0xff]
    %v1862 = vld [vmem:[#allocation3 + $0x58] sm:$0xff]
    %v1863 = vld [vmem:[#allocation3 + $0x60] sm:$0xff]
    %v1864 = vld [vmem:[#allocation3 + $0x68] sm:$0xff]
    %v1865 = vld [vmem:[#allocation3 + $0x70] sm:$0xff]
    %v1866 = vld [vmem:[#allocation3 + $0x78] sm:$0xff]
    %v1867 = vld [vmem:[#allocation3 + $0x80] sm:$0xff]
    %v1868 = vld [vmem:[#allocation3 + $0x88] sm:$0xff]
    %v1869 = vld [vmem:[#allocation3 + $0x90] sm:$0xff]
    %v1870 = vld [vmem:[#allocation3 + $0x98] sm:$0xff]
    %v1871 = vld [vmem:[#allocation3 + $0xa0] sm:$0xff]
    %v1872 = vld [vmem:[#allocation3 + $0xa8] sm:$0xff]
    %v1873 = vld [vmem:[#allocation3 + $0xb0] sm:$0xff]
    %v1874 = vld [vmem:[#allocation3 + $0xb8] sm:$0xff]
    %v1875 = vld [vmem:[#allocation3 + $0xc0] sm:$0xff]
    %v1876 = vld [vmem:[#allocation3 + $0xc8] sm:$0xff]
    %v1877 = vld [vmem:[#allocation3 + $0xd0] sm:$0xff]
    %v1878 = vld [vmem:[#allocation3 + $0xd8] sm:$0xff]
    %v1879 = vld [vmem:[#allocation3 + $0xe0] sm:$0xff]
    %v1880 = vld [vmem:[#allocation3 + $0xe8] sm:$0xff]
    %v1881 = vld [vmem:[#allocation3 + $0xf0] sm:$0xff]
    %v1882 = vld [vmem:[#allocation3 + $0xf8] sm:$0xff]
    %v1883 = vmul.f32 %v1723, %v1851
    %v1884 = vmul.f32 %v1727, %v1852
    %v1885 = vmul.f32 %v1731, %v1853
    %v1886 = vmul.f32 %v1735, %v1854
    %v1887 = vmul.f32 %v1739, %v1855
    %v1888 = vmul.f32 %v1743, %v1856
    %v1889 = vmul.f32 %v1747, %v1857
    %v1890 = vmul.f32 %v1751, %v1858
    %v1891 = vmul.f32 %v1755, %v1859
    %v1892 = vmul.f32 %v1759, %v1860
    %v1893 = vmul.f32 %v1763, %v1861
    %v1894 = vmul.f32 %v1767, %v1862
    %v1895 = vmul.f32 %v1771, %v1863
    %v1896 = vmul.f32 %v1775, %v1864
    %v1897 = vmul.f32 %v1779, %v1865
    %v1898 = vmul.f32 %v1783, %v1866
    %v1899 = vmul.f32 %v1790, %v1867
    %v1900 = vmul.f32 %v1794, %v1868
    %v1901 = vmul.f32 %v1798, %v1869
    %v1902 = vmul.f32 %v1802, %v1870
    %v1903 = vmul.f32 %v1806, %v1871
    %v1904 = vmul.f32 %v1810, %v1872
    %v1905 = vmul.f32 %v1814, %v1873
    %v1906 = vmul.f32 %v1818, %v1874
    %v1907 = vmul.f32 %v1822, %v1875
    %v1908 = vmul.f32 %v1826, %v1876
    %v1909 = vmul.f32 %v1830, %v1877
    %v1910 = vmul.f32 %v1834, %v1878
    %v1911 = vmul.f32 %v1838, %v1879
    %v1912 = vmul.f32 %v1842, %v1880
    %v1913 = vmul.f32 %v1846, %v1881
    %v1914 = vmul.f32 %v1850, %v1882
    %v1915 = vadd.f32 %v1883, %v1884
    %v1916 = vadd.f32 %v1915, %v1885
    %v1917 = vadd.f32 %v1916, %v1886
    %v1918 = vadd.f32 %v1917, %v1887
    %v1919 = vadd.f32 %v1918, %v1888
    %v1920 = vadd.f32 %v1919, %v1889
    %v1921 = vadd.f32 %v1920, %v1890
    %v1922 = vadd.f32 %v1921, %v1891
    %v1923 = vadd.f32 %v1922, %v1892
    %v1924 = vadd.f32 %v1923, %v1893
    %v1925 = vadd.f32 %v1924, %v1894
    %v1926 = vadd.f32 %v1925, %v1895
    %v1927 = vadd.f32 %v1926, %v1896
    %v1928 = vadd.f32 %v1927, %v1897
    %v1929 = vadd.f32 %v1928, %v1898
    %v1930 = vrot.slane %v1929, 4
    %v1931 = vadd.f32 %v1929, %v1930
    %v1932 = vrot.slane %v1931, 2
    %v1933 = vadd.f32 %v1931, %v1932
    %v1934 = vrot.slane %v1933, 1
    %v1935 = vadd.f32 %v1933, %v1934
    %v1936 = vadd.f32 %v1899, %v1900
    %v1937 = vadd.f32 %v1936, %v1901
    %v1938 = vadd.f32 %v1937, %v1902
    %v1939 = vadd.f32 %v1938, %v1903
    %v1940 = vadd.f32 %v1939, %v1904
    %v1941 = vadd.f32 %v1940, %v1905
    %v1942 = vadd.f32 %v1941, %v1906
    %v1943 = vadd.f32 %v1942, %v1907
    %v1944 = vadd.f32 %v1943, %v1908
    %v1945 = vadd.f32 %v1944, %v1909
    %v1946 = vadd.f32 %v1945, %v1910
    %v1947 = vadd.f32 %v1946, %v1911
    %v1948 = vadd.f32 %v1947, %v1912
    %v1949 = vadd.f32 %v1948, %v1913
    %v1950 = vadd.f32 %v1949, %v1914
    %v1951 = vrot.slane %v1950, 4
    %v1952 = vadd.f32 %v1950, %v1951
    %v1953 = vrot.slane %v1952, 2
    %v1954 = vadd.f32 %v1952, %v1953
    %v1955 = vrot.slane %v1954, 1
    %v1956 = vadd.f32 %v1954, %v1955
    %1957 = vmatprep.subr.mxu0 0.0
    %1958 = vmatpush1.msra.mxu0 %v53
    %1959 = vmatprep.subr.mxu0 0.0
    %1960 = vmatpush1.msra.mxu0 %v54
    %1961 = vmatprep.subr.mxu0 0.0
    %1962 = vmatpush1.msra.mxu0 %v55
    %1963 = vmatprep.subr.mxu0 0.0
    %1964 = vmatpush1.msra.mxu0 %v56
    %1965 = vmatprep.subr.mxu0 0.0
    %1966 = vmatpush1.msra.mxu0 0.0
    %1967 = vmatprep.subr.mxu0 0.0
    %1968 = vmatpush1.msra.mxu0 0.0
    %1969 = vmatprep.subr.mxu0 0.0
    %1970 = vmatpush1.msra.mxu0 0.0
    %1971 = vmatprep.subr.mxu0 0.0
    %1972 = vmatpush1.msra.mxu0 0.0
    %1973 = vmatprep.subr.mxu0 0.0
    %1974 = vmatpush1.msra.mxu0 0.0
    %1975 = vmatprep.subr.mxu0 0.0
    %1976 = vmatpush1.msra.mxu0 0.0
    %1977 = vmatprep.subr.mxu0 0.0
    %1978 = vmatpush1.msra.mxu0 0.0
    %1979 = vmatprep.subr.mxu0 0.0
    %1980 = vmatpush1.msra.mxu0 0.0
    %1981 = vmatprep.subr.mxu0 0.0
    %1982 = vmatpush1.msra.mxu0 0.0
    %1983 = vmatprep.subr.mxu0 0.0
    %1984 = vmatpush1.msra.mxu0 0.0
    %1985 = vmatprep.subr.mxu0 0.0
    %1986 = vmatpush1.msra.mxu0 0.0
    %1987 = vmatprep.subr.mxu0 0.0
    %1988 = vmatpush1.msra.mxu0 0.0
    %1989 = vmatprep.subr.mxu0 0.0
    %1990 = vmatpush1.msra.mxu0 0.0
    %1991 = vmatprep.subr.mxu0 0.0
    %1992 = vmatpush1.msra.mxu0 0.0
    %1993 = vmatprep.subr.mxu0 0.0
    %1994 = vmatpush1.msra.mxu0 0.0
    %1995 = vmatprep.subr.mxu0 0.0
    %1996 = vmatpush1.msra.mxu0 0.0
    %1997 = vmatprep.subr.mxu0 0.0
    %1998 = vmatpush1.msra.mxu0 0.0
    %1999 = vmatprep.subr.mxu0 0.0
    %2000 = vmatpush1.msra.mxu0 0.0
    %2001 = vmatprep.subr.mxu0 0.0
    %2002 = vmatpush1.msra.mxu0 0.0
    %2003 = vmatprep.subr.mxu0 0.0
    %2004 = vmatpush1.msra.mxu0 0.0
    %2005 = vmatprep.subr.mxu0 0.0
    %2006 = vmatpush1.msra.mxu0 0.0
    %2007 = vmatprep.subr.mxu0 0.0
    %2008 = vmatpush1.msra.mxu0 0.0
    %2009 = vmatprep.subr.mxu0 0.0
    %2010 = vmatpush1.msra.mxu0 0.0
    %2011 = vmatprep.subr.mxu0 0.0
    %2012 = vmatpush1.msra.mxu0 0.0
    %2013 = vmatprep.subr.mxu0 0.0
    %2014 = vmatpush1.msra.mxu0 0.0
    %2015 = vmatprep.subr.mxu0 0.0
    %2016 = vmatpush1.msra.mxu0 0.0
    %2017 = vmatprep.subr.mxu0 0.0
    %2018 = vmatpush1.msra.mxu0 0.0
    %2019 = vmatprep.subr.mxu0 0.0
    %2020 = vmatpush1.msra.mxu0 0.0
    %2021 = vmatprep.mubr.f32.mxu0 0.0
    %2022 = vmatmul.mubr.f32.gmra.mrb[0].mxu0 %v1043
    %v2023 = vpop.f32.mrb[0].mxu0
    %v2024 = vadd.f32 0.0, %v2023
    %v2025 = vpop.f32.mrb[0].mxu0
    %2026 = vdwg.mxu0
    %v2028 = vrot.slane %v2024, 1
    %v2031 = vadd.f32 %v1935, %v2024
    %v2032 = vadd.f32 %v1956, %v2028
    %v2033 = vxor.u32 %v2031, 2147483648
    %v2034 = vxor.u32 %v2032, 2147483648
    %v2035 = vmul.f32 %v2033, 1.442695
    %v2036 = vpow.pop %v2035
    %v2037 = vmul.f32 %v2034, 1.442695
    %v2038 = vpow.pop %v2037
    %v2039 = vadd.f32 %v2036, 1.0
    %v2040 = vadd.f32 %v2038, 1.0
    %v2041 = vrcp.pop %v2039
    %v2042 = vmul.f32 1.0, %v2041
    %v2043 = vrcp.pop %v2040
    %v2044 = vmul.f32 1.0, %v2043
    %v2045 = vtanh.pop %v2031
    %v2046 = vtanh.pop %v2032
    %v2048 = vrot.slane %v1027, 1
    %v2051 = vmul.f32 %v2042, %v1027
    %v2052 = vmul.f32 %v2044, %v2048
    %2055 = vrot.lane.b32.xlu0 %v2045, 64
    %v2056 = vpop.permute.xlu0 %2055
    %2057 = vrot.lane.b32.xlu0 %v2046, 64
    %v2058 = vpop.permute.xlu0 %2057
    %v2061 = vmul.f32 %v2042, %v2056
    %v2062 = vmul.f32 %v2044, %v2058
    %2065 = vrot.lane.b32.xlu0 %v2061, 32
    %v2066 = vpop.permute.xlu0 %2065
    %2067 = vrot.lane.b32.xlu0 %v2062, 32
    %v2068 = vpop.permute.xlu0 %2067
    %v2071 = vadd.f32 %v2051, %v2066
    %v2072 = vadd.f32 %v2052, %v2068
    %v2073 = vtanh.pop %v2071
    %v2074 = vtanh.pop %v2072
    %2077 = vrot.lane.b32.xlu0 %v2073, 64
    %v2078 = vpop.permute.xlu0 %2077
    %2079 = vrot.lane.b32.xlu0 %v2074, 64
    %v2080 = vpop.permute.xlu0 %2079
    %v2083 = vmul.f32 %v2042, %v2078
    %v2084 = vmul.f32 %v2044, %v2080
    %v2087 = vrot.slane %v2084, 7
    %v2088 = vsel %vm1631, %v2087, %v2083
    %2089 = vrot.lane.b32.xlu0 %v2088, 32
    %v2090 = vpop.permute.xlu0 %2089
    %v2091 = vsel %vm107, %v2090, 0
    %2093 = vmatprep.subr.mxu0 0.0
    %2094 = vmatpush1.msra.mxu0 %v58
    %2095 = vmatprep.subr.mxu0 0.0
    %2096 = vmatpush1.msra.mxu0 %v59
    %2097 = vmatprep.subr.mxu0 0.0
    %2098 = vmatpush1.msra.mxu0 %v60
    %2099 = vmatprep.subr.mxu0 0.0
    %2100 = vmatpush1.msra.mxu0 %v61
    %2101 = vmatprep.subr.mxu0 0.0
    %2102 = vmatpush1.msra.mxu0 0.0
    %2103 = vmatprep.subr.mxu0 0.0
    %2104 = vmatpush1.msra.mxu0 0.0
    %2105 = vmatprep.subr.mxu0 0.0
    %2106 = vmatpush1.msra.mxu0 0.0
    %2107 = vmatprep.subr.mxu0 0.0
    %2108 = vmatpush1.msra.mxu0 0.0
    %2109 = vmatprep.subr.mxu0 0.0
    %2110 = vmatpush1.msra.mxu0 0.0
    %2111 = vmatprep.subr.mxu0 0.0
    %2112 = vmatpush1.msra.mxu0 0.0
    %2113 = vmatprep.subr.mxu0 0.0
    %2114 = vmatpush1.msra.mxu0 0.0
    %2115 = vmatprep.subr.mxu0 0.0
    %2116 = vmatpush1.msra.mxu0 0.0
    %2117 = vmatprep.subr.mxu0 0.0
    %2118 = vmatpush1.msra.mxu0 0.0
    %2119 = vmatprep.subr.mxu0 0.0
    %2120 = vmatpush1.msra.mxu0 0.0
    %2121 = vmatprep.subr.mxu0 0.0
    %2122 = vmatpush1.msra.mxu0 0.0
    %2123 = vmatprep.subr.mxu0 0.0
    %2124 = vmatpush1.msra.mxu0 0.0
    %2125 = vmatprep.subr.mxu0 0.0
    %2126 = vmatpush1.msra.mxu0 0.0
    %2127 = vmatprep.subr.mxu0 0.0
    %2128 = vmatpush1.msra.mxu0 0.0
    %2129 = vmatprep.subr.mxu0 0.0
    %2130 = vmatpush1.msra.mxu0 0.0
    %2131 = vmatprep.subr.mxu0 0.0
    %2132 = vmatpush1.msra.mxu0 0.0
    %2133 = vmatprep.subr.mxu0 0.0
    %2134 = vmatpush1.msra.mxu0 0.0
    %2135 = vmatprep.subr.mxu0 0.0
    %2136 = vmatpush1.msra.mxu0 0.0
    %2137 = vmatprep.subr.mxu0 0.0
    %2138 = vmatpush1.msra.mxu0 0.0
    %2139 = vmatprep.subr.mxu0 0.0
    %2140 = vmatpush1.msra.mxu0 0.0
    %2141 = vmatprep.subr.mxu0 0.0
    %2142 = vmatpush1.msra.mxu0 0.0
    %2143 = vmatprep.subr.mxu0 0.0
    %2144 = vmatpush1.msra.mxu0 0.0
    %2145 = vmatprep.subr.mxu0 0.0
    %2146 = vmatpush1.msra.mxu0 0.0
    %2147 = vmatprep.subr.mxu0 0.0
    %2148 = vmatpush1.msra.mxu0 0.0
    %2149 = vmatprep.subr.mxu0 0.0
    %2150 = vmatpush1.msra.mxu0 0.0
    %2151 = vmatprep.subr.mxu0 0.0
    %2152 = vmatpush1.msra.mxu0 0.0
    %2153 = vmatprep.subr.mxu0 0.0
    %2154 = vmatpush1.msra.mxu0 0.0
    %2155 = vmatprep.subr.mxu0 0.0
    %2156 = vmatpush1.msra.mxu0 0.0
    %2157 = vmatprep.mubr.f32.mxu0 0.0
    %2158 = vmatmul.mubr.f32.gmra.mrb[0].mxu0 %v2091
    %v2159 = vpop.f32.mrb[0].mxu0
    %v2160 = vadd.f32 %v1038, %v2159
    %v2161 = vpop.f32.mrb[0].mxu0
    %2162 = vdwg.mxu0
    %v2163 = vld [vmem:[#allocation2] sm:$0xff]
    %v2164 = vld [vmem:[#allocation2 + $0x8] sm:$0xff]
    %v2165 = vld [vmem:[#allocation2 + $0x10] sm:$0xff]
    %v2166 = vld [vmem:[#allocation2 + $0x18] sm:$0xff]
    %v2167 = vld [vmem:[#allocation2 + $0x20] sm:$0xff]
    %v2168 = vld [vmem:[#allocation2 + $0x28] sm:$0xff]
    %v2169 = vld [vmem:[#allocation2 + $0x30] sm:$0xff]
    %v2170 = vld [vmem:[#allocation2 + $0x38] sm:$0xff]
    %v2171 = vld [vmem:[#allocation2 + $0x40] sm:$0xff]
    %v2172 = vld [vmem:[#allocation2 + $0x48] sm:$0xff]
    %v2173 = vld [vmem:[#allocation2 + $0x50] sm:$0xff]
    %v2174 = vld [vmem:[#allocation2 + $0x58] sm:$0xff]
    %v2175 = vld [vmem:[#allocation2 + $0x60] sm:$0xff]
    %v2176 = vld [vmem:[#allocation2 + $0x68] sm:$0xff]
    %v2177 = vld [vmem:[#allocation2 + $0x70] sm:$0xff]
    %v2178 = vld [vmem:[#allocation2 + $0x78] sm:$0xff]
    %v2179 = vld [vmem:[#allocation2 + $0x80] sm:$0xff]
    %v2180 = vld [vmem:[#allocation2 + $0x88] sm:$0xff]
    %v2181 = vld [vmem:[#allocation2 + $0x90] sm:$0xff]
    %v2182 = vld [vmem:[#allocation2 + $0x98] sm:$0xff]
    %v2183 = vld [vmem:[#allocation2 + $0xa0] sm:$0xff]
    %v2184 = vld [vmem:[#allocation2 + $0xa8] sm:$0xff]
    %v2185 = vld [vmem:[#allocation2 + $0xb0] sm:$0xff]
    %v2186 = vld [vmem:[#allocation2 + $0xb8] sm:$0xff]
    %v2187 = vld [vmem:[#allocation2 + $0xc0] sm:$0xff]
    %v2188 = vld [vmem:[#allocation2 + $0xc8] sm:$0xff]
    %v2189 = vld [vmem:[#allocation2 + $0xd0] sm:$0xff]
    %v2190 = vld [vmem:[#allocation2 + $0xd8] sm:$0xff]
    %v2191 = vld [vmem:[#allocation2 + $0xe0] sm:$0xff]
    %v2192 = vld [vmem:[#allocation2 + $0xe8] sm:$0xff]
    %v2193 = vld [vmem:[#allocation2 + $0xf0] sm:$0xff]
    %v2194 = vld [vmem:[#allocation2 + $0xf8] sm:$0xff]
    %v2197 = vunpack.c.l.s4 1966171168
    %v2198 = vunpack.c.0.s8 %v2197
    %v2199 = vlaneseq
    %v2200 = vshrl.u32 %v2199, 7
    %v2201 = vsub.s32 %v2198, %v2200
    %v2202 = vrot.slane %v2160, %v2201
    %v2203 = vcombine.high %v2202, %v2202
    %v2205 = vunpack.c.l.s4 1966171168
    %v2206 = vunpack.c.0.s8 %v2205
    %v2207 = vlaneseq
    %v2208 = vshrl.u32 %v2207, 7
    %v2209 = vsub.s32 %v2206, %v2208
    %v2210 = vrot.slane %v2202, %v2209
    %v2212 = vunpack.c.l.s4 1966171168
    %v2213 = vunpack.c.0.s8 %v2212
    %v2214 = vlaneseq
    %v2215 = vshrl.u32 %v2214, 7
    %v2216 = vsub.s32 %v2213, %v2215
    %v2217 = vrot.slane %v2203, %v2216
    %v2218 = vlaneseq
    %v2219 = vshrl.u32 %v2218, 7
    %v2220 = vsub.s32 0, %v2219
    %v2221 = vrot.slane %v2210, %v2220
    %v2222 = vlaneseq
    %v2223 = vshrl.u32 %v2222, 7
    %v2224 = vsub.s32 0, %v2223
    %v2225 = vrot.slane %v2217, %v2224
    %v2228 = vadd.f32 %v2221, %v2163
    %v2229 = vadd.f32 %v2221, %v2164
    %v2230 = vadd.f32 %v2221, %v2165
    %v2231 = vadd.f32 %v2221, %v2166
    %v2232 = vadd.f32 %v2221, %v2167
    %v2233 = vadd.f32 %v2221, %v2168
    %v2234 = vadd.f32 %v2221, %v2169
    %v2235 = vadd.f32 %v2221, %v2170
    %v2236 = vadd.f32 %v2221, %v2171
    %v2237 = vadd.f32 %v2221, %v2172
    %v2238 = vadd.f32 %v2221, %v2173
    %v2239 = vadd.f32 %v2221, %v2174
    %v2240 = vadd.f32 %v2221, %v2175
    %v2241 = vadd.f32 %v2221, %v2176
    %v2242 = vadd.f32 %v2221, %v2177
    %v2243 = vadd.f32 %v2221, %v2178
    %v2244 = vadd.f32 %v2225, %v2179
    %v2245 = vadd.f32 %v2225, %v2180
    %v2246 = vadd.f32 %v2225, %v2181
    %v2247 = vadd.f32 %v2225, %v2182
    %v2248 = vadd.f32 %v2225, %v2183
    %v2249 = vadd.f32 %v2225, %v2184
    %v2250 = vadd.f32 %v2225, %v2185
    %v2251 = vadd.f32 %v2225, %v2186
    %v2252 = vadd.f32 %v2225, %v2187
    %v2253 = vadd.f32 %v2225, %v2188
    %v2254 = vadd.f32 %v2225, %v2189
    %v2255 = vadd.f32 %v2225, %v2190
    %v2256 = vadd.f32 %v2225, %v2191
    %v2257 = vadd.f32 %v2225, %v2192
    %v2258 = vadd.f32 %v2225, %v2193
    %v2259 = vadd.f32 %v2225, %v2194
    %v2260 = vtanh.pop %v2228
    %v2261 = vtanh.pop %v2229
    %v2262 = vtanh.pop %v2230
    %v2263 = vtanh.pop %v2231
    %v2264 = vtanh.pop %v2232
    %v2265 = vtanh.pop %v2233
    %v2266 = vtanh.pop %v2234
    %v2267 = vtanh.pop %v2235
    %v2268 = vtanh.pop %v2236
    %v2269 = vtanh.pop %v2237
    %v2270 = vtanh.pop %v2238
    %v2271 = vtanh.pop %v2239
    %v2272 = vtanh.pop %v2240
    %v2273 = vtanh.pop %v2241
    %v2274 = vtanh.pop %v2242
    %v2275 = vtanh.pop %v2243
    %v2276 = vtanh.pop %v2244
    %v2277 = vtanh.pop %v2245
    %v2278 = vtanh.pop %v2246
    %v2279 = vtanh.pop %v2247
    %v2280 = vtanh.pop %v2248
    %v2281 = vtanh.pop %v2249
    %v2282 = vtanh.pop %v2250
    %v2283 = vtanh.pop %v2251
    %v2284 = vtanh.pop %v2252
    %v2285 = vtanh.pop %v2253
    %v2286 = vtanh.pop %v2254
    %v2287 = vtanh.pop %v2255
    %v2288 = vtanh.pop %v2256
    %v2289 = vtanh.pop %v2257
    %v2290 = vtanh.pop %v2258
    %v2291 = vtanh.pop %v2259
    %v2292 = vmul.f32 %v2260, %v1248
    %v2293 = vmul.f32 %v2261, %v1248
    %v2294 = vmul.f32 %v2262, %v1248
    %v2295 = vmul.f32 %v2263, %v1248
    %v2296 = vmul.f32 %v2264, %v1248
    %v2297 = vmul.f32 %v2265, %v1248
    %v2298 = vmul.f32 %v2266, %v1248
    %v2299 = vmul.f32 %v2267, %v1248
    %v2300 = vmul.f32 %v2268, %v1248
    %v2301 = vmul.f32 %v2269, %v1248
    %v2302 = vmul.f32 %v2270, %v1248
    %v2303 = vmul.f32 %v2271, %v1248
    %v2304 = vmul.f32 %v2272, %v1248
    %v2305 = vmul.f32 %v2273, %v1248
    %v2306 = vmul.f32 %v2274, %v1248
    %v2307 = vmul.f32 %v2275, %v1248
    %v2308 = vmul.f32 %v2276, %v1248
    %v2309 = vmul.f32 %v2277, %v1248
    %v2310 = vmul.f32 %v2278, %v1248
    %v2311 = vmul.f32 %v2279, %v1248
    %v2312 = vmul.f32 %v2280, %v1248
    %v2313 = vmul.f32 %v2281, %v1248
    %v2314 = vmul.f32 %v2282, %v1248
    %v2315 = vmul.f32 %v2283, %v1248
    %v2316 = vmul.f32 %v2284, %v1248
    %v2317 = vmul.f32 %v2285, %v1248
    %v2318 = vmul.f32 %v2286, %v1248
    %v2319 = vmul.f32 %v2287, %v1248
    %v2320 = vmul.f32 %v2288, %v1248
    %v2321 = vmul.f32 %v2289, %v1248
    %v2322 = vmul.f32 %v2290, %v1248
    %v2323 = vmul.f32 %v2291, %v1248
    %v2324 = vsel %vm107, %v2292, 0.0
    %2325 = vadd.xlane.f32.xlu0 %v2324
    %v2326 = vpop.xlane.xlu0 %2325
    %v2327 = vsel %vm107, %v2293, 0.0
    %2328 = vadd.xlane.f32.xlu0 %v2327
    %v2329 = vpop.xlane.xlu0 %2328
    %v2330 = vsel %vm107, %v2294, 0.0
    %2331 = vadd.xlane.f32.xlu0 %v2330
    %v2332 = vpop.xlane.xlu0 %2331
    %v2333 = vsel %vm107, %v2295, 0.0
    %2334 = vadd.xlane.f32.xlu0 %v2333
    %v2335 = vpop.xlane.xlu0 %2334
    %v2336 = vsel %vm107, %v2296, 0.0
    %2337 = vadd.xlane.f32.xlu0 %v2336
    %v2338 = vpop.xlane.xlu0 %2337
    %v2339 = vsel %vm107, %v2297, 0.0
    %2340 = vadd.xlane.f32.xlu0 %v2339
    %v2341 = vpop.xlane.xlu0 %2340
    %v2342 = vsel %vm107, %v2298, 0.0
    %2343 = vadd.xlane.f32.xlu0 %v2342
    %v2344 = vpop.xlane.xlu0 %2343
    %v2345 = vsel %vm107, %v2299, 0.0
    %2346 = vadd.xlane.f32.xlu0 %v2345
    %v2347 = vpop.xlane.xlu0 %2346
    %v2348 = vsel %vm107, %v2300, 0.0
    %2349 = vadd.xlane.f32.xlu0 %v2348
    %v2350 = vpop.xlane.xlu0 %2349
    %v2351 = vsel %vm107, %v2301, 0.0
    %2352 = vadd.xlane.f32.xlu0 %v2351
    %v2353 = vpop.xlane.xlu0 %2352
    %v2354 = vsel %vm107, %v2302, 0.0
    %2355 = vadd.xlane.f32.xlu0 %v2354
    %v2356 = vpop.xlane.xlu0 %2355
    %v2357 = vsel %vm107, %v2303, 0.0
    %2358 = vadd.xlane.f32.xlu0 %v2357
    %v2359 = vpop.xlane.xlu0 %2358
    %v2360 = vsel %vm107, %v2304, 0.0
    %2361 = vadd.xlane.f32.xlu0 %v2360
    %v2362 = vpop.xlane.xlu0 %2361
    %v2363 = vsel %vm107, %v2305, 0.0
    %2364 = vadd.xlane.f32.xlu0 %v2363
    %v2365 = vpop.xlane.xlu0 %2364
    %v2366 = vsel %vm107, %v2306, 0.0
    %2367 = vadd.xlane.f32.xlu0 %v2366
    %v2368 = vpop.xlane.xlu0 %2367
    %v2369 = vsel %vm107, %v2307, 0.0
    %2370 = vadd.xlane.f32.xlu0 %v2369
    %v2371 = vpop.xlane.xlu0 %2370
    %v2372 = vsel %vm107, %v2308, 0.0
    %2373 = vadd.xlane.f32.xlu0 %v2372
    %v2374 = vpop.xlane.xlu0 %2373
    %v2375 = vsel %vm107, %v2309, 0.0
    %2376 = vadd.xlane.f32.xlu0 %v2375
    %v2377 = vpop.xlane.xlu0 %2376
    %v2378 = vsel %vm107, %v2310, 0.0
    %2379 = vadd.xlane.f32.xlu0 %v2378
    %v2380 = vpop.xlane.xlu0 %2379
    %v2381 = vsel %vm107, %v2311, 0.0
    %2382 = vadd.xlane.f32.xlu0 %v2381
    %v2383 = vpop.xlane.xlu0 %2382
    %v2384 = vsel %vm107, %v2312, 0.0
    %2385 = vadd.xlane.f32.xlu0 %v2384
    %v2386 = vpop.xlane.xlu0 %2385
    %v2387 = vsel %vm107, %v2313, 0.0
    %2388 = vadd.xlane.f32.xlu0 %v2387
    %v2389 = vpop.xlane.xlu0 %2388
    %v2390 = vsel %vm107, %v2314, 0.0
    %2391 = vadd.xlane.f32.xlu0 %v2390
    %v2392 = vpop.xlane.xlu0 %2391
    %v2393 = vsel %vm107, %v2315, 0.0
    %2394 = vadd.xlane.f32.xlu0 %v2393
    %v2395 = vpop.xlane.xlu0 %2394
    %v2396 = vsel %vm107, %v2316, 0.0
    %2397 = vadd.xlane.f32.xlu0 %v2396
    %v2398 = vpop.xlane.xlu0 %2397
    %v2399 = vsel %vm107, %v2317, 0.0
    %2400 = vadd.xlane.f32.xlu0 %v2399
    %v2401 = vpop.xlane.xlu0 %2400
    %v2402 = vsel %vm107, %v2318, 0.0
    %2403 = vadd.xlane.f32.xlu0 %v2402
    %v2404 = vpop.xlane.xlu0 %2403
    %v2405 = vsel %vm107, %v2319, 0.0
    %2406 = vadd.xlane.f32.xlu0 %v2405
    %v2407 = vpop.xlane.xlu0 %2406
    %v2408 = vsel %vm107, %v2320, 0.0
    %2409 = vadd.xlane.f32.xlu0 %v2408
    %v2410 = vpop.xlane.xlu0 %2409
    %v2411 = vsel %vm107, %v2321, 0.0
    %2412 = vadd.xlane.f32.xlu0 %v2411
    %v2413 = vpop.xlane.xlu0 %2412
    %v2414 = vsel %vm107, %v2322, 0.0
    %2415 = vadd.xlane.f32.xlu0 %v2414
    %v2416 = vpop.xlane.xlu0 %2415
    %v2417 = vsel %vm107, %v2323, 0.0
    %2418 = vadd.xlane.f32.xlu0 %v2417
    %v2419 = vpop.xlane.xlu0 %2418
    %vm2420 = vcmp.eq.f32.partialorder %v1716, 0.0
    %v2453 = vlaneseq
    %v2454 = vshrl.u32 %v2453, 7
    %v2455 = vsub.s32 %v928, %v2454
    %v2456 = vrot.slane %v2326, %v2455
    %v2457 = vlaneseq
    %v2458 = vshrl.u32 %v2457, 7
    %v2459 = vsub.s32 %v1447, %v2458
    %v2460 = vrot.slane %v2329, %v2459
    %v2461 = vsel %vm1452, %v2460, %v2456
    %v2462 = vlaneseq
    %v2463 = vshrl.u32 %v2462, 7
    %v2464 = vsub.s32 %v1454, %v2463
    %v2465 = vrot.slane %v2332, %v2464
    %v2466 = vsel %vm1459, %v2465, %v2461
    %v2467 = vlaneseq
    %v2468 = vshrl.u32 %v2467, 7
    %v2469 = vsub.s32 %v1461, %v2468
    %v2470 = vrot.slane %v2335, %v2469
    %v2471 = vsel %vm1466, %v2470, %v2466
    %v2472 = vlaneseq
    %v2473 = vshrl.u32 %v2472, 7
    %v2474 = vsub.s32 %v1468, %v2473
    %v2475 = vrot.slane %v2338, %v2474
    %v2476 = vsel %vm1473, %v2475, %v2471
    %v2477 = vlaneseq
    %v2478 = vshrl.u32 %v2477, 7
    %v2479 = vsub.s32 %v1475, %v2478
    %v2480 = vrot.slane %v2341, %v2479
    %v2481 = vsel %vm1480, %v2480, %v2476
    %v2482 = vlaneseq
    %v2483 = vshrl.u32 %v2482, 7
    %v2484 = vsub.s32 %v1482, %v2483
    %v2485 = vrot.slane %v2344, %v2484
    %v2486 = vsel %vm1487, %v2485, %v2481
    %v2487 = vlaneseq
    %v2488 = vshrl.u32 %v2487, 7
    %v2489 = vsub.s32 %v1489, %v2488
    %v2490 = vrot.slane %v2347, %v2489
    %v2491 = vsel %vm1494, %v2490, %v2486
    %v2492 = vlaneseq
    %v2493 = vshrl.u32 %v2492, 7
    %v2494 = vsub.s32 %v1496, %v2493
    %v2495 = vrot.slane %v2350, %v2494
    %v2496 = vsel %vm1501, %v2495, %v2491
    %v2497 = vlaneseq
    %v2498 = vshrl.u32 %v2497, 7
    %v2499 = vsub.s32 %v1503, %v2498
    %v2500 = vrot.slane %v2353, %v2499
    %v2501 = vsel %vm1508, %v2500, %v2496
    %v2502 = vlaneseq
    %v2503 = vshrl.u32 %v2502, 7
    %v2504 = vsub.s32 %v1510, %v2503
    %v2505 = vrot.slane %v2356, %v2504
    %v2506 = vsel %vm1515, %v2505, %v2501
    %v2507 = vlaneseq
    %v2508 = vshrl.u32 %v2507, 7
    %v2509 = vsub.s32 %v1517, %v2508
    %v2510 = vrot.slane %v2359, %v2509
    %v2511 = vsel %vm1522, %v2510, %v2506
    %v2512 = vlaneseq
    %v2513 = vshrl.u32 %v2512, 7
    %v2514 = vsub.s32 %v1524, %v2513
    %v2515 = vrot.slane %v2362, %v2514
    %v2516 = vsel %vm1529, %v2515, %v2511
    %v2517 = vlaneseq
    %v2518 = vshrl.u32 %v2517, 7
    %v2519 = vsub.s32 %v1531, %v2518
    %v2520 = vrot.slane %v2365, %v2519
    %v2521 = vsel %vm1536, %v2520, %v2516
    %v2522 = vlaneseq
    %v2523 = vshrl.u32 %v2522, 7
    %v2524 = vsub.s32 %v1538, %v2523
    %v2525 = vrot.slane %v2368, %v2524
    %v2526 = vsel %vm1543, %v2525, %v2521
    %v2527 = vlaneseq
    %v2528 = vshrl.u32 %v2527, 7
    %v2529 = vsub.s32 %v1545, %v2528
    %v2530 = vrot.slane %v2371, %v2529
    %v2531 = vsel %vm1550, %v2530, %v2526
    %v2532 = vlaneseq
    %v2533 = vshrl.u32 %v2532, 7
    %v2534 = vsub.s32 %v928, %v2533
    %v2535 = vrot.slane %v2374, %v2534
    %v2536 = vlaneseq
    %v2537 = vshrl.u32 %v2536, 7
    %v2538 = vsub.s32 %v1447, %v2537
    %v2539 = vrot.slane %v2377, %v2538
    %v2540 = vsel %vm1452, %v2539, %v2535
    %v2541 = vlaneseq
    %v2542 = vshrl.u32 %v2541, 7
    %v2543 = vsub.s32 %v1454, %v2542
    %v2544 = vrot.slane %v2380, %v2543
    %v2545 = vsel %vm1459, %v2544, %v2540
    %v2546 = vlaneseq
    %v2547 = vshrl.u32 %v2546, 7
    %v2548 = vsub.s32 %v1461, %v2547
    %v2549 = vrot.slane %v2383, %v2548
    %v2550 = vsel %vm1466, %v2549, %v2545
    %v2551 = vlaneseq
    %v2552 = vshrl.u32 %v2551, 7
    %v2553 = vsub.s32 %v1468, %v2552
    %v2554 = vrot.slane %v2386, %v2553
    %v2555 = vsel %vm1473, %v2554, %v2550
    %v2556 = vlaneseq
    %v2557 = vshrl.u32 %v2556, 7
    %v2558 = vsub.s32 %v1475, %v2557
    %v2559 = vrot.slane %v2389, %v2558
    %v2560 = vsel %vm1480, %v2559, %v2555
    %v2561 = vlaneseq
    %v2562 = vshrl.u32 %v2561, 7
    %v2563 = vsub.s32 %v1482, %v2562
    %v2564 = vrot.slane %v2392, %v2563
    %v2565 = vsel %vm1487, %v2564, %v2560
    %v2566 = vlaneseq
    %v2567 = vshrl.u32 %v2566, 7
    %v2568 = vsub.s32 %v1489, %v2567
    %v2569 = vrot.slane %v2395, %v2568
    %v2570 = vsel %vm1494, %v2569, %v2565
    %v2571 = vlaneseq
    %v2572 = vshrl.u32 %v2571, 7
    %v2573 = vsub.s32 %v1496, %v2572
    %v2574 = vrot.slane %v2398, %v2573
    %v2575 = vsel %vm1501, %v2574, %v2570
    %v2576 = vlaneseq
    %v2577 = vshrl.u32 %v2576, 7
    %v2578 = vsub.s32 %v1503, %v2577
    %v2579 = vrot.slane %v2401, %v2578
    %v2580 = vsel %vm1508, %v2579, %v2575
    %v2581 = vlaneseq
    %v2582 = vshrl.u32 %v2581, 7
    %v2583 = vsub.s32 %v1510, %v2582
    %v2584 = vrot.slane %v2404, %v2583
    %v2585 = vsel %vm1515, %v2584, %v2580
    %v2586 = vlaneseq
    %v2587 = vshrl.u32 %v2586, 7
    %v2588 = vsub.s32 %v1517, %v2587
    %v2589 = vrot.slane %v2407, %v2588
    %v2590 = vsel %vm1522, %v2589, %v2585
    %v2591 = vlaneseq
    %v2592 = vshrl.u32 %v2591, 7
    %v2593 = vsub.s32 %v1524, %v2592
    %v2594 = vrot.slane %v2410, %v2593
    %v2595 = vsel %vm1529, %v2594, %v2590
    %v2596 = vlaneseq
    %v2597 = vshrl.u32 %v2596, 7
    %v2598 = vsub.s32 %v1531, %v2597
    %v2599 = vrot.slane %v2413, %v2598
    %v2600 = vsel %vm1536, %v2599, %v2595
    %v2601 = vlaneseq
    %v2602 = vshrl.u32 %v2601, 7
    %v2603 = vsub.s32 %v1538, %v2602
    %v2604 = vrot.slane %v2416, %v2603
    %v2605 = vsel %vm1543, %v2604, %v2600
    %v2606 = vlaneseq
    %v2607 = vshrl.u32 %v2606, 7
    %v2608 = vsub.s32 %v1545, %v2607
    %v2609 = vrot.slane %v2419, %v2608
    %v2610 = vsel %vm1550, %v2609, %v2605
    %v2611 = vsel %vm1631, %v2610, %v2531
    %v2613 = vsel %vm2420, -10.0, %v2611
    %v2614 = vsel %vm929, %v2613, -1e+30
    %v2615 = vsel %vm2420, -1e+09, %v2614
    %v2616 = vsel %vm1636, %v2615, -inf
    %2617 = vmax.xlane.f32.xlu0 %v2616
    %v2618 = vpop.xlane.xlu0 %2617
    %vm2619 = vcmp.eq.f32.partialorder %v2615, %v2618
    %v2620 = vsel %vm2619, %v928, 128
    %v2621 = vsel %vm1636, %v2620, 2147483647
    %v2622 = vand.u32 %v2621, 65535
    %v2623 = vshra.s32 %v2621, 16
    %v2624 = vcvt.s32.f32 %v2622
    %v2625 = vcvt.s32.f32 %v2623
    %2626 = vmin.xlane.f32.xlu0 %v2625
    %v2627 = vpop.xlane.xlu0 %2626
    %vm2628 = vcmp.eq.f32.partialorder %v2625, %v2627
    %v2629 = vsel %vm2628, %v2624, inf
    %2630 = vmin.xlane.f32.xlu0 %v2629
    %v2631 = vpop.xlane.xlu0 %2630
    %v2632 = vcvt.f32.s32 %v2631
    %v2633 = vcvt.f32.s32 %v2627
    %v2634 = vshll.u32 %v2633, 16
    %v2635 = vadd.s32 %v2634, %v2632
    %vm2636 = vcmp.eq.s32.totalorder %v928, %v2635
    %v2637 = vsel %vm2636, 1, 0
    %v2638 = vcvt.s32.f32 %v2637
    %v2639 = vsel %vm1636, %v2614, -inf
    %2640 = vmax.xlane.f32.xlu0 %v2639
    %v2641 = vpop.xlane.xlu0 %2640
    %v2642 = vsub.f32 %v2614, %v2641
    %v2643 = vmul.f32 %v2642, 1.442695
    %v2644 = vpow.pop %v2643
    %v2645 = vsel %vm1636, %v2644, 0.0
    %2646 = vadd.xlane.f32.xlu0 %v2645
    %v2647 = vpop.xlane.xlu0 %2646
    %v2648 = vrcp.pop %v2647
    %v2649 = vmul.f32 %v2647, %v2648
    %v2650 = vsub.f32 2.0, %v2649
    %v2651 = vmul.f32 %v2648, %v2650
    %v2652 = vmul.f32 %v2644, %v2651
    %v2653 = vsel %vm929, %v2652, -1e+30
    %v2654 = vsel %vm1636, %v2653, -inf
    %2655 = vmax.xlane.f32.xlu0 %v2654
    %v2656 = vpop.xlane.xlu0 %2655
    %v2657 = vsub.f32 %v2653, %v2656
    %v2658 = vmul.f32 %v2657, 1.442695
    %v2659 = vpow.pop %v2658
    %v2660 = vsel %vm1636, %v2659, 0.0
    %2661 = vadd.xlane.f32.xlu0 %v2660
    %v2662 = vpop.xlane.xlu0 %2661
    %v2663 = vlog2.pop %v2662
    %v2664 = vmul.f32 %v2663, 0.6931472
    %v2665 = vsub.f32 %v2657, %v2664
    %v2668 = vunpack.c.l.s4 1966171168
    %v2669 = vunpack.c.0.s8 %v2668
    %v2670 = vlaneseq
    %v2671 = vshrl.u32 %v2670, 7
    %v2672 = vsub.s32 %v2669, %v2671
    %v2673 = vrot.slane %v2665, %v2672
    %v2674 = vcombine.high %v2673, %v2673
    %v2676 = vunpack.c.l.s4 1966171168
    %v2677 = vunpack.c.0.s8 %v2676
    %v2678 = vlaneseq
    %v2679 = vshrl.u32 %v2678, 7
    %v2680 = vsub.s32 %v2677, %v2679
    %v2681 = vrot.slane %v2673, %v2680
    %v2683 = vunpack.c.l.s4 1966171168
    %v2684 = vunpack.c.0.s8 %v2683
    %v2685 = vlaneseq
    %v2686 = vshrl.u32 %v2685, 7
    %v2687 = vsub.s32 %v2684, %v2686
    %v2688 = vrot.slane %v2674, %v2687
    %2691 = vst [vmem:[#allocation4 + $0x1] sm:$0x1] %v2681
    %2692 = vst [vmem:[#allocation4 + $0x9] sm:$0x1] %v2688
    %vm2693 = vcmp.eq.s32.totalorder %v928, 1
    %v2694 = vsel %vm2693, %v2635, %v1715
    %v2695 = vsub.f32 1.0, %v2638
    %v2696 = vmul.f32 %v1716, %v2695
    %v2697 = vlaneseq
    %v2698 = vshrl.u32 %v2697, 7
    %v2699 = vsub.s32 0, %v2698
    %v2700 = vrot.slane %v2638, %v2699
    %2702 = vbcast.lane.b32.xlu0 %v2700, 256
    %v2703 = vpop.permute.xlu0 %2702
    %s2705 = sor.u32 256, 8
    %2706 = vbcast.lane.b32.xlu0 %v2700, %s2705
    %v2707 = vpop.permute.xlu0 %2706
    %s2709 = sor.u32 256, 16
    %2710 = vbcast.lane.b32.xlu0 %v2700, %s2709
    %v2711 = vpop.permute.xlu0 %2710
    %s2713 = sor.u32 256, 24
    %2714 = vbcast.lane.b32.xlu0 %v2700, %s2713
    %v2715 = vpop.permute.xlu0 %2714
    %s2717 = sor.u32 256, 32
    %2718 = vbcast.lane.b32.xlu0 %v2700, %s2717
    %v2719 = vpop.permute.xlu0 %2718
    %s2721 = sor.u32 256, 40
    %2722 = vbcast.lane.b32.xlu0 %v2700, %s2721
    %v2723 = vpop.permute.xlu0 %2722
    %s2725 = sor.u32 256, 48
    %2726 = vbcast.lane.b32.xlu0 %v2700, %s2725
    %v2727 = vpop.permute.xlu0 %2726
    %s2729 = sor.u32 256, 56
    %2730 = vbcast.lane.b32.xlu0 %v2700, %s2729
    %v2731 = vpop.permute.xlu0 %2730
    %s2733 = sor.u32 256, 64
    %2734 = vbcast.lane.b32.xlu0 %v2700, %s2733
    %v2735 = vpop.permute.xlu0 %2734
    %s2737 = sor.u32 256, 72
    %2738 = vbcast.lane.b32.xlu0 %v2700, %s2737
    %v2739 = vpop.permute.xlu0 %2738
    %s2741 = sor.u32 256, 80
    %2742 = vbcast.lane.b32.xlu0 %v2700, %s2741
    %v2743 = vpop.permute.xlu0 %2742
    %s2745 = sor.u32 256, 88
    %2746 = vbcast.lane.b32.xlu0 %v2700, %s2745
    %v2747 = vpop.permute.xlu0 %2746
    %s2749 = sor.u32 256, 96
    %2750 = vbcast.lane.b32.xlu0 %v2700, %s2749
    %v2751 = vpop.permute.xlu0 %2750
    %s2753 = sor.u32 256, 104
    %2754 = vbcast.lane.b32.xlu0 %v2700, %s2753
    %v2755 = vpop.permute.xlu0 %2754
    %s2757 = sor.u32 256, 112
    %2758 = vbcast.lane.b32.xlu0 %v2700, %s2757
    %v2759 = vpop.permute.xlu0 %2758
    %s2761 = sor.u32 256, 120
    %2762 = vbcast.lane.b32.xlu0 %v2700, %s2761
    %v2763 = vpop.permute.xlu0 %2762
    %v2764 = vlaneseq
    %v2765 = vshrl.u32 %v2764, 7
    %v2766 = vsub.s32 1, %v2765
    %v2767 = vrot.slane %v2638, %v2766
    %2769 = vbcast.lane.b32.xlu0 %v2767, 256
    %v2770 = vpop.permute.xlu0 %2769
    %s2772 = sor.u32 256, 8
    %2773 = vbcast.lane.b32.xlu0 %v2767, %s2772
    %v2774 = vpop.permute.xlu0 %2773
    %s2776 = sor.u32 256, 16
    %2777 = vbcast.lane.b32.xlu0 %v2767, %s2776
    %v2778 = vpop.permute.xlu0 %2777
    %s2780 = sor.u32 256, 24
    %2781 = vbcast.lane.b32.xlu0 %v2767, %s2780
    %v2782 = vpop.permute.xlu0 %2781
    %s2784 = sor.u32 256, 32
    %2785 = vbcast.lane.b32.xlu0 %v2767, %s2784
    %v2786 = vpop.permute.xlu0 %2785
    %s2788 = sor.u32 256, 40
    %2789 = vbcast.lane.b32.xlu0 %v2767, %s2788
    %v2790 = vpop.permute.xlu0 %2789
    %s2792 = sor.u32 256, 48
    %2793 = vbcast.lane.b32.xlu0 %v2767, %s2792
    %v2794 = vpop.permute.xlu0 %2793
    %s2796 = sor.u32 256, 56
    %2797 = vbcast.lane.b32.xlu0 %v2767, %s2796
    %v2798 = vpop.permute.xlu0 %2797
    %s2800 = sor.u32 256, 64
    %2801 = vbcast.lane.b32.xlu0 %v2767, %s2800
    %v2802 = vpop.permute.xlu0 %2801
    %s2804 = sor.u32 256, 72
    %2805 = vbcast.lane.b32.xlu0 %v2767, %s2804
    %v2806 = vpop.permute.xlu0 %2805
    %s2808 = sor.u32 256, 80
    %2809 = vbcast.lane.b32.xlu0 %v2767, %s2808
    %v2810 = vpop.permute.xlu0 %2809
    %s2812 = sor.u32 256, 88
    %2813 = vbcast.lane.b32.xlu0 %v2767, %s2812
    %v2814 = vpop.permute.xlu0 %2813
    %s2816 = sor.u32 256, 96
    %2817 = vbcast.lane.b32.xlu0 %v2767, %s2816
    %v2818 = vpop.permute.xlu0 %2817
    %s2820 = sor.u32 256, 104
    %2821 = vbcast.lane.b32.xlu0 %v2767, %s2820
    %v2822 = vpop.permute.xlu0 %2821
    %s2824 = sor.u32 256, 112
    %2825 = vbcast.lane.b32.xlu0 %v2767, %s2824
    %v2826 = vpop.permute.xlu0 %2825
    %s2828 = sor.u32 256, 120
    %2829 = vbcast.lane.b32.xlu0 %v2767, %s2828
    %v2830 = vpop.permute.xlu0 %2829
    %v2831 = vld [vmem:[#allocation3] sm:$0xff]
    %v2832 = vld [vmem:[#allocation3 + $0x8] sm:$0xff]
    %v2833 = vld [vmem:[#allocation3 + $0x10] sm:$0xff]
    %v2834 = vld [vmem:[#allocation3 + $0x18] sm:$0xff]
    %v2835 = vld [vmem:[#allocation3 + $0x20] sm:$0xff]
    %v2836 = vld [vmem:[#allocation3 + $0x28] sm:$0xff]
    %v2837 = vld [vmem:[#allocation3 + $0x30] sm:$0xff]
    %v2838 = vld [vmem:[#allocation3 + $0x38] sm:$0xff]
    %v2839 = vld [vmem:[#allocation3 + $0x40] sm:$0xff]
    %v2840 = vld [vmem:[#allocation3 + $0x48] sm:$0xff]
    %v2841 = vld [vmem:[#allocation3 + $0x50] sm:$0xff]
    %v2842 = vld [vmem:[#allocation3 + $0x58] sm:$0xff]
    %v2843 = vld [vmem:[#allocation3 + $0x60] sm:$0xff]
    %v2844 = vld [vmem:[#allocation3 + $0x68] sm:$0xff]
    %v2845 = vld [vmem:[#allocation3 + $0x70] sm:$0xff]
    %v2846 = vld [vmem:[#allocation3 + $0x78] sm:$0xff]
    %v2847 = vld [vmem:[#allocation3 + $0x80] sm:$0xff]
    %v2848 = vld [vmem:[#allocation3 + $0x88] sm:$0xff]
    %v2849 = vld [vmem:[#allocation3 + $0x90] sm:$0xff]
    %v2850 = vld [vmem:[#allocation3 + $0x98] sm:$0xff]
    %v2851 = vld [vmem:[#allocation3 + $0xa0] sm:$0xff]
    %v2852 = vld [vmem:[#allocation3 + $0xa8] sm:$0xff]
    %v2853 = vld [vmem:[#allocation3 + $0xb0] sm:$0xff]
    %v2854 = vld [vmem:[#allocation3 + $0xb8] sm:$0xff]
    %v2855 = vld [vmem:[#allocation3 + $0xc0] sm:$0xff]
    %v2856 = vld [vmem:[#allocation3 + $0xc8] sm:$0xff]
    %v2857 = vld [vmem:[#allocation3 + $0xd0] sm:$0xff]
    %v2858 = vld [vmem:[#allocation3 + $0xd8] sm:$0xff]
    %v2859 = vld [vmem:[#allocation3 + $0xe0] sm:$0xff]
    %v2860 = vld [vmem:[#allocation3 + $0xe8] sm:$0xff]
    %v2861 = vld [vmem:[#allocation3 + $0xf0] sm:$0xff]
    %v2862 = vld [vmem:[#allocation3 + $0xf8] sm:$0xff]
    %v2863 = vmul.f32 %v2703, %v2831
    %v2864 = vmul.f32 %v2707, %v2832
    %v2865 = vmul.f32 %v2711, %v2833
    %v2866 = vmul.f32 %v2715, %v2834
    %v2867 = vmul.f32 %v2719, %v2835
    %v2868 = vmul.f32 %v2723, %v2836
    %v2869 = vmul.f32 %v2727, %v2837
    %v2870 = vmul.f32 %v2731, %v2838
    %v2871 = vmul.f32 %v2735, %v2839
    %v2872 = vmul.f32 %v2739, %v2840
    %v2873 = vmul.f32 %v2743, %v2841
    %v2874 = vmul.f32 %v2747, %v2842
    %v2875 = vmul.f32 %v2751, %v2843
    %v2876 = vmul.f32 %v2755, %v2844
    %v2877 = vmul.f32 %v2759, %v2845
    %v2878 = vmul.f32 %v2763, %v2846
    %v2879 = vmul.f32 %v2770, %v2847
    %v2880 = vmul.f32 %v2774, %v2848
    %v2881 = vmul.f32 %v2778, %v2849
    %v2882 = vmul.f32 %v2782, %v2850
    %v2883 = vmul.f32 %v2786, %v2851
    %v2884 = vmul.f32 %v2790, %v2852
    %v2885 = vmul.f32 %v2794, %v2853
    %v2886 = vmul.f32 %v2798, %v2854
    %v2887 = vmul.f32 %v2802, %v2855
    %v2888 = vmul.f32 %v2806, %v2856
    %v2889 = vmul.f32 %v2810, %v2857
    %v2890 = vmul.f32 %v2814, %v2858
    %v2891 = vmul.f32 %v2818, %v2859
    %v2892 = vmul.f32 %v2822, %v2860
    %v2893 = vmul.f32 %v2826, %v2861
    %v2894 = vmul.f32 %v2830, %v2862
    %v2895 = vadd.f32 %v2863, %v2864
    %v2896 = vadd.f32 %v2895, %v2865
    %v2897 = vadd.f32 %v2896, %v2866
    %v2898 = vadd.f32 %v2897, %v2867
    %v2899 = vadd.f32 %v2898, %v2868
    %v2900 = vadd.f32 %v2899, %v2869
    %v2901 = vadd.f32 %v2900, %v2870
    %v2902 = vadd.f32 %v2901, %v2871
    %v2903 = vadd.f32 %v2902, %v2872
    %v2904 = vadd.f32 %v2903, %v2873
    %v2905 = vadd.f32 %v2904, %v2874
    %v2906 = vadd.f32 %v2905, %v2875
    %v2907 = vadd.f32 %v2906, %v2876
    %v2908 = vadd.f32 %v2907, %v2877
    %v2909 = vadd.f32 %v2908, %v2878
    %v2910 = vrot.slane %v2909, 4
    %v2911 = vadd.f32 %v2909, %v2910
    %v2912 = vrot.slane %v2911, 2
    %v2913 = vadd.f32 %v2911, %v2912
    %v2914 = vrot.slane %v2913, 1
    %v2915 = vadd.f32 %v2913, %v2914
    %v2916 = vadd.f32 %v2879, %v2880
    %v2917 = vadd.f32 %v2916, %v2881
    %v2918 = vadd.f32 %v2917, %v2882
    %v2919 = vadd.f32 %v2918, %v2883
    %v2920 = vadd.f32 %v2919, %v2884
    %v2921 = vadd.f32 %v2920, %v2885
    %v2922 = vadd.f32 %v2921, %v2886
    %v2923 = vadd.f32 %v2922, %v2887
    %v2924 = vadd.f32 %v2923, %v2888
    %v2925 = vadd.f32 %v2924, %v2889
    %v2926 = vadd.f32 %v2925, %v2890
    %v2927 = vadd.f32 %v2926, %v2891
    %v2928 = vadd.f32 %v2927, %v2892
    %v2929 = vadd.f32 %v2928, %v2893
    %v2930 = vadd.f32 %v2929, %v2894
    %v2931 = vrot.slane %v2930, 4
    %v2932 = vadd.f32 %v2930, %v2931
    %v2933 = vrot.slane %v2932, 2
    %v2934 = vadd.f32 %v2932, %v2933
    %v2935 = vrot.slane %v2934, 1
    %v2936 = vadd.f32 %v2934, %v2935
    %2937 = vmatprep.subr.mxu0 0.0
    %2938 = vmatpush1.msra.mxu0 %v53
    %2939 = vmatprep.subr.mxu0 0.0
    %2940 = vmatpush1.msra.mxu0 %v54
    %2941 = vmatprep.subr.mxu0 0.0
    %2942 = vmatpush1.msra.mxu0 %v55
    %2943 = vmatprep.subr.mxu0 0.0
    %2944 = vmatpush1.msra.mxu0 %v56
    %2945 = vmatprep.subr.mxu0 0.0
    %2946 = vmatpush1.msra.mxu0 0.0
    %2947 = vmatprep.subr.mxu0 0.0
    %2948 = vmatpush1.msra.mxu0 0.0
    %2949 = vmatprep.subr.mxu0 0.0
    %2950 = vmatpush1.msra.mxu0 0.0
    %2951 = vmatprep.subr.mxu0 0.0
    %2952 = vmatpush1.msra.mxu0 0.0
    %2953 = vmatprep.subr.mxu0 0.0
    %2954 = vmatpush1.msra.mxu0 0.0
    %2955 = vmatprep.subr.mxu0 0.0
    %2956 = vmatpush1.msra.mxu0 0.0
    %2957 = vmatprep.subr.mxu0 0.0
    %2958 = vmatpush1.msra.mxu0 0.0
    %2959 = vmatprep.subr.mxu0 0.0
    %2960 = vmatpush1.msra.mxu0 0.0
    %2961 = vmatprep.subr.mxu0 0.0
    %2962 = vmatpush1.msra.mxu0 0.0
    %2963 = vmatprep.subr.mxu0 0.0
    %2964 = vmatpush1.msra.mxu0 0.0
    %2965 = vmatprep.subr.mxu0 0.0
    %2966 = vmatpush1.msra.mxu0 0.0
    %2967 = vmatprep.subr.mxu0 0.0
    %2968 = vmatpush1.msra.mxu0 0.0
    %2969 = vmatprep.subr.mxu0 0.0
    %2970 = vmatpush1.msra.mxu0 0.0
    %2971 = vmatprep.subr.mxu0 0.0
    %2972 = vmatpush1.msra.mxu0 0.0
    %2973 = vmatprep.subr.mxu0 0.0
    %2974 = vmatpush1.msra.mxu0 0.0
    %2975 = vmatprep.subr.mxu0 0.0
    %2976 = vmatpush1.msra.mxu0 0.0
    %2977 = vmatprep.subr.mxu0 0.0
    %2978 = vmatpush1.msra.mxu0 0.0
    %2979 = vmatprep.subr.mxu0 0.0
    %2980 = vmatpush1.msra.mxu0 0.0
    %2981 = vmatprep.subr.mxu0 0.0
    %2982 = vmatpush1.msra.mxu0 0.0
    %2983 = vmatprep.subr.mxu0 0.0
    %2984 = vmatpush1.msra.mxu0 0.0
    %2985 = vmatprep.subr.mxu0 0.0
    %2986 = vmatpush1.msra.mxu0 0.0
    %2987 = vmatprep.subr.mxu0 0.0
    %2988 = vmatpush1.msra.mxu0 0.0
    %2989 = vmatprep.subr.mxu0 0.0
    %2990 = vmatpush1.msra.mxu0 0.0
    %2991 = vmatprep.subr.mxu0 0.0
    %2992 = vmatpush1.msra.mxu0 0.0
    %2993 = vmatprep.subr.mxu0 0.0
    %2994 = vmatpush1.msra.mxu0 0.0
    %2995 = vmatprep.subr.mxu0 0.0
    %2996 = vmatpush1.msra.mxu0 0.0
    %2997 = vmatprep.subr.mxu0 0.0
    %2998 = vmatpush1.msra.mxu0 0.0
    %2999 = vmatprep.subr.mxu0 0.0
    %3000 = vmatpush1.msra.mxu0 0.0
    %3001 = vmatprep.mubr.f32.mxu0 0.0
    %3002 = vmatmul.mubr.f32.gmra.mrb[0].mxu0 %v2091
    %v3003 = vpop.f32.mrb[0].mxu0
    %v3004 = vadd.f32 0.0, %v3003
    %v3005 = vpop.f32.mrb[0].mxu0
    %3006 = vdwg.mxu0
    %v3008 = vrot.slane %v3004, 1
    %v3011 = vadd.f32 %v2915, %v3004
    %v3012 = vadd.f32 %v2936, %v3008
    %v3013 = vxor.u32 %v3011, 2147483648
    %v3014 = vxor.u32 %v3012, 2147483648
    %v3015 = vmul.f32 %v3013, 1.442695
    %v3016 = vpow.pop %v3015
    %v3017 = vmul.f32 %v3014, 1.442695
    %v3018 = vpow.pop %v3017
    %v3019 = vadd.f32 %v3016, 1.0
    %v3020 = vadd.f32 %v3018, 1.0
    %v3021 = vrcp.pop %v3019
    %v3022 = vmul.f32 1.0, %v3021
    %v3023 = vrcp.pop %v3020
    %v3024 = vmul.f32 1.0, %v3023
    %v3025 = vtanh.pop %v3011
    %v3026 = vtanh.pop %v3012
    %v3027 = vmul.f32 %v3022, %v2071
    %v3028 = vmul.f32 %v3024, %v2072
    %3031 = vrot.lane.b32.xlu0 %v3025, 64
    %v3032 = vpop.permute.xlu0 %3031
    %3033 = vrot.lane.b32.xlu0 %v3026, 64
    %v3034 = vpop.permute.xlu0 %3033
    %v3037 = vmul.f32 %v3022, %v3032
    %v3038 = vmul.f32 %v3024, %v3034
    %3041 = vrot.lane.b32.xlu0 %v3037, 32
    %v3042 = vpop.permute.xlu0 %3041
    %3043 = vrot.lane.b32.xlu0 %v3038, 32
    %v3044 = vpop.permute.xlu0 %3043
    %v3047 = vadd.f32 %v3027, %v3042
    %v3048 = vadd.f32 %v3028, %v3044
    %v3049 = vtanh.pop %v3047
    %v3050 = vtanh.pop %v3048
    %3053 = vrot.lane.b32.xlu0 %v3049, 64
    %v3054 = vpop.permute.xlu0 %3053
    %3055 = vrot.lane.b32.xlu0 %v3050, 64
    %v3056 = vpop.permute.xlu0 %3055
    %v3059 = vmul.f32 %v3022, %v3054
    %v3060 = vmul.f32 %v3024, %v3056
    %v3063 = vrot.slane %v3060, 7
    %v3064 = vsel %vm1631, %v3063, %v3059
    %3065 = vrot.lane.b32.xlu0 %v3064, 32
    %v3066 = vpop.permute.xlu0 %3065
    %v3067 = vsel %vm107, %v3066, 0
    %3069 = vmatprep.subr.mxu0 0.0
    %3070 = vmatpush1.msra.mxu0 %v58
    %3071 = vmatprep.subr.mxu0 0.0
    %3072 = vmatpush1.msra.mxu0 %v59
    %3073 = vmatprep.subr.mxu0 0.0
    %3074 = vmatpush1.msra.mxu0 %v60
    %3075 = vmatprep.subr.mxu0 0.0
    %3076 = vmatpush1.msra.mxu0 %v61
    %3077 = vmatprep.subr.mxu0 0.0
    %3078 = vmatpush1.msra.mxu0 0.0
    %3079 = vmatprep.subr.mxu0 0.0
    %3080 = vmatpush1.msra.mxu0 0.0
    %3081 = vmatprep.subr.mxu0 0.0
    %3082 = vmatpush1.msra.mxu0 0.0
    %3083 = vmatprep.subr.mxu0 0.0
    %3084 = vmatpush1.msra.mxu0 0.0
    %3085 = vmatprep.subr.mxu0 0.0
    %3086 = vmatpush1.msra.mxu0 0.0
    %3087 = vmatprep.subr.mxu0 0.0
    %3088 = vmatpush1.msra.mxu0 0.0
    %3089 = vmatprep.subr.mxu0 0.0
    %3090 = vmatpush1.msra.mxu0 0.0
    %3091 = vmatprep.subr.mxu0 0.0
    %3092 = vmatpush1.msra.mxu0 0.0
    %3093 = vmatprep.subr.mxu0 0.0
    %3094 = vmatpush1.msra.mxu0 0.0
    %3095 = vmatprep.subr.mxu0 0.0
    %3096 = vmatpush1.msra.mxu0 0.0
    %3097 = vmatprep.subr.mxu0 0.0
    %3098 = vmatpush1.msra.mxu0 0.0
    %3099 = vmatprep.subr.mxu0 0.0
    %3100 = vmatpush1.msra.mxu0 0.0
    %3101 = vmatprep.subr.mxu0 0.0
    %3102 = vmatpush1.msra.mxu0 0.0
    %3103 = vmatprep.subr.mxu0 0.0
    %3104 = vmatpush1.msra.mxu0 0.0
    %3105 = vmatprep.subr.mxu0 0.0
    %3106 = vmatpush1.msra.mxu0 0.0
    %3107 = vmatprep.subr.mxu0 0.0
    %3108 = vmatpush1.msra.mxu0 0.0
    %3109 = vmatprep.subr.mxu0 0.0
    %3110 = vmatpush1.msra.mxu0 0.0
    %3111 = vmatprep.subr.mxu0 0.0
    %3112 = vmatpush1.msra.mxu0 0.0
    %3113 = vmatprep.subr.mxu0 0.0
    %3114 = vmatpush1.msra.mxu0 0.0
    %3115 = vmatprep.subr.mxu0 0.0
    %3116 = vmatpush1.msra.mxu0 0.0
    %3117 = vmatprep.subr.mxu0 0.0
    %3118 = vmatpush1.msra.mxu0 0.0
    %3119 = vmatprep.subr.mxu0 0.0
    %3120 = vmatpush1.msra.mxu0 0.0
    %3121 = vmatprep.subr.mxu0 0.0
    %3122 = vmatpush1.msra.mxu0 0.0
    %3123 = vmatprep.subr.mxu0 0.0
    %3124 = vmatpush1.msra.mxu0 0.0
    %3125 = vmatprep.subr.mxu0 0.0
    %3126 = vmatpush1.msra.mxu0 0.0
    %3127 = vmatprep.subr.mxu0 0.0
    %3128 = vmatpush1.msra.mxu0 0.0
    %3129 = vmatprep.subr.mxu0 0.0
    %3130 = vmatpush1.msra.mxu0 0.0
    %3131 = vmatprep.subr.mxu0 0.0
    %3132 = vmatpush1.msra.mxu0 0.0
    %3133 = vmatprep.mubr.f32.mxu0 0.0
    %3134 = vmatmul.mubr.f32.gmra.mrb[0].mxu0 %v3067
    %v3135 = vpop.f32.mrb[0].mxu0
    %v3136 = vadd.f32 %v1038, %v3135
    %v3137 = vpop.f32.mrb[0].mxu0
    %3138 = vdwg.mxu0
    %v3139 = vld [vmem:[#allocation2] sm:$0xff]
    %v3140 = vld [vmem:[#allocation2 + $0x8] sm:$0xff]
    %v3141 = vld [vmem:[#allocation2 + $0x10] sm:$0xff]
    %v3142 = vld [vmem:[#allocation2 + $0x18] sm:$0xff]
    %v3143 = vld [vmem:[#allocation2 + $0x20] sm:$0xff]
    %v3144 = vld [vmem:[#allocation2 + $0x28] sm:$0xff]
    %v3145 = vld [vmem:[#allocation2 + $0x30] sm:$0xff]
    %v3146 = vld [vmem:[#allocation2 + $0x38] sm:$0xff]
    %v3147 = vld [vmem:[#allocation2 + $0x40] sm:$0xff]
    %v3148 = vld [vmem:[#allocation2 + $0x48] sm:$0xff]
    %v3149 = vld [vmem:[#allocation2 + $0x50] sm:$0xff]
    %v3150 = vld [vmem:[#allocation2 + $0x58] sm:$0xff]
    %v3151 = vld [vmem:[#allocation2 + $0x60] sm:$0xff]
    %v3152 = vld [vmem:[#allocation2 + $0x68] sm:$0xff]
    %v3153 = vld [vmem:[#allocation2 + $0x70] sm:$0xff]
    %v3154 = vld [vmem:[#allocation2 + $0x78] sm:$0xff]
    %v3155 = vld [vmem:[#allocation2 + $0x80] sm:$0xff]
    %v3156 = vld [vmem:[#allocation2 + $0x88] sm:$0xff]
    %v3157 = vld [vmem:[#allocation2 + $0x90] sm:$0xff]
    %v3158 = vld [vmem:[#allocation2 + $0x98] sm:$0xff]
    %v3159 = vld [vmem:[#allocation2 + $0xa0] sm:$0xff]
    %v3160 = vld [vmem:[#allocation2 + $0xa8] sm:$0xff]
    %v3161 = vld [vmem:[#allocation2 + $0xb0] sm:$0xff]
    %v3162 = vld [vmem:[#allocation2 + $0xb8] sm:$0xff]
    %v3163 = vld [vmem:[#allocation2 + $0xc0] sm:$0xff]
    %v3164 = vld [vmem:[#allocation2 + $0xc8] sm:$0xff]
    %v3165 = vld [vmem:[#allocation2 + $0xd0] sm:$0xff]
    %v3166 = vld [vmem:[#allocation2 + $0xd8] sm:$0xff]
    %v3167 = vld [vmem:[#allocation2 + $0xe0] sm:$0xff]
    %v3168 = vld [vmem:[#allocation2 + $0xe8] sm:$0xff]
    %v3169 = vld [vmem:[#allocation2 + $0xf0] sm:$0xff]
    %v3170 = vld [vmem:[#allocation2 + $0xf8] sm:$0xff]
    %v3173 = vunpack.c.l.s4 1966171168
    %v3174 = vunpack.c.0.s8 %v3173
    %v3175 = vlaneseq
    %v3176 = vshrl.u32 %v3175, 7
    %v3177 = vsub.s32 %v3174, %v3176
    %v3178 = vrot.slane %v3136, %v3177
    %v3179 = vcombine.high %v3178, %v3178
    %v3181 = vunpack.c.l.s4 1966171168
    %v3182 = vunpack.c.0.s8 %v3181
    %v3183 = vlaneseq
    %v3184 = vshrl.u32 %v3183, 7
    %v3185 = vsub.s32 %v3182, %v3184
    %v3186 = vrot.slane %v3178, %v3185
    %v3188 = vunpack.c.l.s4 1966171168
    %v3189 = vunpack.c.0.s8 %v3188
    %v3190 = vlaneseq
    %v3191 = vshrl.u32 %v3190, 7
    %v3192 = vsub.s32 %v3189, %v3191
    %v3193 = vrot.slane %v3179, %v3192
    %v3194 = vlaneseq
    %v3195 = vshrl.u32 %v3194, 7
    %v3196 = vsub.s32 0, %v3195
    %v3197 = vrot.slane %v3186, %v3196
    %v3198 = vlaneseq
    %v3199 = vshrl.u32 %v3198, 7
    %v3200 = vsub.s32 0, %v3199
    %v3201 = vrot.slane %v3193, %v3200
    %v3204 = vadd.f32 %v3197, %v3139
    %v3205 = vadd.f32 %v3197, %v3140
    %v3206 = vadd.f32 %v3197, %v3141
    %v3207 = vadd.f32 %v3197, %v3142
    %v3208 = vadd.f32 %v3197, %v3143
    %v3209 = vadd.f32 %v3197, %v3144
    %v3210 = vadd.f32 %v3197, %v3145
    %v3211 = vadd.f32 %v3197, %v3146
    %v3212 = vadd.f32 %v3197, %v3147
    %v3213 = vadd.f32 %v3197, %v3148
    %v3214 = vadd.f32 %v3197, %v3149
    %v3215 = vadd.f32 %v3197, %v3150
    %v3216 = vadd.f32 %v3197, %v3151
    %v3217 = vadd.f32 %v3197, %v3152
    %v3218 = vadd.f32 %v3197, %v3153
    %v3219 = vadd.f32 %v3197, %v3154
    %v3220 = vadd.f32 %v3201, %v3155
    %v3221 = vadd.f32 %v3201, %v3156
    %v3222 = vadd.f32 %v3201, %v3157
    %v3223 = vadd.f32 %v3201, %v3158
    %v3224 = vadd.f32 %v3201, %v3159
    %v3225 = vadd.f32 %v3201, %v3160
    %v3226 = vadd.f32 %v3201, %v3161
    %v3227 = vadd.f32 %v3201, %v3162
    %v3228 = vadd.f32 %v3201, %v3163
    %v3229 = vadd.f32 %v3201, %v3164
    %v3230 = vadd.f32 %v3201, %v3165
    %v3231 = vadd.f32 %v3201, %v3166
    %v3232 = vadd.f32 %v3201, %v3167
    %v3233 = vadd.f32 %v3201, %v3168
    %v3234 = vadd.f32 %v3201, %v3169
    %v3235 = vadd.f32 %v3201, %v3170
    %v3236 = vtanh.pop %v3204
    %v3237 = vtanh.pop %v3205
    %v3238 = vtanh.pop %v3206
    %v3239 = vtanh.pop %v3207
    %v3240 = vtanh.pop %v3208
    %v3241 = vtanh.pop %v3209
    %v3242 = vtanh.pop %v3210
    %v3243 = vtanh.pop %v3211
    %v3244 = vtanh.pop %v3212
    %v3245 = vtanh.pop %v3213
    %v3246 = vtanh.pop %v3214
    %v3247 = vtanh.pop %v3215
    %v3248 = vtanh.pop %v3216
    %v3249 = vtanh.pop %v3217
    %v3250 = vtanh.pop %v3218
    %v3251 = vtanh.pop %v3219
    %v3252 = vtanh.pop %v3220
    %v3253 = vtanh.pop %v3221
    %v3254 = vtanh.pop %v3222
    %v3255 = vtanh.pop %v3223
    %v3256 = vtanh.pop %v3224
    %v3257 = vtanh.pop %v3225
    %v3258 = vtanh.pop %v3226
    %v3259 = vtanh.pop %v3227
    %v3260 = vtanh.pop %v3228
    %v3261 = vtanh.pop %v3229
    %v3262 = vtanh.pop %v3230
    %v3263 = vtanh.pop %v3231
    %v3264 = vtanh.pop %v3232
    %v3265 = vtanh.pop %v3233
    %v3266 = vtanh.pop %v3234
    %v3267 = vtanh.pop %v3235
    %v3268 = vmul.f32 %v3236, %v1248
    %v3269 = vmul.f32 %v3237, %v1248
    %v3270 = vmul.f32 %v3238, %v1248
    %v3271 = vmul.f32 %v3239, %v1248
    %v3272 = vmul.f32 %v3240, %v1248
    %v3273 = vmul.f32 %v3241, %v1248
    %v3274 = vmul.f32 %v3242, %v1248
    %v3275 = vmul.f32 %v3243, %v1248
    %v3276 = vmul.f32 %v3244, %v1248
    %v3277 = vmul.f32 %v3245, %v1248
    %v3278 = vmul.f32 %v3246, %v1248
    %v3279 = vmul.f32 %v3247, %v1248
    %v3280 = vmul.f32 %v3248, %v1248
    %v3281 = vmul.f32 %v3249, %v1248
    %v3282 = vmul.f32 %v3250, %v1248
    %v3283 = vmul.f32 %v3251, %v1248
    %v3284 = vmul.f32 %v3252, %v1248
    %v3285 = vmul.f32 %v3253, %v1248
    %v3286 = vmul.f32 %v3254, %v1248
    %v3287 = vmul.f32 %v3255, %v1248
    %v3288 = vmul.f32 %v3256, %v1248
    %v3289 = vmul.f32 %v3257, %v1248
    %v3290 = vmul.f32 %v3258, %v1248
    %v3291 = vmul.f32 %v3259, %v1248
    %v3292 = vmul.f32 %v3260, %v1248
    %v3293 = vmul.f32 %v3261, %v1248
    %v3294 = vmul.f32 %v3262, %v1248
    %v3295 = vmul.f32 %v3263, %v1248
    %v3296 = vmul.f32 %v3264, %v1248
    %v3297 = vmul.f32 %v3265, %v1248
    %v3298 = vmul.f32 %v3266, %v1248
    %v3299 = vmul.f32 %v3267, %v1248
    %v3300 = vsel %vm107, %v3268, 0.0
    %3301 = vadd.xlane.f32.xlu0 %v3300
    %v3302 = vpop.xlane.xlu0 %3301
    %v3303 = vsel %vm107, %v3269, 0.0
    %3304 = vadd.xlane.f32.xlu0 %v3303
    %v3305 = vpop.xlane.xlu0 %3304
    %v3306 = vsel %vm107, %v3270, 0.0
    %3307 = vadd.xlane.f32.xlu0 %v3306
    %v3308 = vpop.xlane.xlu0 %3307
    %v3309 = vsel %vm107, %v3271, 0.0
    %3310 = vadd.xlane.f32.xlu0 %v3309
    %v3311 = vpop.xlane.xlu0 %3310
    %v3312 = vsel %vm107, %v3272, 0.0
    %3313 = vadd.xlane.f32.xlu0 %v3312
    %v3314 = vpop.xlane.xlu0 %3313
    %v3315 = vsel %vm107, %v3273, 0.0
    %3316 = vadd.xlane.f32.xlu0 %v3315
    %v3317 = vpop.xlane.xlu0 %3316
    %v3318 = vsel %vm107, %v3274, 0.0
    %3319 = vadd.xlane.f32.xlu0 %v3318
    %v3320 = vpop.xlane.xlu0 %3319
    %v3321 = vsel %vm107, %v3275, 0.0
    %3322 = vadd.xlane.f32.xlu0 %v3321
    %v3323 = vpop.xlane.xlu0 %3322
    %v3324 = vsel %vm107, %v3276, 0.0
    %3325 = vadd.xlane.f32.xlu0 %v3324
    %v3326 = vpop.xlane.xlu0 %3325
    %v3327 = vsel %vm107, %v3277, 0.0
    %3328 = vadd.xlane.f32.xlu0 %v3327
    %v3329 = vpop.xlane.xlu0 %3328
    %v3330 = vsel %vm107, %v3278, 0.0
    %3331 = vadd.xlane.f32.xlu0 %v3330
    %v3332 = vpop.xlane.xlu0 %3331
    %v3333 = vsel %vm107, %v3279, 0.0
    %3334 = vadd.xlane.f32.xlu0 %v3333
    %v3335 = vpop.xlane.xlu0 %3334
    %v3336 = vsel %vm107, %v3280, 0.0
    %3337 = vadd.xlane.f32.xlu0 %v3336
    %v3338 = vpop.xlane.xlu0 %3337
    %v3339 = vsel %vm107, %v3281, 0.0
    %3340 = vadd.xlane.f32.xlu0 %v3339
    %v3341 = vpop.xlane.xlu0 %3340
    %v3342 = vsel %vm107, %v3282, 0.0
    %3343 = vadd.xlane.f32.xlu0 %v3342
    %v3344 = vpop.xlane.xlu0 %3343
    %v3345 = vsel %vm107, %v3283, 0.0
    %3346 = vadd.xlane.f32.xlu0 %v3345
    %v3347 = vpop.xlane.xlu0 %3346
    %v3348 = vsel %vm107, %v3284, 0.0
    %3349 = vadd.xlane.f32.xlu0 %v3348
    %v3350 = vpop.xlane.xlu0 %3349
    %v3351 = vsel %vm107, %v3285, 0.0
    %3352 = vadd.xlane.f32.xlu0 %v3351
    %v3353 = vpop.xlane.xlu0 %3352
    %v3354 = vsel %vm107, %v3286, 0.0
    %3355 = vadd.xlane.f32.xlu0 %v3354
    %v3356 = vpop.xlane.xlu0 %3355
    %v3357 = vsel %vm107, %v3287, 0.0
    %3358 = vadd.xlane.f32.xlu0 %v3357
    %v3359 = vpop.xlane.xlu0 %3358
    %v3360 = vsel %vm107, %v3288, 0.0
    %3361 = vadd.xlane.f32.xlu0 %v3360
    %v3362 = vpop.xlane.xlu0 %3361
    %v3363 = vsel %vm107, %v3289, 0.0
    %3364 = vadd.xlane.f32.xlu0 %v3363
    %v3365 = vpop.xlane.xlu0 %3364
    %v3366 = vsel %vm107, %v3290, 0.0
    %3367 = vadd.xlane.f32.xlu0 %v3366
    %v3368 = vpop.xlane.xlu0 %3367
    %v3369 = vsel %vm107, %v3291, 0.0
    %3370 = vadd.xlane.f32.xlu0 %v3369
    %v3371 = vpop.xlane.xlu0 %3370
    %v3372 = vsel %vm107, %v3292, 0.0
    %3373 = vadd.xlane.f32.xlu0 %v3372
    %v3374 = vpop.xlane.xlu0 %3373
    %v3375 = vsel %vm107, %v3293, 0.0
    %3376 = vadd.xlane.f32.xlu0 %v3375
    %v3377 = vpop.xlane.xlu0 %3376
    %v3378 = vsel %vm107, %v3294, 0.0
    %3379 = vadd.xlane.f32.xlu0 %v3378
    %v3380 = vpop.xlane.xlu0 %3379
    %v3381 = vsel %vm107, %v3295, 0.0
    %3382 = vadd.xlane.f32.xlu0 %v3381
    %v3383 = vpop.xlane.xlu0 %3382
    %v3384 = vsel %vm107, %v3296, 0.0
    %3385 = vadd.xlane.f32.xlu0 %v3384
    %v3386 = vpop.xlane.xlu0 %3385
    %v3387 = vsel %vm107, %v3297, 0.0
    %3388 = vadd.xlane.f32.xlu0 %v3387
    %v3389 = vpop.xlane.xlu0 %3388
    %v3390 = vsel %vm107, %v3298, 0.0
    %3391 = vadd.xlane.f32.xlu0 %v3390
    %v3392 = vpop.xlane.xlu0 %3391
    %v3393 = vsel %vm107, %v3299, 0.0
    %3394 = vadd.xlane.f32.xlu0 %v3393
    %v3395 = vpop.xlane.xlu0 %3394
    %vm3396 = vcmp.eq.f32.partialorder %v2696, 0.0
    %v3429 = vlaneseq
    %v3430 = vshrl.u32 %v3429, 7
    %v3431 = vsub.s32 %v928, %v3430
    %v3432 = vrot.slane %v3302, %v3431
    %v3433 = vlaneseq
    %v3434 = vshrl.u32 %v3433, 7
    %v3435 = vsub.s32 %v1447, %v3434
    %v3436 = vrot.slane %v3305, %v3435
    %v3437 = vsel %vm1452, %v3436, %v3432
    %v3438 = vlaneseq
    %v3439 = vshrl.u32 %v3438, 7
    %v3440 = vsub.s32 %v1454, %v3439
    %v3441 = vrot.slane %v3308, %v3440
    %v3442 = vsel %vm1459, %v3441, %v3437
    %v3443 = vlaneseq
    %v3444 = vshrl.u32 %v3443, 7
    %v3445 = vsub.s32 %v1461, %v3444
    %v3446 = vrot.slane %v3311, %v3445
    %v3447 = vsel %vm1466, %v3446, %v3442
    %v3448 = vlaneseq
    %v3449 = vshrl.u32 %v3448, 7
    %v3450 = vsub.s32 %v1468, %v3449
    %v3451 = vrot.slane %v3314, %v3450
    %v3452 = vsel %vm1473, %v3451, %v3447
    %v3453 = vlaneseq
    %v3454 = vshrl.u32 %v3453, 7
    %v3455 = vsub.s32 %v1475, %v3454
    %v3456 = vrot.slane %v3317, %v3455
    %v3457 = vsel %vm1480, %v3456, %v3452
    %v3458 = vlaneseq
    %v3459 = vshrl.u32 %v3458, 7
    %v3460 = vsub.s32 %v1482, %v3459
    %v3461 = vrot.slane %v3320, %v3460
    %v3462 = vsel %vm1487, %v3461, %v3457
    %v3463 = vlaneseq
    %v3464 = vshrl.u32 %v3463, 7
    %v3465 = vsub.s32 %v1489, %v3464
    %v3466 = vrot.slane %v3323, %v3465
    %v3467 = vsel %vm1494, %v3466, %v3462
    %v3468 = vlaneseq
    %v3469 = vshrl.u32 %v3468, 7
    %v3470 = vsub.s32 %v1496, %v3469
    %v3471 = vrot.slane %v3326, %v3470
    %v3472 = vsel %vm1501, %v3471, %v3467
    %v3473 = vlaneseq
    %v3474 = vshrl.u32 %v3473, 7
    %v3475 = vsub.s32 %v1503, %v3474
    %v3476 = vrot.slane %v3329, %v3475
    %v3477 = vsel %vm1508, %v3476, %v3472
    %v3478 = vlaneseq
    %v3479 = vshrl.u32 %v3478, 7
    %v3480 = vsub.s32 %v1510, %v3479
    %v3481 = vrot.slane %v3332, %v3480
    %v3482 = vsel %vm1515, %v3481, %v3477
    %v3483 = vlaneseq
    %v3484 = vshrl.u32 %v3483, 7
    %v3485 = vsub.s32 %v1517, %v3484
    %v3486 = vrot.slane %v3335, %v3485
    %v3487 = vsel %vm1522, %v3486, %v3482
    %v3488 = vlaneseq
    %v3489 = vshrl.u32 %v3488, 7
    %v3490 = vsub.s32 %v1524, %v3489
    %v3491 = vrot.slane %v3338, %v3490
    %v3492 = vsel %vm1529, %v3491, %v3487
    %v3493 = vlaneseq
    %v3494 = vshrl.u32 %v3493, 7
    %v3495 = vsub.s32 %v1531, %v3494
    %v3496 = vrot.slane %v3341, %v3495
    %v3497 = vsel %vm1536, %v3496, %v3492
    %v3498 = vlaneseq
    %v3499 = vshrl.u32 %v3498, 7
    %v3500 = vsub.s32 %v1538, %v3499
    %v3501 = vrot.slane %v3344, %v3500
    %v3502 = vsel %vm1543, %v3501, %v3497
    %v3503 = vlaneseq
    %v3504 = vshrl.u32 %v3503, 7
    %v3505 = vsub.s32 %v1545, %v3504
    %v3506 = vrot.slane %v3347, %v3505
    %v3507 = vsel %vm1550, %v3506, %v3502
    %v3508 = vlaneseq
    %v3509 = vshrl.u32 %v3508, 7
    %v3510 = vsub.s32 %v928, %v3509
    %v3511 = vrot.slane %v3350, %v3510
    %v3512 = vlaneseq
    %v3513 = vshrl.u32 %v3512, 7
    %v3514 = vsub.s32 %v1447, %v3513
    %v3515 = vrot.slane %v3353, %v3514
    %v3516 = vsel %vm1452, %v3515, %v3511
    %v3517 = vlaneseq
    %v3518 = vshrl.u32 %v3517, 7
    %v3519 = vsub.s32 %v1454, %v3518
    %v3520 = vrot.slane %v3356, %v3519
    %v3521 = vsel %vm1459, %v3520, %v3516
    %v3522 = vlaneseq
    %v3523 = vshrl.u32 %v3522, 7
    %v3524 = vsub.s32 %v1461, %v3523
    %v3525 = vrot.slane %v3359, %v3524
    %v3526 = vsel %vm1466, %v3525, %v3521
    %v3527 = vlaneseq
    %v3528 = vshrl.u32 %v3527, 7
    %v3529 = vsub.s32 %v1468, %v3528
    %v3530 = vrot.slane %v3362, %v3529
    %v3531 = vsel %vm1473, %v3530, %v3526
    %v3532 = vlaneseq
    %v3533 = vshrl.u32 %v3532, 7
    %v3534 = vsub.s32 %v1475, %v3533
    %v3535 = vrot.slane %v3365, %v3534
    %v3536 = vsel %vm1480, %v3535, %v3531
    %v3537 = vlaneseq
    %v3538 = vshrl.u32 %v3537, 7
    %v3539 = vsub.s32 %v1482, %v3538
    %v3540 = vrot.slane %v3368, %v3539
    %v3541 = vsel %vm1487, %v3540, %v3536
    %v3542 = vlaneseq
    %v3543 = vshrl.u32 %v3542, 7
    %v3544 = vsub.s32 %v1489, %v3543
    %v3545 = vrot.slane %v3371, %v3544
    %v3546 = vsel %vm1494, %v3545, %v3541
    %v3547 = vlaneseq
    %v3548 = vshrl.u32 %v3547, 7
    %v3549 = vsub.s32 %v1496, %v3548
    %v3550 = vrot.slane %v3374, %v3549
    %v3551 = vsel %vm1501, %v3550, %v3546
    %v3552 = vlaneseq
    %v3553 = vshrl.u32 %v3552, 7
    %v3554 = vsub.s32 %v1503, %v3553
    %v3555 = vrot.slane %v3377, %v3554
    %v3556 = vsel %vm1508, %v3555, %v3551
    %v3557 = vlaneseq
    %v3558 = vshrl.u32 %v3557, 7
    %v3559 = vsub.s32 %v1510, %v3558
    %v3560 = vrot.slane %v3380, %v3559
    %v3561 = vsel %vm1515, %v3560, %v3556
    %v3562 = vlaneseq
    %v3563 = vshrl.u32 %v3562, 7
    %v3564 = vsub.s32 %v1517, %v3563
    %v3565 = vrot.slane %v3383, %v3564
    %v3566 = vsel %vm1522, %v3565, %v3561
    %v3567 = vlaneseq
    %v3568 = vshrl.u32 %v3567, 7
    %v3569 = vsub.s32 %v1524, %v3568
    %v3570 = vrot.slane %v3386, %v3569
    %v3571 = vsel %vm1529, %v3570, %v3566
    %v3572 = vlaneseq
    %v3573 = vshrl.u32 %v3572, 7
    %v3574 = vsub.s32 %v1531, %v3573
    %v3575 = vrot.slane %v3389, %v3574
    %v3576 = vsel %vm1536, %v3575, %v3571
    %v3577 = vlaneseq
    %v3578 = vshrl.u32 %v3577, 7
    %v3579 = vsub.s32 %v1538, %v3578
    %v3580 = vrot.slane %v3392, %v3579
    %v3581 = vsel %vm1543, %v3580, %v3576
    %v3582 = vlaneseq
    %v3583 = vshrl.u32 %v3582, 7
    %v3584 = vsub.s32 %v1545, %v3583
    %v3585 = vrot.slane %v3395, %v3584
    %v3586 = vsel %vm1550, %v3585, %v3581
    %v3587 = vsel %vm1631, %v3586, %v3507
    %v3589 = vsel %vm3396, -10.0, %v3587
    %v3590 = vsel %vm929, %v3589, -1e+30
    %v3591 = vsel %vm3396, -1e+09, %v3590
    %v3592 = vsel %vm1636, %v3591, -inf
    %3593 = vmax.xlane.f32.xlu0 %v3592
    %v3594 = vpop.xlane.xlu0 %3593
    %vm3595 = vcmp.eq.f32.partialorder %v3591, %v3594
    %v3596 = vsel %vm3595, %v928, 128
    %v3597 = vsel %vm1636, %v3596, 2147483647
    %v3598 = vand.u32 %v3597, 65535
    %v3599 = vshra.s32 %v3597, 16
    %v3600 = vcvt.s32.f32 %v3598
    %v3601 = vcvt.s32.f32 %v3599
    %3602 = vmin.xlane.f32.xlu0 %v3601
    %v3603 = vpop.xlane.xlu0 %3602
    %vm3604 = vcmp.eq.f32.partialorder %v3601, %v3603
    %v3605 = vsel %vm3604, %v3600, inf
    %3606 = vmin.xlane.f32.xlu0 %v3605
    %v3607 = vpop.xlane.xlu0 %3606
    %v3608 = vcvt.f32.s32 %v3607
    %v3609 = vcvt.f32.s32 %v3603
    %v3610 = vshll.u32 %v3609, 16
    %v3611 = vadd.s32 %v3610, %v3608
    %vm3612 = vcmp.eq.s32.totalorder %v928, %v3611
    %v3613 = vsel %vm3612, 1, 0
    %v3614 = vcvt.s32.f32 %v3613
    %v3615 = vsel %vm1636, %v3590, -inf
    %3616 = vmax.xlane.f32.xlu0 %v3615
    %v3617 = vpop.xlane.xlu0 %3616
    %v3618 = vsub.f32 %v3590, %v3617
    %v3619 = vmul.f32 %v3618, 1.442695
    %v3620 = vpow.pop %v3619
    %v3621 = vsel %vm1636, %v3620, 0.0
    %3622 = vadd.xlane.f32.xlu0 %v3621
    %v3623 = vpop.xlane.xlu0 %3622
    %v3624 = vrcp.pop %v3623
    %v3625 = vmul.f32 %v3623, %v3624
    %v3626 = vsub.f32 2.0, %v3625
    %v3627 = vmul.f32 %v3624, %v3626
    %v3628 = vmul.f32 %v3620, %v3627
    %v3629 = vsel %vm929, %v3628, -1e+30
    %v3630 = vsel %vm1636, %v3629, -inf
    %3631 = vmax.xlane.f32.xlu0 %v3630
    %v3632 = vpop.xlane.xlu0 %3631
    %v3633 = vsub.f32 %v3629, %v3632
    %v3634 = vmul.f32 %v3633, 1.442695
    %v3635 = vpow.pop %v3634
    %v3636 = vsel %vm1636, %v3635, 0.0
    %3637 = vadd.xlane.f32.xlu0 %v3636
    %v3638 = vpop.xlane.xlu0 %3637
    %v3639 = vlog2.pop %v3638
    %v3640 = vmul.f32 %v3639, 0.6931472
    %v3641 = vsub.f32 %v3633, %v3640
    %v3644 = vunpack.c.l.s4 1966171168
    %v3645 = vunpack.c.0.s8 %v3644
    %v3646 = vlaneseq
    %v3647 = vshrl.u32 %v3646, 7
    %v3648 = vsub.s32 %v3645, %v3647
    %v3649 = vrot.slane %v3641, %v3648
    %v3650 = vcombine.high %v3649, %v3649
    %v3652 = vunpack.c.l.s4 1966171168
    %v3653 = vunpack.c.0.s8 %v3652
    %v3654 = vlaneseq
    %v3655 = vshrl.u32 %v3654, 7
    %v3656 = vsub.s32 %v3653, %v3655
    %v3657 = vrot.slane %v3649, %v3656
    %v3659 = vunpack.c.l.s4 1966171168
    %v3660 = vunpack.c.0.s8 %v3659
    %v3661 = vlaneseq
    %v3662 = vshrl.u32 %v3661, 7
    %v3663 = vsub.s32 %v3660, %v3662
    %v3664 = vrot.slane %v3650, %v3663
    %3667 = vst [vmem:[#allocation4 + $0x2] sm:$0x1] %v3657
    %3668 = vst [vmem:[#allocation4 + $0xa] sm:$0x1] %v3664
    %vm3669 = vcmp.eq.s32.totalorder %v928, 2
    %v3670 = vsel %vm3669, %v3611, %v2694
    %v3671 = vsub.f32 1.0, %v3614
    %v3672 = vmul.f32 %v2696, %v3671
    %v3673 = vlaneseq
    %v3674 = vshrl.u32 %v3673, 7
    %v3675 = vsub.s32 0, %v3674
    %v3676 = vrot.slane %v3614, %v3675
    %3678 = vbcast.lane.b32.xlu0 %v3676, 256
    %v3679 = vpop.permute.xlu0 %3678
    %s3681 = sor.u32 256, 8
    %3682 = vbcast.lane.b32.xlu0 %v3676, %s3681
    %v3683 = vpop.permute.xlu0 %3682
    %s3685 = sor.u32 256, 16
    %3686 = vbcast.lane.b32.xlu0 %v3676, %s3685
    %v3687 = vpop.permute.xlu0 %3686
    %s3689 = sor.u32 256, 24
    %3690 = vbcast.lane.b32.xlu0 %v3676, %s3689
    %v3691 = vpop.permute.xlu0 %3690
    %s3693 = sor.u32 256, 32
    %3694 = vbcast.lane.b32.xlu0 %v3676, %s3693
    %v3695 = vpop.permute.xlu0 %3694
    %s3697 = sor.u32 256, 40
    %3698 = vbcast.lane.b32.xlu0 %v3676, %s3697
    %v3699 = vpop.permute.xlu0 %3698
    %s3701 = sor.u32 256, 48
    %3702 = vbcast.lane.b32.xlu0 %v3676, %s3701
    %v3703 = vpop.permute.xlu0 %3702
    %s3705 = sor.u32 256, 56
    %3706 = vbcast.lane.b32.xlu0 %v3676, %s3705
    %v3707 = vpop.permute.xlu0 %3706
    %s3709 = sor.u32 256, 64
    %3710 = vbcast.lane.b32.xlu0 %v3676, %s3709
    %v3711 = vpop.permute.xlu0 %3710
    %s3713 = sor.u32 256, 72
    %3714 = vbcast.lane.b32.xlu0 %v3676, %s3713
    %v3715 = vpop.permute.xlu0 %3714
    %s3717 = sor.u32 256, 80
    %3718 = vbcast.lane.b32.xlu0 %v3676, %s3717
    %v3719 = vpop.permute.xlu0 %3718
    %s3721 = sor.u32 256, 88
    %3722 = vbcast.lane.b32.xlu0 %v3676, %s3721
    %v3723 = vpop.permute.xlu0 %3722
    %s3725 = sor.u32 256, 96
    %3726 = vbcast.lane.b32.xlu0 %v3676, %s3725
    %v3727 = vpop.permute.xlu0 %3726
    %s3729 = sor.u32 256, 104
    %3730 = vbcast.lane.b32.xlu0 %v3676, %s3729
    %v3731 = vpop.permute.xlu0 %3730
    %s3733 = sor.u32 256, 112
    %3734 = vbcast.lane.b32.xlu0 %v3676, %s3733
    %v3735 = vpop.permute.xlu0 %3734
    %s3737 = sor.u32 256, 120
    %3738 = vbcast.lane.b32.xlu0 %v3676, %s3737
    %v3739 = vpop.permute.xlu0 %3738
    %v3740 = vlaneseq
    %v3741 = vshrl.u32 %v3740, 7
    %v3742 = vsub.s32 1, %v3741
    %v3743 = vrot.slane %v3614, %v3742
    %3745 = vbcast.lane.b32.xlu0 %v3743, 256
    %v3746 = vpop.permute.xlu0 %3745
    %s3748 = sor.u32 256, 8
    %3749 = vbcast.lane.b32.xlu0 %v3743, %s3748
    %v3750 = vpop.permute.xlu0 %3749
    %s3752 = sor.u32 256, 16
    %3753 = vbcast.lane.b32.xlu0 %v3743, %s3752
    %v3754 = vpop.permute.xlu0 %3753
    %s3756 = sor.u32 256, 24
    %3757 = vbcast.lane.b32.xlu0 %v3743, %s3756
    %v3758 = vpop.permute.xlu0 %3757
    %s3760 = sor.u32 256, 32
    %3761 = vbcast.lane.b32.xlu0 %v3743, %s3760
    %v3762 = vpop.permute.xlu0 %3761
    %s3764 = sor.u32 256, 40
    %3765 = vbcast.lane.b32.xlu0 %v3743, %s3764
    %v3766 = vpop.permute.xlu0 %3765
    %s3768 = sor.u32 256, 48
    %3769 = vbcast.lane.b32.xlu0 %v3743, %s3768
    %v3770 = vpop.permute.xlu0 %3769
    %s3772 = sor.u32 256, 56
    %3773 = vbcast.lane.b32.xlu0 %v3743, %s3772
    %v3774 = vpop.permute.xlu0 %3773
    %s3776 = sor.u32 256, 64
    %3777 = vbcast.lane.b32.xlu0 %v3743, %s3776
    %v3778 = vpop.permute.xlu0 %3777
    %s3780 = sor.u32 256, 72
    %3781 = vbcast.lane.b32.xlu0 %v3743, %s3780
    %v3782 = vpop.permute.xlu0 %3781
    %s3784 = sor.u32 256, 80
    %3785 = vbcast.lane.b32.xlu0 %v3743, %s3784
    %v3786 = vpop.permute.xlu0 %3785
    %s3788 = sor.u32 256, 88
    %3789 = vbcast.lane.b32.xlu0 %v3743, %s3788
    %v3790 = vpop.permute.xlu0 %3789
    %s3792 = sor.u32 256, 96
    %3793 = vbcast.lane.b32.xlu0 %v3743, %s3792
    %v3794 = vpop.permute.xlu0 %3793
    %s3796 = sor.u32 256, 104
    %3797 = vbcast.lane.b32.xlu0 %v3743, %s3796
    %v3798 = vpop.permute.xlu0 %3797
    %s3800 = sor.u32 256, 112
    %3801 = vbcast.lane.b32.xlu0 %v3743, %s3800
    %v3802 = vpop.permute.xlu0 %3801
    %s3804 = sor.u32 256, 120
    %3805 = vbcast.lane.b32.xlu0 %v3743, %s3804
    %v3806 = vpop.permute.xlu0 %3805
    %v3807 = vld [vmem:[#allocation3] sm:$0xff]
    %v3808 = vld [vmem:[#allocation3 + $0x8] sm:$0xff]
    %v3809 = vld [vmem:[#allocation3 + $0x10] sm:$0xff]
    %v3810 = vld [vmem:[#allocation3 + $0x18] sm:$0xff]
    %v3811 = vld [vmem:[#allocation3 + $0x20] sm:$0xff]
    %v3812 = vld [vmem:[#allocation3 + $0x28] sm:$0xff]
    %v3813 = vld [vmem:[#allocation3 + $0x30] sm:$0xff]
    %v3814 = vld [vmem:[#allocation3 + $0x38] sm:$0xff]
    %v3815 = vld [vmem:[#allocation3 + $0x40] sm:$0xff]
    %v3816 = vld [vmem:[#allocation3 + $0x48] sm:$0xff]
    %v3817 = vld [vmem:[#allocation3 + $0x50] sm:$0xff]
    %v3818 = vld [vmem:[#allocation3 + $0x58] sm:$0xff]
    %v3819 = vld [vmem:[#allocation3 + $0x60] sm:$0xff]
    %v3820 = vld [vmem:[#allocation3 + $0x68] sm:$0xff]
    %v3821 = vld [vmem:[#allocation3 + $0x70] sm:$0xff]
    %v3822 = vld [vmem:[#allocation3 + $0x78] sm:$0xff]
    %v3823 = vld [vmem:[#allocation3 + $0x80] sm:$0xff]
    %v3824 = vld [vmem:[#allocation3 + $0x88] sm:$0xff]
    %v3825 = vld [vmem:[#allocation3 + $0x90] sm:$0xff]
    %v3826 = vld [vmem:[#allocation3 + $0x98] sm:$0xff]
    %v3827 = vld [vmem:[#allocation3 + $0xa0] sm:$0xff]
    %v3828 = vld [vmem:[#allocation3 + $0xa8] sm:$0xff]
    %v3829 = vld [vmem:[#allocation3 + $0xb0] sm:$0xff]
    %v3830 = vld [vmem:[#allocation3 + $0xb8] sm:$0xff]
    %v3831 = vld [vmem:[#allocation3 + $0xc0] sm:$0xff]
    %v3832 = vld [vmem:[#allocation3 + $0xc8] sm:$0xff]
    %v3833 = vld [vmem:[#allocation3 + $0xd0] sm:$0xff]
    %v3834 = vld [vmem:[#allocation3 + $0xd8] sm:$0xff]
    %v3835 = vld [vmem:[#allocation3 + $0xe0] sm:$0xff]
    %v3836 = vld [vmem:[#allocation3 + $0xe8] sm:$0xff]
    %v3837 = vld [vmem:[#allocation3 + $0xf0] sm:$0xff]
    %v3838 = vld [vmem:[#allocation3 + $0xf8] sm:$0xff]
    %v3839 = vmul.f32 %v3679, %v3807
    %v3840 = vmul.f32 %v3683, %v3808
    %v3841 = vmul.f32 %v3687, %v3809
    %v3842 = vmul.f32 %v3691, %v3810
    %v3843 = vmul.f32 %v3695, %v3811
    %v3844 = vmul.f32 %v3699, %v3812
    %v3845 = vmul.f32 %v3703, %v3813
    %v3846 = vmul.f32 %v3707, %v3814
    %v3847 = vmul.f32 %v3711, %v3815
    %v3848 = vmul.f32 %v3715, %v3816
    %v3849 = vmul.f32 %v3719, %v3817
    %v3850 = vmul.f32 %v3723, %v3818
    %v3851 = vmul.f32 %v3727, %v3819
    %v3852 = vmul.f32 %v3731, %v3820
    %v3853 = vmul.f32 %v3735, %v3821
    %v3854 = vmul.f32 %v3739, %v3822
    %v3855 = vmul.f32 %v3746, %v3823
    %v3856 = vmul.f32 %v3750, %v3824
    %v3857 = vmul.f32 %v3754, %v3825
    %v3858 = vmul.f32 %v3758, %v3826
    %v3859 = vmul.f32 %v3762, %v3827
    %v3860 = vmul.f32 %v3766, %v3828
    %v3861 = vmul.f32 %v3770, %v3829
    %v3862 = vmul.f32 %v3774, %v3830
    %v3863 = vmul.f32 %v3778, %v3831
    %v3864 = vmul.f32 %v3782, %v3832
    %v3865 = vmul.f32 %v3786, %v3833
    %v3866 = vmul.f32 %v3790, %v3834
    %v3867 = vmul.f32 %v3794, %v3835
    %v3868 = vmul.f32 %v3798, %v3836
    %v3869 = vmul.f32 %v3802, %v3837
    %v3870 = vmul.f32 %v3806, %v3838
    %v3871 = vadd.f32 %v3839, %v3840
    %v3872 = vadd.f32 %v3871, %v3841
    %v3873 = vadd.f32 %v3872, %v3842
    %v3874 = vadd.f32 %v3873, %v3843
    %v3875 = vadd.f32 %v3874, %v3844
    %v3876 = vadd.f32 %v3875, %v3845
    %v3877 = vadd.f32 %v3876, %v3846
    %v3878 = vadd.f32 %v3877, %v3847
    %v3879 = vadd.f32 %v3878, %v3848
    %v3880 = vadd.f32 %v3879, %v3849
    %v3881 = vadd.f32 %v3880, %v3850
    %v3882 = vadd.f32 %v3881, %v3851
    %v3883 = vadd.f32 %v3882, %v3852
    %v3884 = vadd.f32 %v3883, %v3853
    %v3885 = vadd.f32 %v3884, %v3854
    %v3886 = vrot.slane %v3885, 4
    %v3887 = vadd.f32 %v3885, %v3886
    %v3888 = vrot.slane %v3887, 2
    %v3889 = vadd.f32 %v3887, %v3888
    %v3890 = vrot.slane %v3889, 1
    %v3891 = vadd.f32 %v3889, %v3890
    %v3892 = vadd.f32 %v3855, %v3856
    %v3893 = vadd.f32 %v3892, %v3857
    %v3894 = vadd.f32 %v3893, %v3858
    %v3895 = vadd.f32 %v3894, %v3859
    %v3896 = vadd.f32 %v3895, %v3860
    %v3897 = vadd.f32 %v3896, %v3861
    %v3898 = vadd.f32 %v3897, %v3862
    %v3899 = vadd.f32 %v3898, %v3863
    %v3900 = vadd.f32 %v3899, %v3864
    %v3901 = vadd.f32 %v3900, %v3865
    %v3902 = vadd.f32 %v3901, %v3866
    %v3903 = vadd.f32 %v3902, %v3867
    %v3904 = vadd.f32 %v3903, %v3868
    %v3905 = vadd.f32 %v3904, %v3869
    %v3906 = vadd.f32 %v3905, %v3870
    %v3907 = vrot.slane %v3906, 4
    %v3908 = vadd.f32 %v3906, %v3907
    %v3909 = vrot.slane %v3908, 2
    %v3910 = vadd.f32 %v3908, %v3909
    %v3911 = vrot.slane %v3910, 1
    %v3912 = vadd.f32 %v3910, %v3911
    %3913 = vmatprep.subr.mxu0 0.0
    %3914 = vmatpush1.msra.mxu0 %v53
    %3915 = vmatprep.subr.mxu0 0.0
    %3916 = vmatpush1.msra.mxu0 %v54
    %3917 = vmatprep.subr.mxu0 0.0
    %3918 = vmatpush1.msra.mxu0 %v55
    %3919 = vmatprep.subr.mxu0 0.0
    %3920 = vmatpush1.msra.mxu0 %v56
    %3921 = vmatprep.subr.mxu0 0.0
    %3922 = vmatpush1.msra.mxu0 0.0
    %3923 = vmatprep.subr.mxu0 0.0
    %3924 = vmatpush1.msra.mxu0 0.0
    %3925 = vmatprep.subr.mxu0 0.0
    %3926 = vmatpush1.msra.mxu0 0.0
    %3927 = vmatprep.subr.mxu0 0.0
    %3928 = vmatpush1.msra.mxu0 0.0
    %3929 = vmatprep.subr.mxu0 0.0
    %3930 = vmatpush1.msra.mxu0 0.0
    %3931 = vmatprep.subr.mxu0 0.0
    %3932 = vmatpush1.msra.mxu0 0.0
    %3933 = vmatprep.subr.mxu0 0.0
    %3934 = vmatpush1.msra.mxu0 0.0
    %3935 = vmatprep.subr.mxu0 0.0
    %3936 = vmatpush1.msra.mxu0 0.0
    %3937 = vmatprep.subr.mxu0 0.0
    %3938 = vmatpush1.msra.mxu0 0.0
    %3939 = vmatprep.subr.mxu0 0.0
    %3940 = vmatpush1.msra.mxu0 0.0
    %3941 = vmatprep.subr.mxu0 0.0
    %3942 = vmatpush1.msra.mxu0 0.0
    %3943 = vmatprep.subr.mxu0 0.0
    %3944 = vmatpush1.msra.mxu0 0.0
    %3945 = vmatprep.subr.mxu0 0.0
    %3946 = vmatpush1.msra.mxu0 0.0
    %3947 = vmatprep.subr.mxu0 0.0
    %3948 = vmatpush1.msra.mxu0 0.0
    %3949 = vmatprep.subr.mxu0 0.0
    %3950 = vmatpush1.msra.mxu0 0.0
    %3951 = vmatprep.subr.mxu0 0.0
    %3952 = vmatpush1.msra.mxu0 0.0
    %3953 = vmatprep.subr.mxu0 0.0
    %3954 = vmatpush1.msra.mxu0 0.0
    %3955 = vmatprep.subr.mxu0 0.0
    %3956 = vmatpush1.msra.mxu0 0.0
    %3957 = vmatprep.subr.mxu0 0.0
    %3958 = vmatpush1.msra.mxu0 0.0
    %3959 = vmatprep.subr.mxu0 0.0
    %3960 = vmatpush1.msra.mxu0 0.0
    %3961 = vmatprep.subr.mxu0 0.0
    %3962 = vmatpush1.msra.mxu0 0.0
    %3963 = vmatprep.subr.mxu0 0.0
    %3964 = vmatpush1.msra.mxu0 0.0
    %3965 = vmatprep.subr.mxu0 0.0
    %3966 = vmatpush1.msra.mxu0 0.0
    %3967 = vmatprep.subr.mxu0 0.0
    %3968 = vmatpush1.msra.mxu0 0.0
    %3969 = vmatprep.subr.mxu0 0.0
    %3970 = vmatpush1.msra.mxu0 0.0
    %3971 = vmatprep.subr.mxu0 0.0
    %3972 = vmatpush1.msra.mxu0 0.0
    %3973 = vmatprep.subr.mxu0 0.0
    %3974 = vmatpush1.msra.mxu0 0.0
    %3975 = vmatprep.subr.mxu0 0.0
    %3976 = vmatpush1.msra.mxu0 0.0
    %3977 = vmatprep.mubr.f32.mxu0 0.0
    %3978 = vmatmul.mubr.f32.gmra.mrb[0].mxu0 %v3067
    %v3979 = vpop.f32.mrb[0].mxu0
    %v3980 = vadd.f32 0.0, %v3979
    %v3981 = vpop.f32.mrb[0].mxu0
    %3982 = vdwg.mxu0
    %v3984 = vrot.slane %v3980, 1
    %v3987 = vadd.f32 %v3891, %v3980
    %v3988 = vadd.f32 %v3912, %v3984
    %v3989 = vxor.u32 %v3987, 2147483648
    %v3990 = vxor.u32 %v3988, 2147483648
    %v3991 = vmul.f32 %v3989, 1.442695
    %v3992 = vpow.pop %v3991
    %v3993 = vmul.f32 %v3990, 1.442695
    %v3994 = vpow.pop %v3993
    %v3995 = vadd.f32 %v3992, 1.0
    %v3996 = vadd.f32 %v3994, 1.0
    %v3997 = vrcp.pop %v3995
    %v3998 = vmul.f32 1.0, %v3997
    %v3999 = vrcp.pop %v3996
    %v4000 = vmul.f32 1.0, %v3999
    %v4001 = vtanh.pop %v3987
    %v4002 = vtanh.pop %v3988
    %v4003 = vmul.f32 %v3998, %v3047
    %v4004 = vmul.f32 %v4000, %v3048
    %4007 = vrot.lane.b32.xlu0 %v4001, 64
    %v4008 = vpop.permute.xlu0 %4007
    %4009 = vrot.lane.b32.xlu0 %v4002, 64
    %v4010 = vpop.permute.xlu0 %4009
    %v4013 = vmul.f32 %v3998, %v4008
    %v4014 = vmul.f32 %v4000, %v4010
    %4017 = vrot.lane.b32.xlu0 %v4013, 32
    %v4018 = vpop.permute.xlu0 %4017
    %4019 = vrot.lane.b32.xlu0 %v4014, 32
    %v4020 = vpop.permute.xlu0 %4019
    %v4023 = vadd.f32 %v4003, %v4018
    %v4024 = vadd.f32 %v4004, %v4020
    %v4025 = vtanh.pop %v4023
    %v4026 = vtanh.pop %v4024
    %4029 = vrot.lane.b32.xlu0 %v4025, 64
    %v4030 = vpop.permute.xlu0 %4029
    %4031 = vrot.lane.b32.xlu0 %v4026, 64
    %v4032 = vpop.permute.xlu0 %4031
    %v4035 = vmul.f32 %v3998, %v4030
    %v4036 = vmul.f32 %v4000, %v4032
    %v4039 = vrot.slane %v4036, 7
    %v4040 = vsel %vm1631, %v4039, %v4035
    %4041 = vrot.lane.b32.xlu0 %v4040, 32
    %v4042 = vpop.permute.xlu0 %4041
    %v4043 = vsel %vm107, %v4042, 0
    %4045 = vmatprep.subr.mxu0 0.0
    %4046 = vmatpush1.msra.mxu0 %v58
    %4047 = vmatprep.subr.mxu0 0.0
    %4048 = vmatpush1.msra.mxu0 %v59
    %4049 = vmatprep.subr.mxu0 0.0
    %4050 = vmatpush1.msra.mxu0 %v60
    %4051 = vmatprep.subr.mxu0 0.0
    %4052 = vmatpush1.msra.mxu0 %v61
    %4053 = vmatprep.subr.mxu0 0.0
    %4054 = vmatpush1.msra.mxu0 0.0
    %4055 = vmatprep.subr.mxu0 0.0
    %4056 = vmatpush1.msra.mxu0 0.0
    %4057 = vmatprep.subr.mxu0 0.0
    %4058 = vmatpush1.msra.mxu0 0.0
    %4059 = vmatprep.subr.mxu0 0.0
    %4060 = vmatpush1.msra.mxu0 0.0
    %4061 = vmatprep.subr.mxu0 0.0
    %4062 = vmatpush1.msra.mxu0 0.0
    %4063 = vmatprep.subr.mxu0 0.0
    %4064 = vmatpush1.msra.mxu0 0.0
    %4065 = vmatprep.subr.mxu0 0.0
    %4066 = vmatpush1.msra.mxu0 0.0
    %4067 = vmatprep.subr.mxu0 0.0
    %4068 = vmatpush1.msra.mxu0 0.0
    %4069 = vmatprep.subr.mxu0 0.0
    %4070 = vmatpush1.msra.mxu0 0.0
    %4071 = vmatprep.subr.mxu0 0.0
    %4072 = vmatpush1.msra.mxu0 0.0
    %4073 = vmatprep.subr.mxu0 0.0
    %4074 = vmatpush1.msra.mxu0 0.0
    %4075 = vmatprep.subr.mxu0 0.0
    %4076 = vmatpush1.msra.mxu0 0.0
    %4077 = vmatprep.subr.mxu0 0.0
    %4078 = vmatpush1.msra.mxu0 0.0
    %4079 = vmatprep.subr.mxu0 0.0
    %4080 = vmatpush1.msra.mxu0 0.0
    %4081 = vmatprep.subr.mxu0 0.0
    %4082 = vmatpush1.msra.mxu0 0.0
    %4083 = vmatprep.subr.mxu0 0.0
    %4084 = vmatpush1.msra.mxu0 0.0
    %4085 = vmatprep.subr.mxu0 0.0
    %4086 = vmatpush1.msra.mxu0 0.0
    %4087 = vmatprep.subr.mxu0 0.0
    %4088 = vmatpush1.msra.mxu0 0.0
    %4089 = vmatprep.subr.mxu0 0.0
    %4090 = vmatpush1.msra.mxu0 0.0
    %4091 = vmatprep.subr.mxu0 0.0
    %4092 = vmatpush1.msra.mxu0 0.0
    %4093 = vmatprep.subr.mxu0 0.0
    %4094 = vmatpush1.msra.mxu0 0.0
    %4095 = vmatprep.subr.mxu0 0.0
    %4096 = vmatpush1.msra.mxu0 0.0
    %4097 = vmatprep.subr.mxu0 0.0
    %4098 = vmatpush1.msra.mxu0 0.0
    %4099 = vmatprep.subr.mxu0 0.0
    %4100 = vmatpush1.msra.mxu0 0.0
    %4101 = vmatprep.subr.mxu0 0.0
    %4102 = vmatpush1.msra.mxu0 0.0
    %4103 = vmatprep.subr.mxu0 0.0
    %4104 = vmatpush1.msra.mxu0 0.0
    %4105 = vmatprep.subr.mxu0 0.0
    %4106 = vmatpush1.msra.mxu0 0.0
    %4107 = vmatprep.subr.mxu0 0.0
    %4108 = vmatpush1.msra.mxu0 0.0
    %4109 = vmatprep.mubr.f32.mxu0 0.0
    %4110 = vmatmul.mubr.f32.gmra.mrb[0].mxu0 %v4043
    %v4111 = vpop.f32.mrb[0].mxu0
    %v4112 = vadd.f32 %v1038, %v4111
    %v4113 = vpop.f32.mrb[0].mxu0
    %4114 = vdwg.mxu0
    %v4115 = vld [vmem:[#allocation2] sm:$0xff]
    %v4116 = vld [vmem:[#allocation2 + $0x8] sm:$0xff]
    %v4117 = vld [vmem:[#allocation2 + $0x10] sm:$0xff]
    %v4118 = vld [vmem:[#allocation2 + $0x18] sm:$0xff]
    %v4119 = vld [vmem:[#allocation2 + $0x20] sm:$0xff]
    %v4120 = vld [vmem:[#allocation2 + $0x28] sm:$0xff]
    %v4121 = vld [vmem:[#allocation2 + $0x30] sm:$0xff]
    %v4122 = vld [vmem:[#allocation2 + $0x38] sm:$0xff]
    %v4123 = vld [vmem:[#allocation2 + $0x40] sm:$0xff]
    %v4124 = vld [vmem:[#allocation2 + $0x48] sm:$0xff]
    %v4125 = vld [vmem:[#allocation2 + $0x50] sm:$0xff]
    %v4126 = vld [vmem:[#allocation2 + $0x58] sm:$0xff]
    %v4127 = vld [vmem:[#allocation2 + $0x60] sm:$0xff]
    %v4128 = vld [vmem:[#allocation2 + $0x68] sm:$0xff]
    %v4129 = vld [vmem:[#allocation2 + $0x70] sm:$0xff]
    %v4130 = vld [vmem:[#allocation2 + $0x78] sm:$0xff]
    %v4131 = vld [vmem:[#allocation2 + $0x80] sm:$0xff]
    %v4132 = vld [vmem:[#allocation2 + $0x88] sm:$0xff]
    %v4133 = vld [vmem:[#allocation2 + $0x90] sm:$0xff]
    %v4134 = vld [vmem:[#allocation2 + $0x98] sm:$0xff]
    %v4135 = vld [vmem:[#allocation2 + $0xa0] sm:$0xff]
    %v4136 = vld [vmem:[#allocation2 + $0xa8] sm:$0xff]
    %v4137 = vld [vmem:[#allocation2 + $0xb0] sm:$0xff]
    %v4138 = vld [vmem:[#allocation2 + $0xb8] sm:$0xff]
    %v4139 = vld [vmem:[#allocation2 + $0xc0] sm:$0xff]
    %v4140 = vld [vmem:[#allocation2 + $0xc8] sm:$0xff]
    %v4141 = vld [vmem:[#allocation2 + $0xd0] sm:$0xff]
    %v4142 = vld [vmem:[#allocation2 + $0xd8] sm:$0xff]
    %v4143 = vld [vmem:[#allocation2 + $0xe0] sm:$0xff]
    %v4144 = vld [vmem:[#allocation2 + $0xe8] sm:$0xff]
    %v4145 = vld [vmem:[#allocation2 + $0xf0] sm:$0xff]
    %v4146 = vld [vmem:[#allocation2 + $0xf8] sm:$0xff]
    %v4149 = vunpack.c.l.s4 1966171168
    %v4150 = vunpack.c.0.s8 %v4149
    %v4151 = vlaneseq
    %v4152 = vshrl.u32 %v4151, 7
    %v4153 = vsub.s32 %v4150, %v4152
    %v4154 = vrot.slane %v4112, %v4153
    %v4155 = vcombine.high %v4154, %v4154
    %v4157 = vunpack.c.l.s4 1966171168
    %v4158 = vunpack.c.0.s8 %v4157
    %v4159 = vlaneseq
    %v4160 = vshrl.u32 %v4159, 7
    %v4161 = vsub.s32 %v4158, %v4160
    %v4162 = vrot.slane %v4154, %v4161
    %v4164 = vunpack.c.l.s4 1966171168
    %v4165 = vunpack.c.0.s8 %v4164
    %v4166 = vlaneseq
    %v4167 = vshrl.u32 %v4166, 7
    %v4168 = vsub.s32 %v4165, %v4167
    %v4169 = vrot.slane %v4155, %v4168
    %v4170 = vlaneseq
    %v4171 = vshrl.u32 %v4170, 7
    %v4172 = vsub.s32 0, %v4171
    %v4173 = vrot.slane %v4162, %v4172
    %v4174 = vlaneseq
    %v4175 = vshrl.u32 %v4174, 7
    %v4176 = vsub.s32 0, %v4175
    %v4177 = vrot.slane %v4169, %v4176
    %v4180 = vadd.f32 %v4173, %v4115
    %v4181 = vadd.f32 %v4173, %v4116
    %v4182 = vadd.f32 %v4173, %v4117
    %v4183 = vadd.f32 %v4173, %v4118
    %v4184 = vadd.f32 %v4173, %v4119
    %v4185 = vadd.f32 %v4173, %v4120
    %v4186 = vadd.f32 %v4173, %v4121
    %v4187 = vadd.f32 %v4173, %v4122
    %v4188 = vadd.f32 %v4173, %v4123
    %v4189 = vadd.f32 %v4173, %v4124
    %v4190 = vadd.f32 %v4173, %v4125
    %v4191 = vadd.f32 %v4173, %v4126
    %v4192 = vadd.f32 %v4173, %v4127
    %v4193 = vadd.f32 %v4173, %v4128
    %v4194 = vadd.f32 %v4173, %v4129
    %v4195 = vadd.f32 %v4173, %v4130
    %v4196 = vadd.f32 %v4177, %v4131
    %v4197 = vadd.f32 %v4177, %v4132
    %v4198 = vadd.f32 %v4177, %v4133
    %v4199 = vadd.f32 %v4177, %v4134
    %v4200 = vadd.f32 %v4177, %v4135
    %v4201 = vadd.f32 %v4177, %v4136
    %v4202 = vadd.f32 %v4177, %v4137
    %v4203 = vadd.f32 %v4177, %v4138
    %v4204 = vadd.f32 %v4177, %v4139
    %v4205 = vadd.f32 %v4177, %v4140
    %v4206 = vadd.f32 %v4177, %v4141
    %v4207 = vadd.f32 %v4177, %v4142
    %v4208 = vadd.f32 %v4177, %v4143
    %v4209 = vadd.f32 %v4177, %v4144
    %v4210 = vadd.f32 %v4177, %v4145
    %v4211 = vadd.f32 %v4177, %v4146
    %v4212 = vtanh.pop %v4180
    %v4213 = vtanh.pop %v4181
    %v4214 = vtanh.pop %v4182
    %v4215 = vtanh.pop %v4183
    %v4216 = vtanh.pop %v4184
    %v4217 = vtanh.pop %v4185
    %v4218 = vtanh.pop %v4186
    %v4219 = vtanh.pop %v4187
    %v4220 = vtanh.pop %v4188
    %v4221 = vtanh.pop %v4189
    %v4222 = vtanh.pop %v4190
    %v4223 = vtanh.pop %v4191
    %v4224 = vtanh.pop %v4192
    %v4225 = vtanh.pop %v4193
    %v4226 = vtanh.pop %v4194
    %v4227 = vtanh.pop %v4195
    %v4228 = vtanh.pop %v4196
    %v4229 = vtanh.pop %v4197
    %v4230 = vtanh.pop %v4198
    %v4231 = vtanh.pop %v4199
    %v4232 = vtanh.pop %v4200
    %v4233 = vtanh.pop %v4201
    %v4234 = vtanh.pop %v4202
    %v4235 = vtanh.pop %v4203
    %v4236 = vtanh.pop %v4204
    %v4237 = vtanh.pop %v4205
    %v4238 = vtanh.pop %v4206
    %v4239 = vtanh.pop %v4207
    %v4240 = vtanh.pop %v4208
    %v4241 = vtanh.pop %v4209
    %v4242 = vtanh.pop %v4210
    %v4243 = vtanh.pop %v4211
    %v4244 = vmul.f32 %v4212, %v1248
    %v4245 = vmul.f32 %v4213, %v1248
    %v4246 = vmul.f32 %v4214, %v1248
    %v4247 = vmul.f32 %v4215, %v1248
    %v4248 = vmul.f32 %v4216, %v1248
    %v4249 = vmul.f32 %v4217, %v1248
    %v4250 = vmul.f32 %v4218, %v1248
    %v4251 = vmul.f32 %v4219, %v1248
    %v4252 = vmul.f32 %v4220, %v1248
    %v4253 = vmul.f32 %v4221, %v1248
    %v4254 = vmul.f32 %v4222, %v1248
    %v4255 = vmul.f32 %v4223, %v1248
    %v4256 = vmul.f32 %v4224, %v1248
    %v4257 = vmul.f32 %v4225, %v1248
    %v4258 = vmul.f32 %v4226, %v1248
    %v4259 = vmul.f32 %v4227, %v1248
    %v4260 = vmul.f32 %v4228, %v1248
    %v4261 = vmul.f32 %v4229, %v1248
    %v4262 = vmul.f32 %v4230, %v1248
    %v4263 = vmul.f32 %v4231, %v1248
    %v4264 = vmul.f32 %v4232, %v1248
    %v4265 = vmul.f32 %v4233, %v1248
    %v4266 = vmul.f32 %v4234, %v1248
    %v4267 = vmul.f32 %v4235, %v1248
    %v4268 = vmul.f32 %v4236, %v1248
    %v4269 = vmul.f32 %v4237, %v1248
    %v4270 = vmul.f32 %v4238, %v1248
    %v4271 = vmul.f32 %v4239, %v1248
    %v4272 = vmul.f32 %v4240, %v1248
    %v4273 = vmul.f32 %v4241, %v1248
    %v4274 = vmul.f32 %v4242, %v1248
    %v4275 = vmul.f32 %v4243, %v1248
    %v4276 = vsel %vm107, %v4244, 0.0
    %4277 = vadd.xlane.f32.xlu0 %v4276
    %v4278 = vpop.xlane.xlu0 %4277
    %v4279 = vsel %vm107, %v4245, 0.0
    %4280 = vadd.xlane.f32.xlu0 %v4279
    %v4281 = vpop.xlane.xlu0 %4280
    %v4282 = vsel %vm107, %v4246, 0.0
    %4283 = vadd.xlane.f32.xlu0 %v4282
    %v4284 = vpop.xlane.xlu0 %4283
    %v4285 = vsel %vm107, %v4247, 0.0
    %4286 = vadd.xlane.f32.xlu0 %v4285
    %v4287 = vpop.xlane.xlu0 %4286
    %v4288 = vsel %vm107, %v4248, 0.0
    %4289 = vadd.xlane.f32.xlu0 %v4288
    %v4290 = vpop.xlane.xlu0 %4289
    %v4291 = vsel %vm107, %v4249, 0.0
    %4292 = vadd.xlane.f32.xlu0 %v4291
    %v4293 = vpop.xlane.xlu0 %4292
    %v4294 = vsel %vm107, %v4250, 0.0
    %4295 = vadd.xlane.f32.xlu0 %v4294
    %v4296 = vpop.xlane.xlu0 %4295
    %v4297 = vsel %vm107, %v4251, 0.0
    %4298 = vadd.xlane.f32.xlu0 %v4297
    %v4299 = vpop.xlane.xlu0 %4298
    %v4300 = vsel %vm107, %v4252, 0.0
    %4301 = vadd.xlane.f32.xlu0 %v4300
    %v4302 = vpop.xlane.xlu0 %4301
    %v4303 = vsel %vm107, %v4253, 0.0
    %4304 = vadd.xlane.f32.xlu0 %v4303
    %v4305 = vpop.xlane.xlu0 %4304
    %v4306 = vsel %vm107, %v4254, 0.0
    %4307 = vadd.xlane.f32.xlu0 %v4306
    %v4308 = vpop.xlane.xlu0 %4307
    %v4309 = vsel %vm107, %v4255, 0.0
    %4310 = vadd.xlane.f32.xlu0 %v4309
    %v4311 = vpop.xlane.xlu0 %4310
    %v4312 = vsel %vm107, %v4256, 0.0
    %4313 = vadd.xlane.f32.xlu0 %v4312
    %v4314 = vpop.xlane.xlu0 %4313
    %v4315 = vsel %vm107, %v4257, 0.0
    %4316 = vadd.xlane.f32.xlu0 %v4315
    %v4317 = vpop.xlane.xlu0 %4316
    %v4318 = vsel %vm107, %v4258, 0.0
    %4319 = vadd.xlane.f32.xlu0 %v4318
    %v4320 = vpop.xlane.xlu0 %4319
    %v4321 = vsel %vm107, %v4259, 0.0
    %4322 = vadd.xlane.f32.xlu0 %v4321
    %v4323 = vpop.xlane.xlu0 %4322
    %v4324 = vsel %vm107, %v4260, 0.0
    %4325 = vadd.xlane.f32.xlu0 %v4324
    %v4326 = vpop.xlane.xlu0 %4325
    %v4327 = vsel %vm107, %v4261, 0.0
    %4328 = vadd.xlane.f32.xlu0 %v4327
    %v4329 = vpop.xlane.xlu0 %4328
    %v4330 = vsel %vm107, %v4262, 0.0
    %4331 = vadd.xlane.f32.xlu0 %v4330
    %v4332 = vpop.xlane.xlu0 %4331
    %v4333 = vsel %vm107, %v4263, 0.0
    %4334 = vadd.xlane.f32.xlu0 %v4333
    %v4335 = vpop.xlane.xlu0 %4334
    %v4336 = vsel %vm107, %v4264, 0.0
    %4337 = vadd.xlane.f32.xlu0 %v4336
    %v4338 = vpop.xlane.xlu0 %4337
    %v4339 = vsel %vm107, %v4265, 0.0
    %4340 = vadd.xlane.f32.xlu0 %v4339
    %v4341 = vpop.xlane.xlu0 %4340
    %v4342 = vsel %vm107, %v4266, 0.0
    %4343 = vadd.xlane.f32.xlu0 %v4342
    %v4344 = vpop.xlane.xlu0 %4343
    %v4345 = vsel %vm107, %v4267, 0.0
    %4346 = vadd.xlane.f32.xlu0 %v4345
    %v4347 = vpop.xlane.xlu0 %4346
    %v4348 = vsel %vm107, %v4268, 0.0
    %4349 = vadd.xlane.f32.xlu0 %v4348
    %v4350 = vpop.xlane.xlu0 %4349
    %v4351 = vsel %vm107, %v4269, 0.0
    %4352 = vadd.xlane.f32.xlu0 %v4351
    %v4353 = vpop.xlane.xlu0 %4352
    %v4354 = vsel %vm107, %v4270, 0.0
    %4355 = vadd.xlane.f32.xlu0 %v4354
    %v4356 = vpop.xlane.xlu0 %4355
    %v4357 = vsel %vm107, %v4271, 0.0
    %4358 = vadd.xlane.f32.xlu0 %v4357
    %v4359 = vpop.xlane.xlu0 %4358
    %v4360 = vsel %vm107, %v4272, 0.0
    %4361 = vadd.xlane.f32.xlu0 %v4360
    %v4362 = vpop.xlane.xlu0 %4361
    %v4363 = vsel %vm107, %v4273, 0.0
    %4364 = vadd.xlane.f32.xlu0 %v4363
    %v4365 = vpop.xlane.xlu0 %4364
    %v4366 = vsel %vm107, %v4274, 0.0
    %4367 = vadd.xlane.f32.xlu0 %v4366
    %v4368 = vpop.xlane.xlu0 %4367
    %v4369 = vsel %vm107, %v4275, 0.0
    %4370 = vadd.xlane.f32.xlu0 %v4369
    %v4371 = vpop.xlane.xlu0 %4370
    %vm4372 = vcmp.eq.f32.partialorder %v3672, 0.0
    %v4405 = vlaneseq
    %v4406 = vshrl.u32 %v4405, 7
    %v4407 = vsub.s32 %v928, %v4406
    %v4408 = vrot.slane %v4278, %v4407
    %v4409 = vlaneseq
    %v4410 = vshrl.u32 %v4409, 7
    %v4411 = vsub.s32 %v1447, %v4410
    %v4412 = vrot.slane %v4281, %v4411
    %v4413 = vsel %vm1452, %v4412, %v4408
    %v4414 = vlaneseq
    %v4415 = vshrl.u32 %v4414, 7
    %v4416 = vsub.s32 %v1454, %v4415
    %v4417 = vrot.slane %v4284, %v4416
    %v4418 = vsel %vm1459, %v4417, %v4413
    %v4419 = vlaneseq
    %v4420 = vshrl.u32 %v4419, 7
    %v4421 = vsub.s32 %v1461, %v4420
    %v4422 = vrot.slane %v4287, %v4421
    %v4423 = vsel %vm1466, %v4422, %v4418
    %v4424 = vlaneseq
    %v4425 = vshrl.u32 %v4424, 7
    %v4426 = vsub.s32 %v1468, %v4425
    %v4427 = vrot.slane %v4290, %v4426
    %v4428 = vsel %vm1473, %v4427, %v4423
    %v4429 = vlaneseq
    %v4430 = vshrl.u32 %v4429, 7
    %v4431 = vsub.s32 %v1475, %v4430
    %v4432 = vrot.slane %v4293, %v4431
    %v4433 = vsel %vm1480, %v4432, %v4428
    %v4434 = vlaneseq
    %v4435 = vshrl.u32 %v4434, 7
    %v4436 = vsub.s32 %v1482, %v4435
    %v4437 = vrot.slane %v4296, %v4436
    %v4438 = vsel %vm1487, %v4437, %v4433
    %v4439 = vlaneseq
    %v4440 = vshrl.u32 %v4439, 7
    %v4441 = vsub.s32 %v1489, %v4440
    %v4442 = vrot.slane %v4299, %v4441
    %v4443 = vsel %vm1494, %v4442, %v4438
    %v4444 = vlaneseq
    %v4445 = vshrl.u32 %v4444, 7
    %v4446 = vsub.s32 %v1496, %v4445
    %v4447 = vrot.slane %v4302, %v4446
    %v4448 = vsel %vm1501, %v4447, %v4443
    %v4449 = vlaneseq
    %v4450 = vshrl.u32 %v4449, 7
    %v4451 = vsub.s32 %v1503, %v4450
    %v4452 = vrot.slane %v4305, %v4451
    %v4453 = vsel %vm1508, %v4452, %v4448
    %v4454 = vlaneseq
    %v4455 = vshrl.u32 %v4454, 7
    %v4456 = vsub.s32 %v1510, %v4455
    %v4457 = vrot.slane %v4308, %v4456
    %v4458 = vsel %vm1515, %v4457, %v4453
    %v4459 = vlaneseq
    %v4460 = vshrl.u32 %v4459, 7
    %v4461 = vsub.s32 %v1517, %v4460
    %v4462 = vrot.slane %v4311, %v4461
    %v4463 = vsel %vm1522, %v4462, %v4458
    %v4464 = vlaneseq
    %v4465 = vshrl.u32 %v4464, 7
    %v4466 = vsub.s32 %v1524, %v4465
    %v4467 = vrot.slane %v4314, %v4466
    %v4468 = vsel %vm1529, %v4467, %v4463
    %v4469 = vlaneseq
    %v4470 = vshrl.u32 %v4469, 7
    %v4471 = vsub.s32 %v1531, %v4470
    %v4472 = vrot.slane %v4317, %v4471
    %v4473 = vsel %vm1536, %v4472, %v4468
    %v4474 = vlaneseq
    %v4475 = vshrl.u32 %v4474, 7
    %v4476 = vsub.s32 %v1538, %v4475
    %v4477 = vrot.slane %v4320, %v4476
    %v4478 = vsel %vm1543, %v4477, %v4473
    %v4479 = vlaneseq
    %v4480 = vshrl.u32 %v4479, 7
    %v4481 = vsub.s32 %v1545, %v4480
    %v4482 = vrot.slane %v4323, %v4481
    %v4483 = vsel %vm1550, %v4482, %v4478
    %v4484 = vlaneseq
    %v4485 = vshrl.u32 %v4484, 7
    %v4486 = vsub.s32 %v928, %v4485
    %v4487 = vrot.slane %v4326, %v4486
    %v4488 = vlaneseq
    %v4489 = vshrl.u32 %v4488, 7
    %v4490 = vsub.s32 %v1447, %v4489
    %v4491 = vrot.slane %v4329, %v4490
    %v4492 = vsel %vm1452, %v4491, %v4487
    %v4493 = vlaneseq
    %v4494 = vshrl.u32 %v4493, 7
    %v4495 = vsub.s32 %v1454, %v4494
    %v4496 = vrot.slane %v4332, %v4495
    %v4497 = vsel %vm1459, %v4496, %v4492
    %v4498 = vlaneseq
    %v4499 = vshrl.u32 %v4498, 7
    %v4500 = vsub.s32 %v1461, %v4499
    %v4501 = vrot.slane %v4335, %v4500
    %v4502 = vsel %vm1466, %v4501, %v4497
    %v4503 = vlaneseq
    %v4504 = vshrl.u32 %v4503, 7
    %v4505 = vsub.s32 %v1468, %v4504
    %v4506 = vrot.slane %v4338, %v4505
    %v4507 = vsel %vm1473, %v4506, %v4502
    %v4508 = vlaneseq
    %v4509 = vshrl.u32 %v4508, 7
    %v4510 = vsub.s32 %v1475, %v4509
    %v4511 = vrot.slane %v4341, %v4510
    %v4512 = vsel %vm1480, %v4511, %v4507
    %v4513 = vlaneseq
    %v4514 = vshrl.u32 %v4513, 7
    %v4515 = vsub.s32 %v1482, %v4514
    %v4516 = vrot.slane %v4344, %v4515
    %v4517 = vsel %vm1487, %v4516, %v4512
    %v4518 = vlaneseq
    %v4519 = vshrl.u32 %v4518, 7
    %v4520 = vsub.s32 %v1489, %v4519
    %v4521 = vrot.slane %v4347, %v4520
    %v4522 = vsel %vm1494, %v4521, %v4517
    %v4523 = vlaneseq
    %v4524 = vshrl.u32 %v4523, 7
    %v4525 = vsub.s32 %v1496, %v4524
    %v4526 = vrot.slane %v4350, %v4525
    %v4527 = vsel %vm1501, %v4526, %v4522
    %v4528 = vlaneseq
    %v4529 = vshrl.u32 %v4528, 7
    %v4530 = vsub.s32 %v1503, %v4529
    %v4531 = vrot.slane %v4353, %v4530
    %v4532 = vsel %vm1508, %v4531, %v4527
    %v4533 = vlaneseq
    %v4534 = vshrl.u32 %v4533, 7
    %v4535 = vsub.s32 %v1510, %v4534
    %v4536 = vrot.slane %v4356, %v4535
    %v4537 = vsel %vm1515, %v4536, %v4532
    %v4538 = vlaneseq
    %v4539 = vshrl.u32 %v4538, 7
    %v4540 = vsub.s32 %v1517, %v4539
    %v4541 = vrot.slane %v4359, %v4540
    %v4542 = vsel %vm1522, %v4541, %v4537
    %v4543 = vlaneseq
    %v4544 = vshrl.u32 %v4543, 7
    %v4545 = vsub.s32 %v1524, %v4544
    %v4546 = vrot.slane %v4362, %v4545
    %v4547 = vsel %vm1529, %v4546, %v4542
    %v4548 = vlaneseq
    %v4549 = vshrl.u32 %v4548, 7
    %v4550 = vsub.s32 %v1531, %v4549
    %v4551 = vrot.slane %v4365, %v4550
    %v4552 = vsel %vm1536, %v4551, %v4547
    %v4553 = vlaneseq
    %v4554 = vshrl.u32 %v4553, 7
    %v4555 = vsub.s32 %v1538, %v4554
    %v4556 = vrot.slane %v4368, %v4555
    %v4557 = vsel %vm1543, %v4556, %v4552
    %v4558 = vlaneseq
    %v4559 = vshrl.u32 %v4558, 7
    %v4560 = vsub.s32 %v1545, %v4559
    %v4561 = vrot.slane %v4371, %v4560
    %v4562 = vsel %vm1550, %v4561, %v4557
    %v4563 = vsel %vm1631, %v4562, %v4483
    %v4565 = vsel %vm4372, -10.0, %v4563
    %v4566 = vsel %vm929, %v4565, -1e+30
    %v4567 = vsel %vm4372, -1e+09, %v4566
    %v4568 = vsel %vm1636, %v4567, -inf
    %4569 = vmax.xlane.f32.xlu0 %v4568
    %v4570 = vpop.xlane.xlu0 %4569
    %vm4571 = vcmp.eq.f32.partialorder %v4567, %v4570
    %v4572 = vsel %vm4571, %v928, 128
    %v4573 = vsel %vm1636, %v4572, 2147483647
    %v4574 = vand.u32 %v4573, 65535
    %v4575 = vshra.s32 %v4573, 16
    %v4576 = vcvt.s32.f32 %v4574
    %v4577 = vcvt.s32.f32 %v4575
    %4578 = vmin.xlane.f32.xlu0 %v4577
    %v4579 = vpop.xlane.xlu0 %4578
    %vm4580 = vcmp.eq.f32.partialorder %v4577, %v4579
    %v4581 = vsel %vm4580, %v4576, inf
    %4582 = vmin.xlane.f32.xlu0 %v4581
    %v4583 = vpop.xlane.xlu0 %4582
    %v4584 = vcvt.f32.s32 %v4583
    %v4585 = vcvt.f32.s32 %v4579
    %v4586 = vshll.u32 %v4585, 16
    %v4587 = vadd.s32 %v4586, %v4584
    %vm4588 = vcmp.eq.s32.totalorder %v928, %v4587
    %v4589 = vsel %vm4588, 1, 0
    %v4590 = vcvt.s32.f32 %v4589
    %v4591 = vsel %vm1636, %v4566, -inf
    %4592 = vmax.xlane.f32.xlu0 %v4591
    %v4593 = vpop.xlane.xlu0 %4592
    %v4594 = vsub.f32 %v4566, %v4593
    %v4595 = vmul.f32 %v4594, 1.442695
    %v4596 = vpow.pop %v4595
    %v4597 = vsel %vm1636, %v4596, 0.0
    %4598 = vadd.xlane.f32.xlu0 %v4597
    %v4599 = vpop.xlane.xlu0 %4598
    %v4600 = vrcp.pop %v4599
    %v4601 = vmul.f32 %v4599, %v4600
    %v4602 = vsub.f32 2.0, %v4601
    %v4603 = vmul.f32 %v4600, %v4602
    %v4604 = vmul.f32 %v4596, %v4603
    %v4605 = vsel %vm929, %v4604, -1e+30
    %v4606 = vsel %vm1636, %v4605, -inf
    %4607 = vmax.xlane.f32.xlu0 %v4606
    %v4608 = vpop.xlane.xlu0 %4607
    %v4609 = vsub.f32 %v4605, %v4608
    %v4610 = vmul.f32 %v4609, 1.442695
    %v4611 = vpow.pop %v4610
    %v4612 = vsel %vm1636, %v4611, 0.0
    %4613 = vadd.xlane.f32.xlu0 %v4612
    %v4614 = vpop.xlane.xlu0 %4613
    %v4615 = vlog2.pop %v4614
    %v4616 = vmul.f32 %v4615, 0.6931472
    %v4617 = vsub.f32 %v4609, %v4616
    %v4620 = vunpack.c.l.s4 1966171168
    %v4621 = vunpack.c.0.s8 %v4620
    %v4622 = vlaneseq
    %v4623 = vshrl.u32 %v4622, 7
    %v4624 = vsub.s32 %v4621, %v4623
    %v4625 = vrot.slane %v4617, %v4624
    %v4626 = vcombine.high %v4625, %v4625
    %v4628 = vunpack.c.l.s4 1966171168
    %v4629 = vunpack.c.0.s8 %v4628
    %v4630 = vlaneseq
    %v4631 = vshrl.u32 %v4630, 7
    %v4632 = vsub.s32 %v4629, %v4631
    %v4633 = vrot.slane %v4625, %v4632
    %v4635 = vunpack.c.l.s4 1966171168
    %v4636 = vunpack.c.0.s8 %v4635
    %v4637 = vlaneseq
    %v4638 = vshrl.u32 %v4637, 7
    %v4639 = vsub.s32 %v4636, %v4638
    %v4640 = vrot.slane %v4626, %v4639
    %4643 = vst [vmem:[#allocation4 + $0x3] sm:$0x1] %v4633
    %4644 = vst [vmem:[#allocation4 + $0xb] sm:$0x1] %v4640
    %vm4645 = vcmp.eq.s32.totalorder %v928, 3
    %v4646 = vsel %vm4645, %v4587, %v3670
    %v4647 = vsub.f32 1.0, %v4590
    %v4648 = vmul.f32 %v3672, %v4647
    %v4649 = vlaneseq
    %v4650 = vshrl.u32 %v4649, 7
    %v4651 = vsub.s32 0, %v4650
    %v4652 = vrot.slane %v4590, %v4651
    %4654 = vbcast.lane.b32.xlu0 %v4652, 256
    %v4655 = vpop.permute.xlu0 %4654
    %s4657 = sor.u32 256, 8
    %4658 = vbcast.lane.b32.xlu0 %v4652, %s4657
    %v4659 = vpop.permute.xlu0 %4658
    %s4661 = sor.u32 256, 16
    %4662 = vbcast.lane.b32.xlu0 %v4652, %s4661
    %v4663 = vpop.permute.xlu0 %4662
    %s4665 = sor.u32 256, 24
    %4666 = vbcast.lane.b32.xlu0 %v4652, %s4665
    %v4667 = vpop.permute.xlu0 %4666
    %s4669 = sor.u32 256, 32
    %4670 = vbcast.lane.b32.xlu0 %v4652, %s4669
    %v4671 = vpop.permute.xlu0 %4670
    %s4673 = sor.u32 256, 40
    %4674 = vbcast.lane.b32.xlu0 %v4652, %s4673
    %v4675 = vpop.permute.xlu0 %4674
    %s4677 = sor.u32 256, 48
    %4678 = vbcast.lane.b32.xlu0 %v4652, %s4677
    %v4679 = vpop.permute.xlu0 %4678
    %s4681 = sor.u32 256, 56
    %4682 = vbcast.lane.b32.xlu0 %v4652, %s4681
    %v4683 = vpop.permute.xlu0 %4682
    %s4685 = sor.u32 256, 64
    %4686 = vbcast.lane.b32.xlu0 %v4652, %s4685
    %v4687 = vpop.permute.xlu0 %4686
    %s4689 = sor.u32 256, 72
    %4690 = vbcast.lane.b32.xlu0 %v4652, %s4689
    %v4691 = vpop.permute.xlu0 %4690
    %s4693 = sor.u32 256, 80
    %4694 = vbcast.lane.b32.xlu0 %v4652, %s4693
    %v4695 = vpop.permute.xlu0 %4694
    %s4697 = sor.u32 256, 88
    %4698 = vbcast.lane.b32.xlu0 %v4652, %s4697
    %v4699 = vpop.permute.xlu0 %4698
    %s4701 = sor.u32 256, 96
    %4702 = vbcast.lane.b32.xlu0 %v4652, %s4701
    %v4703 = vpop.permute.xlu0 %4702
    %s4705 = sor.u32 256, 104
    %4706 = vbcast.lane.b32.xlu0 %v4652, %s4705
    %v4707 = vpop.permute.xlu0 %4706
    %s4709 = sor.u32 256, 112
    %4710 = vbcast.lane.b32.xlu0 %v4652, %s4709
    %v4711 = vpop.permute.xlu0 %4710
    %s4713 = sor.u32 256, 120
    %4714 = vbcast.lane.b32.xlu0 %v4652, %s4713
    %v4715 = vpop.permute.xlu0 %4714
    %v4716 = vlaneseq
    %v4717 = vshrl.u32 %v4716, 7
    %v4718 = vsub.s32 1, %v4717
    %v4719 = vrot.slane %v4590, %v4718
    %4721 = vbcast.lane.b32.xlu0 %v4719, 256
    %v4722 = vpop.permute.xlu0 %4721
    %s4724 = sor.u32 256, 8
    %4725 = vbcast.lane.b32.xlu0 %v4719, %s4724
    %v4726 = vpop.permute.xlu0 %4725
    %s4728 = sor.u32 256, 16
    %4729 = vbcast.lane.b32.xlu0 %v4719, %s4728
    %v4730 = vpop.permute.xlu0 %4729
    %s4732 = sor.u32 256, 24
    %4733 = vbcast.lane.b32.xlu0 %v4719, %s4732
    %v4734 = vpop.permute.xlu0 %4733
    %s4736 = sor.u32 256, 32
    %4737 = vbcast.lane.b32.xlu0 %v4719, %s4736
    %v4738 = vpop.permute.xlu0 %4737
    %s4740 = sor.u32 256, 40
    %4741 = vbcast.lane.b32.xlu0 %v4719, %s4740
    %v4742 = vpop.permute.xlu0 %4741
    %s4744 = sor.u32 256, 48
    %4745 = vbcast.lane.b32.xlu0 %v4719, %s4744
    %v4746 = vpop.permute.xlu0 %4745
    %s4748 = sor.u32 256, 56
    %4749 = vbcast.lane.b32.xlu0 %v4719, %s4748
    %v4750 = vpop.permute.xlu0 %4749
    %s4752 = sor.u32 256, 64
    %4753 = vbcast.lane.b32.xlu0 %v4719, %s4752
    %v4754 = vpop.permute.xlu0 %4753
    %s4756 = sor.u32 256, 72
    %4757 = vbcast.lane.b32.xlu0 %v4719, %s4756
    %v4758 = vpop.permute.xlu0 %4757
    %s4760 = sor.u32 256, 80
    %4761 = vbcast.lane.b32.xlu0 %v4719, %s4760
    %v4762 = vpop.permute.xlu0 %4761
    %s4764 = sor.u32 256, 88
    %4765 = vbcast.lane.b32.xlu0 %v4719, %s4764
    %v4766 = vpop.permute.xlu0 %4765
    %s4768 = sor.u32 256, 96
    %4769 = vbcast.lane.b32.xlu0 %v4719, %s4768
    %v4770 = vpop.permute.xlu0 %4769
    %s4772 = sor.u32 256, 104
    %4773 = vbcast.lane.b32.xlu0 %v4719, %s4772
    %v4774 = vpop.permute.xlu0 %4773
    %s4776 = sor.u32 256, 112
    %4777 = vbcast.lane.b32.xlu0 %v4719, %s4776
    %v4778 = vpop.permute.xlu0 %4777
    %s4780 = sor.u32 256, 120
    %4781 = vbcast.lane.b32.xlu0 %v4719, %s4780
    %v4782 = vpop.permute.xlu0 %4781
    %v4783 = vld [vmem:[#allocation3] sm:$0xff]
    %v4784 = vld [vmem:[#allocation3 + $0x8] sm:$0xff]
    %v4785 = vld [vmem:[#allocation3 + $0x10] sm:$0xff]
    %v4786 = vld [vmem:[#allocation3 + $0x18] sm:$0xff]
    %v4787 = vld [vmem:[#allocation3 + $0x20] sm:$0xff]
    %v4788 = vld [vmem:[#allocation3 + $0x28] sm:$0xff]
    %v4789 = vld [vmem:[#allocation3 + $0x30] sm:$0xff]
    %v4790 = vld [vmem:[#allocation3 + $0x38] sm:$0xff]
    %v4791 = vld [vmem:[#allocation3 + $0x40] sm:$0xff]
    %v4792 = vld [vmem:[#allocation3 + $0x48] sm:$0xff]
    %v4793 = vld [vmem:[#allocation3 + $0x50] sm:$0xff]
    %v4794 = vld [vmem:[#allocation3 + $0x58] sm:$0xff]
    %v4795 = vld [vmem:[#allocation3 + $0x60] sm:$0xff]
    %v4796 = vld [vmem:[#allocation3 + $0x68] sm:$0xff]
    %v4797 = vld [vmem:[#allocation3 + $0x70] sm:$0xff]
    %v4798 = vld [vmem:[#allocation3 + $0x78] sm:$0xff]
    %v4799 = vld [vmem:[#allocation3 + $0x80] sm:$0xff]
    %v4800 = vld [vmem:[#allocation3 + $0x88] sm:$0xff]
    %v4801 = vld [vmem:[#allocation3 + $0x90] sm:$0xff]
    %v4802 = vld [vmem:[#allocation3 + $0x98] sm:$0xff]
    %v4803 = vld [vmem:[#allocation3 + $0xa0] sm:$0xff]
    %v4804 = vld [vmem:[#allocation3 + $0xa8] sm:$0xff]
    %v4805 = vld [vmem:[#allocation3 + $0xb0] sm:$0xff]
    %v4806 = vld [vmem:[#allocation3 + $0xb8] sm:$0xff]
    %v4807 = vld [vmem:[#allocation3 + $0xc0] sm:$0xff]
    %v4808 = vld [vmem:[#allocation3 + $0xc8] sm:$0xff]
    %v4809 = vld [vmem:[#allocation3 + $0xd0] sm:$0xff]
    %v4810 = vld [vmem:[#allocation3 + $0xd8] sm:$0xff]
    %v4811 = vld [vmem:[#allocation3 + $0xe0] sm:$0xff]
    %v4812 = vld [vmem:[#allocation3 + $0xe8] sm:$0xff]
    %v4813 = vld [vmem:[#allocation3 + $0xf0] sm:$0xff]
    %v4814 = vld [vmem:[#allocation3 + $0xf8] sm:$0xff]
    %v4815 = vmul.f32 %v4655, %v4783
    %v4816 = vmul.f32 %v4659, %v4784
    %v4817 = vmul.f32 %v4663, %v4785
    %v4818 = vmul.f32 %v4667, %v4786
    %v4819 = vmul.f32 %v4671, %v4787
    %v4820 = vmul.f32 %v4675, %v4788
    %v4821 = vmul.f32 %v4679, %v4789
    %v4822 = vmul.f32 %v4683, %v4790
    %v4823 = vmul.f32 %v4687, %v4791
    %v4824 = vmul.f32 %v4691, %v4792
    %v4825 = vmul.f32 %v4695, %v4793
    %v4826 = vmul.f32 %v4699, %v4794
    %v4827 = vmul.f32 %v4703, %v4795
    %v4828 = vmul.f32 %v4707, %v4796
    %v4829 = vmul.f32 %v4711, %v4797
    %v4830 = vmul.f32 %v4715, %v4798
    %v4831 = vmul.f32 %v4722, %v4799
    %v4832 = vmul.f32 %v4726, %v4800
    %v4833 = vmul.f32 %v4730, %v4801
    %v4834 = vmul.f32 %v4734, %v4802
    %v4835 = vmul.f32 %v4738, %v4803
    %v4836 = vmul.f32 %v4742, %v4804
    %v4837 = vmul.f32 %v4746, %v4805
    %v4838 = vmul.f32 %v4750, %v4806
    %v4839 = vmul.f32 %v4754, %v4807
    %v4840 = vmul.f32 %v4758, %v4808
    %v4841 = vmul.f32 %v4762, %v4809
    %v4842 = vmul.f32 %v4766, %v4810
    %v4843 = vmul.f32 %v4770, %v4811
    %v4844 = vmul.f32 %v4774, %v4812
    %v4845 = vmul.f32 %v4778, %v4813
    %v4846 = vmul.f32 %v4782, %v4814
    %v4847 = vadd.f32 %v4815, %v4816
    %v4848 = vadd.f32 %v4847, %v4817
    %v4849 = vadd.f32 %v4848, %v4818
    %v4850 = vadd.f32 %v4849, %v4819
    %v4851 = vadd.f32 %v4850, %v4820
    %v4852 = vadd.f32 %v4851, %v4821
    %v4853 = vadd.f32 %v4852, %v4822
    %v4854 = vadd.f32 %v4853, %v4823
    %v4855 = vadd.f32 %v4854, %v4824
    %v4856 = vadd.f32 %v4855, %v4825
    %v4857 = vadd.f32 %v4856, %v4826
    %v4858 = vadd.f32 %v4857, %v4827
    %v4859 = vadd.f32 %v4858, %v4828
    %v4860 = vadd.f32 %v4859, %v4829
    %v4861 = vadd.f32 %v4860, %v4830
    %v4862 = vrot.slane %v4861, 4
    %v4863 = vadd.f32 %v4861, %v4862
    %v4864 = vrot.slane %v4863, 2
    %v4865 = vadd.f32 %v4863, %v4864
    %v4866 = vrot.slane %v4865, 1
    %v4867 = vadd.f32 %v4865, %v4866
    %v4868 = vadd.f32 %v4831, %v4832
    %v4869 = vadd.f32 %v4868, %v4833
    %v4870 = vadd.f32 %v4869, %v4834
    %v4871 = vadd.f32 %v4870, %v4835
    %v4872 = vadd.f32 %v4871, %v4836
    %v4873 = vadd.f32 %v4872, %v4837
    %v4874 = vadd.f32 %v4873, %v4838
    %v4875 = vadd.f32 %v4874, %v4839
    %v4876 = vadd.f32 %v4875, %v4840
    %v4877 = vadd.f32 %v4876, %v4841
    %v4878 = vadd.f32 %v4877, %v4842
    %v4879 = vadd.f32 %v4878, %v4843
    %v4880 = vadd.f32 %v4879, %v4844
    %v4881 = vadd.f32 %v4880, %v4845
    %v4882 = vadd.f32 %v4881, %v4846
    %v4883 = vrot.slane %v4882, 4
    %v4884 = vadd.f32 %v4882, %v4883
    %v4885 = vrot.slane %v4884, 2
    %v4886 = vadd.f32 %v4884, %v4885
    %v4887 = vrot.slane %v4886, 1
    %v4888 = vadd.f32 %v4886, %v4887
    %4889 = vmatprep.subr.mxu0 0.0
    %4890 = vmatpush1.msra.mxu0 %v53
    %4891 = vmatprep.subr.mxu0 0.0
    %4892 = vmatpush1.msra.mxu0 %v54
    %4893 = vmatprep.subr.mxu0 0.0
    %4894 = vmatpush1.msra.mxu0 %v55
    %4895 = vmatprep.subr.mxu0 0.0
    %4896 = vmatpush1.msra.mxu0 %v56
    %4897 = vmatprep.subr.mxu0 0.0
    %4898 = vmatpush1.msra.mxu0 0.0
    %4899 = vmatprep.subr.mxu0 0.0
    %4900 = vmatpush1.msra.mxu0 0.0
    %4901 = vmatprep.subr.mxu0 0.0
    %4902 = vmatpush1.msra.mxu0 0.0
    %4903 = vmatprep.subr.mxu0 0.0
    %4904 = vmatpush1.msra.mxu0 0.0
    %4905 = vmatprep.subr.mxu0 0.0
    %4906 = vmatpush1.msra.mxu0 0.0
    %4907 = vmatprep.subr.mxu0 0.0
    %4908 = vmatpush1.msra.mxu0 0.0
    %4909 = vmatprep.subr.mxu0 0.0
    %4910 = vmatpush1.msra.mxu0 0.0
    %4911 = vmatprep.subr.mxu0 0.0
    %4912 = vmatpush1.msra.mxu0 0.0
    %4913 = vmatprep.subr.mxu0 0.0
    %4914 = vmatpush1.msra.mxu0 0.0
    %4915 = vmatprep.subr.mxu0 0.0
    %4916 = vmatpush1.msra.mxu0 0.0
    %4917 = vmatprep.subr.mxu0 0.0
    %4918 = vmatpush1.msra.mxu0 0.0
    %4919 = vmatprep.subr.mxu0 0.0
    %4920 = vmatpush1.msra.mxu0 0.0
    %4921 = vmatprep.subr.mxu0 0.0
    %4922 = vmatpush1.msra.mxu0 0.0
    %4923 = vmatprep.subr.mxu0 0.0
    %4924 = vmatpush1.msra.mxu0 0.0
    %4925 = vmatprep.subr.mxu0 0.0
    %4926 = vmatpush1.msra.mxu0 0.0
    %4927 = vmatprep.subr.mxu0 0.0
    %4928 = vmatpush1.msra.mxu0 0.0
    %4929 = vmatprep.subr.mxu0 0.0
    %4930 = vmatpush1.msra.mxu0 0.0
    %4931 = vmatprep.subr.mxu0 0.0
    %4932 = vmatpush1.msra.mxu0 0.0
    %4933 = vmatprep.subr.mxu0 0.0
    %4934 = vmatpush1.msra.mxu0 0.0
    %4935 = vmatprep.subr.mxu0 0.0
    %4936 = vmatpush1.msra.mxu0 0.0
    %4937 = vmatprep.subr.mxu0 0.0
    %4938 = vmatpush1.msra.mxu0 0.0
    %4939 = vmatprep.subr.mxu0 0.0
    %4940 = vmatpush1.msra.mxu0 0.0
    %4941 = vmatprep.subr.mxu0 0.0
    %4942 = vmatpush1.msra.mxu0 0.0
    %4943 = vmatprep.subr.mxu0 0.0
    %4944 = vmatpush1.msra.mxu0 0.0
    %4945 = vmatprep.subr.mxu0 0.0
    %4946 = vmatpush1.msra.mxu0 0.0
    %4947 = vmatprep.subr.mxu0 0.0
    %4948 = vmatpush1.msra.mxu0 0.0
    %4949 = vmatprep.subr.mxu0 0.0
    %4950 = vmatpush1.msra.mxu0 0.0
    %4951 = vmatprep.subr.mxu0 0.0
    %4952 = vmatpush1.msra.mxu0 0.0
    %4953 = vmatprep.mubr.f32.mxu0 0.0
    %4954 = vmatmul.mubr.f32.gmra.mrb[0].mxu0 %v4043
    %v4955 = vpop.f32.mrb[0].mxu0
    %v4956 = vadd.f32 0.0, %v4955
    %v4957 = vpop.f32.mrb[0].mxu0
    %4958 = vdwg.mxu0
    %v4960 = vrot.slane %v4956, 1
    %v4963 = vadd.f32 %v4867, %v4956
    %v4964 = vadd.f32 %v4888, %v4960
    %v4965 = vxor.u32 %v4963, 2147483648
    %v4966 = vxor.u32 %v4964, 2147483648
    %v4967 = vmul.f32 %v4965, 1.442695
    %v4968 = vpow.pop %v4967
    %v4969 = vmul.f32 %v4966, 1.442695
    %v4970 = vpow.pop %v4969
    %v4971 = vadd.f32 %v4968, 1.0
    %v4972 = vadd.f32 %v4970, 1.0
    %v4973 = vrcp.pop %v4971
    %v4974 = vmul.f32 1.0, %v4973
    %v4975 = vrcp.pop %v4972
    %v4976 = vmul.f32 1.0, %v4975
    %v4977 = vtanh.pop %v4963
    %v4978 = vtanh.pop %v4964
    %v4979 = vmul.f32 %v4974, %v4023
    %v4980 = vmul.f32 %v4976, %v4024
    %4983 = vrot.lane.b32.xlu0 %v4977, 64
    %v4984 = vpop.permute.xlu0 %4983
    %4985 = vrot.lane.b32.xlu0 %v4978, 64
    %v4986 = vpop.permute.xlu0 %4985
    %v4989 = vmul.f32 %v4974, %v4984
    %v4990 = vmul.f32 %v4976, %v4986
    %4993 = vrot.lane.b32.xlu0 %v4989, 32
    %v4994 = vpop.permute.xlu0 %4993
    %4995 = vrot.lane.b32.xlu0 %v4990, 32
    %v4996 = vpop.permute.xlu0 %4995
    %v4999 = vadd.f32 %v4979, %v4994
    %v5000 = vadd.f32 %v4980, %v4996
    %v5001 = vtanh.pop %v4999
    %v5002 = vtanh.pop %v5000
    %5005 = vrot.lane.b32.xlu0 %v5001, 64
    %v5006 = vpop.permute.xlu0 %5005
    %5007 = vrot.lane.b32.xlu0 %v5002, 64
    %v5008 = vpop.permute.xlu0 %5007
    %v5011 = vmul.f32 %v4974, %v5006
    %v5012 = vmul.f32 %v4976, %v5008
    %v5015 = vrot.slane %v5012, 7
    %v5016 = vsel %vm1631, %v5015, %v5011
    %5017 = vrot.lane.b32.xlu0 %v5016, 32
    %v5018 = vpop.permute.xlu0 %5017
    %v5019 = vsel %vm107, %v5018, 0
    %5021 = vmatprep.subr.mxu0 0.0
    %5022 = vmatpush1.msra.mxu0 %v58
    %5023 = vmatprep.subr.mxu0 0.0
    %5024 = vmatpush1.msra.mxu0 %v59
    %5025 = vmatprep.subr.mxu0 0.0
    %5026 = vmatpush1.msra.mxu0 %v60
    %5027 = vmatprep.subr.mxu0 0.0
    %5028 = vmatpush1.msra.mxu0 %v61
    %5029 = vmatprep.subr.mxu0 0.0
    %5030 = vmatpush1.msra.mxu0 0.0
    %5031 = vmatprep.subr.mxu0 0.0
    %5032 = vmatpush1.msra.mxu0 0.0
    %5033 = vmatprep.subr.mxu0 0.0
    %5034 = vmatpush1.msra.mxu0 0.0
    %5035 = vmatprep.subr.mxu0 0.0
    %5036 = vmatpush1.msra.mxu0 0.0
    %5037 = vmatprep.subr.mxu0 0.0
    %5038 = vmatpush1.msra.mxu0 0.0
    %5039 = vmatprep.subr.mxu0 0.0
    %5040 = vmatpush1.msra.mxu0 0.0
    %5041 = vmatprep.subr.mxu0 0.0
    %5042 = vmatpush1.msra.mxu0 0.0
    %5043 = vmatprep.subr.mxu0 0.0
    %5044 = vmatpush1.msra.mxu0 0.0
    %5045 = vmatprep.subr.mxu0 0.0
    %5046 = vmatpush1.msra.mxu0 0.0
    %5047 = vmatprep.subr.mxu0 0.0
    %5048 = vmatpush1.msra.mxu0 0.0
    %5049 = vmatprep.subr.mxu0 0.0
    %5050 = vmatpush1.msra.mxu0 0.0
    %5051 = vmatprep.subr.mxu0 0.0
    %5052 = vmatpush1.msra.mxu0 0.0
    %5053 = vmatprep.subr.mxu0 0.0
    %5054 = vmatpush1.msra.mxu0 0.0
    %5055 = vmatprep.subr.mxu0 0.0
    %5056 = vmatpush1.msra.mxu0 0.0
    %5057 = vmatprep.subr.mxu0 0.0
    %5058 = vmatpush1.msra.mxu0 0.0
    %5059 = vmatprep.subr.mxu0 0.0
    %5060 = vmatpush1.msra.mxu0 0.0
    %5061 = vmatprep.subr.mxu0 0.0
    %5062 = vmatpush1.msra.mxu0 0.0
    %5063 = vmatprep.subr.mxu0 0.0
    %5064 = vmatpush1.msra.mxu0 0.0
    %5065 = vmatprep.subr.mxu0 0.0
    %5066 = vmatpush1.msra.mxu0 0.0
    %5067 = vmatprep.subr.mxu0 0.0
    %5068 = vmatpush1.msra.mxu0 0.0
    %5069 = vmatprep.subr.mxu0 0.0
    %5070 = vmatpush1.msra.mxu0 0.0
    %5071 = vmatprep.subr.mxu0 0.0
    %5072 = vmatpush1.msra.mxu0 0.0
    %5073 = vmatprep.subr.mxu0 0.0
    %5074 = vmatpush1.msra.mxu0 0.0
    %5075 = vmatprep.subr.mxu0 0.0
    %5076 = vmatpush1.msra.mxu0 0.0
    %5077 = vmatprep.subr.mxu0 0.0
    %5078 = vmatpush1.msra.mxu0 0.0
    %5079 = vmatprep.subr.mxu0 0.0
    %5080 = vmatpush1.msra.mxu0 0.0
    %5081 = vmatprep.subr.mxu0 0.0
    %5082 = vmatpush1.msra.mxu0 0.0
    %5083 = vmatprep.subr.mxu0 0.0
    %5084 = vmatpush1.msra.mxu0 0.0
    %5085 = vmatprep.mubr.f32.mxu0 0.0
    %5086 = vmatmul.mubr.f32.gmra.mrb[0].mxu0 %v5019
    %v5087 = vpop.f32.mrb[0].mxu0
    %v5088 = vadd.f32 %v1038, %v5087
    %v5089 = vpop.f32.mrb[0].mxu0
    %5090 = vdwg.mxu0
    %v5091 = vld [vmem:[#allocation2] sm:$0xff]
    %v5092 = vld [vmem:[#allocation2 + $0x8] sm:$0xff]
    %v5093 = vld [vmem:[#allocation2 + $0x10] sm:$0xff]
    %v5094 = vld [vmem:[#allocation2 + $0x18] sm:$0xff]
    %v5095 = vld [vmem:[#allocation2 + $0x20] sm:$0xff]
    %v5096 = vld [vmem:[#allocation2 + $0x28] sm:$0xff]
    %v5097 = vld [vmem:[#allocation2 + $0x30] sm:$0xff]
    %v5098 = vld [vmem:[#allocation2 + $0x38] sm:$0xff]
    %v5099 = vld [vmem:[#allocation2 + $0x40] sm:$0xff]
    %v5100 = vld [vmem:[#allocation2 + $0x48] sm:$0xff]
    %v5101 = vld [vmem:[#allocation2 + $0x50] sm:$0xff]
    %v5102 = vld [vmem:[#allocation2 + $0x58] sm:$0xff]
    %v5103 = vld [vmem:[#allocation2 + $0x60] sm:$0xff]
    %v5104 = vld [vmem:[#allocation2 + $0x68] sm:$0xff]
    %v5105 = vld [vmem:[#allocation2 + $0x70] sm:$0xff]
    %v5106 = vld [vmem:[#allocation2 + $0x78] sm:$0xff]
    %v5107 = vld [vmem:[#allocation2 + $0x80] sm:$0xff]
    %v5108 = vld [vmem:[#allocation2 + $0x88] sm:$0xff]
    %v5109 = vld [vmem:[#allocation2 + $0x90] sm:$0xff]
    %v5110 = vld [vmem:[#allocation2 + $0x98] sm:$0xff]
    %v5111 = vld [vmem:[#allocation2 + $0xa0] sm:$0xff]
    %v5112 = vld [vmem:[#allocation2 + $0xa8] sm:$0xff]
    %v5113 = vld [vmem:[#allocation2 + $0xb0] sm:$0xff]
    %v5114 = vld [vmem:[#allocation2 + $0xb8] sm:$0xff]
    %v5115 = vld [vmem:[#allocation2 + $0xc0] sm:$0xff]
    %v5116 = vld [vmem:[#allocation2 + $0xc8] sm:$0xff]
    %v5117 = vld [vmem:[#allocation2 + $0xd0] sm:$0xff]
    %v5118 = vld [vmem:[#allocation2 + $0xd8] sm:$0xff]
    %v5119 = vld [vmem:[#allocation2 + $0xe0] sm:$0xff]
    %v5120 = vld [vmem:[#allocation2 + $0xe8] sm:$0xff]
    %v5121 = vld [vmem:[#allocation2 + $0xf0] sm:$0xff]
    %v5122 = vld [vmem:[#allocation2 + $0xf8] sm:$0xff]
    %v5125 = vunpack.c.l.s4 1966171168
    %v5126 = vunpack.c.0.s8 %v5125
    %v5127 = vlaneseq
    %v5128 = vshrl.u32 %v5127, 7
    %v5129 = vsub.s32 %v5126, %v5128
    %v5130 = vrot.slane %v5088, %v5129
    %v5131 = vcombine.high %v5130, %v5130
    %v5133 = vunpack.c.l.s4 1966171168
    %v5134 = vunpack.c.0.s8 %v5133
    %v5135 = vlaneseq
    %v5136 = vshrl.u32 %v5135, 7
    %v5137 = vsub.s32 %v5134, %v5136
    %v5138 = vrot.slane %v5130, %v5137
    %v5140 = vunpack.c.l.s4 1966171168
    %v5141 = vunpack.c.0.s8 %v5140
    %v5142 = vlaneseq
    %v5143 = vshrl.u32 %v5142, 7
    %v5144 = vsub.s32 %v5141, %v5143
    %v5145 = vrot.slane %v5131, %v5144
    %v5146 = vlaneseq
    %v5147 = vshrl.u32 %v5146, 7
    %v5148 = vsub.s32 0, %v5147
    %v5149 = vrot.slane %v5138, %v5148
    %v5150 = vlaneseq
    %v5151 = vshrl.u32 %v5150, 7
    %v5152 = vsub.s32 0, %v5151
    %v5153 = vrot.slane %v5145, %v5152
    %v5156 = vadd.f32 %v5149, %v5091
    %v5157 = vadd.f32 %v5149, %v5092
    %v5158 = vadd.f32 %v5149, %v5093
    %v5159 = vadd.f32 %v5149, %v5094
    %v5160 = vadd.f32 %v5149, %v5095
    %v5161 = vadd.f32 %v5149, %v5096
    %v5162 = vadd.f32 %v5149, %v5097
    %v5163 = vadd.f32 %v5149, %v5098
    %v5164 = vadd.f32 %v5149, %v5099
    %v5165 = vadd.f32 %v5149, %v5100
    %v5166 = vadd.f32 %v5149, %v5101
    %v5167 = vadd.f32 %v5149, %v5102
    %v5168 = vadd.f32 %v5149, %v5103
    %v5169 = vadd.f32 %v5149, %v5104
    %v5170 = vadd.f32 %v5149, %v5105
    %v5171 = vadd.f32 %v5149, %v5106
    %v5172 = vadd.f32 %v5153, %v5107
    %v5173 = vadd.f32 %v5153, %v5108
    %v5174 = vadd.f32 %v5153, %v5109
    %v5175 = vadd.f32 %v5153, %v5110
    %v5176 = vadd.f32 %v5153, %v5111
    %v5177 = vadd.f32 %v5153, %v5112
    %v5178 = vadd.f32 %v5153, %v5113
    %v5179 = vadd.f32 %v5153, %v5114
    %v5180 = vadd.f32 %v5153, %v5115
    %v5181 = vadd.f32 %v5153, %v5116
    %v5182 = vadd.f32 %v5153, %v5117
    %v5183 = vadd.f32 %v5153, %v5118
    %v5184 = vadd.f32 %v5153, %v5119
    %v5185 = vadd.f32 %v5153, %v5120
    %v5186 = vadd.f32 %v5153, %v5121
    %v5187 = vadd.f32 %v5153, %v5122
    %v5188 = vtanh.pop %v5156
    %v5189 = vtanh.pop %v5157
    %v5190 = vtanh.pop %v5158
    %v5191 = vtanh.pop %v5159
    %v5192 = vtanh.pop %v5160
    %v5193 = vtanh.pop %v5161
    %v5194 = vtanh.pop %v5162
    %v5195 = vtanh.pop %v5163
    %v5196 = vtanh.pop %v5164
    %v5197 = vtanh.pop %v5165
    %v5198 = vtanh.pop %v5166
    %v5199 = vtanh.pop %v5167
    %v5200 = vtanh.pop %v5168
    %v5201 = vtanh.pop %v5169
    %v5202 = vtanh.pop %v5170
    %v5203 = vtanh.pop %v5171
    %v5204 = vtanh.pop %v5172
    %v5205 = vtanh.pop %v5173
    %v5206 = vtanh.pop %v5174
    %v5207 = vtanh.pop %v5175
    %v5208 = vtanh.pop %v5176
    %v5209 = vtanh.pop %v5177
    %v5210 = vtanh.pop %v5178
    %v5211 = vtanh.pop %v5179
    %v5212 = vtanh.pop %v5180
    %v5213 = vtanh.pop %v5181
    %v5214 = vtanh.pop %v5182
    %v5215 = vtanh.pop %v5183
    %v5216 = vtanh.pop %v5184
    %v5217 = vtanh.pop %v5185
    %v5218 = vtanh.pop %v5186
    %v5219 = vtanh.pop %v5187
    %v5220 = vmul.f32 %v5188, %v1248
    %v5221 = vmul.f32 %v5189, %v1248
    %v5222 = vmul.f32 %v5190, %v1248
    %v5223 = vmul.f32 %v5191, %v1248
    %v5224 = vmul.f32 %v5192, %v1248
    %v5225 = vmul.f32 %v5193, %v1248
    %v5226 = vmul.f32 %v5194, %v1248
    %v5227 = vmul.f32 %v5195, %v1248
    %v5228 = vmul.f32 %v5196, %v1248
    %v5229 = vmul.f32 %v5197, %v1248
    %v5230 = vmul.f32 %v5198, %v1248
    %v5231 = vmul.f32 %v5199, %v1248
    %v5232 = vmul.f32 %v5200, %v1248
    %v5233 = vmul.f32 %v5201, %v1248
    %v5234 = vmul.f32 %v5202, %v1248
    %v5235 = vmul.f32 %v5203, %v1248
    %v5236 = vmul.f32 %v5204, %v1248
    %v5237 = vmul.f32 %v5205, %v1248
    %v5238 = vmul.f32 %v5206, %v1248
    %v5239 = vmul.f32 %v5207, %v1248
    %v5240 = vmul.f32 %v5208, %v1248
    %v5241 = vmul.f32 %v5209, %v1248
    %v5242 = vmul.f32 %v5210, %v1248
    %v5243 = vmul.f32 %v5211, %v1248
    %v5244 = vmul.f32 %v5212, %v1248
    %v5245 = vmul.f32 %v5213, %v1248
    %v5246 = vmul.f32 %v5214, %v1248
    %v5247 = vmul.f32 %v5215, %v1248
    %v5248 = vmul.f32 %v5216, %v1248
    %v5249 = vmul.f32 %v5217, %v1248
    %v5250 = vmul.f32 %v5218, %v1248
    %v5251 = vmul.f32 %v5219, %v1248
    %v5252 = vsel %vm107, %v5220, 0.0
    %5253 = vadd.xlane.f32.xlu0 %v5252
    %v5254 = vpop.xlane.xlu0 %5253
    %v5255 = vsel %vm107, %v5221, 0.0
    %5256 = vadd.xlane.f32.xlu0 %v5255
    %v5257 = vpop.xlane.xlu0 %5256
    %v5258 = vsel %vm107, %v5222, 0.0
    %5259 = vadd.xlane.f32.xlu0 %v5258
    %v5260 = vpop.xlane.xlu0 %5259
    %v5261 = vsel %vm107, %v5223, 0.0
    %5262 = vadd.xlane.f32.xlu0 %v5261
    %v5263 = vpop.xlane.xlu0 %5262
    %v5264 = vsel %vm107, %v5224, 0.0
    %5265 = vadd.xlane.f32.xlu0 %v5264
    %v5266 = vpop.xlane.xlu0 %5265
    %v5267 = vsel %vm107, %v5225, 0.0
    %5268 = vadd.xlane.f32.xlu0 %v5267
    %v5269 = vpop.xlane.xlu0 %5268
    %v5270 = vsel %vm107, %v5226, 0.0
    %5271 = vadd.xlane.f32.xlu0 %v5270
    %v5272 = vpop.xlane.xlu0 %5271
    %v5273 = vsel %vm107, %v5227, 0.0
    %5274 = vadd.xlane.f32.xlu0 %v5273
    %v5275 = vpop.xlane.xlu0 %5274
    %v5276 = vsel %vm107, %v5228, 0.0
    %5277 = vadd.xlane.f32.xlu0 %v5276
    %v5278 = vpop.xlane.xlu0 %5277
    %v5279 = vsel %vm107, %v5229, 0.0
    %5280 = vadd.xlane.f32.xlu0 %v5279
    %v5281 = vpop.xlane.xlu0 %5280
    %v5282 = vsel %vm107, %v5230, 0.0
    %5283 = vadd.xlane.f32.xlu0 %v5282
    %v5284 = vpop.xlane.xlu0 %5283
    %v5285 = vsel %vm107, %v5231, 0.0
    %5286 = vadd.xlane.f32.xlu0 %v5285
    %v5287 = vpop.xlane.xlu0 %5286
    %v5288 = vsel %vm107, %v5232, 0.0
    %5289 = vadd.xlane.f32.xlu0 %v5288
    %v5290 = vpop.xlane.xlu0 %5289
    %v5291 = vsel %vm107, %v5233, 0.0
    %5292 = vadd.xlane.f32.xlu0 %v5291
    %v5293 = vpop.xlane.xlu0 %5292
    %v5294 = vsel %vm107, %v5234, 0.0
    %5295 = vadd.xlane.f32.xlu0 %v5294
    %v5296 = vpop.xlane.xlu0 %5295
    %v5297 = vsel %vm107, %v5235, 0.0
    %5298 = vadd.xlane.f32.xlu0 %v5297
    %v5299 = vpop.xlane.xlu0 %5298
    %v5300 = vsel %vm107, %v5236, 0.0
    %5301 = vadd.xlane.f32.xlu0 %v5300
    %v5302 = vpop.xlane.xlu0 %5301
    %v5303 = vsel %vm107, %v5237, 0.0
    %5304 = vadd.xlane.f32.xlu0 %v5303
    %v5305 = vpop.xlane.xlu0 %5304
    %v5306 = vsel %vm107, %v5238, 0.0
    %5307 = vadd.xlane.f32.xlu0 %v5306
    %v5308 = vpop.xlane.xlu0 %5307
    %v5309 = vsel %vm107, %v5239, 0.0
    %5310 = vadd.xlane.f32.xlu0 %v5309
    %v5311 = vpop.xlane.xlu0 %5310
    %v5312 = vsel %vm107, %v5240, 0.0
    %5313 = vadd.xlane.f32.xlu0 %v5312
    %v5314 = vpop.xlane.xlu0 %5313
    %v5315 = vsel %vm107, %v5241, 0.0
    %5316 = vadd.xlane.f32.xlu0 %v5315
    %v5317 = vpop.xlane.xlu0 %5316
    %v5318 = vsel %vm107, %v5242, 0.0
    %5319 = vadd.xlane.f32.xlu0 %v5318
    %v5320 = vpop.xlane.xlu0 %5319
    %v5321 = vsel %vm107, %v5243, 0.0
    %5322 = vadd.xlane.f32.xlu0 %v5321
    %v5323 = vpop.xlane.xlu0 %5322
    %v5324 = vsel %vm107, %v5244, 0.0
    %5325 = vadd.xlane.f32.xlu0 %v5324
    %v5326 = vpop.xlane.xlu0 %5325
    %v5327 = vsel %vm107, %v5245, 0.0
    %5328 = vadd.xlane.f32.xlu0 %v5327
    %v5329 = vpop.xlane.xlu0 %5328
    %v5330 = vsel %vm107, %v5246, 0.0
    %5331 = vadd.xlane.f32.xlu0 %v5330
    %v5332 = vpop.xlane.xlu0 %5331
    %v5333 = vsel %vm107, %v5247, 0.0
    %5334 = vadd.xlane.f32.xlu0 %v5333
    %v5335 = vpop.xlane.xlu0 %5334
    %v5336 = vsel %vm107, %v5248, 0.0
    %5337 = vadd.xlane.f32.xlu0 %v5336
    %v5338 = vpop.xlane.xlu0 %5337
    %v5339 = vsel %vm107, %v5249, 0.0
    %5340 = vadd.xlane.f32.xlu0 %v5339
    %v5341 = vpop.xlane.xlu0 %5340
    %v5342 = vsel %vm107, %v5250, 0.0
    %5343 = vadd.xlane.f32.xlu0 %v5342
    %v5344 = vpop.xlane.xlu0 %5343
    %v5345 = vsel %vm107, %v5251, 0.0
    %5346 = vadd.xlane.f32.xlu0 %v5345
    %v5347 = vpop.xlane.xlu0 %5346
    %vm5348 = vcmp.eq.f32.partialorder %v4648, 0.0
    %v5381 = vlaneseq
    %v5382 = vshrl.u32 %v5381, 7
    %v5383 = vsub.s32 %v928, %v5382
    %v5384 = vrot.slane %v5254, %v5383
    %v5385 = vlaneseq
    %v5386 = vshrl.u32 %v5385, 7
    %v5387 = vsub.s32 %v1447, %v5386
    %v5388 = vrot.slane %v5257, %v5387
    %v5389 = vsel %vm1452, %v5388, %v5384
    %v5390 = vlaneseq
    %v5391 = vshrl.u32 %v5390, 7
    %v5392 = vsub.s32 %v1454, %v5391
    %v5393 = vrot.slane %v5260, %v5392
    %v5394 = vsel %vm1459, %v5393, %v5389
    %v5395 = vlaneseq
    %v5396 = vshrl.u32 %v5395, 7
    %v5397 = vsub.s32 %v1461, %v5396
    %v5398 = vrot.slane %v5263, %v5397
    %v5399 = vsel %vm1466, %v5398, %v5394
    %v5400 = vlaneseq
    %v5401 = vshrl.u32 %v5400, 7
    %v5402 = vsub.s32 %v1468, %v5401
    %v5403 = vrot.slane %v5266, %v5402
    %v5404 = vsel %vm1473, %v5403, %v5399
    %v5405 = vlaneseq
    %v5406 = vshrl.u32 %v5405, 7
    %v5407 = vsub.s32 %v1475, %v5406
    %v5408 = vrot.slane %v5269, %v5407
    %v5409 = vsel %vm1480, %v5408, %v5404
    %v5410 = vlaneseq
    %v5411 = vshrl.u32 %v5410, 7
    %v5412 = vsub.s32 %v1482, %v5411
    %v5413 = vrot.slane %v5272, %v5412
    %v5414 = vsel %vm1487, %v5413, %v5409
    %v5415 = vlaneseq
    %v5416 = vshrl.u32 %v5415, 7
    %v5417 = vsub.s32 %v1489, %v5416
    %v5418 = vrot.slane %v5275, %v5417
    %v5419 = vsel %vm1494, %v5418, %v5414
    %v5420 = vlaneseq
    %v5421 = vshrl.u32 %v5420, 7
    %v5422 = vsub.s32 %v1496, %v5421
    %v5423 = vrot.slane %v5278, %v5422
    %v5424 = vsel %vm1501, %v5423, %v5419
    %v5425 = vlaneseq
    %v5426 = vshrl.u32 %v5425, 7
    %v5427 = vsub.s32 %v1503, %v5426
    %v5428 = vrot.slane %v5281, %v5427
    %v5429 = vsel %vm1508, %v5428, %v5424
    %v5430 = vlaneseq
    %v5431 = vshrl.u32 %v5430, 7
    %v5432 = vsub.s32 %v1510, %v5431
    %v5433 = vrot.slane %v5284, %v5432
    %v5434 = vsel %vm1515, %v5433, %v5429
    %v5435 = vlaneseq
    %v5436 = vshrl.u32 %v5435, 7
    %v5437 = vsub.s32 %v1517, %v5436
    %v5438 = vrot.slane %v5287, %v5437
    %v5439 = vsel %vm1522, %v5438, %v5434
    %v5440 = vlaneseq
    %v5441 = vshrl.u32 %v5440, 7
    %v5442 = vsub.s32 %v1524, %v5441
    %v5443 = vrot.slane %v5290, %v5442
    %v5444 = vsel %vm1529, %v5443, %v5439
    %v5445 = vlaneseq
    %v5446 = vshrl.u32 %v5445, 7
    %v5447 = vsub.s32 %v1531, %v5446
    %v5448 = vrot.slane %v5293, %v5447
    %v5449 = vsel %vm1536, %v5448, %v5444
    %v5450 = vlaneseq
    %v5451 = vshrl.u32 %v5450, 7
    %v5452 = vsub.s32 %v1538, %v5451
    %v5453 = vrot.slane %v5296, %v5452
    %v5454 = vsel %vm1543, %v5453, %v5449
    %v5455 = vlaneseq
    %v5456 = vshrl.u32 %v5455, 7
    %v5457 = vsub.s32 %v1545, %v5456
    %v5458 = vrot.slane %v5299, %v5457
    %v5459 = vsel %vm1550, %v5458, %v5454
    %v5460 = vlaneseq
    %v5461 = vshrl.u32 %v5460, 7
    %v5462 = vsub.s32 %v928, %v5461
    %v5463 = vrot.slane %v5302, %v5462
    %v5464 = vlaneseq
    %v5465 = vshrl.u32 %v5464, 7
    %v5466 = vsub.s32 %v1447, %v5465
    %v5467 = vrot.slane %v5305, %v5466
    %v5468 = vsel %vm1452, %v5467, %v5463
    %v5469 = vlaneseq
    %v5470 = vshrl.u32 %v5469, 7
    %v5471 = vsub.s32 %v1454, %v5470
    %v5472 = vrot.slane %v5308, %v5471
    %v5473 = vsel %vm1459, %v5472, %v5468
    %v5474 = vlaneseq
    %v5475 = vshrl.u32 %v5474, 7
    %v5476 = vsub.s32 %v1461, %v5475
    %v5477 = vrot.slane %v5311, %v5476
    %v5478 = vsel %vm1466, %v5477, %v5473
    %v5479 = vlaneseq
    %v5480 = vshrl.u32 %v5479, 7
    %v5481 = vsub.s32 %v1468, %v5480
    %v5482 = vrot.slane %v5314, %v5481
    %v5483 = vsel %vm1473, %v5482, %v5478
    %v5484 = vlaneseq
    %v5485 = vshrl.u32 %v5484, 7
    %v5486 = vsub.s32 %v1475, %v5485
    %v5487 = vrot.slane %v5317, %v5486
    %v5488 = vsel %vm1480, %v5487, %v5483
    %v5489 = vlaneseq
    %v5490 = vshrl.u32 %v5489, 7
    %v5491 = vsub.s32 %v1482, %v5490
    %v5492 = vrot.slane %v5320, %v5491
    %v5493 = vsel %vm1487, %v5492, %v5488
    %v5494 = vlaneseq
    %v5495 = vshrl.u32 %v5494, 7
    %v5496 = vsub.s32 %v1489, %v5495
    %v5497 = vrot.slane %v5323, %v5496
    %v5498 = vsel %vm1494, %v5497, %v5493
    %v5499 = vlaneseq
    %v5500 = vshrl.u32 %v5499, 7
    %v5501 = vsub.s32 %v1496, %v5500
    %v5502 = vrot.slane %v5326, %v5501
    %v5503 = vsel %vm1501, %v5502, %v5498
    %v5504 = vlaneseq
    %v5505 = vshrl.u32 %v5504, 7
    %v5506 = vsub.s32 %v1503, %v5505
    %v5507 = vrot.slane %v5329, %v5506
    %v5508 = vsel %vm1508, %v5507, %v5503
    %v5509 = vlaneseq
    %v5510 = vshrl.u32 %v5509, 7
    %v5511 = vsub.s32 %v1510, %v5510
    %v5512 = vrot.slane %v5332, %v5511
    %v5513 = vsel %vm1515, %v5512, %v5508
    %v5514 = vlaneseq
    %v5515 = vshrl.u32 %v5514, 7
    %v5516 = vsub.s32 %v1517, %v5515
    %v5517 = vrot.slane %v5335, %v5516
    %v5518 = vsel %vm1522, %v5517, %v5513
    %v5519 = vlaneseq
    %v5520 = vshrl.u32 %v5519, 7
    %v5521 = vsub.s32 %v1524, %v5520
    %v5522 = vrot.slane %v5338, %v5521
    %v5523 = vsel %vm1529, %v5522, %v5518
    %v5524 = vlaneseq
    %v5525 = vshrl.u32 %v5524, 7
    %v5526 = vsub.s32 %v1531, %v5525
    %v5527 = vrot.slane %v5341, %v5526
    %v5528 = vsel %vm1536, %v5527, %v5523
    %v5529 = vlaneseq
    %v5530 = vshrl.u32 %v5529, 7
    %v5531 = vsub.s32 %v1538, %v5530
    %v5532 = vrot.slane %v5344, %v5531
    %v5533 = vsel %vm1543, %v5532, %v5528
    %v5534 = vlaneseq
    %v5535 = vshrl.u32 %v5534, 7
    %v5536 = vsub.s32 %v1545, %v5535
    %v5537 = vrot.slane %v5347, %v5536
    %v5538 = vsel %vm1550, %v5537, %v5533
    %v5539 = vsel %vm1631, %v5538, %v5459
    %v5541 = vsel %vm5348, -10.0, %v5539
    %v5542 = vsel %vm929, %v5541, -1e+30
    %v5543 = vsel %vm5348, -1e+09, %v5542
    %v5544 = vsel %vm1636, %v5543, -inf
    %5545 = vmax.xlane.f32.xlu0 %v5544
    %v5546 = vpop.xlane.xlu0 %5545
    %vm5547 = vcmp.eq.f32.partialorder %v5543, %v5546
    %v5548 = vsel %vm5547, %v928, 128
    %v5549 = vsel %vm1636, %v5548, 2147483647
    %v5550 = vand.u32 %v5549, 65535
    %v5551 = vshra.s32 %v5549, 16
    %v5552 = vcvt.s32.f32 %v5550
    %v5553 = vcvt.s32.f32 %v5551
    %5554 = vmin.xlane.f32.xlu0 %v5553
    %v5555 = vpop.xlane.xlu0 %5554
    %vm5556 = vcmp.eq.f32.partialorder %v5553, %v5555
    %v5557 = vsel %vm5556, %v5552, inf
    %5558 = vmin.xlane.f32.xlu0 %v5557
    %v5559 = vpop.xlane.xlu0 %5558
    %v5560 = vcvt.f32.s32 %v5559
    %v5561 = vcvt.f32.s32 %v5555
    %v5562 = vshll.u32 %v5561, 16
    %v5563 = vadd.s32 %v5562, %v5560
    %vm5564 = vcmp.eq.s32.totalorder %v928, %v5563
    %v5565 = vsel %vm5564, 1, 0
    %v5566 = vcvt.s32.f32 %v5565
    %v5567 = vsel %vm1636, %v5542, -inf
    %5568 = vmax.xlane.f32.xlu0 %v5567
    %v5569 = vpop.xlane.xlu0 %5568
    %v5570 = vsub.f32 %v5542, %v5569
    %v5571 = vmul.f32 %v5570, 1.442695
    %v5572 = vpow.pop %v5571
    %v5573 = vsel %vm1636, %v5572, 0.0
    %5574 = vadd.xlane.f32.xlu0 %v5573
    %v5575 = vpop.xlane.xlu0 %5574
    %v5576 = vrcp.pop %v5575
    %v5577 = vmul.f32 %v5575, %v5576
    %v5578 = vsub.f32 2.0, %v5577
    %v5579 = vmul.f32 %v5576, %v5578
    %v5580 = vmul.f32 %v5572, %v5579
    %v5581 = vsel %vm929, %v5580, -1e+30
    %v5582 = vsel %vm1636, %v5581, -inf
    %5583 = vmax.xlane.f32.xlu0 %v5582
    %v5584 = vpop.xlane.xlu0 %5583
    %v5585 = vsub.f32 %v5581, %v5584
    %v5586 = vmul.f32 %v5585, 1.442695
    %v5587 = vpow.pop %v5586
    %v5588 = vsel %vm1636, %v5587, 0.0
    %5589 = vadd.xlane.f32.xlu0 %v5588
    %v5590 = vpop.xlane.xlu0 %5589
    %v5591 = vlog2.pop %v5590
    %v5592 = vmul.f32 %v5591, 0.6931472
    %v5593 = vsub.f32 %v5585, %v5592
    %v5596 = vunpack.c.l.s4 1966171168
    %v5597 = vunpack.c.0.s8 %v5596
    %v5598 = vlaneseq
    %v5599 = vshrl.u32 %v5598, 7
    %v5600 = vsub.s32 %v5597, %v5599
    %v5601 = vrot.slane %v5593, %v5600
    %v5602 = vcombine.high %v5601, %v5601
    %v5604 = vunpack.c.l.s4 1966171168
    %v5605 = vunpack.c.0.s8 %v5604
    %v5606 = vlaneseq
    %v5607 = vshrl.u32 %v5606, 7
    %v5608 = vsub.s32 %v5605, %v5607
    %v5609 = vrot.slane %v5601, %v5608
    %v5611 = vunpack.c.l.s4 1966171168
    %v5612 = vunpack.c.0.s8 %v5611
    %v5613 = vlaneseq
    %v5614 = vshrl.u32 %v5613, 7
    %v5615 = vsub.s32 %v5612, %v5614
    %v5616 = vrot.slane %v5602, %v5615
    %5619 = vst [vmem:[#allocation4 + $0x4] sm:$0x1] %v5609
    %5620 = vst [vmem:[#allocation4 + $0xc] sm:$0x1] %v5616
    %vm5621 = vcmp.eq.s32.totalorder %v928, 4
    %v5622 = vsel %vm5621, %v5563, %v4646
    %v5623 = vsub.f32 1.0, %v5566
    %v5624 = vmul.f32 %v4648, %v5623
    %v5625 = vlaneseq
    %v5626 = vshrl.u32 %v5625, 7
    %v5627 = vsub.s32 0, %v5626
    %v5628 = vrot.slane %v5566, %v5627
    %5630 = vbcast.lane.b32.xlu0 %v5628, 256
    %v5631 = vpop.permute.xlu0 %5630
    %s5633 = sor.u32 256, 8
    %5634 = vbcast.lane.b32.xlu0 %v5628, %s5633
    %v5635 = vpop.permute.xlu0 %5634
    %s5637 = sor.u32 256, 16
    %5638 = vbcast.lane.b32.xlu0 %v5628, %s5637
    %v5639 = vpop.permute.xlu0 %5638
    %s5641 = sor.u32 256, 24
    %5642 = vbcast.lane.b32.xlu0 %v5628, %s5641
    %v5643 = vpop.permute.xlu0 %5642
    %s5645 = sor.u32 256, 32
    %5646 = vbcast.lane.b32.xlu0 %v5628, %s5645
    %v5647 = vpop.permute.xlu0 %5646
    %s5649 = sor.u32 256, 40
    %5650 = vbcast.lane.b32.xlu0 %v5628, %s5649
    %v5651 = vpop.permute.xlu0 %5650
    %s5653 = sor.u32 256, 48
    %5654 = vbcast.lane.b32.xlu0 %v5628, %s5653
    %v5655 = vpop.permute.xlu0 %5654
    %s5657 = sor.u32 256, 56
    %5658 = vbcast.lane.b32.xlu0 %v5628, %s5657
    %v5659 = vpop.permute.xlu0 %5658
    %s5661 = sor.u32 256, 64
    %5662 = vbcast.lane.b32.xlu0 %v5628, %s5661
    %v5663 = vpop.permute.xlu0 %5662
    %s5665 = sor.u32 256, 72
    %5666 = vbcast.lane.b32.xlu0 %v5628, %s5665
    %v5667 = vpop.permute.xlu0 %5666
    %s5669 = sor.u32 256, 80
    %5670 = vbcast.lane.b32.xlu0 %v5628, %s5669
    %v5671 = vpop.permute.xlu0 %5670
    %s5673 = sor.u32 256, 88
    %5674 = vbcast.lane.b32.xlu0 %v5628, %s5673
    %v5675 = vpop.permute.xlu0 %5674
    %s5677 = sor.u32 256, 96
    %5678 = vbcast.lane.b32.xlu0 %v5628, %s5677
    %v5679 = vpop.permute.xlu0 %5678
    %s5681 = sor.u32 256, 104
    %5682 = vbcast.lane.b32.xlu0 %v5628, %s5681
    %v5683 = vpop.permute.xlu0 %5682
    %s5685 = sor.u32 256, 112
    %5686 = vbcast.lane.b32.xlu0 %v5628, %s5685
    %v5687 = vpop.permute.xlu0 %5686
    %s5689 = sor.u32 256, 120
    %5690 = vbcast.lane.b32.xlu0 %v5628, %s5689
    %v5691 = vpop.permute.xlu0 %5690
    %v5692 = vlaneseq
    %v5693 = vshrl.u32 %v5692, 7
    %v5694 = vsub.s32 1, %v5693
    %v5695 = vrot.slane %v5566, %v5694
    %5697 = vbcast.lane.b32.xlu0 %v5695, 256
    %v5698 = vpop.permute.xlu0 %5697
    %s5700 = sor.u32 256, 8
    %5701 = vbcast.lane.b32.xlu0 %v5695, %s5700
    %v5702 = vpop.permute.xlu0 %5701
    %s5704 = sor.u32 256, 16
    %5705 = vbcast.lane.b32.xlu0 %v5695, %s5704
    %v5706 = vpop.permute.xlu0 %5705
    %s5708 = sor.u32 256, 24
    %5709 = vbcast.lane.b32.xlu0 %v5695, %s5708
    %v5710 = vpop.permute.xlu0 %5709
    %s5712 = sor.u32 256, 32
    %5713 = vbcast.lane.b32.xlu0 %v5695, %s5712
    %v5714 = vpop.permute.xlu0 %5713
    %s5716 = sor.u32 256, 40
    %5717 = vbcast.lane.b32.xlu0 %v5695, %s5716
    %v5718 = vpop.permute.xlu0 %5717
    %s5720 = sor.u32 256, 48
    %5721 = vbcast.lane.b32.xlu0 %v5695, %s5720
    %v5722 = vpop.permute.xlu0 %5721
    %s5724 = sor.u32 256, 56
    %5725 = vbcast.lane.b32.xlu0 %v5695, %s5724
    %v5726 = vpop.permute.xlu0 %5725
    %s5728 = sor.u32 256, 64
    %5729 = vbcast.lane.b32.xlu0 %v5695, %s5728
    %v5730 = vpop.permute.xlu0 %5729
    %s5732 = sor.u32 256, 72
    %5733 = vbcast.lane.b32.xlu0 %v5695, %s5732
    %v5734 = vpop.permute.xlu0 %5733
    %s5736 = sor.u32 256, 80
    %5737 = vbcast.lane.b32.xlu0 %v5695, %s5736
    %v5738 = vpop.permute.xlu0 %5737
    %s5740 = sor.u32 256, 88
    %5741 = vbcast.lane.b32.xlu0 %v5695, %s5740
    %v5742 = vpop.permute.xlu0 %5741
    %s5744 = sor.u32 256, 96
    %5745 = vbcast.lane.b32.xlu0 %v5695, %s5744
    %v5746 = vpop.permute.xlu0 %5745
    %s5748 = sor.u32 256, 104
    %5749 = vbcast.lane.b32.xlu0 %v5695, %s5748
    %v5750 = vpop.permute.xlu0 %5749
    %s5752 = sor.u32 256, 112
    %5753 = vbcast.lane.b32.xlu0 %v5695, %s5752
    %v5754 = vpop.permute.xlu0 %5753
    %s5756 = sor.u32 256, 120
    %5757 = vbcast.lane.b32.xlu0 %v5695, %s5756
    %v5758 = vpop.permute.xlu0 %5757
    %v5759 = vld [vmem:[#allocation3] sm:$0xff]
    %v5760 = vld [vmem:[#allocation3 + $0x8] sm:$0xff]
    %v5761 = vld [vmem:[#allocation3 + $0x10] sm:$0xff]
    %v5762 = vld [vmem:[#allocation3 + $0x18] sm:$0xff]
    %v5763 = vld [vmem:[#allocation3 + $0x20] sm:$0xff]
    %v5764 = vld [vmem:[#allocation3 + $0x28] sm:$0xff]
    %v5765 = vld [vmem:[#allocation3 + $0x30] sm:$0xff]
    %v5766 = vld [vmem:[#allocation3 + $0x38] sm:$0xff]
    %v5767 = vld [vmem:[#allocation3 + $0x40] sm:$0xff]
    %v5768 = vld [vmem:[#allocation3 + $0x48] sm:$0xff]
    %v5769 = vld [vmem:[#allocation3 + $0x50] sm:$0xff]
    %v5770 = vld [vmem:[#allocation3 + $0x58] sm:$0xff]
    %v5771 = vld [vmem:[#allocation3 + $0x60] sm:$0xff]
    %v5772 = vld [vmem:[#allocation3 + $0x68] sm:$0xff]
    %v5773 = vld [vmem:[#allocation3 + $0x70] sm:$0xff]
    %v5774 = vld [vmem:[#allocation3 + $0x78] sm:$0xff]
    %v5775 = vld [vmem:[#allocation3 + $0x80] sm:$0xff]
    %v5776 = vld [vmem:[#allocation3 + $0x88] sm:$0xff]
    %v5777 = vld [vmem:[#allocation3 + $0x90] sm:$0xff]
    %v5778 = vld [vmem:[#allocation3 + $0x98] sm:$0xff]
    %v5779 = vld [vmem:[#allocation3 + $0xa0] sm:$0xff]
    %v5780 = vld [vmem:[#allocation3 + $0xa8] sm:$0xff]
    %v5781 = vld [vmem:[#allocation3 + $0xb0] sm:$0xff]
    %v5782 = vld [vmem:[#allocation3 + $0xb8] sm:$0xff]
    %v5783 = vld [vmem:[#allocation3 + $0xc0] sm:$0xff]
    %v5784 = vld [vmem:[#allocation3 + $0xc8] sm:$0xff]
    %v5785 = vld [vmem:[#allocation3 + $0xd0] sm:$0xff]
    %v5786 = vld [vmem:[#allocation3 + $0xd8] sm:$0xff]
    %v5787 = vld [vmem:[#allocation3 + $0xe0] sm:$0xff]
    %v5788 = vld [vmem:[#allocation3 + $0xe8] sm:$0xff]
    %v5789 = vld [vmem:[#allocation3 + $0xf0] sm:$0xff]
    %v5790 = vld [vmem:[#allocation3 + $0xf8] sm:$0xff]
    %v5791 = vmul.f32 %v5631, %v5759
    %v5792 = vmul.f32 %v5635, %v5760
    %v5793 = vmul.f32 %v5639, %v5761
    %v5794 = vmul.f32 %v5643, %v5762
    %v5795 = vmul.f32 %v5647, %v5763
    %v5796 = vmul.f32 %v5651, %v5764
    %v5797 = vmul.f32 %v5655, %v5765
    %v5798 = vmul.f32 %v5659, %v5766
    %v5799 = vmul.f32 %v5663, %v5767
    %v5800 = vmul.f32 %v5667, %v5768
    %v5801 = vmul.f32 %v5671, %v5769
    %v5802 = vmul.f32 %v5675, %v5770
    %v5803 = vmul.f32 %v5679, %v5771
    %v5804 = vmul.f32 %v5683, %v5772
    %v5805 = vmul.f32 %v5687, %v5773
    %v5806 = vmul.f32 %v5691, %v5774
    %v5807 = vmul.f32 %v5698, %v5775
    %v5808 = vmul.f32 %v5702, %v5776
    %v5809 = vmul.f32 %v5706, %v5777
    %v5810 = vmul.f32 %v5710, %v5778
    %v5811 = vmul.f32 %v5714, %v5779
    %v5812 = vmul.f32 %v5718, %v5780
    %v5813 = vmul.f32 %v5722, %v5781
    %v5814 = vmul.f32 %v5726, %v5782
    %v5815 = vmul.f32 %v5730, %v5783
    %v5816 = vmul.f32 %v5734, %v5784
    %v5817 = vmul.f32 %v5738, %v5785
    %v5818 = vmul.f32 %v5742, %v5786
    %v5819 = vmul.f32 %v5746, %v5787
    %v5820 = vmul.f32 %v5750, %v5788
    %v5821 = vmul.f32 %v5754, %v5789
    %v5822 = vmul.f32 %v5758, %v5790
    %v5823 = vadd.f32 %v5791, %v5792
    %v5824 = vadd.f32 %v5823, %v5793
    %v5825 = vadd.f32 %v5824, %v5794
    %v5826 = vadd.f32 %v5825, %v5795
    %v5827 = vadd.f32 %v5826, %v5796
    %v5828 = vadd.f32 %v5827, %v5797
    %v5829 = vadd.f32 %v5828, %v5798
    %v5830 = vadd.f32 %v5829, %v5799
    %v5831 = vadd.f32 %v5830, %v5800
    %v5832 = vadd.f32 %v5831, %v5801
    %v5833 = vadd.f32 %v5832, %v5802
    %v5834 = vadd.f32 %v5833, %v5803
    %v5835 = vadd.f32 %v5834, %v5804
    %v5836 = vadd.f32 %v5835, %v5805
    %v5837 = vadd.f32 %v5836, %v5806
    %v5838 = vrot.slane %v5837, 4
    %v5839 = vadd.f32 %v5837, %v5838
    %v5840 = vrot.slane %v5839, 2
    %v5841 = vadd.f32 %v5839, %v5840
    %v5842 = vrot.slane %v5841, 1
    %v5843 = vadd.f32 %v5841, %v5842
    %v5844 = vadd.f32 %v5807, %v5808
    %v5845 = vadd.f32 %v5844, %v5809
    %v5846 = vadd.f32 %v5845, %v5810
    %v5847 = vadd.f32 %v5846, %v5811
    %v5848 = vadd.f32 %v5847, %v5812
    %v5849 = vadd.f32 %v5848, %v5813
    %v5850 = vadd.f32 %v5849, %v5814
    %v5851 = vadd.f32 %v5850, %v5815
    %v5852 = vadd.f32 %v5851, %v5816
    %v5853 = vadd.f32 %v5852, %v5817
    %v5854 = vadd.f32 %v5853, %v5818
    %v5855 = vadd.f32 %v5854, %v5819
    %v5856 = vadd.f32 %v5855, %v5820
    %v5857 = vadd.f32 %v5856, %v5821
    %v5858 = vadd.f32 %v5857, %v5822
    %v5859 = vrot.slane %v5858, 4
    %v5860 = vadd.f32 %v5858, %v5859
    %v5861 = vrot.slane %v5860, 2
    %v5862 = vadd.f32 %v5860, %v5861
    %v5863 = vrot.slane %v5862, 1
    %v5864 = vadd.f32 %v5862, %v5863
    %5865 = vmatprep.subr.mxu0 0.0
    %5866 = vmatpush1.msra.mxu0 %v53
    %5867 = vmatprep.subr.mxu0 0.0
    %5868 = vmatpush1.msra.mxu0 %v54
    %5869 = vmatprep.subr.mxu0 0.0
    %5870 = vmatpush1.msra.mxu0 %v55
    %5871 = vmatprep.subr.mxu0 0.0
    %5872 = vmatpush1.msra.mxu0 %v56
    %5873 = vmatprep.subr.mxu0 0.0
    %5874 = vmatpush1.msra.mxu0 0.0
    %5875 = vmatprep.subr.mxu0 0.0
    %5876 = vmatpush1.msra.mxu0 0.0
    %5877 = vmatprep.subr.mxu0 0.0
    %5878 = vmatpush1.msra.mxu0 0.0
    %5879 = vmatprep.subr.mxu0 0.0
    %5880 = vmatpush1.msra.mxu0 0.0
    %5881 = vmatprep.subr.mxu0 0.0
    %5882 = vmatpush1.msra.mxu0 0.0
    %5883 = vmatprep.subr.mxu0 0.0
    %5884 = vmatpush1.msra.mxu0 0.0
    %5885 = vmatprep.subr.mxu0 0.0
    %5886 = vmatpush1.msra.mxu0 0.0
    %5887 = vmatprep.subr.mxu0 0.0
    %5888 = vmatpush1.msra.mxu0 0.0
    %5889 = vmatprep.subr.mxu0 0.0
    %5890 = vmatpush1.msra.mxu0 0.0
    %5891 = vmatprep.subr.mxu0 0.0
    %5892 = vmatpush1.msra.mxu0 0.0
    %5893 = vmatprep.subr.mxu0 0.0
    %5894 = vmatpush1.msra.mxu0 0.0
    %5895 = vmatprep.subr.mxu0 0.0
    %5896 = vmatpush1.msra.mxu0 0.0
    %5897 = vmatprep.subr.mxu0 0.0
    %5898 = vmatpush1.msra.mxu0 0.0
    %5899 = vmatprep.subr.mxu0 0.0
    %5900 = vmatpush1.msra.mxu0 0.0
    %5901 = vmatprep.subr.mxu0 0.0
    %5902 = vmatpush1.msra.mxu0 0.0
    %5903 = vmatprep.subr.mxu0 0.0
    %5904 = vmatpush1.msra.mxu0 0.0
    %5905 = vmatprep.subr.mxu0 0.0
    %5906 = vmatpush1.msra.mxu0 0.0
    %5907 = vmatprep.subr.mxu0 0.0
    %5908 = vmatpush1.msra.mxu0 0.0
    %5909 = vmatprep.subr.mxu0 0.0
    %5910 = vmatpush1.msra.mxu0 0.0
    %5911 = vmatprep.subr.mxu0 0.0
    %5912 = vmatpush1.msra.mxu0 0.0
    %5913 = vmatprep.subr.mxu0 0.0
    %5914 = vmatpush1.msra.mxu0 0.0
    %5915 = vmatprep.subr.mxu0 0.0
    %5916 = vmatpush1.msra.mxu0 0.0
    %5917 = vmatprep.subr.mxu0 0.0
    %5918 = vmatpush1.msra.mxu0 0.0
    %5919 = vmatprep.subr.mxu0 0.0
    %5920 = vmatpush1.msra.mxu0 0.0
    %5921 = vmatprep.subr.mxu0 0.0
    %5922 = vmatpush1.msra.mxu0 0.0
    %5923 = vmatprep.subr.mxu0 0.0
    %5924 = vmatpush1.msra.mxu0 0.0
    %5925 = vmatprep.subr.mxu0 0.0
    %5926 = vmatpush1.msra.mxu0 0.0
    %5927 = vmatprep.subr.mxu0 0.0
    %5928 = vmatpush1.msra.mxu0 0.0
    %5929 = vmatprep.mubr.f32.mxu0 0.0
    %5930 = vmatmul.mubr.f32.gmra.mrb[0].mxu0 %v5019
    %v5931 = vpop.f32.mrb[0].mxu0
    %v5932 = vadd.f32 0.0, %v5931
    %v5933 = vpop.f32.mrb[0].mxu0
    %5934 = vdwg.mxu0
    %v5936 = vrot.slane %v5932, 1
    %v5939 = vadd.f32 %v5843, %v5932
    %v5940 = vadd.f32 %v5864, %v5936
    %v5941 = vxor.u32 %v5939, 2147483648
    %v5942 = vxor.u32 %v5940, 2147483648
    %v5943 = vmul.f32 %v5941, 1.442695
    %v5944 = vpow.pop %v5943
    %v5945 = vmul.f32 %v5942, 1.442695
    %v5946 = vpow.pop %v5945
    %v5947 = vadd.f32 %v5944, 1.0
    %v5948 = vadd.f32 %v5946, 1.0
    %v5949 = vrcp.pop %v5947
    %v5950 = vmul.f32 1.0, %v5949
    %v5951 = vrcp.pop %v5948
    %v5952 = vmul.f32 1.0, %v5951
    %v5953 = vtanh.pop %v5939
    %v5954 = vtanh.pop %v5940
    %v5955 = vmul.f32 %v5950, %v4999
    %v5956 = vmul.f32 %v5952, %v5000
    %5959 = vrot.lane.b32.xlu0 %v5953, 64
    %v5960 = vpop.permute.xlu0 %5959
    %5961 = vrot.lane.b32.xlu0 %v5954, 64
    %v5962 = vpop.permute.xlu0 %5961
    %v5965 = vmul.f32 %v5950, %v5960
    %v5966 = vmul.f32 %v5952, %v5962
    %5969 = vrot.lane.b32.xlu0 %v5965, 32
    %v5970 = vpop.permute.xlu0 %5969
    %5971 = vrot.lane.b32.xlu0 %v5966, 32
    %v5972 = vpop.permute.xlu0 %5971
    %v5975 = vadd.f32 %v5955, %v5970
    %v5976 = vadd.f32 %v5956, %v5972
    %v5977 = vtanh.pop %v5975
    %v5978 = vtanh.pop %v5976
    %5981 = vrot.lane.b32.xlu0 %v5977, 64
    %v5982 = vpop.permute.xlu0 %5981
    %5983 = vrot.lane.b32.xlu0 %v5978, 64
    %v5984 = vpop.permute.xlu0 %5983
    %v5987 = vmul.f32 %v5950, %v5982
    %v5988 = vmul.f32 %v5952, %v5984
    %v5991 = vrot.slane %v5988, 7
    %v5992 = vsel %vm1631, %v5991, %v5987
    %5993 = vrot.lane.b32.xlu0 %v5992, 32
    %v5994 = vpop.permute.xlu0 %5993
    %v5995 = vsel %vm107, %v5994, 0
    %5997 = vmatprep.subr.mxu0 0.0
    %5998 = vmatpush1.msra.mxu0 %v58
    %5999 = vmatprep.subr.mxu0 0.0
    %6000 = vmatpush1.msra.mxu0 %v59
    %6001 = vmatprep.subr.mxu0 0.0
    %6002 = vmatpush1.msra.mxu0 %v60
    %6003 = vmatprep.subr.mxu0 0.0
    %6004 = vmatpush1.msra.mxu0 %v61
    %6005 = vmatprep.subr.mxu0 0.0
    %6006 = vmatpush1.msra.mxu0 0.0
    %6007 = vmatprep.subr.mxu0 0.0
    %6008 = vmatpush1.msra.mxu0 0.0
    %6009 = vmatprep.subr.mxu0 0.0
    %6010 = vmatpush1.msra.mxu0 0.0
    %6011 = vmatprep.subr.mxu0 0.0
    %6012 = vmatpush1.msra.mxu0 0.0
    %6013 = vmatprep.subr.mxu0 0.0
    %6014 = vmatpush1.msra.mxu0 0.0
    %6015 = vmatprep.subr.mxu0 0.0
    %6016 = vmatpush1.msra.mxu0 0.0
    %6017 = vmatprep.subr.mxu0 0.0
    %6018 = vmatpush1.msra.mxu0 0.0
    %6019 = vmatprep.subr.mxu0 0.0
    %6020 = vmatpush1.msra.mxu0 0.0
    %6021 = vmatprep.subr.mxu0 0.0
    %6022 = vmatpush1.msra.mxu0 0.0
    %6023 = vmatprep.subr.mxu0 0.0
    %6024 = vmatpush1.msra.mxu0 0.0
    %6025 = vmatprep.subr.mxu0 0.0
    %6026 = vmatpush1.msra.mxu0 0.0
    %6027 = vmatprep.subr.mxu0 0.0
    %6028 = vmatpush1.msra.mxu0 0.0
    %6029 = vmatprep.subr.mxu0 0.0
    %6030 = vmatpush1.msra.mxu0 0.0
    %6031 = vmatprep.subr.mxu0 0.0
    %6032 = vmatpush1.msra.mxu0 0.0
    %6033 = vmatprep.subr.mxu0 0.0
    %6034 = vmatpush1.msra.mxu0 0.0
    %6035 = vmatprep.subr.mxu0 0.0
    %6036 = vmatpush1.msra.mxu0 0.0
    %6037 = vmatprep.subr.mxu0 0.0
    %6038 = vmatpush1.msra.mxu0 0.0
    %6039 = vmatprep.subr.mxu0 0.0
    %6040 = vmatpush1.msra.mxu0 0.0
    %6041 = vmatprep.subr.mxu0 0.0
    %6042 = vmatpush1.msra.mxu0 0.0
    %6043 = vmatprep.subr.mxu0 0.0
    %6044 = vmatpush1.msra.mxu0 0.0
    %6045 = vmatprep.subr.mxu0 0.0
    %6046 = vmatpush1.msra.mxu0 0.0
    %6047 = vmatprep.subr.mxu0 0.0
    %6048 = vmatpush1.msra.mxu0 0.0
    %6049 = vmatprep.subr.mxu0 0.0
    %6050 = vmatpush1.msra.mxu0 0.0
    %6051 = vmatprep.subr.mxu0 0.0
    %6052 = vmatpush1.msra.mxu0 0.0
    %6053 = vmatprep.subr.mxu0 0.0
    %6054 = vmatpush1.msra.mxu0 0.0
    %6055 = vmatprep.subr.mxu0 0.0
    %6056 = vmatpush1.msra.mxu0 0.0
    %6057 = vmatprep.subr.mxu0 0.0
    %6058 = vmatpush1.msra.mxu0 0.0
    %6059 = vmatprep.subr.mxu0 0.0
    %6060 = vmatpush1.msra.mxu0 0.0
    %6061 = vmatprep.mubr.f32.mxu0 0.0
    %6062 = vmatmul.mubr.f32.gmra.mrb[0].mxu0 %v5995
    %v6063 = vpop.f32.mrb[0].mxu0
    %v6064 = vadd.f32 %v1038, %v6063
    %v6065 = vpop.f32.mrb[0].mxu0
    %6066 = vdwg.mxu0
    %v6067 = vld [vmem:[#allocation2] sm:$0xff]
    %v6068 = vld [vmem:[#allocation2 + $0x8] sm:$0xff]
    %v6069 = vld [vmem:[#allocation2 + $0x10] sm:$0xff]
    %v6070 = vld [vmem:[#allocation2 + $0x18] sm:$0xff]
    %v6071 = vld [vmem:[#allocation2 + $0x20] sm:$0xff]
    %v6072 = vld [vmem:[#allocation2 + $0x28] sm:$0xff]
    %v6073 = vld [vmem:[#allocation2 + $0x30] sm:$0xff]
    %v6074 = vld [vmem:[#allocation2 + $0x38] sm:$0xff]
    %v6075 = vld [vmem:[#allocation2 + $0x40] sm:$0xff]
    %v6076 = vld [vmem:[#allocation2 + $0x48] sm:$0xff]
    %v6077 = vld [vmem:[#allocation2 + $0x50] sm:$0xff]
    %v6078 = vld [vmem:[#allocation2 + $0x58] sm:$0xff]
    %v6079 = vld [vmem:[#allocation2 + $0x60] sm:$0xff]
    %v6080 = vld [vmem:[#allocation2 + $0x68] sm:$0xff]
    %v6081 = vld [vmem:[#allocation2 + $0x70] sm:$0xff]
    %v6082 = vld [vmem:[#allocation2 + $0x78] sm:$0xff]
    %v6083 = vld [vmem:[#allocation2 + $0x80] sm:$0xff]
    %v6084 = vld [vmem:[#allocation2 + $0x88] sm:$0xff]
    %v6085 = vld [vmem:[#allocation2 + $0x90] sm:$0xff]
    %v6086 = vld [vmem:[#allocation2 + $0x98] sm:$0xff]
    %v6087 = vld [vmem:[#allocation2 + $0xa0] sm:$0xff]
    %v6088 = vld [vmem:[#allocation2 + $0xa8] sm:$0xff]
    %v6089 = vld [vmem:[#allocation2 + $0xb0] sm:$0xff]
    %v6090 = vld [vmem:[#allocation2 + $0xb8] sm:$0xff]
    %v6091 = vld [vmem:[#allocation2 + $0xc0] sm:$0xff]
    %v6092 = vld [vmem:[#allocation2 + $0xc8] sm:$0xff]
    %v6093 = vld [vmem:[#allocation2 + $0xd0] sm:$0xff]
    %v6094 = vld [vmem:[#allocation2 + $0xd8] sm:$0xff]
    %v6095 = vld [vmem:[#allocation2 + $0xe0] sm:$0xff]
    %v6096 = vld [vmem:[#allocation2 + $0xe8] sm:$0xff]
    %v6097 = vld [vmem:[#allocation2 + $0xf0] sm:$0xff]
    %v6098 = vld [vmem:[#allocation2 + $0xf8] sm:$0xff]
    %v6101 = vunpack.c.l.s4 1966171168
    %v6102 = vunpack.c.0.s8 %v6101
    %v6103 = vlaneseq
    %v6104 = vshrl.u32 %v6103, 7
    %v6105 = vsub.s32 %v6102, %v6104
    %v6106 = vrot.slane %v6064, %v6105
    %v6107 = vcombine.high %v6106, %v6106
    %v6109 = vunpack.c.l.s4 1966171168
    %v6110 = vunpack.c.0.s8 %v6109
    %v6111 = vlaneseq
    %v6112 = vshrl.u32 %v6111, 7
    %v6113 = vsub.s32 %v6110, %v6112
    %v6114 = vrot.slane %v6106, %v6113
    %v6116 = vunpack.c.l.s4 1966171168
    %v6117 = vunpack.c.0.s8 %v6116
    %v6118 = vlaneseq
    %v6119 = vshrl.u32 %v6118, 7
    %v6120 = vsub.s32 %v6117, %v6119
    %v6121 = vrot.slane %v6107, %v6120
    %v6122 = vlaneseq
    %v6123 = vshrl.u32 %v6122, 7
    %v6124 = vsub.s32 0, %v6123
    %v6125 = vrot.slane %v6114, %v6124
    %v6126 = vlaneseq
    %v6127 = vshrl.u32 %v6126, 7
    %v6128 = vsub.s32 0, %v6127
    %v6129 = vrot.slane %v6121, %v6128
    %v6132 = vadd.f32 %v6125, %v6067
    %v6133 = vadd.f32 %v6125, %v6068
    %v6134 = vadd.f32 %v6125, %v6069
    %v6135 = vadd.f32 %v6125, %v6070
    %v6136 = vadd.f32 %v6125, %v6071
    %v6137 = vadd.f32 %v6125, %v6072
    %v6138 = vadd.f32 %v6125, %v6073
    %v6139 = vadd.f32 %v6125, %v6074
    %v6140 = vadd.f32 %v6125, %v6075
    %v6141 = vadd.f32 %v6125, %v6076
    %v6142 = vadd.f32 %v6125, %v6077
    %v6143 = vadd.f32 %v6125, %v6078
    %v6144 = vadd.f32 %v6125, %v6079
    %v6145 = vadd.f32 %v6125, %v6080
    %v6146 = vadd.f32 %v6125, %v6081
    %v6147 = vadd.f32 %v6125, %v6082
    %v6148 = vadd.f32 %v6129, %v6083
    %v6149 = vadd.f32 %v6129, %v6084
    %v6150 = vadd.f32 %v6129, %v6085
    %v6151 = vadd.f32 %v6129, %v6086
    %v6152 = vadd.f32 %v6129, %v6087
    %v6153 = vadd.f32 %v6129, %v6088
    %v6154 = vadd.f32 %v6129, %v6089
    %v6155 = vadd.f32 %v6129, %v6090
    %v6156 = vadd.f32 %v6129, %v6091
    %v6157 = vadd.f32 %v6129, %v6092
    %v6158 = vadd.f32 %v6129, %v6093
    %v6159 = vadd.f32 %v6129, %v6094
    %v6160 = vadd.f32 %v6129, %v6095
    %v6161 = vadd.f32 %v6129, %v6096
    %v6162 = vadd.f32 %v6129, %v6097
    %v6163 = vadd.f32 %v6129, %v6098
    %v6164 = vtanh.pop %v6132
    %v6165 = vtanh.pop %v6133
    %v6166 = vtanh.pop %v6134
    %v6167 = vtanh.pop %v6135
    %v6168 = vtanh.pop %v6136
    %v6169 = vtanh.pop %v6137
    %v6170 = vtanh.pop %v6138
    %v6171 = vtanh.pop %v6139
    %v6172 = vtanh.pop %v6140
    %v6173 = vtanh.pop %v6141
    %v6174 = vtanh.pop %v6142
    %v6175 = vtanh.pop %v6143
    %v6176 = vtanh.pop %v6144
    %v6177 = vtanh.pop %v6145
    %v6178 = vtanh.pop %v6146
    %v6179 = vtanh.pop %v6147
    %v6180 = vtanh.pop %v6148
    %v6181 = vtanh.pop %v6149
    %v6182 = vtanh.pop %v6150
    %v6183 = vtanh.pop %v6151
    %v6184 = vtanh.pop %v6152
    %v6185 = vtanh.pop %v6153
    %v6186 = vtanh.pop %v6154
    %v6187 = vtanh.pop %v6155
    %v6188 = vtanh.pop %v6156
    %v6189 = vtanh.pop %v6157
    %v6190 = vtanh.pop %v6158
    %v6191 = vtanh.pop %v6159
    %v6192 = vtanh.pop %v6160
    %v6193 = vtanh.pop %v6161
    %v6194 = vtanh.pop %v6162
    %v6195 = vtanh.pop %v6163
    %v6196 = vmul.f32 %v6164, %v1248
    %v6197 = vmul.f32 %v6165, %v1248
    %v6198 = vmul.f32 %v6166, %v1248
    %v6199 = vmul.f32 %v6167, %v1248
    %v6200 = vmul.f32 %v6168, %v1248
    %v6201 = vmul.f32 %v6169, %v1248
    %v6202 = vmul.f32 %v6170, %v1248
    %v6203 = vmul.f32 %v6171, %v1248
    %v6204 = vmul.f32 %v6172, %v1248
    %v6205 = vmul.f32 %v6173, %v1248
    %v6206 = vmul.f32 %v6174, %v1248
    %v6207 = vmul.f32 %v6175, %v1248
    %v6208 = vmul.f32 %v6176, %v1248
    %v6209 = vmul.f32 %v6177, %v1248
    %v6210 = vmul.f32 %v6178, %v1248
    %v6211 = vmul.f32 %v6179, %v1248
    %v6212 = vmul.f32 %v6180, %v1248
    %v6213 = vmul.f32 %v6181, %v1248
    %v6214 = vmul.f32 %v6182, %v1248
    %v6215 = vmul.f32 %v6183, %v1248
    %v6216 = vmul.f32 %v6184, %v1248
    %v6217 = vmul.f32 %v6185, %v1248
    %v6218 = vmul.f32 %v6186, %v1248
    %v6219 = vmul.f32 %v6187, %v1248
    %v6220 = vmul.f32 %v6188, %v1248
    %v6221 = vmul.f32 %v6189, %v1248
    %v6222 = vmul.f32 %v6190, %v1248
    %v6223 = vmul.f32 %v6191, %v1248
    %v6224 = vmul.f32 %v6192, %v1248
    %v6225 = vmul.f32 %v6193, %v1248
    %v6226 = vmul.f32 %v6194, %v1248
    %v6227 = vmul.f32 %v6195, %v1248
    %v6228 = vsel %vm107, %v6196, 0.0
    %6229 = vadd.xlane.f32.xlu0 %v6228
    %v6230 = vpop.xlane.xlu0 %6229
    %v6231 = vsel %vm107, %v6197, 0.0
    %6232 = vadd.xlane.f32.xlu0 %v6231
    %v6233 = vpop.xlane.xlu0 %6232
    %v6234 = vsel %vm107, %v6198, 0.0
    %6235 = vadd.xlane.f32.xlu0 %v6234
    %v6236 = vpop.xlane.xlu0 %6235
    %v6237 = vsel %vm107, %v6199, 0.0
    %6238 = vadd.xlane.f32.xlu0 %v6237
    %v6239 = vpop.xlane.xlu0 %6238
    %v6240 = vsel %vm107, %v6200, 0.0
    %6241 = vadd.xlane.f32.xlu0 %v6240
    %v6242 = vpop.xlane.xlu0 %6241
    %v6243 = vsel %vm107, %v6201, 0.0
    %6244 = vadd.xlane.f32.xlu0 %v6243
    %v6245 = vpop.xlane.xlu0 %6244
    %v6246 = vsel %vm107, %v6202, 0.0
    %6247 = vadd.xlane.f32.xlu0 %v6246
    %v6248 = vpop.xlane.xlu0 %6247
    %v6249 = vsel %vm107, %v6203, 0.0
    %6250 = vadd.xlane.f32.xlu0 %v6249
    %v6251 = vpop.xlane.xlu0 %6250
    %v6252 = vsel %vm107, %v6204, 0.0
    %6253 = vadd.xlane.f32.xlu0 %v6252
    %v6254 = vpop.xlane.xlu0 %6253
    %v6255 = vsel %vm107, %v6205, 0.0
    %6256 = vadd.xlane.f32.xlu0 %v6255
    %v6257 = vpop.xlane.xlu0 %6256
    %v6258 = vsel %vm107, %v6206, 0.0
    %6259 = vadd.xlane.f32.xlu0 %v6258
    %v6260 = vpop.xlane.xlu0 %6259
    %v6261 = vsel %vm107, %v6207, 0.0
    %6262 = vadd.xlane.f32.xlu0 %v6261
    %v6263 = vpop.xlane.xlu0 %6262
    %v6264 = vsel %vm107, %v6208, 0.0
    %6265 = vadd.xlane.f32.xlu0 %v6264
    %v6266 = vpop.xlane.xlu0 %6265
    %v6267 = vsel %vm107, %v6209, 0.0
    %6268 = vadd.xlane.f32.xlu0 %v6267
    %v6269 = vpop.xlane.xlu0 %6268
    %v6270 = vsel %vm107, %v6210, 0.0
    %6271 = vadd.xlane.f32.xlu0 %v6270
    %v6272 = vpop.xlane.xlu0 %6271
    %v6273 = vsel %vm107, %v6211, 0.0
    %6274 = vadd.xlane.f32.xlu0 %v6273
    %v6275 = vpop.xlane.xlu0 %6274
    %v6276 = vsel %vm107, %v6212, 0.0
    %6277 = vadd.xlane.f32.xlu0 %v6276
    %v6278 = vpop.xlane.xlu0 %6277
    %v6279 = vsel %vm107, %v6213, 0.0
    %6280 = vadd.xlane.f32.xlu0 %v6279
    %v6281 = vpop.xlane.xlu0 %6280
    %v6282 = vsel %vm107, %v6214, 0.0
    %6283 = vadd.xlane.f32.xlu0 %v6282
    %v6284 = vpop.xlane.xlu0 %6283
    %v6285 = vsel %vm107, %v6215, 0.0
    %6286 = vadd.xlane.f32.xlu0 %v6285
    %v6287 = vpop.xlane.xlu0 %6286
    %v6288 = vsel %vm107, %v6216, 0.0
    %6289 = vadd.xlane.f32.xlu0 %v6288
    %v6290 = vpop.xlane.xlu0 %6289
    %v6291 = vsel %vm107, %v6217, 0.0
    %6292 = vadd.xlane.f32.xlu0 %v6291
    %v6293 = vpop.xlane.xlu0 %6292
    %v6294 = vsel %vm107, %v6218, 0.0
    %6295 = vadd.xlane.f32.xlu0 %v6294
    %v6296 = vpop.xlane.xlu0 %6295
    %v6297 = vsel %vm107, %v6219, 0.0
    %6298 = vadd.xlane.f32.xlu0 %v6297
    %v6299 = vpop.xlane.xlu0 %6298
    %v6300 = vsel %vm107, %v6220, 0.0
    %6301 = vadd.xlane.f32.xlu0 %v6300
    %v6302 = vpop.xlane.xlu0 %6301
    %v6303 = vsel %vm107, %v6221, 0.0
    %6304 = vadd.xlane.f32.xlu0 %v6303
    %v6305 = vpop.xlane.xlu0 %6304
    %v6306 = vsel %vm107, %v6222, 0.0
    %6307 = vadd.xlane.f32.xlu0 %v6306
    %v6308 = vpop.xlane.xlu0 %6307
    %v6309 = vsel %vm107, %v6223, 0.0
    %6310 = vadd.xlane.f32.xlu0 %v6309
    %v6311 = vpop.xlane.xlu0 %6310
    %v6312 = vsel %vm107, %v6224, 0.0
    %6313 = vadd.xlane.f32.xlu0 %v6312
    %v6314 = vpop.xlane.xlu0 %6313
    %v6315 = vsel %vm107, %v6225, 0.0
    %6316 = vadd.xlane.f32.xlu0 %v6315
    %v6317 = vpop.xlane.xlu0 %6316
    %v6318 = vsel %vm107, %v6226, 0.0
    %6319 = vadd.xlane.f32.xlu0 %v6318
    %v6320 = vpop.xlane.xlu0 %6319
    %v6321 = vsel %vm107, %v6227, 0.0
    %6322 = vadd.xlane.f32.xlu0 %v6321
    %v6323 = vpop.xlane.xlu0 %6322
    %vm6324 = vcmp.eq.f32.partialorder %v5624, 0.0
    %v6357 = vlaneseq
    %v6358 = vshrl.u32 %v6357, 7
    %v6359 = vsub.s32 %v928, %v6358
    %v6360 = vrot.slane %v6230, %v6359
    %v6361 = vlaneseq
    %v6362 = vshrl.u32 %v6361, 7
    %v6363 = vsub.s32 %v1447, %v6362
    %v6364 = vrot.slane %v6233, %v6363
    %v6365 = vsel %vm1452, %v6364, %v6360
    %v6366 = vlaneseq
    %v6367 = vshrl.u32 %v6366, 7
    %v6368 = vsub.s32 %v1454, %v6367
    %v6369 = vrot.slane %v6236, %v6368
    %v6370 = vsel %vm1459, %v6369, %v6365
    %v6371 = vlaneseq
    %v6372 = vshrl.u32 %v6371, 7
    %v6373 = vsub.s32 %v1461, %v6372
    %v6374 = vrot.slane %v6239, %v6373
    %v6375 = vsel %vm1466, %v6374, %v6370
    %v6376 = vlaneseq
    %v6377 = vshrl.u32 %v6376, 7
    %v6378 = vsub.s32 %v1468, %v6377
    %v6379 = vrot.slane %v6242, %v6378
    %v6380 = vsel %vm1473, %v6379, %v6375
    %v6381 = vlaneseq
    %v6382 = vshrl.u32 %v6381, 7
    %v6383 = vsub.s32 %v1475, %v6382
    %v6384 = vrot.slane %v6245, %v6383
    %v6385 = vsel %vm1480, %v6384, %v6380
    %v6386 = vlaneseq
    %v6387 = vshrl.u32 %v6386, 7
    %v6388 = vsub.s32 %v1482, %v6387
    %v6389 = vrot.slane %v6248, %v6388
    %v6390 = vsel %vm1487, %v6389, %v6385
    %v6391 = vlaneseq
    %v6392 = vshrl.u32 %v6391, 7
    %v6393 = vsub.s32 %v1489, %v6392
    %v6394 = vrot.slane %v6251, %v6393
    %v6395 = vsel %vm1494, %v6394, %v6390
    %v6396 = vlaneseq
    %v6397 = vshrl.u32 %v6396, 7
    %v6398 = vsub.s32 %v1496, %v6397
    %v6399 = vrot.slane %v6254, %v6398
    %v6400 = vsel %vm1501, %v6399, %v6395
    %v6401 = vlaneseq
    %v6402 = vshrl.u32 %v6401, 7
    %v6403 = vsub.s32 %v1503, %v6402
    %v6404 = vrot.slane %v6257, %v6403
    %v6405 = vsel %vm1508, %v6404, %v6400
    %v6406 = vlaneseq
    %v6407 = vshrl.u32 %v6406, 7
    %v6408 = vsub.s32 %v1510, %v6407
    %v6409 = vrot.slane %v6260, %v6408
    %v6410 = vsel %vm1515, %v6409, %v6405
    %v6411 = vlaneseq
    %v6412 = vshrl.u32 %v6411, 7
    %v6413 = vsub.s32 %v1517, %v6412
    %v6414 = vrot.slane %v6263, %v6413
    %v6415 = vsel %vm1522, %v6414, %v6410
    %v6416 = vlaneseq
    %v6417 = vshrl.u32 %v6416, 7
    %v6418 = vsub.s32 %v1524, %v6417
    %v6419 = vrot.slane %v6266, %v6418
    %v6420 = vsel %vm1529, %v6419, %v6415
    %v6421 = vlaneseq
    %v6422 = vshrl.u32 %v6421, 7
    %v6423 = vsub.s32 %v1531, %v6422
    %v6424 = vrot.slane %v6269, %v6423
    %v6425 = vsel %vm1536, %v6424, %v6420
    %v6426 = vlaneseq
    %v6427 = vshrl.u32 %v6426, 7
    %v6428 = vsub.s32 %v1538, %v6427
    %v6429 = vrot.slane %v6272, %v6428
    %v6430 = vsel %vm1543, %v6429, %v6425
    %v6431 = vlaneseq
    %v6432 = vshrl.u32 %v6431, 7
    %v6433 = vsub.s32 %v1545, %v6432
    %v6434 = vrot.slane %v6275, %v6433
    %v6435 = vsel %vm1550, %v6434, %v6430
    %v6436 = vlaneseq
    %v6437 = vshrl.u32 %v6436, 7
    %v6438 = vsub.s32 %v928, %v6437
    %v6439 = vrot.slane %v6278, %v6438
    %v6440 = vlaneseq
    %v6441 = vshrl.u32 %v6440, 7
    %v6442 = vsub.s32 %v1447, %v6441
    %v6443 = vrot.slane %v6281, %v6442
    %v6444 = vsel %vm1452, %v6443, %v6439
    %v6445 = vlaneseq
    %v6446 = vshrl.u32 %v6445, 7
    %v6447 = vsub.s32 %v1454, %v6446
    %v6448 = vrot.slane %v6284, %v6447
    %v6449 = vsel %vm1459, %v6448, %v6444
    %v6450 = vlaneseq
    %v6451 = vshrl.u32 %v6450, 7
    %v6452 = vsub.s32 %v1461, %v6451
    %v6453 = vrot.slane %v6287, %v6452
    %v6454 = vsel %vm1466, %v6453, %v6449
    %v6455 = vlaneseq
    %v6456 = vshrl.u32 %v6455, 7
    %v6457 = vsub.s32 %v1468, %v6456
    %v6458 = vrot.slane %v6290, %v6457
    %v6459 = vsel %vm1473, %v6458, %v6454
    %v6460 = vlaneseq
    %v6461 = vshrl.u32 %v6460, 7
    %v6462 = vsub.s32 %v1475, %v6461
    %v6463 = vrot.slane %v6293, %v6462
    %v6464 = vsel %vm1480, %v6463, %v6459
    %v6465 = vlaneseq
    %v6466 = vshrl.u32 %v6465, 7
    %v6467 = vsub.s32 %v1482, %v6466
    %v6468 = vrot.slane %v6296, %v6467
    %v6469 = vsel %vm1487, %v6468, %v6464
    %v6470 = vlaneseq
    %v6471 = vshrl.u32 %v6470, 7
    %v6472 = vsub.s32 %v1489, %v6471
    %v6473 = vrot.slane %v6299, %v6472
    %v6474 = vsel %vm1494, %v6473, %v6469
    %v6475 = vlaneseq
    %v6476 = vshrl.u32 %v6475, 7
    %v6477 = vsub.s32 %v1496, %v6476
    %v6478 = vrot.slane %v6302, %v6477
    %v6479 = vsel %vm1501, %v6478, %v6474
    %v6480 = vlaneseq
    %v6481 = vshrl.u32 %v6480, 7
    %v6482 = vsub.s32 %v1503, %v6481
    %v6483 = vrot.slane %v6305, %v6482
    %v6484 = vsel %vm1508, %v6483, %v6479
    %v6485 = vlaneseq
    %v6486 = vshrl.u32 %v6485, 7
    %v6487 = vsub.s32 %v1510, %v6486
    %v6488 = vrot.slane %v6308, %v6487
    %v6489 = vsel %vm1515, %v6488, %v6484
    %v6490 = vlaneseq
    %v6491 = vshrl.u32 %v6490, 7
    %v6492 = vsub.s32 %v1517, %v6491
    %v6493 = vrot.slane %v6311, %v6492
    %v6494 = vsel %vm1522, %v6493, %v6489
    %v6495 = vlaneseq
    %v6496 = vshrl.u32 %v6495, 7
    %v6497 = vsub.s32 %v1524, %v6496
    %v6498 = vrot.slane %v6314, %v6497
    %v6499 = vsel %vm1529, %v6498, %v6494
    %v6500 = vlaneseq
    %v6501 = vshrl.u32 %v6500, 7
    %v6502 = vsub.s32 %v1531, %v6501
    %v6503 = vrot.slane %v6317, %v6502
    %v6504 = vsel %vm1536, %v6503, %v6499
    %v6505 = vlaneseq
    %v6506 = vshrl.u32 %v6505, 7
    %v6507 = vsub.s32 %v1538, %v6506
    %v6508 = vrot.slane %v6320, %v6507
    %v6509 = vsel %vm1543, %v6508, %v6504
    %v6510 = vlaneseq
    %v6511 = vshrl.u32 %v6510, 7
    %v6512 = vsub.s32 %v1545, %v6511
    %v6513 = vrot.slane %v6323, %v6512
    %v6514 = vsel %vm1550, %v6513, %v6509
    %v6515 = vsel %vm1631, %v6514, %v6435
    %v6517 = vsel %vm6324, -10.0, %v6515
    %v6518 = vsel %vm929, %v6517, -1e+30
    %v6519 = vsel %vm6324, -1e+09, %v6518
    %v6520 = vsel %vm1636, %v6519, -inf
    %6521 = vmax.xlane.f32.xlu0 %v6520
    %v6522 = vpop.xlane.xlu0 %6521
    %vm6523 = vcmp.eq.f32.partialorder %v6519, %v6522
    %v6524 = vsel %vm6523, %v928, 128
    %v6525 = vsel %vm1636, %v6524, 2147483647
    %v6526 = vand.u32 %v6525, 65535
    %v6527 = vshra.s32 %v6525, 16
    %v6528 = vcvt.s32.f32 %v6526
    %v6529 = vcvt.s32.f32 %v6527
    %6530 = vmin.xlane.f32.xlu0 %v6529
    %v6531 = vpop.xlane.xlu0 %6530
    %vm6532 = vcmp.eq.f32.partialorder %v6529, %v6531
    %v6533 = vsel %vm6532, %v6528, inf
    %6534 = vmin.xlane.f32.xlu0 %v6533
    %v6535 = vpop.xlane.xlu0 %6534
    %v6536 = vcvt.f32.s32 %v6535
    %v6537 = vcvt.f32.s32 %v6531
    %v6538 = vshll.u32 %v6537, 16
    %v6539 = vadd.s32 %v6538, %v6536
    %vm6540 = vcmp.eq.s32.totalorder %v928, %v6539
    %v6541 = vsel %vm6540, 1, 0
    %v6542 = vcvt.s32.f32 %v6541
    %v6543 = vsel %vm1636, %v6518, -inf
    %6544 = vmax.xlane.f32.xlu0 %v6543
    %v6545 = vpop.xlane.xlu0 %6544
    %v6546 = vsub.f32 %v6518, %v6545
    %v6547 = vmul.f32 %v6546, 1.442695
    %v6548 = vpow.pop %v6547
    %v6549 = vsel %vm1636, %v6548, 0.0
    %6550 = vadd.xlane.f32.xlu0 %v6549
    %v6551 = vpop.xlane.xlu0 %6550
    %v6552 = vrcp.pop %v6551
    %v6553 = vmul.f32 %v6551, %v6552
    %v6554 = vsub.f32 2.0, %v6553
    %v6555 = vmul.f32 %v6552, %v6554
    %v6556 = vmul.f32 %v6548, %v6555
    %v6557 = vsel %vm929, %v6556, -1e+30
    %v6558 = vsel %vm1636, %v6557, -inf
    %6559 = vmax.xlane.f32.xlu0 %v6558
    %v6560 = vpop.xlane.xlu0 %6559
    %v6561 = vsub.f32 %v6557, %v6560
    %v6562 = vmul.f32 %v6561, 1.442695
    %v6563 = vpow.pop %v6562
    %v6564 = vsel %vm1636, %v6563, 0.0
    %6565 = vadd.xlane.f32.xlu0 %v6564
    %v6566 = vpop.xlane.xlu0 %6565
    %v6567 = vlog2.pop %v6566
    %v6568 = vmul.f32 %v6567, 0.6931472
    %v6569 = vsub.f32 %v6561, %v6568
    %v6572 = vunpack.c.l.s4 1966171168
    %v6573 = vunpack.c.0.s8 %v6572
    %v6574 = vlaneseq
    %v6575 = vshrl.u32 %v6574, 7
    %v6576 = vsub.s32 %v6573, %v6575
    %v6577 = vrot.slane %v6569, %v6576
    %v6578 = vcombine.high %v6577, %v6577
    %v6580 = vunpack.c.l.s4 1966171168
    %v6581 = vunpack.c.0.s8 %v6580
    %v6582 = vlaneseq
    %v6583 = vshrl.u32 %v6582, 7
    %v6584 = vsub.s32 %v6581, %v6583
    %v6585 = vrot.slane %v6577, %v6584
    %v6587 = vunpack.c.l.s4 1966171168
    %v6588 = vunpack.c.0.s8 %v6587
    %v6589 = vlaneseq
    %v6590 = vshrl.u32 %v6589, 7
    %v6591 = vsub.s32 %v6588, %v6590
    %v6592 = vrot.slane %v6578, %v6591
    %6595 = vst [vmem:[#allocation4 + $0x5] sm:$0x1] %v6585
    %6596 = vst [vmem:[#allocation4 + $0xd] sm:$0x1] %v6592
    %vm6597 = vcmp.eq.s32.totalorder %v928, 5
    %v6598 = vsel %vm6597, %v6539, %v5622
    %v6599 = vsub.f32 1.0, %v6542
    %v6600 = vmul.f32 %v5624, %v6599
    %v6601 = vlaneseq
    %v6602 = vshrl.u32 %v6601, 7
    %v6603 = vsub.s32 0, %v6602
    %v6604 = vrot.slane %v6542, %v6603
    %6606 = vbcast.lane.b32.xlu0 %v6604, 256
    %v6607 = vpop.permute.xlu0 %6606
    %s6609 = sor.u32 256, 8
    %6610 = vbcast.lane.b32.xlu0 %v6604, %s6609
    %v6611 = vpop.permute.xlu0 %6610
    %s6613 = sor.u32 256, 16
    %6614 = vbcast.lane.b32.xlu0 %v6604, %s6613
    %v6615 = vpop.permute.xlu0 %6614
    %s6617 = sor.u32 256, 24
    %6618 = vbcast.lane.b32.xlu0 %v6604, %s6617
    %v6619 = vpop.permute.xlu0 %6618
    %s6621 = sor.u32 256, 32
    %6622 = vbcast.lane.b32.xlu0 %v6604, %s6621
    %v6623 = vpop.permute.xlu0 %6622
    %s6625 = sor.u32 256, 40
    %6626 = vbcast.lane.b32.xlu0 %v6604, %s6625
    %v6627 = vpop.permute.xlu0 %6626
    %s6629 = sor.u32 256, 48
    %6630 = vbcast.lane.b32.xlu0 %v6604, %s6629
    %v6631 = vpop.permute.xlu0 %6630
    %s6633 = sor.u32 256, 56
    %6634 = vbcast.lane.b32.xlu0 %v6604, %s6633
    %v6635 = vpop.permute.xlu0 %6634
    %s6637 = sor.u32 256, 64
    %6638 = vbcast.lane.b32.xlu0 %v6604, %s6637
    %v6639 = vpop.permute.xlu0 %6638
    %s6641 = sor.u32 256, 72
    %6642 = vbcast.lane.b32.xlu0 %v6604, %s6641
    %v6643 = vpop.permute.xlu0 %6642
    %s6645 = sor.u32 256, 80
    %6646 = vbcast.lane.b32.xlu0 %v6604, %s6645
    %v6647 = vpop.permute.xlu0 %6646
    %s6649 = sor.u32 256, 88
    %6650 = vbcast.lane.b32.xlu0 %v6604, %s6649
    %v6651 = vpop.permute.xlu0 %6650
    %s6653 = sor.u32 256, 96
    %6654 = vbcast.lane.b32.xlu0 %v6604, %s6653
    %v6655 = vpop.permute.xlu0 %6654
    %s6657 = sor.u32 256, 104
    %6658 = vbcast.lane.b32.xlu0 %v6604, %s6657
    %v6659 = vpop.permute.xlu0 %6658
    %s6661 = sor.u32 256, 112
    %6662 = vbcast.lane.b32.xlu0 %v6604, %s6661
    %v6663 = vpop.permute.xlu0 %6662
    %s6665 = sor.u32 256, 120
    %6666 = vbcast.lane.b32.xlu0 %v6604, %s6665
    %v6667 = vpop.permute.xlu0 %6666
    %v6668 = vlaneseq
    %v6669 = vshrl.u32 %v6668, 7
    %v6670 = vsub.s32 1, %v6669
    %v6671 = vrot.slane %v6542, %v6670
    %6673 = vbcast.lane.b32.xlu0 %v6671, 256
    %v6674 = vpop.permute.xlu0 %6673
    %s6676 = sor.u32 256, 8
    %6677 = vbcast.lane.b32.xlu0 %v6671, %s6676
    %v6678 = vpop.permute.xlu0 %6677
    %s6680 = sor.u32 256, 16
    %6681 = vbcast.lane.b32.xlu0 %v6671, %s6680
    %v6682 = vpop.permute.xlu0 %6681
    %s6684 = sor.u32 256, 24
    %6685 = vbcast.lane.b32.xlu0 %v6671, %s6684
    %v6686 = vpop.permute.xlu0 %6685
    %s6688 = sor.u32 256, 32
    %6689 = vbcast.lane.b32.xlu0 %v6671, %s6688
    %v6690 = vpop.permute.xlu0 %6689
    %s6692 = sor.u32 256, 40
    %6693 = vbcast.lane.b32.xlu0 %v6671, %s6692
    %v6694 = vpop.permute.xlu0 %6693
    %s6696 = sor.u32 256, 48
    %6697 = vbcast.lane.b32.xlu0 %v6671, %s6696
    %v6698 = vpop.permute.xlu0 %6697
    %s6700 = sor.u32 256, 56
    %6701 = vbcast.lane.b32.xlu0 %v6671, %s6700
    %v6702 = vpop.permute.xlu0 %6701
    %s6704 = sor.u32 256, 64
    %6705 = vbcast.lane.b32.xlu0 %v6671, %s6704
    %v6706 = vpop.permute.xlu0 %6705
    %s6708 = sor.u32 256, 72
    %6709 = vbcast.lane.b32.xlu0 %v6671, %s6708
    %v6710 = vpop.permute.xlu0 %6709
    %s6712 = sor.u32 256, 80
    %6713 = vbcast.lane.b32.xlu0 %v6671, %s6712
    %v6714 = vpop.permute.xlu0 %6713
    %s6716 = sor.u32 256, 88
    %6717 = vbcast.lane.b32.xlu0 %v6671, %s6716
    %v6718 = vpop.permute.xlu0 %6717
    %s6720 = sor.u32 256, 96
    %6721 = vbcast.lane.b32.xlu0 %v6671, %s6720
    %v6722 = vpop.permute.xlu0 %6721
    %s6724 = sor.u32 256, 104
    %6725 = vbcast.lane.b32.xlu0 %v6671, %s6724
    %v6726 = vpop.permute.xlu0 %6725
    %s6728 = sor.u32 256, 112
    %6729 = vbcast.lane.b32.xlu0 %v6671, %s6728
    %v6730 = vpop.permute.xlu0 %6729
    %s6732 = sor.u32 256, 120
    %6733 = vbcast.lane.b32.xlu0 %v6671, %s6732
    %v6734 = vpop.permute.xlu0 %6733
    %v6735 = vld [vmem:[#allocation3] sm:$0xff]
    %v6736 = vld [vmem:[#allocation3 + $0x8] sm:$0xff]
    %v6737 = vld [vmem:[#allocation3 + $0x10] sm:$0xff]
    %v6738 = vld [vmem:[#allocation3 + $0x18] sm:$0xff]
    %v6739 = vld [vmem:[#allocation3 + $0x20] sm:$0xff]
    %v6740 = vld [vmem:[#allocation3 + $0x28] sm:$0xff]
    %v6741 = vld [vmem:[#allocation3 + $0x30] sm:$0xff]
    %v6742 = vld [vmem:[#allocation3 + $0x38] sm:$0xff]
    %v6743 = vld [vmem:[#allocation3 + $0x40] sm:$0xff]
    %v6744 = vld [vmem:[#allocation3 + $0x48] sm:$0xff]
    %v6745 = vld [vmem:[#allocation3 + $0x50] sm:$0xff]
    %v6746 = vld [vmem:[#allocation3 + $0x58] sm:$0xff]
    %v6747 = vld [vmem:[#allocation3 + $0x60] sm:$0xff]
    %v6748 = vld [vmem:[#allocation3 + $0x68] sm:$0xff]
    %v6749 = vld [vmem:[#allocation3 + $0x70] sm:$0xff]
    %v6750 = vld [vmem:[#allocation3 + $0x78] sm:$0xff]
    %v6751 = vld [vmem:[#allocation3 + $0x80] sm:$0xff]
    %v6752 = vld [vmem:[#allocation3 + $0x88] sm:$0xff]
    %v6753 = vld [vmem:[#allocation3 + $0x90] sm:$0xff]
    %v6754 = vld [vmem:[#allocation3 + $0x98] sm:$0xff]
    %v6755 = vld [vmem:[#allocation3 + $0xa0] sm:$0xff]
    %v6756 = vld [vmem:[#allocation3 + $0xa8] sm:$0xff]
    %v6757 = vld [vmem:[#allocation3 + $0xb0] sm:$0xff]
    %v6758 = vld [vmem:[#allocation3 + $0xb8] sm:$0xff]
    %v6759 = vld [vmem:[#allocation3 + $0xc0] sm:$0xff]
    %v6760 = vld [vmem:[#allocation3 + $0xc8] sm:$0xff]
    %v6761 = vld [vmem:[#allocation3 + $0xd0] sm:$0xff]
    %v6762 = vld [vmem:[#allocation3 + $0xd8] sm:$0xff]
    %v6763 = vld [vmem:[#allocation3 + $0xe0] sm:$0xff]
    %v6764 = vld [vmem:[#allocation3 + $0xe8] sm:$0xff]
    %v6765 = vld [vmem:[#allocation3 + $0xf0] sm:$0xff]
    %v6766 = vld [vmem:[#allocation3 + $0xf8] sm:$0xff]
    %v6767 = vmul.f32 %v6607, %v6735
    %v6768 = vmul.f32 %v6611, %v6736
    %v6769 = vmul.f32 %v6615, %v6737
    %v6770 = vmul.f32 %v6619, %v6738
    %v6771 = vmul.f32 %v6623, %v6739
    %v6772 = vmul.f32 %v6627, %v6740
    %v6773 = vmul.f32 %v6631, %v6741
    %v6774 = vmul.f32 %v6635, %v6742
    %v6775 = vmul.f32 %v6639, %v6743
    %v6776 = vmul.f32 %v6643, %v6744
    %v6777 = vmul.f32 %v6647, %v6745
    %v6778 = vmul.f32 %v6651, %v6746
    %v6779 = vmul.f32 %v6655, %v6747
    %v6780 = vmul.f32 %v6659, %v6748
    %v6781 = vmul.f32 %v6663, %v6749
    %v6782 = vmul.f32 %v6667, %v6750
    %v6783 = vmul.f32 %v6674, %v6751
    %v6784 = vmul.f32 %v6678, %v6752
    %v6785 = vmul.f32 %v6682, %v6753
    %v6786 = vmul.f32 %v6686, %v6754
    %v6787 = vmul.f32 %v6690, %v6755
    %v6788 = vmul.f32 %v6694, %v6756
    %v6789 = vmul.f32 %v6698, %v6757
    %v6790 = vmul.f32 %v6702, %v6758
    %v6791 = vmul.f32 %v6706, %v6759
    %v6792 = vmul.f32 %v6710, %v6760
    %v6793 = vmul.f32 %v6714, %v6761
    %v6794 = vmul.f32 %v6718, %v6762
    %v6795 = vmul.f32 %v6722, %v6763
    %v6796 = vmul.f32 %v6726, %v6764
    %v6797 = vmul.f32 %v6730, %v6765
    %v6798 = vmul.f32 %v6734, %v6766
    %v6799 = vadd.f32 %v6767, %v6768
    %v6800 = vadd.f32 %v6799, %v6769
    %v6801 = vadd.f32 %v6800, %v6770
    %v6802 = vadd.f32 %v6801, %v6771
    %v6803 = vadd.f32 %v6802, %v6772
    %v6804 = vadd.f32 %v6803, %v6773
    %v6805 = vadd.f32 %v6804, %v6774
    %v6806 = vadd.f32 %v6805, %v6775
    %v6807 = vadd.f32 %v6806, %v6776
    %v6808 = vadd.f32 %v6807, %v6777
    %v6809 = vadd.f32 %v6808, %v6778
    %v6810 = vadd.f32 %v6809, %v6779
    %v6811 = vadd.f32 %v6810, %v6780
    %v6812 = vadd.f32 %v6811, %v6781
    %v6813 = vadd.f32 %v6812, %v6782
    %v6814 = vrot.slane %v6813, 4
    %v6815 = vadd.f32 %v6813, %v6814
    %v6816 = vrot.slane %v6815, 2
    %v6817 = vadd.f32 %v6815, %v6816
    %v6818 = vrot.slane %v6817, 1
    %v6819 = vadd.f32 %v6817, %v6818
    %v6820 = vadd.f32 %v6783, %v6784
    %v6821 = vadd.f32 %v6820, %v6785
    %v6822 = vadd.f32 %v6821, %v6786
    %v6823 = vadd.f32 %v6822, %v6787
    %v6824 = vadd.f32 %v6823, %v6788
    %v6825 = vadd.f32 %v6824, %v6789
    %v6826 = vadd.f32 %v6825, %v6790
    %v6827 = vadd.f32 %v6826, %v6791
    %v6828 = vadd.f32 %v6827, %v6792
    %v6829 = vadd.f32 %v6828, %v6793
    %v6830 = vadd.f32 %v6829, %v6794
    %v6831 = vadd.f32 %v6830, %v6795
    %v6832 = vadd.f32 %v6831, %v6796
    %v6833 = vadd.f32 %v6832, %v6797
    %v6834 = vadd.f32 %v6833, %v6798
    %v6835 = vrot.slane %v6834, 4
    %v6836 = vadd.f32 %v6834, %v6835
    %v6837 = vrot.slane %v6836, 2
    %v6838 = vadd.f32 %v6836, %v6837
    %v6839 = vrot.slane %v6838, 1
    %v6840 = vadd.f32 %v6838, %v6839
    %6841 = vmatprep.subr.mxu0 0.0
    %6842 = vmatpush1.msra.mxu0 %v53
    %6843 = vmatprep.subr.mxu0 0.0
    %6844 = vmatpush1.msra.mxu0 %v54
    %6845 = vmatprep.subr.mxu0 0.0
    %6846 = vmatpush1.msra.mxu0 %v55
    %6847 = vmatprep.subr.mxu0 0.0
    %6848 = vmatpush1.msra.mxu0 %v56
    %6849 = vmatprep.subr.mxu0 0.0
    %6850 = vmatpush1.msra.mxu0 0.0
    %6851 = vmatprep.subr.mxu0 0.0
    %6852 = vmatpush1.msra.mxu0 0.0
    %6853 = vmatprep.subr.mxu0 0.0
    %6854 = vmatpush1.msra.mxu0 0.0
    %6855 = vmatprep.subr.mxu0 0.0
    %6856 = vmatpush1.msra.mxu0 0.0
    %6857 = vmatprep.subr.mxu0 0.0
    %6858 = vmatpush1.msra.mxu0 0.0
    %6859 = vmatprep.subr.mxu0 0.0
    %6860 = vmatpush1.msra.mxu0 0.0
    %6861 = vmatprep.subr.mxu0 0.0
    %6862 = vmatpush1.msra.mxu0 0.0
    %6863 = vmatprep.subr.mxu0 0.0
    %6864 = vmatpush1.msra.mxu0 0.0
    %6865 = vmatprep.subr.mxu0 0.0
    %6866 = vmatpush1.msra.mxu0 0.0
    %6867 = vmatprep.subr.mxu0 0.0
    %6868 = vmatpush1.msra.mxu0 0.0
    %6869 = vmatprep.subr.mxu0 0.0
    %6870 = vmatpush1.msra.mxu0 0.0
    %6871 = vmatprep.subr.mxu0 0.0
    %6872 = vmatpush1.msra.mxu0 0.0
    %6873 = vmatprep.subr.mxu0 0.0
    %6874 = vmatpush1.msra.mxu0 0.0
    %6875 = vmatprep.subr.mxu0 0.0
    %6876 = vmatpush1.msra.mxu0 0.0
    %6877 = vmatprep.subr.mxu0 0.0
    %6878 = vmatpush1.msra.mxu0 0.0
    %6879 = vmatprep.subr.mxu0 0.0
    %6880 = vmatpush1.msra.mxu0 0.0
    %6881 = vmatprep.subr.mxu0 0.0
    %6882 = vmatpush1.msra.mxu0 0.0
    %6883 = vmatprep.subr.mxu0 0.0
    %6884 = vmatpush1.msra.mxu0 0.0
    %6885 = vmatprep.subr.mxu0 0.0
    %6886 = vmatpush1.msra.mxu0 0.0
    %6887 = vmatprep.subr.mxu0 0.0
    %6888 = vmatpush1.msra.mxu0 0.0
    %6889 = vmatprep.subr.mxu0 0.0
    %6890 = vmatpush1.msra.mxu0 0.0
    %6891 = vmatprep.subr.mxu0 0.0
    %6892 = vmatpush1.msra.mxu0 0.0
    %6893 = vmatprep.subr.mxu0 0.0
    %6894 = vmatpush1.msra.mxu0 0.0
    %6895 = vmatprep.subr.mxu0 0.0
    %6896 = vmatpush1.msra.mxu0 0.0
    %6897 = vmatprep.subr.mxu0 0.0
    %6898 = vmatpush1.msra.mxu0 0.0
    %6899 = vmatprep.subr.mxu0 0.0
    %6900 = vmatpush1.msra.mxu0 0.0
    %6901 = vmatprep.subr.mxu0 0.0
    %6902 = vmatpush1.msra.mxu0 0.0
    %6903 = vmatprep.subr.mxu0 0.0
    %6904 = vmatpush1.msra.mxu0 0.0
    %6905 = vmatprep.mubr.f32.mxu0 0.0
    %6906 = vmatmul.mubr.f32.gmra.mrb[0].mxu0 %v5995
    %v6907 = vpop.f32.mrb[0].mxu0
    %v6908 = vadd.f32 0.0, %v6907
    %v6909 = vpop.f32.mrb[0].mxu0
    %6910 = vdwg.mxu0
    %v6912 = vrot.slane %v6908, 1
    %v6915 = vadd.f32 %v6819, %v6908
    %v6916 = vadd.f32 %v6840, %v6912
    %v6917 = vxor.u32 %v6915, 2147483648
    %v6918 = vxor.u32 %v6916, 2147483648
    %v6919 = vmul.f32 %v6917, 1.442695
    %v6920 = vpow.pop %v6919
    %v6921 = vmul.f32 %v6918, 1.442695
    %v6922 = vpow.pop %v6921
    %v6923 = vadd.f32 %v6920, 1.0
    %v6924 = vadd.f32 %v6922, 1.0
    %v6925 = vrcp.pop %v6923
    %v6926 = vmul.f32 1.0, %v6925
    %v6927 = vrcp.pop %v6924
    %v6928 = vmul.f32 1.0, %v6927
    %v6929 = vtanh.pop %v6915
    %v6930 = vtanh.pop %v6916
    %v6931 = vmul.f32 %v6926, %v5975
    %v6932 = vmul.f32 %v6928, %v5976
    %6935 = vrot.lane.b32.xlu0 %v6929, 64
    %v6936 = vpop.permute.xlu0 %6935
    %6937 = vrot.lane.b32.xlu0 %v6930, 64
    %v6938 = vpop.permute.xlu0 %6937
    %v6941 = vmul.f32 %v6926, %v6936
    %v6942 = vmul.f32 %v6928, %v6938
    %6945 = vrot.lane.b32.xlu0 %v6941, 32
    %v6946 = vpop.permute.xlu0 %6945
    %6947 = vrot.lane.b32.xlu0 %v6942, 32
    %v6948 = vpop.permute.xlu0 %6947
    %v6951 = vadd.f32 %v6931, %v6946
    %v6952 = vadd.f32 %v6932, %v6948
    %v6953 = vtanh.pop %v6951
    %v6954 = vtanh.pop %v6952
    %6957 = vrot.lane.b32.xlu0 %v6953, 64
    %v6958 = vpop.permute.xlu0 %6957
    %6959 = vrot.lane.b32.xlu0 %v6954, 64
    %v6960 = vpop.permute.xlu0 %6959
    %v6963 = vmul.f32 %v6926, %v6958
    %v6964 = vmul.f32 %v6928, %v6960
    %v6967 = vrot.slane %v6964, 7
    %v6968 = vsel %vm1631, %v6967, %v6963
    %6969 = vrot.lane.b32.xlu0 %v6968, 32
    %v6970 = vpop.permute.xlu0 %6969
    %v6971 = vsel %vm107, %v6970, 0
    %6973 = vmatprep.subr.mxu0 0.0
    %6974 = vmatpush1.msra.mxu0 %v58
    %6975 = vmatprep.subr.mxu0 0.0
    %6976 = vmatpush1.msra.mxu0 %v59
    %6977 = vmatprep.subr.mxu0 0.0
    %6978 = vmatpush1.msra.mxu0 %v60
    %6979 = vmatprep.subr.mxu0 0.0
    %6980 = vmatpush1.msra.mxu0 %v61
    %6981 = vmatprep.subr.mxu0 0.0
    %6982 = vmatpush1.msra.mxu0 0.0
    %6983 = vmatprep.subr.mxu0 0.0
    %6984 = vmatpush1.msra.mxu0 0.0
    %6985 = vmatprep.subr.mxu0 0.0
    %6986 = vmatpush1.msra.mxu0 0.0
    %6987 = vmatprep.subr.mxu0 0.0
    %6988 = vmatpush1.msra.mxu0 0.0
    %6989 = vmatprep.subr.mxu0 0.0
    %6990 = vmatpush1.msra.mxu0 0.0
    %6991 = vmatprep.subr.mxu0 0.0
    %6992 = vmatpush1.msra.mxu0 0.0
    %6993 = vmatprep.subr.mxu0 0.0
    %6994 = vmatpush1.msra.mxu0 0.0
    %6995 = vmatprep.subr.mxu0 0.0
    %6996 = vmatpush1.msra.mxu0 0.0
    %6997 = vmatprep.subr.mxu0 0.0
    %6998 = vmatpush1.msra.mxu0 0.0
    %6999 = vmatprep.subr.mxu0 0.0
    %7000 = vmatpush1.msra.mxu0 0.0
    %7001 = vmatprep.subr.mxu0 0.0
    %7002 = vmatpush1.msra.mxu0 0.0
    %7003 = vmatprep.subr.mxu0 0.0
    %7004 = vmatpush1.msra.mxu0 0.0
    %7005 = vmatprep.subr.mxu0 0.0
    %7006 = vmatpush1.msra.mxu0 0.0
    %7007 = vmatprep.subr.mxu0 0.0
    %7008 = vmatpush1.msra.mxu0 0.0
    %7009 = vmatprep.subr.mxu0 0.0
    %7010 = vmatpush1.msra.mxu0 0.0
    %7011 = vmatprep.subr.mxu0 0.0
    %7012 = vmatpush1.msra.mxu0 0.0
    %7013 = vmatprep.subr.mxu0 0.0
    %7014 = vmatpush1.msra.mxu0 0.0
    %7015 = vmatprep.subr.mxu0 0.0
    %7016 = vmatpush1.msra.mxu0 0.0
    %7017 = vmatprep.subr.mxu0 0.0
    %7018 = vmatpush1.msra.mxu0 0.0
    %7019 = vmatprep.subr.mxu0 0.0
    %7020 = vmatpush1.msra.mxu0 0.0
    %7021 = vmatprep.subr.mxu0 0.0
    %7022 = vmatpush1.msra.mxu0 0.0
    %7023 = vmatprep.subr.mxu0 0.0
    %7024 = vmatpush1.msra.mxu0 0.0
    %7025 = vmatprep.subr.mxu0 0.0
    %7026 = vmatpush1.msra.mxu0 0.0
    %7027 = vmatprep.subr.mxu0 0.0
    %7028 = vmatpush1.msra.mxu0 0.0
    %7029 = vmatprep.subr.mxu0 0.0
    %7030 = vmatpush1.msra.mxu0 0.0
    %7031 = vmatprep.subr.mxu0 0.0
    %7032 = vmatpush1.msra.mxu0 0.0
    %7033 = vmatprep.subr.mxu0 0.0
    %7034 = vmatpush1.msra.mxu0 0.0
    %7035 = vmatprep.subr.mxu0 0.0
    %7036 = vmatpush1.msra.mxu0 0.0
    %7037 = vmatprep.mubr.f32.mxu0 0.0
    %7038 = vmatmul.mubr.f32.gmra.mrb[0].mxu0 %v6971
    %v7039 = vpop.f32.mrb[0].mxu0
    %v7040 = vadd.f32 %v1038, %v7039
    %v7041 = vpop.f32.mrb[0].mxu0
    %7042 = vdwg.mxu0
    %v7043 = vld [vmem:[#allocation2] sm:$0xff]
    %v7044 = vld [vmem:[#allocation2 + $0x8] sm:$0xff]
    %v7045 = vld [vmem:[#allocation2 + $0x10] sm:$0xff]
    %v7046 = vld [vmem:[#allocation2 + $0x18] sm:$0xff]
    %v7047 = vld [vmem:[#allocation2 + $0x20] sm:$0xff]
    %v7048 = vld [vmem:[#allocation2 + $0x28] sm:$0xff]
    %v7049 = vld [vmem:[#allocation2 + $0x30] sm:$0xff]
    %v7050 = vld [vmem:[#allocation2 + $0x38] sm:$0xff]
    %v7051 = vld [vmem:[#allocation2 + $0x40] sm:$0xff]
    %v7052 = vld [vmem:[#allocation2 + $0x48] sm:$0xff]
    %v7053 = vld [vmem:[#allocation2 + $0x50] sm:$0xff]
    %v7054 = vld [vmem:[#allocation2 + $0x58] sm:$0xff]
    %v7055 = vld [vmem:[#allocation2 + $0x60] sm:$0xff]
    %v7056 = vld [vmem:[#allocation2 + $0x68] sm:$0xff]
    %v7057 = vld [vmem:[#allocation2 + $0x70] sm:$0xff]
    %v7058 = vld [vmem:[#allocation2 + $0x78] sm:$0xff]
    %v7059 = vld [vmem:[#allocation2 + $0x80] sm:$0xff]
    %v7060 = vld [vmem:[#allocation2 + $0x88] sm:$0xff]
    %v7061 = vld [vmem:[#allocation2 + $0x90] sm:$0xff]
    %v7062 = vld [vmem:[#allocation2 + $0x98] sm:$0xff]
    %v7063 = vld [vmem:[#allocation2 + $0xa0] sm:$0xff]
    %v7064 = vld [vmem:[#allocation2 + $0xa8] sm:$0xff]
    %v7065 = vld [vmem:[#allocation2 + $0xb0] sm:$0xff]
    %v7066 = vld [vmem:[#allocation2 + $0xb8] sm:$0xff]
    %v7067 = vld [vmem:[#allocation2 + $0xc0] sm:$0xff]
    %v7068 = vld [vmem:[#allocation2 + $0xc8] sm:$0xff]
    %v7069 = vld [vmem:[#allocation2 + $0xd0] sm:$0xff]
    %v7070 = vld [vmem:[#allocation2 + $0xd8] sm:$0xff]
    %v7071 = vld [vmem:[#allocation2 + $0xe0] sm:$0xff]
    %v7072 = vld [vmem:[#allocation2 + $0xe8] sm:$0xff]
    %v7073 = vld [vmem:[#allocation2 + $0xf0] sm:$0xff]
    %v7074 = vld [vmem:[#allocation2 + $0xf8] sm:$0xff]
    %v7077 = vunpack.c.l.s4 1966171168
    %v7078 = vunpack.c.0.s8 %v7077
    %v7079 = vlaneseq
    %v7080 = vshrl.u32 %v7079, 7
    %v7081 = vsub.s32 %v7078, %v7080
    %v7082 = vrot.slane %v7040, %v7081
    %v7083 = vcombine.high %v7082, %v7082
    %v7085 = vunpack.c.l.s4 1966171168
    %v7086 = vunpack.c.0.s8 %v7085
    %v7087 = vlaneseq
    %v7088 = vshrl.u32 %v7087, 7
    %v7089 = vsub.s32 %v7086, %v7088
    %v7090 = vrot.slane %v7082, %v7089
    %v7092 = vunpack.c.l.s4 1966171168
    %v7093 = vunpack.c.0.s8 %v7092
    %v7094 = vlaneseq
    %v7095 = vshrl.u32 %v7094, 7
    %v7096 = vsub.s32 %v7093, %v7095
    %v7097 = vrot.slane %v7083, %v7096
    %v7098 = vlaneseq
    %v7099 = vshrl.u32 %v7098, 7
    %v7100 = vsub.s32 0, %v7099
    %v7101 = vrot.slane %v7090, %v7100
    %v7102 = vlaneseq
    %v7103 = vshrl.u32 %v7102, 7
    %v7104 = vsub.s32 0, %v7103
    %v7105 = vrot.slane %v7097, %v7104
    %v7108 = vadd.f32 %v7101, %v7043
    %v7109 = vadd.f32 %v7101, %v7044
    %v7110 = vadd.f32 %v7101, %v7045
    %v7111 = vadd.f32 %v7101, %v7046
    %v7112 = vadd.f32 %v7101, %v7047
    %v7113 = vadd.f32 %v7101, %v7048
    %v7114 = vadd.f32 %v7101, %v7049
    %v7115 = vadd.f32 %v7101, %v7050
    %v7116 = vadd.f32 %v7101, %v7051
    %v7117 = vadd.f32 %v7101, %v7052
    %v7118 = vadd.f32 %v7101, %v7053
    %v7119 = vadd.f32 %v7101, %v7054
    %v7120 = vadd.f32 %v7101, %v7055
    %v7121 = vadd.f32 %v7101, %v7056
    %v7122 = vadd.f32 %v7101, %v7057
    %v7123 = vadd.f32 %v7101, %v7058
    %v7124 = vadd.f32 %v7105, %v7059
    %v7125 = vadd.f32 %v7105, %v7060
    %v7126 = vadd.f32 %v7105, %v7061
    %v7127 = vadd.f32 %v7105, %v7062
    %v7128 = vadd.f32 %v7105, %v7063
    %v7129 = vadd.f32 %v7105, %v7064
    %v7130 = vadd.f32 %v7105, %v7065
    %v7131 = vadd.f32 %v7105, %v7066
    %v7132 = vadd.f32 %v7105, %v7067
    %v7133 = vadd.f32 %v7105, %v7068
    %v7134 = vadd.f32 %v7105, %v7069
    %v7135 = vadd.f32 %v7105, %v7070
    %v7136 = vadd.f32 %v7105, %v7071
    %v7137 = vadd.f32 %v7105, %v7072
    %v7138 = vadd.f32 %v7105, %v7073
    %v7139 = vadd.f32 %v7105, %v7074
    %v7140 = vtanh.pop %v7108
    %v7141 = vtanh.pop %v7109
    %v7142 = vtanh.pop %v7110
    %v7143 = vtanh.pop %v7111
    %v7144 = vtanh.pop %v7112
    %v7145 = vtanh.pop %v7113
    %v7146 = vtanh.pop %v7114
    %v7147 = vtanh.pop %v7115
    %v7148 = vtanh.pop %v7116
    %v7149 = vtanh.pop %v7117
    %v7150 = vtanh.pop %v7118
    %v7151 = vtanh.pop %v7119
    %v7152 = vtanh.pop %v7120
    %v7153 = vtanh.pop %v7121
    %v7154 = vtanh.pop %v7122
    %v7155 = vtanh.pop %v7123
    %v7156 = vtanh.pop %v7124
    %v7157 = vtanh.pop %v7125
    %v7158 = vtanh.pop %v7126
    %v7159 = vtanh.pop %v7127
    %v7160 = vtanh.pop %v7128
    %v7161 = vtanh.pop %v7129
    %v7162 = vtanh.pop %v7130
    %v7163 = vtanh.pop %v7131
    %v7164 = vtanh.pop %v7132
    %v7165 = vtanh.pop %v7133
    %v7166 = vtanh.pop %v7134
    %v7167 = vtanh.pop %v7135
    %v7168 = vtanh.pop %v7136
    %v7169 = vtanh.pop %v7137
    %v7170 = vtanh.pop %v7138
    %v7171 = vtanh.pop %v7139
    %v7172 = vmul.f32 %v7140, %v1248
    %v7173 = vmul.f32 %v7141, %v1248
    %v7174 = vmul.f32 %v7142, %v1248
    %v7175 = vmul.f32 %v7143, %v1248
    %v7176 = vmul.f32 %v7144, %v1248
    %v7177 = vmul.f32 %v7145, %v1248
    %v7178 = vmul.f32 %v7146, %v1248
    %v7179 = vmul.f32 %v7147, %v1248
    %v7180 = vmul.f32 %v7148, %v1248
    %v7181 = vmul.f32 %v7149, %v1248
    %v7182 = vmul.f32 %v7150, %v1248
    %v7183 = vmul.f32 %v7151, %v1248
    %v7184 = vmul.f32 %v7152, %v1248
    %v7185 = vmul.f32 %v7153, %v1248
    %v7186 = vmul.f32 %v7154, %v1248
    %v7187 = vmul.f32 %v7155, %v1248
    %v7188 = vmul.f32 %v7156, %v1248
    %v7189 = vmul.f32 %v7157, %v1248
    %v7190 = vmul.f32 %v7158, %v1248
    %v7191 = vmul.f32 %v7159, %v1248
    %v7192 = vmul.f32 %v7160, %v1248
    %v7193 = vmul.f32 %v7161, %v1248
    %v7194 = vmul.f32 %v7162, %v1248
    %v7195 = vmul.f32 %v7163, %v1248
    %v7196 = vmul.f32 %v7164, %v1248
    %v7197 = vmul.f32 %v7165, %v1248
    %v7198 = vmul.f32 %v7166, %v1248
    %v7199 = vmul.f32 %v7167, %v1248
    %v7200 = vmul.f32 %v7168, %v1248
    %v7201 = vmul.f32 %v7169, %v1248
    %v7202 = vmul.f32 %v7170, %v1248
    %v7203 = vmul.f32 %v7171, %v1248
    %v7204 = vsel %vm107, %v7172, 0.0
    %7205 = vadd.xlane.f32.xlu0 %v7204
    %v7206 = vpop.xlane.xlu0 %7205
    %v7207 = vsel %vm107, %v7173, 0.0
    %7208 = vadd.xlane.f32.xlu0 %v7207
    %v7209 = vpop.xlane.xlu0 %7208
    %v7210 = vsel %vm107, %v7174, 0.0
    %7211 = vadd.xlane.f32.xlu0 %v7210
    %v7212 = vpop.xlane.xlu0 %7211
    %v7213 = vsel %vm107, %v7175, 0.0
    %7214 = vadd.xlane.f32.xlu0 %v7213
    %v7215 = vpop.xlane.xlu0 %7214
    %v7216 = vsel %vm107, %v7176, 0.0
    %7217 = vadd.xlane.f32.xlu0 %v7216
    %v7218 = vpop.xlane.xlu0 %7217
    %v7219 = vsel %vm107, %v7177, 0.0
    %7220 = vadd.xlane.f32.xlu0 %v7219
    %v7221 = vpop.xlane.xlu0 %7220
    %v7222 = vsel %vm107, %v7178, 0.0
    %7223 = vadd.xlane.f32.xlu0 %v7222
    %v7224 = vpop.xlane.xlu0 %7223
    %v7225 = vsel %vm107, %v7179, 0.0
    %7226 = vadd.xlane.f32.xlu0 %v7225
    %v7227 = vpop.xlane.xlu0 %7226
    %v7228 = vsel %vm107, %v7180, 0.0
    %7229 = vadd.xlane.f32.xlu0 %v7228
    %v7230 = vpop.xlane.xlu0 %7229
    %v7231 = vsel %vm107, %v7181, 0.0
    %7232 = vadd.xlane.f32.xlu0 %v7231
    %v7233 = vpop.xlane.xlu0 %7232
    %v7234 = vsel %vm107, %v7182, 0.0
    %7235 = vadd.xlane.f32.xlu0 %v7234
    %v7236 = vpop.xlane.xlu0 %7235
    %v7237 = vsel %vm107, %v7183, 0.0
    %7238 = vadd.xlane.f32.xlu0 %v7237
    %v7239 = vpop.xlane.xlu0 %7238
    %v7240 = vsel %vm107, %v7184, 0.0
    %7241 = vadd.xlane.f32.xlu0 %v7240
    %v7242 = vpop.xlane.xlu0 %7241
    %v7243 = vsel %vm107, %v7185, 0.0
    %7244 = vadd.xlane.f32.xlu0 %v7243
    %v7245 = vpop.xlane.xlu0 %7244
    %v7246 = vsel %vm107, %v7186, 0.0
    %7247 = vadd.xlane.f32.xlu0 %v7246
    %v7248 = vpop.xlane.xlu0 %7247
    %v7249 = vsel %vm107, %v7187, 0.0
    %7250 = vadd.xlane.f32.xlu0 %v7249
    %v7251 = vpop.xlane.xlu0 %7250
    %v7252 = vsel %vm107, %v7188, 0.0
    %7253 = vadd.xlane.f32.xlu0 %v7252
    %v7254 = vpop.xlane.xlu0 %7253
    %v7255 = vsel %vm107, %v7189, 0.0
    %7256 = vadd.xlane.f32.xlu0 %v7255
    %v7257 = vpop.xlane.xlu0 %7256
    %v7258 = vsel %vm107, %v7190, 0.0
    %7259 = vadd.xlane.f32.xlu0 %v7258
    %v7260 = vpop.xlane.xlu0 %7259
    %v7261 = vsel %vm107, %v7191, 0.0
    %7262 = vadd.xlane.f32.xlu0 %v7261
    %v7263 = vpop.xlane.xlu0 %7262
    %v7264 = vsel %vm107, %v7192, 0.0
    %7265 = vadd.xlane.f32.xlu0 %v7264
    %v7266 = vpop.xlane.xlu0 %7265
    %v7267 = vsel %vm107, %v7193, 0.0
    %7268 = vadd.xlane.f32.xlu0 %v7267
    %v7269 = vpop.xlane.xlu0 %7268
    %v7270 = vsel %vm107, %v7194, 0.0
    %7271 = vadd.xlane.f32.xlu0 %v7270
    %v7272 = vpop.xlane.xlu0 %7271
    %v7273 = vsel %vm107, %v7195, 0.0
    %7274 = vadd.xlane.f32.xlu0 %v7273
    %v7275 = vpop.xlane.xlu0 %7274
    %v7276 = vsel %vm107, %v7196, 0.0
    %7277 = vadd.xlane.f32.xlu0 %v7276
    %v7278 = vpop.xlane.xlu0 %7277
    %v7279 = vsel %vm107, %v7197, 0.0
    %7280 = vadd.xlane.f32.xlu0 %v7279
    %v7281 = vpop.xlane.xlu0 %7280
    %v7282 = vsel %vm107, %v7198, 0.0
    %7283 = vadd.xlane.f32.xlu0 %v7282
    %v7284 = vpop.xlane.xlu0 %7283
    %v7285 = vsel %vm107, %v7199, 0.0
    %7286 = vadd.xlane.f32.xlu0 %v7285
    %v7287 = vpop.xlane.xlu0 %7286
    %v7288 = vsel %vm107, %v7200, 0.0
    %7289 = vadd.xlane.f32.xlu0 %v7288
    %v7290 = vpop.xlane.xlu0 %7289
    %v7291 = vsel %vm107, %v7201, 0.0
    %7292 = vadd.xlane.f32.xlu0 %v7291
    %v7293 = vpop.xlane.xlu0 %7292
    %v7294 = vsel %vm107, %v7202, 0.0
    %7295 = vadd.xlane.f32.xlu0 %v7294
    %v7296 = vpop.xlane.xlu0 %7295
    %v7297 = vsel %vm107, %v7203, 0.0
    %7298 = vadd.xlane.f32.xlu0 %v7297
    %v7299 = vpop.xlane.xlu0 %7298
    %vm7300 = vcmp.eq.f32.partialorder %v6600, 0.0
    %v7333 = vlaneseq
    %v7334 = vshrl.u32 %v7333, 7
    %v7335 = vsub.s32 %v928, %v7334
    %v7336 = vrot.slane %v7206, %v7335
    %v7337 = vlaneseq
    %v7338 = vshrl.u32 %v7337, 7
    %v7339 = vsub.s32 %v1447, %v7338
    %v7340 = vrot.slane %v7209, %v7339
    %v7341 = vsel %vm1452, %v7340, %v7336
    %v7342 = vlaneseq
    %v7343 = vshrl.u32 %v7342, 7
    %v7344 = vsub.s32 %v1454, %v7343
    %v7345 = vrot.slane %v7212, %v7344
    %v7346 = vsel %vm1459, %v7345, %v7341
    %v7347 = vlaneseq
    %v7348 = vshrl.u32 %v7347, 7
    %v7349 = vsub.s32 %v1461, %v7348
    %v7350 = vrot.slane %v7215, %v7349
    %v7351 = vsel %vm1466, %v7350, %v7346
    %v7352 = vlaneseq
    %v7353 = vshrl.u32 %v7352, 7
    %v7354 = vsub.s32 %v1468, %v7353
    %v7355 = vrot.slane %v7218, %v7354
    %v7356 = vsel %vm1473, %v7355, %v7351
    %v7357 = vlaneseq
    %v7358 = vshrl.u32 %v7357, 7
    %v7359 = vsub.s32 %v1475, %v7358
    %v7360 = vrot.slane %v7221, %v7359
    %v7361 = vsel %vm1480, %v7360, %v7356
    %v7362 = vlaneseq
    %v7363 = vshrl.u32 %v7362, 7
    %v7364 = vsub.s32 %v1482, %v7363
    %v7365 = vrot.slane %v7224, %v7364
    %v7366 = vsel %vm1487, %v7365, %v7361
    %v7367 = vlaneseq
    %v7368 = vshrl.u32 %v7367, 7
    %v7369 = vsub.s32 %v1489, %v7368
    %v7370 = vrot.slane %v7227, %v7369
    %v7371 = vsel %vm1494, %v7370, %v7366
    %v7372 = vlaneseq
    %v7373 = vshrl.u32 %v7372, 7
    %v7374 = vsub.s32 %v1496, %v7373
    %v7375 = vrot.slane %v7230, %v7374
    %v7376 = vsel %vm1501, %v7375, %v7371
    %v7377 = vlaneseq
    %v7378 = vshrl.u32 %v7377, 7
    %v7379 = vsub.s32 %v1503, %v7378
    %v7380 = vrot.slane %v7233, %v7379
    %v7381 = vsel %vm1508, %v7380, %v7376
    %v7382 = vlaneseq
    %v7383 = vshrl.u32 %v7382, 7
    %v7384 = vsub.s32 %v1510, %v7383
    %v7385 = vrot.slane %v7236, %v7384
    %v7386 = vsel %vm1515, %v7385, %v7381
    %v7387 = vlaneseq
    %v7388 = vshrl.u32 %v7387, 7
    %v7389 = vsub.s32 %v1517, %v7388
    %v7390 = vrot.slane %v7239, %v7389
    %v7391 = vsel %vm1522, %v7390, %v7386
    %v7392 = vlaneseq
    %v7393 = vshrl.u32 %v7392, 7
    %v7394 = vsub.s32 %v1524, %v7393
    %v7395 = vrot.slane %v7242, %v7394
    %v7396 = vsel %vm1529, %v7395, %v7391
    %v7397 = vlaneseq
    %v7398 = vshrl.u32 %v7397, 7
    %v7399 = vsub.s32 %v1531, %v7398
    %v7400 = vrot.slane %v7245, %v7399
    %v7401 = vsel %vm1536, %v7400, %v7396
    %v7402 = vlaneseq
    %v7403 = vshrl.u32 %v7402, 7
    %v7404 = vsub.s32 %v1538, %v7403
    %v7405 = vrot.slane %v7248, %v7404
    %v7406 = vsel %vm1543, %v7405, %v7401
    %v7407 = vlaneseq
    %v7408 = vshrl.u32 %v7407, 7
    %v7409 = vsub.s32 %v1545, %v7408
    %v7410 = vrot.slane %v7251, %v7409
    %v7411 = vsel %vm1550, %v7410, %v7406
    %v7412 = vlaneseq
    %v7413 = vshrl.u32 %v7412, 7
    %v7414 = vsub.s32 %v928, %v7413
    %v7415 = vrot.slane %v7254, %v7414
    %v7416 = vlaneseq
    %v7417 = vshrl.u32 %v7416, 7
    %v7418 = vsub.s32 %v1447, %v7417
    %v7419 = vrot.slane %v7257, %v7418
    %v7420 = vsel %vm1452, %v7419, %v7415
    %v7421 = vlaneseq
    %v7422 = vshrl.u32 %v7421, 7
    %v7423 = vsub.s32 %v1454, %v7422
    %v7424 = vrot.slane %v7260, %v7423
    %v7425 = vsel %vm1459, %v7424, %v7420
    %v7426 = vlaneseq
    %v7427 = vshrl.u32 %v7426, 7
    %v7428 = vsub.s32 %v1461, %v7427
    %v7429 = vrot.slane %v7263, %v7428
    %v7430 = vsel %vm1466, %v7429, %v7425
    %v7431 = vlaneseq
    %v7432 = vshrl.u32 %v7431, 7
    %v7433 = vsub.s32 %v1468, %v7432
    %v7434 = vrot.slane %v7266, %v7433
    %v7435 = vsel %vm1473, %v7434, %v7430
    %v7436 = vlaneseq
    %v7437 = vshrl.u32 %v7436, 7
    %v7438 = vsub.s32 %v1475, %v7437
    %v7439 = vrot.slane %v7269, %v7438
    %v7440 = vsel %vm1480, %v7439, %v7435
    %v7441 = vlaneseq
    %v7442 = vshrl.u32 %v7441, 7
    %v7443 = vsub.s32 %v1482, %v7442
    %v7444 = vrot.slane %v7272, %v7443
    %v7445 = vsel %vm1487, %v7444, %v7440
    %v7446 = vlaneseq
    %v7447 = vshrl.u32 %v7446, 7
    %v7448 = vsub.s32 %v1489, %v7447
    %v7449 = vrot.slane %v7275, %v7448
    %v7450 = vsel %vm1494, %v7449, %v7445
    %v7451 = vlaneseq
    %v7452 = vshrl.u32 %v7451, 7
    %v7453 = vsub.s32 %v1496, %v7452
    %v7454 = vrot.slane %v7278, %v7453
    %v7455 = vsel %vm1501, %v7454, %v7450
    %v7456 = vlaneseq
    %v7457 = vshrl.u32 %v7456, 7
    %v7458 = vsub.s32 %v1503, %v7457
    %v7459 = vrot.slane %v7281, %v7458
    %v7460 = vsel %vm1508, %v7459, %v7455
    %v7461 = vlaneseq
    %v7462 = vshrl.u32 %v7461, 7
    %v7463 = vsub.s32 %v1510, %v7462
    %v7464 = vrot.slane %v7284, %v7463
    %v7465 = vsel %vm1515, %v7464, %v7460
    %v7466 = vlaneseq
    %v7467 = vshrl.u32 %v7466, 7
    %v7468 = vsub.s32 %v1517, %v7467
    %v7469 = vrot.slane %v7287, %v7468
    %v7470 = vsel %vm1522, %v7469, %v7465
    %v7471 = vlaneseq
    %v7472 = vshrl.u32 %v7471, 7
    %v7473 = vsub.s32 %v1524, %v7472
    %v7474 = vrot.slane %v7290, %v7473
    %v7475 = vsel %vm1529, %v7474, %v7470
    %v7476 = vlaneseq
    %v7477 = vshrl.u32 %v7476, 7
    %v7478 = vsub.s32 %v1531, %v7477
    %v7479 = vrot.slane %v7293, %v7478
    %v7480 = vsel %vm1536, %v7479, %v7475
    %v7481 = vlaneseq
    %v7482 = vshrl.u32 %v7481, 7
    %v7483 = vsub.s32 %v1538, %v7482
    %v7484 = vrot.slane %v7296, %v7483
    %v7485 = vsel %vm1543, %v7484, %v7480
    %v7486 = vlaneseq
    %v7487 = vshrl.u32 %v7486, 7
    %v7488 = vsub.s32 %v1545, %v7487
    %v7489 = vrot.slane %v7299, %v7488
    %v7490 = vsel %vm1550, %v7489, %v7485
    %v7491 = vsel %vm1631, %v7490, %v7411
    %v7493 = vsel %vm7300, -10.0, %v7491
    %v7494 = vsel %vm929, %v7493, -1e+30
    %v7495 = vsel %vm7300, -1e+09, %v7494
    %v7496 = vsel %vm1636, %v7495, -inf
    %7497 = vmax.xlane.f32.xlu0 %v7496
    %v7498 = vpop.xlane.xlu0 %7497
    %vm7499 = vcmp.eq.f32.partialorder %v7495, %v7498
    %v7500 = vsel %vm7499, %v928, 128
    %v7501 = vsel %vm1636, %v7500, 2147483647
    %v7502 = vand.u32 %v7501, 65535
    %v7503 = vshra.s32 %v7501, 16
    %v7504 = vcvt.s32.f32 %v7502
    %v7505 = vcvt.s32.f32 %v7503
    %7506 = vmin.xlane.f32.xlu0 %v7505
    %v7507 = vpop.xlane.xlu0 %7506
    %vm7508 = vcmp.eq.f32.partialorder %v7505, %v7507
    %v7509 = vsel %vm7508, %v7504, inf
    %7510 = vmin.xlane.f32.xlu0 %v7509
    %v7511 = vpop.xlane.xlu0 %7510
    %v7512 = vcvt.f32.s32 %v7511
    %v7513 = vcvt.f32.s32 %v7507
    %v7514 = vshll.u32 %v7513, 16
    %v7515 = vadd.s32 %v7514, %v7512
    %vm7516 = vcmp.eq.s32.totalorder %v928, %v7515
    %v7517 = vsel %vm7516, 1, 0
    %v7518 = vcvt.s32.f32 %v7517
    %v7519 = vsel %vm1636, %v7494, -inf
    %7520 = vmax.xlane.f32.xlu0 %v7519
    %v7521 = vpop.xlane.xlu0 %7520
    %v7522 = vsub.f32 %v7494, %v7521
    %v7523 = vmul.f32 %v7522, 1.442695
    %v7524 = vpow.pop %v7523
    %v7525 = vsel %vm1636, %v7524, 0.0
    %7526 = vadd.xlane.f32.xlu0 %v7525
    %v7527 = vpop.xlane.xlu0 %7526
    %v7528 = vrcp.pop %v7527
    %v7529 = vmul.f32 %v7527, %v7528
    %v7530 = vsub.f32 2.0, %v7529
    %v7531 = vmul.f32 %v7528, %v7530
    %v7532 = vmul.f32 %v7524, %v7531
    %v7533 = vsel %vm929, %v7532, -1e+30
    %v7534 = vsel %vm1636, %v7533, -inf
    %7535 = vmax.xlane.f32.xlu0 %v7534
    %v7536 = vpop.xlane.xlu0 %7535
    %v7537 = vsub.f32 %v7533, %v7536
    %v7538 = vmul.f32 %v7537, 1.442695
    %v7539 = vpow.pop %v7538
    %v7540 = vsel %vm1636, %v7539, 0.0
    %7541 = vadd.xlane.f32.xlu0 %v7540
    %v7542 = vpop.xlane.xlu0 %7541
    %v7543 = vlog2.pop %v7542
    %v7544 = vmul.f32 %v7543, 0.6931472
    %v7545 = vsub.f32 %v7537, %v7544
    %v7548 = vunpack.c.l.s4 1966171168
    %v7549 = vunpack.c.0.s8 %v7548
    %v7550 = vlaneseq
    %v7551 = vshrl.u32 %v7550, 7
    %v7552 = vsub.s32 %v7549, %v7551
    %v7553 = vrot.slane %v7545, %v7552
    %v7554 = vcombine.high %v7553, %v7553
    %v7556 = vunpack.c.l.s4 1966171168
    %v7557 = vunpack.c.0.s8 %v7556
    %v7558 = vlaneseq
    %v7559 = vshrl.u32 %v7558, 7
    %v7560 = vsub.s32 %v7557, %v7559
    %v7561 = vrot.slane %v7553, %v7560
    %v7563 = vunpack.c.l.s4 1966171168
    %v7564 = vunpack.c.0.s8 %v7563
    %v7565 = vlaneseq
    %v7566 = vshrl.u32 %v7565, 7
    %v7567 = vsub.s32 %v7564, %v7566
    %v7568 = vrot.slane %v7554, %v7567
    %7571 = vst [vmem:[#allocation4 + $0x6] sm:$0x1] %v7561
    %7572 = vst [vmem:[#allocation4 + $0xe] sm:$0x1] %v7568
    %vm7573 = vcmp.eq.s32.totalorder %v928, 6
    %v7574 = vsel %vm7573, %v7515, %v6598
    %v7575 = vsub.f32 1.0, %v7518
    %v7576 = vmul.f32 %v6600, %v7575
    %v7577 = vlaneseq
    %v7578 = vshrl.u32 %v7577, 7
    %v7579 = vsub.s32 0, %v7578
    %v7580 = vrot.slane %v7518, %v7579
    %7582 = vbcast.lane.b32.xlu0 %v7580, 256
    %v7583 = vpop.permute.xlu0 %7582
    %s7585 = sor.u32 256, 8
    %7586 = vbcast.lane.b32.xlu0 %v7580, %s7585
    %v7587 = vpop.permute.xlu0 %7586
    %s7589 = sor.u32 256, 16
    %7590 = vbcast.lane.b32.xlu0 %v7580, %s7589
    %v7591 = vpop.permute.xlu0 %7590
    %s7593 = sor.u32 256, 24
    %7594 = vbcast.lane.b32.xlu0 %v7580, %s7593
    %v7595 = vpop.permute.xlu0 %7594
    %s7597 = sor.u32 256, 32
    %7598 = vbcast.lane.b32.xlu0 %v7580, %s7597
    %v7599 = vpop.permute.xlu0 %7598
    %s7601 = sor.u32 256, 40
    %7602 = vbcast.lane.b32.xlu0 %v7580, %s7601
    %v7603 = vpop.permute.xlu0 %7602
    %s7605 = sor.u32 256, 48
    %7606 = vbcast.lane.b32.xlu0 %v7580, %s7605
    %v7607 = vpop.permute.xlu0 %7606
    %s7609 = sor.u32 256, 56
    %7610 = vbcast.lane.b32.xlu0 %v7580, %s7609
    %v7611 = vpop.permute.xlu0 %7610
    %s7613 = sor.u32 256, 64
    %7614 = vbcast.lane.b32.xlu0 %v7580, %s7613
    %v7615 = vpop.permute.xlu0 %7614
    %s7617 = sor.u32 256, 72
    %7618 = vbcast.lane.b32.xlu0 %v7580, %s7617
    %v7619 = vpop.permute.xlu0 %7618
    %s7621 = sor.u32 256, 80
    %7622 = vbcast.lane.b32.xlu0 %v7580, %s7621
    %v7623 = vpop.permute.xlu0 %7622
    %s7625 = sor.u32 256, 88
    %7626 = vbcast.lane.b32.xlu0 %v7580, %s7625
    %v7627 = vpop.permute.xlu0 %7626
    %s7629 = sor.u32 256, 96
    %7630 = vbcast.lane.b32.xlu0 %v7580, %s7629
    %v7631 = vpop.permute.xlu0 %7630
    %s7633 = sor.u32 256, 104
    %7634 = vbcast.lane.b32.xlu0 %v7580, %s7633
    %v7635 = vpop.permute.xlu0 %7634
    %s7637 = sor.u32 256, 112
    %7638 = vbcast.lane.b32.xlu0 %v7580, %s7637
    %v7639 = vpop.permute.xlu0 %7638
    %s7641 = sor.u32 256, 120
    %7642 = vbcast.lane.b32.xlu0 %v7580, %s7641
    %v7643 = vpop.permute.xlu0 %7642
    %v7644 = vlaneseq
    %v7645 = vshrl.u32 %v7644, 7
    %v7646 = vsub.s32 1, %v7645
    %v7647 = vrot.slane %v7518, %v7646
    %7649 = vbcast.lane.b32.xlu0 %v7647, 256
    %v7650 = vpop.permute.xlu0 %7649
    %s7652 = sor.u32 256, 8
    %7653 = vbcast.lane.b32.xlu0 %v7647, %s7652
    %v7654 = vpop.permute.xlu0 %7653
    %s7656 = sor.u32 256, 16
    %7657 = vbcast.lane.b32.xlu0 %v7647, %s7656
    %v7658 = vpop.permute.xlu0 %7657
    %s7660 = sor.u32 256, 24
    %7661 = vbcast.lane.b32.xlu0 %v7647, %s7660
    %v7662 = vpop.permute.xlu0 %7661
    %s7664 = sor.u32 256, 32
    %7665 = vbcast.lane.b32.xlu0 %v7647, %s7664
    %v7666 = vpop.permute.xlu0 %7665
    %s7668 = sor.u32 256, 40
    %7669 = vbcast.lane.b32.xlu0 %v7647, %s7668
    %v7670 = vpop.permute.xlu0 %7669
    %s7672 = sor.u32 256, 48
    %7673 = vbcast.lane.b32.xlu0 %v7647, %s7672
    %v7674 = vpop.permute.xlu0 %7673
    %s7676 = sor.u32 256, 56
    %7677 = vbcast.lane.b32.xlu0 %v7647, %s7676
    %v7678 = vpop.permute.xlu0 %7677
    %s7680 = sor.u32 256, 64
    %7681 = vbcast.lane.b32.xlu0 %v7647, %s7680
    %v7682 = vpop.permute.xlu0 %7681
    %s7684 = sor.u32 256, 72
    %7685 = vbcast.lane.b32.xlu0 %v7647, %s7684
    %v7686 = vpop.permute.xlu0 %7685
    %s7688 = sor.u32 256, 80
    %7689 = vbcast.lane.b32.xlu0 %v7647, %s7688
    %v7690 = vpop.permute.xlu0 %7689
    %s7692 = sor.u32 256, 88
    %7693 = vbcast.lane.b32.xlu0 %v7647, %s7692
    %v7694 = vpop.permute.xlu0 %7693
    %s7696 = sor.u32 256, 96
    %7697 = vbcast.lane.b32.xlu0 %v7647, %s7696
    %v7698 = vpop.permute.xlu0 %7697
    %s7700 = sor.u32 256, 104
    %7701 = vbcast.lane.b32.xlu0 %v7647, %s7700
    %v7702 = vpop.permute.xlu0 %7701
    %s7704 = sor.u32 256, 112
    %7705 = vbcast.lane.b32.xlu0 %v7647, %s7704
    %v7706 = vpop.permute.xlu0 %7705
    %s7708 = sor.u32 256, 120
    %7709 = vbcast.lane.b32.xlu0 %v7647, %s7708
    %v7710 = vpop.permute.xlu0 %7709
    %v7711 = vld [vmem:[#allocation3] sm:$0xff]
    %v7712 = vld [vmem:[#allocation3 + $0x8] sm:$0xff]
    %v7713 = vld [vmem:[#allocation3 + $0x10] sm:$0xff]
    %v7714 = vld [vmem:[#allocation3 + $0x18] sm:$0xff]
    %v7715 = vld [vmem:[#allocation3 + $0x20] sm:$0xff]
    %v7716 = vld [vmem:[#allocation3 + $0x28] sm:$0xff]
    %v7717 = vld [vmem:[#allocation3 + $0x30] sm:$0xff]
    %v7718 = vld [vmem:[#allocation3 + $0x38] sm:$0xff]
    %v7719 = vld [vmem:[#allocation3 + $0x40] sm:$0xff]
    %v7720 = vld [vmem:[#allocation3 + $0x48] sm:$0xff]
    %v7721 = vld [vmem:[#allocation3 + $0x50] sm:$0xff]
    %v7722 = vld [vmem:[#allocation3 + $0x58] sm:$0xff]
    %v7723 = vld [vmem:[#allocation3 + $0x60] sm:$0xff]
    %v7724 = vld [vmem:[#allocation3 + $0x68] sm:$0xff]
    %v7725 = vld [vmem:[#allocation3 + $0x70] sm:$0xff]
    %v7726 = vld [vmem:[#allocation3 + $0x78] sm:$0xff]
    %v7727 = vld [vmem:[#allocation3 + $0x80] sm:$0xff]
    %v7728 = vld [vmem:[#allocation3 + $0x88] sm:$0xff]
    %v7729 = vld [vmem:[#allocation3 + $0x90] sm:$0xff]
    %v7730 = vld [vmem:[#allocation3 + $0x98] sm:$0xff]
    %v7731 = vld [vmem:[#allocation3 + $0xa0] sm:$0xff]
    %v7732 = vld [vmem:[#allocation3 + $0xa8] sm:$0xff]
    %v7733 = vld [vmem:[#allocation3 + $0xb0] sm:$0xff]
    %v7734 = vld [vmem:[#allocation3 + $0xb8] sm:$0xff]
    %v7735 = vld [vmem:[#allocation3 + $0xc0] sm:$0xff]
    %v7736 = vld [vmem:[#allocation3 + $0xc8] sm:$0xff]
    %v7737 = vld [vmem:[#allocation3 + $0xd0] sm:$0xff]
    %v7738 = vld [vmem:[#allocation3 + $0xd8] sm:$0xff]
    %v7739 = vld [vmem:[#allocation3 + $0xe0] sm:$0xff]
    %v7740 = vld [vmem:[#allocation3 + $0xe8] sm:$0xff]
    %v7741 = vld [vmem:[#allocation3 + $0xf0] sm:$0xff]
    %v7742 = vld [vmem:[#allocation3 + $0xf8] sm:$0xff]
    %v7743 = vmul.f32 %v7583, %v7711
    %v7744 = vmul.f32 %v7587, %v7712
    %v7745 = vmul.f32 %v7591, %v7713
    %v7746 = vmul.f32 %v7595, %v7714
    %v7747 = vmul.f32 %v7599, %v7715
    %v7748 = vmul.f32 %v7603, %v7716
    %v7749 = vmul.f32 %v7607, %v7717
    %v7750 = vmul.f32 %v7611, %v7718
    %v7751 = vmul.f32 %v7615, %v7719
    %v7752 = vmul.f32 %v7619, %v7720
    %v7753 = vmul.f32 %v7623, %v7721
    %v7754 = vmul.f32 %v7627, %v7722
    %v7755 = vmul.f32 %v7631, %v7723
    %v7756 = vmul.f32 %v7635, %v7724
    %v7757 = vmul.f32 %v7639, %v7725
    %v7758 = vmul.f32 %v7643, %v7726
    %v7759 = vmul.f32 %v7650, %v7727
    %v7760 = vmul.f32 %v7654, %v7728
    %v7761 = vmul.f32 %v7658, %v7729
    %v7762 = vmul.f32 %v7662, %v7730
    %v7763 = vmul.f32 %v7666, %v7731
    %v7764 = vmul.f32 %v7670, %v7732
    %v7765 = vmul.f32 %v7674, %v7733
    %v7766 = vmul.f32 %v7678, %v7734
    %v7767 = vmul.f32 %v7682, %v7735
    %v7768 = vmul.f32 %v7686, %v7736
    %v7769 = vmul.f32 %v7690, %v7737
    %v7770 = vmul.f32 %v7694, %v7738
    %v7771 = vmul.f32 %v7698, %v7739
    %v7772 = vmul.f32 %v7702, %v7740
    %v7773 = vmul.f32 %v7706, %v7741
    %v7774 = vmul.f32 %v7710, %v7742
    %v7775 = vadd.f32 %v7743, %v7744
    %v7776 = vadd.f32 %v7775, %v7745
    %v7777 = vadd.f32 %v7776, %v7746
    %v7778 = vadd.f32 %v7777, %v7747
    %v7779 = vadd.f32 %v7778, %v7748
    %v7780 = vadd.f32 %v7779, %v7749
    %v7781 = vadd.f32 %v7780, %v7750
    %v7782 = vadd.f32 %v7781, %v7751
    %v7783 = vadd.f32 %v7782, %v7752
    %v7784 = vadd.f32 %v7783, %v7753
    %v7785 = vadd.f32 %v7784, %v7754
    %v7786 = vadd.f32 %v7785, %v7755
    %v7787 = vadd.f32 %v7786, %v7756
    %v7788 = vadd.f32 %v7787, %v7757
    %v7789 = vadd.f32 %v7788, %v7758
    %v7790 = vrot.slane %v7789, 4
    %v7791 = vadd.f32 %v7789, %v7790
    %v7792 = vrot.slane %v7791, 2
    %v7793 = vadd.f32 %v7791, %v7792
    %v7794 = vrot.slane %v7793, 1
    %v7795 = vadd.f32 %v7793, %v7794
    %v7796 = vadd.f32 %v7759, %v7760
    %v7797 = vadd.f32 %v7796, %v7761
    %v7798 = vadd.f32 %v7797, %v7762
    %v7799 = vadd.f32 %v7798, %v7763
    %v7800 = vadd.f32 %v7799, %v7764
    %v7801 = vadd.f32 %v7800, %v7765
    %v7802 = vadd.f32 %v7801, %v7766
    %v7803 = vadd.f32 %v7802, %v7767
    %v7804 = vadd.f32 %v7803, %v7768
    %v7805 = vadd.f32 %v7804, %v7769
    %v7806 = vadd.f32 %v7805, %v7770
    %v7807 = vadd.f32 %v7806, %v7771
    %v7808 = vadd.f32 %v7807, %v7772
    %v7809 = vadd.f32 %v7808, %v7773
    %v7810 = vadd.f32 %v7809, %v7774
    %v7811 = vrot.slane %v7810, 4
    %v7812 = vadd.f32 %v7810, %v7811
    %v7813 = vrot.slane %v7812, 2
    %v7814 = vadd.f32 %v7812, %v7813
    %v7815 = vrot.slane %v7814, 1
    %v7816 = vadd.f32 %v7814, %v7815
    %7817 = vmatprep.subr.mxu0 0.0
    %7818 = vmatpush1.msra.mxu0 %v53
    %7819 = vmatprep.subr.mxu0 0.0
    %7820 = vmatpush1.msra.mxu0 %v54
    %7821 = vmatprep.subr.mxu0 0.0
    %7822 = vmatpush1.msra.mxu0 %v55
    %7823 = vmatprep.subr.mxu0 0.0
    %7824 = vmatpush1.msra.mxu0 %v56
    %7825 = vmatprep.subr.mxu0 0.0
    %7826 = vmatpush1.msra.mxu0 0.0
    %7827 = vmatprep.subr.mxu0 0.0
    %7828 = vmatpush1.msra.mxu0 0.0
    %7829 = vmatprep.subr.mxu0 0.0
    %7830 = vmatpush1.msra.mxu0 0.0
    %7831 = vmatprep.subr.mxu0 0.0
    %7832 = vmatpush1.msra.mxu0 0.0
    %7833 = vmatprep.subr.mxu0 0.0
    %7834 = vmatpush1.msra.mxu0 0.0
    %7835 = vmatprep.subr.mxu0 0.0
    %7836 = vmatpush1.msra.mxu0 0.0
    %7837 = vmatprep.subr.mxu0 0.0
    %7838 = vmatpush1.msra.mxu0 0.0
    %7839 = vmatprep.subr.mxu0 0.0
    %7840 = vmatpush1.msra.mxu0 0.0
    %7841 = vmatprep.subr.mxu0 0.0
    %7842 = vmatpush1.msra.mxu0 0.0
    %7843 = vmatprep.subr.mxu0 0.0
    %7844 = vmatpush1.msra.mxu0 0.0
    %7845 = vmatprep.subr.mxu0 0.0
    %7846 = vmatpush1.msra.mxu0 0.0
    %7847 = vmatprep.subr.mxu0 0.0
    %7848 = vmatpush1.msra.mxu0 0.0
    %7849 = vmatprep.subr.mxu0 0.0
    %7850 = vmatpush1.msra.mxu0 0.0
    %7851 = vmatprep.subr.mxu0 0.0
    %7852 = vmatpush1.msra.mxu0 0.0
    %7853 = vmatprep.subr.mxu0 0.0
    %7854 = vmatpush1.msra.mxu0 0.0
    %7855 = vmatprep.subr.mxu0 0.0
    %7856 = vmatpush1.msra.mxu0 0.0
    %7857 = vmatprep.subr.mxu0 0.0
    %7858 = vmatpush1.msra.mxu0 0.0
    %7859 = vmatprep.subr.mxu0 0.0
    %7860 = vmatpush1.msra.mxu0 0.0
    %7861 = vmatprep.subr.mxu0 0.0
    %7862 = vmatpush1.msra.mxu0 0.0
    %7863 = vmatprep.subr.mxu0 0.0
    %7864 = vmatpush1.msra.mxu0 0.0
    %7865 = vmatprep.subr.mxu0 0.0
    %7866 = vmatpush1.msra.mxu0 0.0
    %7867 = vmatprep.subr.mxu0 0.0
    %7868 = vmatpush1.msra.mxu0 0.0
    %7869 = vmatprep.subr.mxu0 0.0
    %7870 = vmatpush1.msra.mxu0 0.0
    %7871 = vmatprep.subr.mxu0 0.0
    %7872 = vmatpush1.msra.mxu0 0.0
    %7873 = vmatprep.subr.mxu0 0.0
    %7874 = vmatpush1.msra.mxu0 0.0
    %7875 = vmatprep.subr.mxu0 0.0
    %7876 = vmatpush1.msra.mxu0 0.0
    %7877 = vmatprep.subr.mxu0 0.0
    %7878 = vmatpush1.msra.mxu0 0.0
    %7879 = vmatprep.subr.mxu0 0.0
    %7880 = vmatpush1.msra.mxu0 0.0
    %7881 = vmatprep.mubr.f32.mxu0 0.0
    %7882 = vmatmul.mubr.f32.gmra.mrb[0].mxu0 %v6971
    %v7883 = vpop.f32.mrb[0].mxu0
    %v7884 = vadd.f32 0.0, %v7883
    %v7885 = vpop.f32.mrb[0].mxu0
    %7886 = vdwg.mxu0
    %v7888 = vrot.slane %v7884, 1
    %v7891 = vadd.f32 %v7795, %v7884
    %v7892 = vadd.f32 %v7816, %v7888
    %v7893 = vxor.u32 %v7891, 2147483648
    %v7894 = vxor.u32 %v7892, 2147483648
    %v7895 = vmul.f32 %v7893, 1.442695
    %v7896 = vpow.pop %v7895
    %v7897 = vmul.f32 %v7894, 1.442695
    %v7898 = vpow.pop %v7897
    %v7899 = vadd.f32 %v7896, 1.0
    %v7900 = vadd.f32 %v7898, 1.0
    %v7901 = vrcp.pop %v7899
    %v7902 = vmul.f32 1.0, %v7901
    %v7903 = vrcp.pop %v7900
    %v7904 = vmul.f32 1.0, %v7903
    %v7905 = vtanh.pop %v7891
    %v7906 = vtanh.pop %v7892
    %v7907 = vmul.f32 %v7902, %v6951
    %v7908 = vmul.f32 %v7904, %v6952
    %7911 = vrot.lane.b32.xlu0 %v7905, 64
    %v7912 = vpop.permute.xlu0 %7911
    %7913 = vrot.lane.b32.xlu0 %v7906, 64
    %v7914 = vpop.permute.xlu0 %7913
    %v7917 = vmul.f32 %v7902, %v7912
    %v7918 = vmul.f32 %v7904, %v7914
    %7921 = vrot.lane.b32.xlu0 %v7917, 32
    %v7922 = vpop.permute.xlu0 %7921
    %7923 = vrot.lane.b32.xlu0 %v7918, 32
    %v7924 = vpop.permute.xlu0 %7923
    %v7927 = vadd.f32 %v7907, %v7922
    %v7928 = vadd.f32 %v7908, %v7924
    %v7929 = vtanh.pop %v7927
    %v7930 = vtanh.pop %v7928
    %7933 = vrot.lane.b32.xlu0 %v7929, 64
    %v7934 = vpop.permute.xlu0 %7933
    %7935 = vrot.lane.b32.xlu0 %v7930, 64
    %v7936 = vpop.permute.xlu0 %7935
    %v7939 = vmul.f32 %v7902, %v7934
    %v7940 = vmul.f32 %v7904, %v7936
    %v7943 = vrot.slane %v7940, 7
    %v7944 = vsel %vm1631, %v7943, %v7939
    %7945 = vrot.lane.b32.xlu0 %v7944, 32
    %v7946 = vpop.permute.xlu0 %7945
    %v7947 = vsel %vm107, %v7946, 0
    %7949 = vmatprep.subr.mxu0 0.0
    %7950 = vmatpush1.msra.mxu0 %v58
    %7951 = vmatprep.subr.mxu0 0.0
    %7952 = vmatpush1.msra.mxu0 %v59
    %7953 = vmatprep.subr.mxu0 0.0
    %7954 = vmatpush1.msra.mxu0 %v60
    %7955 = vmatprep.subr.mxu0 0.0
    %7956 = vmatpush1.msra.mxu0 %v61
    %7957 = vmatprep.subr.mxu0 0.0
    %7958 = vmatpush1.msra.mxu0 0.0
    %7959 = vmatprep.subr.mxu0 0.0
    %7960 = vmatpush1.msra.mxu0 0.0
    %7961 = vmatprep.subr.mxu0 0.0
    %7962 = vmatpush1.msra.mxu0 0.0
    %7963 = vmatprep.subr.mxu0 0.0
    %7964 = vmatpush1.msra.mxu0 0.0
    %7965 = vmatprep.subr.mxu0 0.0
    %7966 = vmatpush1.msra.mxu0 0.0
    %7967 = vmatprep.subr.mxu0 0.0
    %7968 = vmatpush1.msra.mxu0 0.0
    %7969 = vmatprep.subr.mxu0 0.0
    %7970 = vmatpush1.msra.mxu0 0.0
    %7971 = vmatprep.subr.mxu0 0.0
    %7972 = vmatpush1.msra.mxu0 0.0
    %7973 = vmatprep.subr.mxu0 0.0
    %7974 = vmatpush1.msra.mxu0 0.0
    %7975 = vmatprep.subr.mxu0 0.0
    %7976 = vmatpush1.msra.mxu0 0.0
    %7977 = vmatprep.subr.mxu0 0.0
    %7978 = vmatpush1.msra.mxu0 0.0
    %7979 = vmatprep.subr.mxu0 0.0
    %7980 = vmatpush1.msra.mxu0 0.0
    %7981 = vmatprep.subr.mxu0 0.0
    %7982 = vmatpush1.msra.mxu0 0.0
    %7983 = vmatprep.subr.mxu0 0.0
    %7984 = vmatpush1.msra.mxu0 0.0
    %7985 = vmatprep.subr.mxu0 0.0
    %7986 = vmatpush1.msra.mxu0 0.0
    %7987 = vmatprep.subr.mxu0 0.0
    %7988 = vmatpush1.msra.mxu0 0.0
    %7989 = vmatprep.subr.mxu0 0.0
    %7990 = vmatpush1.msra.mxu0 0.0
    %7991 = vmatprep.subr.mxu0 0.0
    %7992 = vmatpush1.msra.mxu0 0.0
    %7993 = vmatprep.subr.mxu0 0.0
    %7994 = vmatpush1.msra.mxu0 0.0
    %7995 = vmatprep.subr.mxu0 0.0
    %7996 = vmatpush1.msra.mxu0 0.0
    %7997 = vmatprep.subr.mxu0 0.0
    %7998 = vmatpush1.msra.mxu0 0.0
    %7999 = vmatprep.subr.mxu0 0.0
    %8000 = vmatpush1.msra.mxu0 0.0
    %8001 = vmatprep.subr.mxu0 0.0
    %8002 = vmatpush1.msra.mxu0 0.0
    %8003 = vmatprep.subr.mxu0 0.0
    %8004 = vmatpush1.msra.mxu0 0.0
    %8005 = vmatprep.subr.mxu0 0.0
    %8006 = vmatpush1.msra.mxu0 0.0
    %8007 = vmatprep.subr.mxu0 0.0
    %8008 = vmatpush1.msra.mxu0 0.0
    %8009 = vmatprep.subr.mxu0 0.0
    %8010 = vmatpush1.msra.mxu0 0.0
    %8011 = vmatprep.subr.mxu0 0.0
    %8012 = vmatpush1.msra.mxu0 0.0
    %8013 = vmatprep.mubr.f32.mxu0 0.0
    %8014 = vmatmul.mubr.f32.gmra.mrb[0].mxu0 %v7947
    %v8015 = vpop.f32.mrb[0].mxu0
    %v8016 = vadd.f32 %v1038, %v8015
    %v8017 = vpop.f32.mrb[0].mxu0
    %8018 = vdwg.mxu0
    %v8019 = vld [vmem:[#allocation2] sm:$0xff]
    %v8020 = vld [vmem:[#allocation2 + $0x8] sm:$0xff]
    %v8021 = vld [vmem:[#allocation2 + $0x10] sm:$0xff]
    %v8022 = vld [vmem:[#allocation2 + $0x18] sm:$0xff]
    %v8023 = vld [vmem:[#allocation2 + $0x20] sm:$0xff]
    %v8024 = vld [vmem:[#allocation2 + $0x28] sm:$0xff]
    %v8025 = vld [vmem:[#allocation2 + $0x30] sm:$0xff]
    %v8026 = vld [vmem:[#allocation2 + $0x38] sm:$0xff]
    %v8027 = vld [vmem:[#allocation2 + $0x40] sm:$0xff]
    %v8028 = vld [vmem:[#allocation2 + $0x48] sm:$0xff]
    %v8029 = vld [vmem:[#allocation2 + $0x50] sm:$0xff]
    %v8030 = vld [vmem:[#allocation2 + $0x58] sm:$0xff]
    %v8031 = vld [vmem:[#allocation2 + $0x60] sm:$0xff]
    %v8032 = vld [vmem:[#allocation2 + $0x68] sm:$0xff]
    %v8033 = vld [vmem:[#allocation2 + $0x70] sm:$0xff]
    %v8034 = vld [vmem:[#allocation2 + $0x78] sm:$0xff]
    %v8035 = vld [vmem:[#allocation2 + $0x80] sm:$0xff]
    %v8036 = vld [vmem:[#allocation2 + $0x88] sm:$0xff]
    %v8037 = vld [vmem:[#allocation2 + $0x90] sm:$0xff]
    %v8038 = vld [vmem:[#allocation2 + $0x98] sm:$0xff]
    %v8039 = vld [vmem:[#allocation2 + $0xa0] sm:$0xff]
    %v8040 = vld [vmem:[#allocation2 + $0xa8] sm:$0xff]
    %v8041 = vld [vmem:[#allocation2 + $0xb0] sm:$0xff]
    %v8042 = vld [vmem:[#allocation2 + $0xb8] sm:$0xff]
    %v8043 = vld [vmem:[#allocation2 + $0xc0] sm:$0xff]
    %v8044 = vld [vmem:[#allocation2 + $0xc8] sm:$0xff]
    %v8045 = vld [vmem:[#allocation2 + $0xd0] sm:$0xff]
    %v8046 = vld [vmem:[#allocation2 + $0xd8] sm:$0xff]
    %v8047 = vld [vmem:[#allocation2 + $0xe0] sm:$0xff]
    %v8048 = vld [vmem:[#allocation2 + $0xe8] sm:$0xff]
    %v8049 = vld [vmem:[#allocation2 + $0xf0] sm:$0xff]
    %v8050 = vld [vmem:[#allocation2 + $0xf8] sm:$0xff]
    %v8053 = vunpack.c.l.s4 1966171168
    %v8054 = vunpack.c.0.s8 %v8053
    %v8055 = vlaneseq
    %v8056 = vshrl.u32 %v8055, 7
    %v8057 = vsub.s32 %v8054, %v8056
    %v8058 = vrot.slane %v8016, %v8057
    %v8059 = vcombine.high %v8058, %v8058
    %v8061 = vunpack.c.l.s4 1966171168
    %v8062 = vunpack.c.0.s8 %v8061
    %v8063 = vlaneseq
    %v8064 = vshrl.u32 %v8063, 7
    %v8065 = vsub.s32 %v8062, %v8064
    %v8066 = vrot.slane %v8058, %v8065
    %v8068 = vunpack.c.l.s4 1966171168
    %v8069 = vunpack.c.0.s8 %v8068
    %v8070 = vlaneseq
    %v8071 = vshrl.u32 %v8070, 7
    %v8072 = vsub.s32 %v8069, %v8071
    %v8073 = vrot.slane %v8059, %v8072
    %v8074 = vlaneseq
    %v8075 = vshrl.u32 %v8074, 7
    %v8076 = vsub.s32 0, %v8075
    %v8077 = vrot.slane %v8066, %v8076
    %v8078 = vlaneseq
    %v8079 = vshrl.u32 %v8078, 7
    %v8080 = vsub.s32 0, %v8079
    %v8081 = vrot.slane %v8073, %v8080
    %v8084 = vadd.f32 %v8077, %v8019
    %v8085 = vadd.f32 %v8077, %v8020
    %v8086 = vadd.f32 %v8077, %v8021
    %v8087 = vadd.f32 %v8077, %v8022
    %v8088 = vadd.f32 %v8077, %v8023
    %v8089 = vadd.f32 %v8077, %v8024
    %v8090 = vadd.f32 %v8077, %v8025
    %v8091 = vadd.f32 %v8077, %v8026
    %v8092 = vadd.f32 %v8077, %v8027
    %v8093 = vadd.f32 %v8077, %v8028
    %v8094 = vadd.f32 %v8077, %v8029
    %v8095 = vadd.f32 %v8077, %v8030
    %v8096 = vadd.f32 %v8077, %v8031
    %v8097 = vadd.f32 %v8077, %v8032
    %v8098 = vadd.f32 %v8077, %v8033
    %v8099 = vadd.f32 %v8077, %v8034
    %v8100 = vadd.f32 %v8081, %v8035
    %v8101 = vadd.f32 %v8081, %v8036
    %v8102 = vadd.f32 %v8081, %v8037
    %v8103 = vadd.f32 %v8081, %v8038
    %v8104 = vadd.f32 %v8081, %v8039
    %v8105 = vadd.f32 %v8081, %v8040
    %v8106 = vadd.f32 %v8081, %v8041
    %v8107 = vadd.f32 %v8081, %v8042
    %v8108 = vadd.f32 %v8081, %v8043
    %v8109 = vadd.f32 %v8081, %v8044
    %v8110 = vadd.f32 %v8081, %v8045
    %v8111 = vadd.f32 %v8081, %v8046
    %v8112 = vadd.f32 %v8081, %v8047
    %v8113 = vadd.f32 %v8081, %v8048
    %v8114 = vadd.f32 %v8081, %v8049
    %v8115 = vadd.f32 %v8081, %v8050
    %v8116 = vtanh.pop %v8084
    %v8117 = vtanh.pop %v8085
    %v8118 = vtanh.pop %v8086
    %v8119 = vtanh.pop %v8087
    %v8120 = vtanh.pop %v8088
    %v8121 = vtanh.pop %v8089
    %v8122 = vtanh.pop %v8090
    %v8123 = vtanh.pop %v8091
    %v8124 = vtanh.pop %v8092
    %v8125 = vtanh.pop %v8093
    %v8126 = vtanh.pop %v8094
    %v8127 = vtanh.pop %v8095
    %v8128 = vtanh.pop %v8096
    %v8129 = vtanh.pop %v8097
    %v8130 = vtanh.pop %v8098
    %v8131 = vtanh.pop %v8099
    %v8132 = vtanh.pop %v8100
    %v8133 = vtanh.pop %v8101
    %v8134 = vtanh.pop %v8102
    %v8135 = vtanh.pop %v8103
    %v8136 = vtanh.pop %v8104
    %v8137 = vtanh.pop %v8105
    %v8138 = vtanh.pop %v8106
    %v8139 = vtanh.pop %v8107
    %v8140 = vtanh.pop %v8108
    %v8141 = vtanh.pop %v8109
    %v8142 = vtanh.pop %v8110
    %v8143 = vtanh.pop %v8111
    %v8144 = vtanh.pop %v8112
    %v8145 = vtanh.pop %v8113
    %v8146 = vtanh.pop %v8114
    %v8147 = vtanh.pop %v8115
    %v8148 = vmul.f32 %v8116, %v1248
    %v8149 = vmul.f32 %v8117, %v1248
    %v8150 = vmul.f32 %v8118, %v1248
    %v8151 = vmul.f32 %v8119, %v1248
    %v8152 = vmul.f32 %v8120, %v1248
    %v8153 = vmul.f32 %v8121, %v1248
    %v8154 = vmul.f32 %v8122, %v1248
    %v8155 = vmul.f32 %v8123, %v1248
    %v8156 = vmul.f32 %v8124, %v1248
    %v8157 = vmul.f32 %v8125, %v1248
    %v8158 = vmul.f32 %v8126, %v1248
    %v8159 = vmul.f32 %v8127, %v1248
    %v8160 = vmul.f32 %v8128, %v1248
    %v8161 = vmul.f32 %v8129, %v1248
    %v8162 = vmul.f32 %v8130, %v1248
    %v8163 = vmul.f32 %v8131, %v1248
    %v8164 = vmul.f32 %v8132, %v1248
    %v8165 = vmul.f32 %v8133, %v1248
    %v8166 = vmul.f32 %v8134, %v1248
    %v8167 = vmul.f32 %v8135, %v1248
    %v8168 = vmul.f32 %v8136, %v1248
    %v8169 = vmul.f32 %v8137, %v1248
    %v8170 = vmul.f32 %v8138, %v1248
    %v8171 = vmul.f32 %v8139, %v1248
    %v8172 = vmul.f32 %v8140, %v1248
    %v8173 = vmul.f32 %v8141, %v1248
    %v8174 = vmul.f32 %v8142, %v1248
    %v8175 = vmul.f32 %v8143, %v1248
    %v8176 = vmul.f32 %v8144, %v1248
    %v8177 = vmul.f32 %v8145, %v1248
    %v8178 = vmul.f32 %v8146, %v1248
    %v8179 = vmul.f32 %v8147, %v1248
    %v8180 = vsel %vm107, %v8148, 0.0
    %8181 = vadd.xlane.f32.xlu0 %v8180
    %v8182 = vpop.xlane.xlu0 %8181
    %v8183 = vsel %vm107, %v8149, 0.0
    %8184 = vadd.xlane.f32.xlu0 %v8183
    %v8185 = vpop.xlane.xlu0 %8184
    %v8186 = vsel %vm107, %v8150, 0.0
    %8187 = vadd.xlane.f32.xlu0 %v8186
    %v8188 = vpop.xlane.xlu0 %8187
    %v8189 = vsel %vm107, %v8151, 0.0
    %8190 = vadd.xlane.f32.xlu0 %v8189
    %v8191 = vpop.xlane.xlu0 %8190
    %v8192 = vsel %vm107, %v8152, 0.0
    %8193 = vadd.xlane.f32.xlu0 %v8192
    %v8194 = vpop.xlane.xlu0 %8193
    %v8195 = vsel %vm107, %v8153, 0.0
    %8196 = vadd.xlane.f32.xlu0 %v8195
    %v8197 = vpop.xlane.xlu0 %8196
    %v8198 = vsel %vm107, %v8154, 0.0
    %8199 = vadd.xlane.f32.xlu0 %v8198
    %v8200 = vpop.xlane.xlu0 %8199
    %v8201 = vsel %vm107, %v8155, 0.0
    %8202 = vadd.xlane.f32.xlu0 %v8201
    %v8203 = vpop.xlane.xlu0 %8202
    %v8204 = vsel %vm107, %v8156, 0.0
    %8205 = vadd.xlane.f32.xlu0 %v8204
    %v8206 = vpop.xlane.xlu0 %8205
    %v8207 = vsel %vm107, %v8157, 0.0
    %8208 = vadd.xlane.f32.xlu0 %v8207
    %v8209 = vpop.xlane.xlu0 %8208
    %v8210 = vsel %vm107, %v8158, 0.0
    %8211 = vadd.xlane.f32.xlu0 %v8210
    %v8212 = vpop.xlane.xlu0 %8211
    %v8213 = vsel %vm107, %v8159, 0.0
    %8214 = vadd.xlane.f32.xlu0 %v8213
    %v8215 = vpop.xlane.xlu0 %8214
    %v8216 = vsel %vm107, %v8160, 0.0
    %8217 = vadd.xlane.f32.xlu0 %v8216
    %v8218 = vpop.xlane.xlu0 %8217
    %v8219 = vsel %vm107, %v8161, 0.0
    %8220 = vadd.xlane.f32.xlu0 %v8219
    %v8221 = vpop.xlane.xlu0 %8220
    %v8222 = vsel %vm107, %v8162, 0.0
    %8223 = vadd.xlane.f32.xlu0 %v8222
    %v8224 = vpop.xlane.xlu0 %8223
    %v8225 = vsel %vm107, %v8163, 0.0
    %8226 = vadd.xlane.f32.xlu0 %v8225
    %v8227 = vpop.xlane.xlu0 %8226
    %v8228 = vsel %vm107, %v8164, 0.0
    %8229 = vadd.xlane.f32.xlu0 %v8228
    %v8230 = vpop.xlane.xlu0 %8229
    %v8231 = vsel %vm107, %v8165, 0.0
    %8232 = vadd.xlane.f32.xlu0 %v8231
    %v8233 = vpop.xlane.xlu0 %8232
    %v8234 = vsel %vm107, %v8166, 0.0
    %8235 = vadd.xlane.f32.xlu0 %v8234
    %v8236 = vpop.xlane.xlu0 %8235
    %v8237 = vsel %vm107, %v8167, 0.0
    %8238 = vadd.xlane.f32.xlu0 %v8237
    %v8239 = vpop.xlane.xlu0 %8238
    %v8240 = vsel %vm107, %v8168, 0.0
    %8241 = vadd.xlane.f32.xlu0 %v8240
    %v8242 = vpop.xlane.xlu0 %8241
    %v8243 = vsel %vm107, %v8169, 0.0
    %8244 = vadd.xlane.f32.xlu0 %v8243
    %v8245 = vpop.xlane.xlu0 %8244
    %v8246 = vsel %vm107, %v8170, 0.0
    %8247 = vadd.xlane.f32.xlu0 %v8246
    %v8248 = vpop.xlane.xlu0 %8247
    %v8249 = vsel %vm107, %v8171, 0.0
    %8250 = vadd.xlane.f32.xlu0 %v8249
    %v8251 = vpop.xlane.xlu0 %8250
    %v8252 = vsel %vm107, %v8172, 0.0
    %8253 = vadd.xlane.f32.xlu0 %v8252
    %v8254 = vpop.xlane.xlu0 %8253
    %v8255 = vsel %vm107, %v8173, 0.0
    %8256 = vadd.xlane.f32.xlu0 %v8255
    %v8257 = vpop.xlane.xlu0 %8256
    %v8258 = vsel %vm107, %v8174, 0.0
    %8259 = vadd.xlane.f32.xlu0 %v8258
    %v8260 = vpop.xlane.xlu0 %8259
    %v8261 = vsel %vm107, %v8175, 0.0
    %8262 = vadd.xlane.f32.xlu0 %v8261
    %v8263 = vpop.xlane.xlu0 %8262
    %v8264 = vsel %vm107, %v8176, 0.0
    %8265 = vadd.xlane.f32.xlu0 %v8264
    %v8266 = vpop.xlane.xlu0 %8265
    %v8267 = vsel %vm107, %v8177, 0.0
    %8268 = vadd.xlane.f32.xlu0 %v8267
    %v8269 = vpop.xlane.xlu0 %8268
    %v8270 = vsel %vm107, %v8178, 0.0
    %8271 = vadd.xlane.f32.xlu0 %v8270
    %v8272 = vpop.xlane.xlu0 %8271
    %v8273 = vsel %vm107, %v8179, 0.0
    %8274 = vadd.xlane.f32.xlu0 %v8273
    %v8275 = vpop.xlane.xlu0 %8274
    %vm8276 = vcmp.eq.f32.partialorder %v7576, 0.0
    %v8309 = vlaneseq
    %v8310 = vshrl.u32 %v8309, 7
    %v8311 = vsub.s32 %v928, %v8310
    %v8312 = vrot.slane %v8182, %v8311
    %v8313 = vlaneseq
    %v8314 = vshrl.u32 %v8313, 7
    %v8315 = vsub.s32 %v1447, %v8314
    %v8316 = vrot.slane %v8185, %v8315
    %v8317 = vsel %vm1452, %v8316, %v8312
    %v8318 = vlaneseq
    %v8319 = vshrl.u32 %v8318, 7
    %v8320 = vsub.s32 %v1454, %v8319
    %v8321 = vrot.slane %v8188, %v8320
    %v8322 = vsel %vm1459, %v8321, %v8317
    %v8323 = vlaneseq
    %v8324 = vshrl.u32 %v8323, 7
    %v8325 = vsub.s32 %v1461, %v8324
    %v8326 = vrot.slane %v8191, %v8325
    %v8327 = vsel %vm1466, %v8326, %v8322
    %v8328 = vlaneseq
    %v8329 = vshrl.u32 %v8328, 7
    %v8330 = vsub.s32 %v1468, %v8329
    %v8331 = vrot.slane %v8194, %v8330
    %v8332 = vsel %vm1473, %v8331, %v8327
    %v8333 = vlaneseq
    %v8334 = vshrl.u32 %v8333, 7
    %v8335 = vsub.s32 %v1475, %v8334
    %v8336 = vrot.slane %v8197, %v8335
    %v8337 = vsel %vm1480, %v8336, %v8332
    %v8338 = vlaneseq
    %v8339 = vshrl.u32 %v8338, 7
    %v8340 = vsub.s32 %v1482, %v8339
    %v8341 = vrot.slane %v8200, %v8340
    %v8342 = vsel %vm1487, %v8341, %v8337
    %v8343 = vlaneseq
    %v8344 = vshrl.u32 %v8343, 7
    %v8345 = vsub.s32 %v1489, %v8344
    %v8346 = vrot.slane %v8203, %v8345
    %v8347 = vsel %vm1494, %v8346, %v8342
    %v8348 = vlaneseq
    %v8349 = vshrl.u32 %v8348, 7
    %v8350 = vsub.s32 %v1496, %v8349
    %v8351 = vrot.slane %v8206, %v8350
    %v8352 = vsel %vm1501, %v8351, %v8347
    %v8353 = vlaneseq
    %v8354 = vshrl.u32 %v8353, 7
    %v8355 = vsub.s32 %v1503, %v8354
    %v8356 = vrot.slane %v8209, %v8355
    %v8357 = vsel %vm1508, %v8356, %v8352
    %v8358 = vlaneseq
    %v8359 = vshrl.u32 %v8358, 7
    %v8360 = vsub.s32 %v1510, %v8359
    %v8361 = vrot.slane %v8212, %v8360
    %v8362 = vsel %vm1515, %v8361, %v8357
    %v8363 = vlaneseq
    %v8364 = vshrl.u32 %v8363, 7
    %v8365 = vsub.s32 %v1517, %v8364
    %v8366 = vrot.slane %v8215, %v8365
    %v8367 = vsel %vm1522, %v8366, %v8362
    %v8368 = vlaneseq
    %v8369 = vshrl.u32 %v8368, 7
    %v8370 = vsub.s32 %v1524, %v8369
    %v8371 = vrot.slane %v8218, %v8370
    %v8372 = vsel %vm1529, %v8371, %v8367
    %v8373 = vlaneseq
    %v8374 = vshrl.u32 %v8373, 7
    %v8375 = vsub.s32 %v1531, %v8374
    %v8376 = vrot.slane %v8221, %v8375
    %v8377 = vsel %vm1536, %v8376, %v8372
    %v8378 = vlaneseq
    %v8379 = vshrl.u32 %v8378, 7
    %v8380 = vsub.s32 %v1538, %v8379
    %v8381 = vrot.slane %v8224, %v8380
    %v8382 = vsel %vm1543, %v8381, %v8377
    %v8383 = vlaneseq
    %v8384 = vshrl.u32 %v8383, 7
    %v8385 = vsub.s32 %v1545, %v8384
    %v8386 = vrot.slane %v8227, %v8385
    %v8387 = vsel %vm1550, %v8386, %v8382
    %v8388 = vlaneseq
    %v8389 = vshrl.u32 %v8388, 7
    %v8390 = vsub.s32 %v928, %v8389
    %v8391 = vrot.slane %v8230, %v8390
    %v8392 = vlaneseq
    %v8393 = vshrl.u32 %v8392, 7
    %v8394 = vsub.s32 %v1447, %v8393
    %v8395 = vrot.slane %v8233, %v8394
    %v8396 = vsel %vm1452, %v8395, %v8391
    %v8397 = vlaneseq
    %v8398 = vshrl.u32 %v8397, 7
    %v8399 = vsub.s32 %v1454, %v8398
    %v8400 = vrot.slane %v8236, %v8399
    %v8401 = vsel %vm1459, %v8400, %v8396
    %v8402 = vlaneseq
    %v8403 = vshrl.u32 %v8402, 7
    %v8404 = vsub.s32 %v1461, %v8403
    %v8405 = vrot.slane %v8239, %v8404
    %v8406 = vsel %vm1466, %v8405, %v8401
    %v8407 = vlaneseq
    %v8408 = vshrl.u32 %v8407, 7
    %v8409 = vsub.s32 %v1468, %v8408
    %v8410 = vrot.slane %v8242, %v8409
    %v8411 = vsel %vm1473, %v8410, %v8406
    %v8412 = vlaneseq
    %v8413 = vshrl.u32 %v8412, 7
    %v8414 = vsub.s32 %v1475, %v8413
    %v8415 = vrot.slane %v8245, %v8414
    %v8416 = vsel %vm1480, %v8415, %v8411
    %v8417 = vlaneseq
    %v8418 = vshrl.u32 %v8417, 7
    %v8419 = vsub.s32 %v1482, %v8418
    %v8420 = vrot.slane %v8248, %v8419
    %v8421 = vsel %vm1487, %v8420, %v8416
    %v8422 = vlaneseq
    %v8423 = vshrl.u32 %v8422, 7
    %v8424 = vsub.s32 %v1489, %v8423
    %v8425 = vrot.slane %v8251, %v8424
    %v8426 = vsel %vm1494, %v8425, %v8421
    %v8427 = vlaneseq
    %v8428 = vshrl.u32 %v8427, 7
    %v8429 = vsub.s32 %v1496, %v8428
    %v8430 = vrot.slane %v8254, %v8429
    %v8431 = vsel %vm1501, %v8430, %v8426
    %v8432 = vlaneseq
    %v8433 = vshrl.u32 %v8432, 7
    %v8434 = vsub.s32 %v1503, %v8433
    %v8435 = vrot.slane %v8257, %v8434
    %v8436 = vsel %vm1508, %v8435, %v8431
    %v8437 = vlaneseq
    %v8438 = vshrl.u32 %v8437, 7
    %v8439 = vsub.s32 %v1510, %v8438
    %v8440 = vrot.slane %v8260, %v8439
    %v8441 = vsel %vm1515, %v8440, %v8436
    %v8442 = vlaneseq
    %v8443 = vshrl.u32 %v8442, 7
    %v8444 = vsub.s32 %v1517, %v8443
    %v8445 = vrot.slane %v8263, %v8444
    %v8446 = vsel %vm1522, %v8445, %v8441
    %v8447 = vlaneseq
    %v8448 = vshrl.u32 %v8447, 7
    %v8449 = vsub.s32 %v1524, %v8448
    %v8450 = vrot.slane %v8266, %v8449
    %v8451 = vsel %vm1529, %v8450, %v8446
    %v8452 = vlaneseq
    %v8453 = vshrl.u32 %v8452, 7
    %v8454 = vsub.s32 %v1531, %v8453
    %v8455 = vrot.slane %v8269, %v8454
    %v8456 = vsel %vm1536, %v8455, %v8451
    %v8457 = vlaneseq
    %v8458 = vshrl.u32 %v8457, 7
    %v8459 = vsub.s32 %v1538, %v8458
    %v8460 = vrot.slane %v8272, %v8459
    %v8461 = vsel %vm1543, %v8460, %v8456
    %v8462 = vlaneseq
    %v8463 = vshrl.u32 %v8462, 7
    %v8464 = vsub.s32 %v1545, %v8463
    %v8465 = vrot.slane %v8275, %v8464
    %v8466 = vsel %vm1550, %v8465, %v8461
    %v8467 = vsel %vm1631, %v8466, %v8387
    %v8469 = vsel %vm8276, -10.0, %v8467
    %v8470 = vsel %vm929, %v8469, -1e+30
    %v8471 = vsel %vm8276, -1e+09, %v8470
    %v8472 = vsel %vm1636, %v8471, -inf
    %8473 = vmax.xlane.f32.xlu0 %v8472
    %v8474 = vpop.xlane.xlu0 %8473
    %vm8475 = vcmp.eq.f32.partialorder %v8471, %v8474
    %v8476 = vsel %vm8475, %v928, 128
    %v8477 = vsel %vm1636, %v8476, 2147483647
    %v8478 = vand.u32 %v8477, 65535
    %v8479 = vshra.s32 %v8477, 16
    %v8480 = vcvt.s32.f32 %v8478
    %v8481 = vcvt.s32.f32 %v8479
    %8482 = vmin.xlane.f32.xlu0 %v8481
    %v8483 = vpop.xlane.xlu0 %8482
    %vm8484 = vcmp.eq.f32.partialorder %v8481, %v8483
    %v8485 = vsel %vm8484, %v8480, inf
    %8486 = vmin.xlane.f32.xlu0 %v8485
    %v8487 = vpop.xlane.xlu0 %8486
    %v8488 = vcvt.f32.s32 %v8487
    %v8489 = vcvt.f32.s32 %v8483
    %v8490 = vshll.u32 %v8489, 16
    %v8491 = vadd.s32 %v8490, %v8488
    %v8492 = vsel %vm1636, %v8470, -inf
    %8493 = vmax.xlane.f32.xlu0 %v8492
    %v8494 = vpop.xlane.xlu0 %8493
    %v8495 = vsub.f32 %v8470, %v8494
    %v8496 = vmul.f32 %v8495, 1.442695
    %v8497 = vpow.pop %v8496
    %v8498 = vsel %vm1636, %v8497, 0.0
    %8499 = vadd.xlane.f32.xlu0 %v8498
    %v8500 = vpop.xlane.xlu0 %8499
    %v8501 = vrcp.pop %v8500
    %v8502 = vmul.f32 %v8500, %v8501
    %v8503 = vsub.f32 2.0, %v8502
    %v8504 = vmul.f32 %v8501, %v8503
    %v8505 = vmul.f32 %v8497, %v8504
    %v8506 = vsel %vm929, %v8505, -1e+30
    %v8507 = vsel %vm1636, %v8506, -inf
    %8508 = vmax.xlane.f32.xlu0 %v8507
    %v8509 = vpop.xlane.xlu0 %8508
    %v8510 = vsub.f32 %v8506, %v8509
    %v8511 = vmul.f32 %v8510, 1.442695
    %v8512 = vpow.pop %v8511
    %v8513 = vsel %vm1636, %v8512, 0.0
    %8514 = vadd.xlane.f32.xlu0 %v8513
    %v8515 = vpop.xlane.xlu0 %8514
    %v8516 = vlog2.pop %v8515
    %v8517 = vmul.f32 %v8516, 0.6931472
    %v8518 = vsub.f32 %v8510, %v8517
    %v8521 = vunpack.c.l.s4 1966171168
    %v8522 = vunpack.c.0.s8 %v8521
    %v8523 = vlaneseq
    %v8524 = vshrl.u32 %v8523, 7
    %v8525 = vsub.s32 %v8522, %v8524
    %v8526 = vrot.slane %v8518, %v8525
    %v8527 = vcombine.high %v8526, %v8526
    %v8529 = vunpack.c.l.s4 1966171168
    %v8530 = vunpack.c.0.s8 %v8529
    %v8531 = vlaneseq
    %v8532 = vshrl.u32 %v8531, 7
    %v8533 = vsub.s32 %v8530, %v8532
    %v8534 = vrot.slane %v8526, %v8533
    %v8536 = vunpack.c.l.s4 1966171168
    %v8537 = vunpack.c.0.s8 %v8536
    %v8538 = vlaneseq
    %v8539 = vshrl.u32 %v8538, 7
    %v8540 = vsub.s32 %v8537, %v8539
    %v8541 = vrot.slane %v8527, %v8540
    %8544 = vst [vmem:[#allocation4 + $0x7] sm:$0x1] %v8534
    %8545 = vst [vmem:[#allocation4 + $0xf] sm:$0x1] %v8541
    %vm8546 = vcmp.eq.s32.totalorder %v928, 7
    %v8547 = vsel %vm8546, %v8491, %v7574
    %vm8549 = vcmask 254976
    %8550 = vst.msk [vmem:[#allocation8] sm:$0x3] %vm8549, %v7946
    %v8553 = vrot.slane %v7928, 7
    %v8554 = vsel %vm1631, %v8553, %v7927
    %8555 = vrot.lane.b32.xlu0 %v8554, 96
    %v8556 = vpop.permute.xlu0 %8555
    %8558 = vst.msk [vmem:[#allocation9] sm:$0x3] %vm8549, %v8556
    %vm8559 = vcmask 58368
    %8560 = vst.msk [vmem:[#allocation6] sm:$0x3] %vm8559, %v8547
    // Predicated region
    $region54: #{tpu_custom_call.1} parent=1 // pred_check
      _
    $region55: #{tpu_custom_call.1} parent=1 // pred_check_branch
      %8562 = sbr.rel (0) target = $region57
    $region56: #{tpu_custom_call.1} parent=1 // pred_region
      %s8564 = ssub.s32 256, 256
      %8565 = vsyncadd [#allocation5], %s8564
      %s8566 = sshll.u32 [#allocation4], 4
      %s8567 = int_to_ptr.vmem [resolvable:$true] %s8566
      %8572 = dma.vmem_to_hbm [thread:$0]  %s8567, 256, %s13, [#allocation5], 128, 128, 8
    $region57: #{tpu_custom_call.1} parent=1 // pred_fallthru
      _
    // Predicated region
    $region58: #{tpu_custom_call.1} parent=1 // pred_check
      _
    $region59: #{tpu_custom_call.1} parent=1 // pred_check_branch
      %8574 = sbr.rel (0) target = $region61
    $region60: #{tpu_custom_call.1} parent=1 // pred_region
      %s8576 = ssub.s32 32, 32
      %8577 = vsyncadd [#allocation7], %s8576
      %s8579 = sshll.u32 [#allocation6], 4
      %s8580 = int_to_ptr.vmem [resolvable:$true] %s8579
      %8582 = dma.vmem_to_hbm [thread:$0]  %s8580, 32, %s14, [#allocation7]
    $region61: #{tpu_custom_call.1} parent=1 // pred_fallthru
      _
    // Predicated region
    $region62: #{tpu_custom_call.1} parent=1 // pred_check
      _
    $region63: #{tpu_custom_call.1} parent=1 // pred_check_branch
      %8584 = sbr.rel (0) target = $region65
    $region64: #{tpu_custom_call.1} parent=1 // pred_region
      %s8586 = ssub.s32 32, 32
      %8587 = vsyncadd [#allocation7], %s8586
      %s8589 = sshll.u32 [#allocation8], 4
      %s8590 = int_to_ptr.vmem [resolvable:$true] %s8589
      %8592 = dma.vmem_to_hbm [thread:$0]  %s8590, 32, %s15, [#allocation7]
    $region65: #{tpu_custom_call.1} parent=1 // pred_fallthru
      _
    // Predicated region
    $region66: #{tpu_custom_call.1} parent=1 // pred_check
      _
    $region67: #{tpu_custom_call.1} parent=1 // pred_check_branch
      %8594 = sbr.rel (0) target = $region69
    $region68: #{tpu_custom_call.1} parent=1 // pred_region
      %s8596 = ssub.s32 32, 32
      %8597 = vsyncadd [#allocation10], %s8596
      %s8599 = sshll.u32 [#allocation9], 4
      %s8600 = int_to_ptr.vmem [resolvable:$true] %s8599
      %8602 = dma.vmem_to_hbm [thread:$0]  %s8600, 32, %s16, [#allocation10]
    $region69: #{tpu_custom_call.1} parent=1 // pred_fallthru
      _
    // Predicated region
    $region70: #{tpu_custom_call.1} parent=1 // pred_check
      _
    $region71: #{tpu_custom_call.1} parent=1 // pred_check_branch
      %8604 = sbr.rel (0) target = $region73
    $region72: #{tpu_custom_call.1} parent=1 // pred_region
      %8605 = dma.done [#allocation5], 256
    $region73: #{tpu_custom_call.1} parent=1 // pred_fallthru
      _
    // Predicated region
    $region74: #{tpu_custom_call.1} parent=1 // pred_check
      _
    $region75: #{tpu_custom_call.1} parent=1 // pred_check_branch
      %8607 = sbr.rel (0) target = $region77
    $region76: #{tpu_custom_call.1} parent=1 // pred_region
      %8608 = dma.done [#allocation7], 32
    $region77: #{tpu_custom_call.1} parent=1 // pred_fallthru
      _
    // Predicated region
    $region78: #{tpu_custom_call.1} parent=1 // pred_check
      _
    $region79: #{tpu_custom_call.1} parent=1 // pred_check_branch
      %8610 = sbr.rel (0) target = $region81
    $region80: #{tpu_custom_call.1} parent=1 // pred_region
      %8611 = dma.done [#allocation7], 32
    $region81: #{tpu_custom_call.1} parent=1 // pred_fallthru
      _
    // Predicated region
    $region82: #{tpu_custom_call.1} parent=1 // pred_check
      _
    $region83: #{tpu_custom_call.1} parent=1 // pred_check_branch
      %8613 = sbr.rel (0) target = $region85
    $region84: #{tpu_custom_call.1} parent=1 // pred_region
      %8614 = dma.done [#allocation10], 32
    $region85: #{tpu_custom_call.1} parent=1 // pred_fallthru
      _
    %8615 = vsyncpa [#allocation5], 1
    %8616 = vsyncpa [#allocation7], 1
    %8617 = vsyncpa [#allocation10], 1

</llo_original>
